<compile_context>
chip_gen: v6e
topology: v6e:2x2x1
jax: 0.10.0
libtpu: 0.0.40
codegen_flags: <defaults>
</compile_context>

<pallas_src>
import math
from functools import partial

import jax
import jax.numpy as jnp
from jax import lax
from jax.experimental import pallas as pl
from jax.experimental.pallas import tpu as pltpu

HIDDEN = 32           # d_model / hidden (PyTorch default 256, shrunk for demo)
HEADS = 2
HEAD_DIM = HIDDEN // HEADS
IN_FEATS = 7          # self.lin = nn.Linear(7, hidden)
IN_PAD = 8            # pad contraction dim 7 -> 8 (sublane aligned)
LN_EPS = 1e-5
BN_EPS = 1e-5
SAG_RATIO = 0.5
NUM_STAGES = 4
NEG_INF = -1e30

# dot_general dimension numbers: contract the last dim of both operands (A @ B^T)
DN_LAST = (((1,), (1,)), ((), ()))


# ----------------------------------------------------------------------------
# Transformer encoder layer (post-norm, eval) on masked node set
# ----------------------------------------------------------------------------
def _transformer_block(x, mask_row, wqkv, bqkv, wo, bo, w1, b1, w2, b2,
                       ln1g, ln1b, ln2g, ln2b):
    """mask_row (1,n): 1.0 for nodes still alive -> softmax keys of dropped
    nodes are masked out.  1/sqrt(head_dim) is folded into wqkv/bqkv (Q part)."""
    f32 = jnp.float32
    n, h = x.shape
    qkv = jnp.dot(x, wqkv, preferred_element_type=f32) + bqkv          # (n, 3H)
    key_ok = mask_row > 0.5                                            # (1, n)

    attn = jnp.zeros((n, h), f32)
    for hd in range(HEADS):                                            # HEADS == 2
        lo = hd * HEAD_DIM
        q = qkv[:, lo:lo + HEAD_DIM]
        k = qkv[:, h + lo:h + lo + HEAD_DIM]
        v = qkv[:, 2 * h + lo:2 * h + lo + HEAD_DIM]
        s = lax.dot_general(q, k, DN_LAST, preferred_element_type=f32)  # q @ k^T
        s = jnp.where(key_ok, s, NEG_INF)                               # drop dead keys
        s = s - jnp.max(s, axis=-1, keepdims=True)
        p = jnp.exp(s)
        p = p * pl.reciprocal(jnp.sum(p, axis=-1, keepdims=True), approx=True)
        o = jnp.dot(p, v, preferred_element_type=f32)                   # (n, HEAD_DIM)
        # concat(o_0, o_1) @ Wo == sum_h o_h @ Wo[h*D:(h+1)*D, :]  (no concat)
        attn = attn + jnp.dot(o, wo[lo:lo + HEAD_DIM, :], preferred_element_type=f32)
    attn = attn + bo

    # residual + LayerNorm1
    y = x + attn
    mu = jnp.mean(y, axis=-1, keepdims=True)
    var = jnp.mean((y - mu) ** 2, axis=-1, keepdims=True)
    y = (y - mu) * lax.rsqrt(var + LN_EPS) * ln1g + ln1b

    # feed-forward (relu) + residual + LayerNorm2
    f = jnp.maximum(jnp.dot(y, w1, preferred_element_type=f32) + b1, 0.0)
    f = jnp.dot(f, w2, preferred_element_type=f32) + b2
    z = y + f
    mu2 = jnp.mean(z, axis=-1, keepdims=True)
    var2 = jnp.mean((z - mu2) ** 2, axis=-1, keepdims=True)
    return (z - mu2) * lax.rsqrt(var2 + LN_EPS) * ln2g + ln2b


# ----------------------------------------------------------------------------
# Fully fused forward kernel (all 4 stages + SAG top-k + final mean pool)
# ----------------------------------------------------------------------------
def _fused_kernel(x_ref, adj_ref, a_ref, lin_w_ref, lin_b_ref,
                  wqkv_ref, bqkv_ref, wo_ref, bo_ref,
                  w1_ref, b1_ref, w2_ref, b2_ref,
                  ln1g_ref, ln1b_ref, ln2g_ref, ln2b_ref,
                  conv_w_ref, conv_b_ref, fc_w_ref, fc_b_ref,
                  bns_ref, bnh_ref, wrel_ref, wroot_ref, brel_ref,
                  o_ref, *, keep_ks):
    f32 = jnp.float32
    n = adj_ref.shape[0]

    # Input projection Linear(7->H) on zero-padded features
    x = (jnp.dot(x_ref[...], lin_w_ref[...], preferred_element_type=f32)
         + lin_b_ref[...])
    adj = adj_ref[...]
    a_mix = a_ref[0]                                   # blend scalar (SMEM)

    ones_1h = jnp.ones((1, HIDDEN), f32)

    def to_row(v_col, exact01):
        """(n,1) -> (1,n) without transposes/reshapes: ones(1,H) @ bcast(v)^T
        on the MXU.  exact01=True snaps the result back to exact {0,1}."""
        v_nh = jnp.broadcast_to(v_col, (n, HIDDEN))
        r = lax.dot_general(ones_1h, v_nh, DN_LAST, preferred_element_type=f32)
        if exact01:
            return jnp.where(r > 0.5 * HIDDEN, 1.0, 0.0)
        return r * (1.0 / HIDDEN)

    row_i = lax.broadcasted_iota(jnp.int32, (n, n), 0)
    col_j = lax.broadcasted_iota(jnp.int32, (n, n), 1)

    mask = jnp.ones((n, 1), f32)                       # 1.0 = node still alive
    num_stages = len(keep_ks)
    for s in range(num_stages):
        mask_row = to_row(mask, exact01=True)          # (1, n): alive(j)

        if s < num_stages - 1:                         # stage 4 has no transformer
            xt = _transformer_block(
                x, mask_row,
                wqkv_ref[...], bqkv_ref[...], wo_ref[...], bo_ref[...],
                w1_ref[...], b1_ref[...], w2_ref[...], b2_ref[...],
                ln1g_ref[...], ln1b_ref[...], ln2g_ref[...], ln2b_ref[...])
            x = a_mix * xt + (1.0 - a_mix) * x

        # --- GCNConv on surviving sub-graph: D^-1/2 (A+I) D^-1/2 X W + b -----
        adj_m = adj * mask * mask_row                  # edges touching dead nodes -> 0
        deg = jnp.sum(adj_m, axis=-1, keepdims=True) + 1.0   # analytic self-loop
        dinv = lax.rsqrt(deg)
        xw = jnp.dot(x, conv_w_ref[s], preferred_element_type=f32)
        h = (dinv * jnp.dot(adj_m, dinv * xw, preferred_element_type=f32)
             + (dinv * dinv) * xw + conv_b_ref[s])

        # --- relu(fc) then BatchNorm1d (eval) folded to scale/shift ----------
        h = jnp.maximum(
            jnp.dot(h, fc_w_ref[s], preferred_element_type=f32) + fc_b_ref[s],
            0.0)
        h = h * bns_ref[s] + bnh_ref[s]

        # --- SAGPooling score: GraphConv(H,1) via lane reductions ------------
        aggr = jnp.dot(adj_m, h, preferred_element_type=f32)
        contrib = aggr * wrel_ref[s] + h * wroot_ref[s]                # (n, H)
        sc = jnp.sum(contrib, axis=-1, keepdims=True)                  # (n, 1)
        score = sc + brel_ref[s]                                       # + bias

        # --- in-kernel top-k over alive nodes (pairwise rank, ties by index) -
        sc_row = to_row(sc, exact01=False)                             # (1, n)
        beats = jnp.logical_and(
            row_i != col_j,
            jnp.logical_or(sc_row > sc,
                           jnp.logical_and(sc_row == sc, col_j < row_i)))
        rank = jnp.sum(jnp.where(beats, mask_row, 0.0), axis=-1, keepdims=True)
        mask = mask * jnp.where(rank < float(keep_ks[s]), 1.0, 0.0)

        # SAGPooling output features; dropped rows zeroed instead of gathered
        x = h * jnp.tanh(score) * mask

    # --- global_mean_pool over the finally-kept nodes -------------------------
    o_ref[...] = (jnp.dot(jnp.ones((1, n), f32), x, preferred_element_type=f32)
                  * (1.0 / float(keep_ks[-1])))


# ----------------------------------------------------------------------------
# Parameters (deterministic synthetic init; PyTorch weights stored as W^T)
# ----------------------------------------------------------------------------
def init_params(key):
    H = HIDDEN

    def dense(k, shape, scale=0.1):
        return (scale * jax.random.normal(k, shape)).astype(jnp.float32)

    keys = iter(jax.random.split(key, 64))
    nk = lambda: next(keys)

    lin_w = dense(nk(), (IN_FEATS, H))
    lin_w = jnp.pad(lin_w, ((0, IN_PAD - IN_FEATS), (0, 0)))   # zero row for padded feat

    # fold 1/sqrt(HEAD_DIM) attention scale into the Q projection
    scale = 1.0 / math.sqrt(HEAD_DIM)
    wqkv = dense(nk(), (H, 3 * H)).at[:, :H].multiply(scale)
    bqkv = dense(nk(), (1, 3 * H)).at[:, :H].multiply(scale)

    p = {
        "a": jnp.full((1, 1), 0.01, jnp.float32),          # nn.Parameter(weight)
        "lin_w": lin_w,
        "lin_b": dense(nk(), (1, H)),
        "t_wqkv": wqkv,
        "t_bqkv": bqkv,
        "t_wo": dense(nk(), (H, H)),
        "t_bo": dense(nk(), (1, H)),
        "t_w1": dense(nk(), (H, H)),
        "t_b1": dense(nk(), (1, H)),
        "t_w2": dense(nk(), (H, H)),
        "t_b2": dense(nk(), (1, H)),
        "t_ln1_g": jnp.ones((1, H), jnp.float32),
        "t_ln1_b": jnp.zeros((1, H), jnp.float32),
        "t_ln2_g": jnp.ones((1, H), jnp.float32),
        "t_ln2_b": jnp.zeros((1, H), jnp.float32),
    }
    for i in (1, 2, 3, 4):
        p[f"conv{i}_w"] = dense(nk(), (H, H))
        p[f"conv{i}_b"] = dense(nk(), (1, H))
        p[f"fc{i}_w"] = dense(nk(), (H, H))
        p[f"fc{i}_b"] = dense(nk(), (1, H))
        p[f"bn{i}_g"] = jnp.ones((1, H), jnp.float32)
        p[f"bn{i}_b"] = jnp.zeros((1, H), jnp.float32)
        p[f"bn{i}_m"] = jnp.zeros((1, H), jnp.float32)     # running_mean (eval)
        p[f"bn{i}_v"] = jnp.ones((1, H), jnp.float32)      # running_var  (eval)
        p[f"sag{i}_wrel"] = dense(nk(), (H, 1))
        p[f"sag{i}_brel"] = dense(nk(), (1, 1))
        p[f"sag{i}_wroot"] = dense(nk(), (H, 1))
    return p


def pack_params(p):
    """Host-side, once: stack per-stage params, fold eval BN -> scale/shift."""
    H = HIDDEN
    stages = (1, 2, 3, 4)
    bn_scale, bn_shift = [], []
    for i in stages:
        sc = p[f"bn{i}_g"] * lax.rsqrt(p[f"bn{i}_v"] + BN_EPS)
        bn_scale.append(sc)
        bn_shift.append(p[f"bn{i}_b"] - p[f"bn{i}_m"] * sc)
    return {
        "a": p["a"].reshape((1,)),
        "lin_w": p["lin_w"], "lin_b": p["lin_b"],
        "t_wqkv": p["t_wqkv"], "t_bqkv": p["t_bqkv"],
        "t_wo": p["t_wo"], "t_bo": p["t_bo"],
        "t_w1": p["t_w1"], "t_b1": p["t_b1"],
        "t_w2": p["t_w2"], "t_b2": p["t_b2"],
        "t_ln1_g": p["t_ln1_g"], "t_ln1_b": p["t_ln1_b"],
        "t_ln2_g": p["t_ln2_g"], "t_ln2_b": p["t_ln2_b"],
        "conv_w": jnp.stack([p[f"conv{i}_w"] for i in stages]),        # (4,H,H)
        "conv_b": jnp.stack([p[f"conv{i}_b"] for i in stages]),        # (4,1,H)
        "fc_w": jnp.stack([p[f"fc{i}_w"] for i in stages]),
        "fc_b": jnp.stack([p[f"fc{i}_b"] for i in stages]),
        "bn_scale": jnp.stack(bn_scale),                               # (4,1,H)
        "bn_shift": jnp.stack(bn_shift),
        "sag_wrel": jnp.stack([p[f"sag{i}_wrel"].reshape(1, H) for i in stages]),
        "sag_wroot": jnp.stack([p[f"sag{i}_wroot"].reshape(1, H) for i in stages]),
        "sag_brel": jnp.stack([p[f"sag{i}_brel"].reshape(()) for i in stages]),  # (4,)
    }


# ----------------------------------------------------------------------------
# Forward pass: one fused pallas_call
# ----------------------------------------------------------------------------
@jax.jit
def trans_gcn_forward(x, edge_index, batch, kp):
    # TODO(synk): multi-graph batches not supported; single-graph top-k / pooling.
    del batch
    n = x.shape[0]
    adj = jnp.zeros((n, n), jnp.float32).at[edge_index[1], edge_index[0]].set(1.0)
    x = jnp.pad(x.astype(jnp.float32), ((0, 0), (0, IN_PAD - IN_FEATS)))

    keep_ks, cur = [], n                      # static node-keep counts per stage
    for _ in range(NUM_STAGES):
        cur = int(math.ceil(SAG_RATIO * cur))
        keep_ks.append(cur)

    vmem = pl.BlockSpec(memory_space=pltpu.MemorySpace.VMEM)
    smem = pl.BlockSpec(memory_space=pltpu.MemorySpace.SMEM)

    args = (x, adj, kp["a"], kp["lin_w"], kp["lin_b"],
            kp["t_wqkv"], kp["t_bqkv"], kp["t_wo"], kp["t_bo"],
            kp["t_w1"], kp["t_b1"], kp["t_w2"], kp["t_b2"],
            kp["t_ln1_g"], kp["t_ln1_b"], kp["t_ln2_g"], kp["t_ln2_b"],
            kp["conv_w"], kp["conv_b"], kp["fc_w"], kp["fc_b"],
            kp["bn_scale"], kp["bn_shift"],
            kp["sag_wrel"], kp["sag_wroot"], kp["sag_brel"])
    # scalars (a, sag_brel) in SMEM, everything else whole-array in VMEM
    in_specs = [vmem, vmem, smem] + [vmem] * 22 + [smem]

    return pl.pallas_call(
        partial(_fused_kernel, keep_ks=tuple(keep_ks)),
        out_shape=jax.ShapeDtypeStruct((1, HIDDEN), jnp.float32),
        in_specs=in_specs,
        out_specs=vmem,
    )(*args)


# ----------------------------------------------------------------------------
if __name__ == "__main__":
    N = 16
    key = jax.random.PRNGKey(0)
    k_feat, k_par = jax.random.split(key)

    x = jax.random.normal(k_feat, (N, IN_FEATS), jnp.float32)

    # deterministic undirected graph: 16-node ring + 4 chords, both directions
    ring = [(i, (i + 1) % N) for i in range(N)]
    chords = [(0, 5), (2, 9), (3, 12), (7, 14)]
    und = ring + chords
    src = [a for a, b in und] + [b for a, b in und]
    dst = [b for a, b in und] + [a for a, b in und]
    edge_index = jnp.array([src, dst], dtype=jnp.int32)      # (2, 40)
    batch = jnp.zeros((N,), jnp.int32)                       # single graph

    params = pack_params(init_params(k_par))
    out = trans_gcn_forward(x, edge_index, batch, params)
    out = jax.block_until_ready(out)

    assert out.shape == (1, HIDDEN)
    assert bool(jnp.all(jnp.isfinite(out)))
    print("KERNEL_OK")
</pallas_src>

<mosaic_0001>
module attributes {stable_mosaic.version = 11 : i64} {
  func.func @_fused_kernel(%arg0: memref<16x8xf32, #tpu.memory_space<vmem>>, %arg1: memref<16x16xf32, #tpu.memory_space<vmem>>, %arg2: memref<1xf32, #tpu.memory_space<smem>>, %arg3: memref<8x32xf32, #tpu.memory_space<vmem>>, %arg4: memref<1x32xf32, #tpu.memory_space<vmem>>, %arg5: memref<32x96xf32, #tpu.memory_space<vmem>>, %arg6: memref<1x96xf32, #tpu.memory_space<vmem>>, %arg7: memref<32x32xf32, #tpu.memory_space<vmem>>, %arg8: memref<1x32xf32, #tpu.memory_space<vmem>>, %arg9: memref<32x32xf32, #tpu.memory_space<vmem>>, %arg10: memref<1x32xf32, #tpu.memory_space<vmem>>, %arg11: memref<32x32xf32, #tpu.memory_space<vmem>>, %arg12: memref<1x32xf32, #tpu.memory_space<vmem>>, %arg13: memref<1x32xf32, #tpu.memory_space<vmem>>, %arg14: memref<1x32xf32, #tpu.memory_space<vmem>>, %arg15: memref<1x32xf32, #tpu.memory_space<vmem>>, %arg16: memref<1x32xf32, #tpu.memory_space<vmem>>, %arg17: memref<4x32x32xf32, #tpu.memory_space<vmem>>, %arg18: memref<4x1x32xf32, #tpu.memory_space<vmem>>, %arg19: memref<4x32x32xf32, #tpu.memory_space<vmem>>, %arg20: memref<4x1x32xf32, #tpu.memory_space<vmem>>, %arg21: memref<4x1x32xf32, #tpu.memory_space<vmem>>, %arg22: memref<4x1x32xf32, #tpu.memory_space<vmem>>, %arg23: memref<4x1x32xf32, #tpu.memory_space<vmem>>, %arg24: memref<4x1x32xf32, #tpu.memory_space<vmem>>, %arg25: memref<4xf32, #tpu.memory_space<smem>>, %arg26: memref<1x32xf32, #tpu.memory_space<vmem>>) attributes {dimension_semantics = [], scalar_prefetch = 0 : i64, scratch_operands = 0 : i64, tpu.core_type = #tpu.core_type<tc>} {
    %c0 = arith.constant 0 : index
    %c0_0 = arith.constant 0 : index
    %0 = vector.load %arg0[%c0, %c0_0] : memref<16x8xf32, #tpu.memory_space<vmem>>, vector<16x8xf32>
    %c0_1 = arith.constant 0 : index
    %c0_2 = arith.constant 0 : index
    %1 = vector.load %arg3[%c0_1, %c0_2] : memref<8x32xf32, #tpu.memory_space<vmem>>, vector<8x32xf32>
    %cst = arith.constant dense<0.000000e+00> : vector<16x32xf32>
    %2 = tpu.matmul %0, %1, %cst {dimension_numbers = #tpu.dot_dimension_numbers<[1], [0], [0], [1], [0, 0, 1, 1], [], []>} : vector<16x8xf32>, vector<8x32xf32>, vector<16x32xf32> -> vector<16x32xf32>
    %c0_3 = arith.constant 0 : index
    %c0_4 = arith.constant 0 : index
    %3 = vector.load %arg4[%c0_3, %c0_4] : memref<1x32xf32, #tpu.memory_space<vmem>>, vector<1x32xf32>
    %4 = vector.broadcast %3 : vector<1x32xf32> to vector<16x32xf32>
    %5 = arith.addf %2, %4 : vector<16x32xf32>
    %c0_5 = arith.constant 0 : index
    %c0_6 = arith.constant 0 : index
    %6 = vector.load %arg1[%c0_5, %c0_6] : memref<16x16xf32, #tpu.memory_space<vmem>>, vector<16x16xf32>
    %c0_7 = arith.constant 0 : index
    %7 = memref.load %arg2[%c0_7] : memref<1xf32, #tpu.memory_space<smem>>
    %cst_8 = arith.constant 1.000000e+00 : f32
    %8 = vector.broadcast %cst_8 : f32 to vector<1x32xf32>
    %9 = tpu.iota {dimensions = array<i32: 0>} : vector<16x16xi32>
    %10 = tpu.iota {dimensions = array<i32: 1>} : vector<16x16xi32>
    %cst_9 = arith.constant 1.000000e+00 : f32
    %11 = vector.broadcast %cst_9 : f32 to vector<16x1xf32>
    %12 = vector.shape_cast %11 : vector<16x1xf32> to vector<16x1xf32>
    %13 = vector.broadcast %12 : vector<16x1xf32> to vector<16x32xf32>
    %cst_10 = arith.constant dense<0.000000e+00> : vector<1x16xf32>
    %14 = tpu.matmul %8, %13, %cst_10 {dimension_numbers = #tpu.dot_dimension_numbers<[1], [1], [0], [0], [0, 0, 1, 0], [], []>} : vector<1x32xf32>, vector<16x32xf32>, vector<1x16xf32> -> vector<1x16xf32>
    %cst_11 = arith.constant 1.600000e+01 : f32
    %15 = vector.broadcast %cst_11 : f32 to vector<1x16xf32>
    %16 = arith.cmpf ogt, %14, %15 : vector<1x16xf32>
    %cst_12 = arith.constant 1.000000e+00 : f32
    %cst_13 = arith.constant 0.000000e+00 : f32
    %17 = vector.broadcast %cst_12 : f32 to vector<1x16xf32>
    %18 = vector.broadcast %cst_13 : f32 to vector<1x16xf32>
    %19 = arith.select %16, %17, %18 : vector<1x16xi1>, vector<1x16xf32>
    %c0_14 = arith.constant 0 : index
    %c0_15 = arith.constant 0 : index
    %20 = vector.load %arg5[%c0_14, %c0_15] : memref<32x96xf32, #tpu.memory_space<vmem>>, vector<32x96xf32>
    %c0_16 = arith.constant 0 : index
    %c0_17 = arith.constant 0 : index
    %21 = vector.load %arg6[%c0_16, %c0_17] : memref<1x96xf32, #tpu.memory_space<vmem>>, vector<1x96xf32>
    %c0_18 = arith.constant 0 : index
    %c0_19 = arith.constant 0 : index
    %22 = vector.load %arg7[%c0_18, %c0_19] : memref<32x32xf32, #tpu.memory_space<vmem>>, vector<32x32xf32>
    %c0_20 = arith.constant 0 : index
    %c0_21 = arith.constant 0 : index
    %23 = vector.load %arg8[%c0_20, %c0_21] : memref<1x32xf32, #tpu.memory_space<vmem>>, vector<1x32xf32>
    %c0_22 = arith.constant 0 : index
    %c0_23 = arith.constant 0 : index
    %24 = vector.load %arg9[%c0_22, %c0_23] : memref<32x32xf32, #tpu.memory_space<vmem>>, vector<32x32xf32>
    %c0_24 = arith.constant 0 : index
    %c0_25 = arith.constant 0 : index
    %25 = vector.load %arg10[%c0_24, %c0_25] : memref<1x32xf32, #tpu.memory_space<vmem>>, vector<1x32xf32>
    %c0_26 = arith.constant 0 : index
    %c0_27 = arith.constant 0 : index
    %26 = vector.load %arg11[%c0_26, %c0_27] : memref<32x32xf32, #tpu.memory_space<vmem>>, vector<32x32xf32>
    %c0_28 = arith.constant 0 : index
    %c0_29 = arith.constant 0 : index
    %27 = vector.load %arg12[%c0_28, %c0_29] : memref<1x32xf32, #tpu.memory_space<vmem>>, vector<1x32xf32>
    %c0_30 = arith.constant 0 : index
    %c0_31 = arith.constant 0 : index
    %28 = vector.load %arg13[%c0_30, %c0_31] : memref<1x32xf32, #tpu.memory_space<vmem>>, vector<1x32xf32>
    %c0_32 = arith.constant 0 : index
    %c0_33 = arith.constant 0 : index
    %29 = vector.load %arg14[%c0_32, %c0_33] : memref<1x32xf32, #tpu.memory_space<vmem>>, vector<1x32xf32>
    %c0_34 = arith.constant 0 : index
    %c0_35 = arith.constant 0 : index
    %30 = vector.load %arg15[%c0_34, %c0_35] : memref<1x32xf32, #tpu.memory_space<vmem>>, vector<1x32xf32>
    %c0_36 = arith.constant 0 : index
    %c0_37 = arith.constant 0 : index
    %31 = vector.load %arg16[%c0_36, %c0_37] : memref<1x32xf32, #tpu.memory_space<vmem>>, vector<1x32xf32>
    %cst_38 = arith.constant dense<0.000000e+00> : vector<16x96xf32>
    %32 = tpu.matmul %5, %20, %cst_38 {dimension_numbers = #tpu.dot_dimension_numbers<[1], [0], [0], [1], [0, 0, 1, 1], [], []>} : vector<16x32xf32>, vector<32x96xf32>, vector<16x96xf32> -> vector<16x96xf32>
    %33 = vector.broadcast %21 : vector<1x96xf32> to vector<16x96xf32>
    %34 = arith.addf %32, %33 : vector<16x96xf32>
    %cst_39 = arith.constant 5.000000e-01 : f32
    %35 = vector.broadcast %cst_39 : f32 to vector<1x16xf32>
    %36 = arith.cmpf ogt, %19, %35 : vector<1x16xf32>
    %cst_40 = arith.constant 0.000000e+00 : f32
    %37 = vector.broadcast %cst_40 : f32 to vector<16x32xf32>
    %38 = vector.extract_strided_slice %34 {offsets = [0, 0], sizes = [16, 16], strides = [1, 1]} : vector<16x96xf32> to vector<16x16xf32>
    %39 = vector.extract_strided_slice %34 {offsets = [0, 32], sizes = [16, 16], strides = [1, 1]} : vector<16x96xf32> to vector<16x16xf32>
    %40 = vector.extract_strided_slice %34 {offsets = [0, 64], sizes = [16, 16], strides = [1, 1]} : vector<16x96xf32> to vector<16x16xf32>
    %cst_41 = arith.constant dense<0.000000e+00> : vector<16x16xf32>
    %41 = tpu.matmul %38, %39, %cst_41 {dimension_numbers = #tpu.dot_dimension_numbers<[1], [1], [0], [0], [0, 0, 1, 0], [], []>} : vector<16x16xf32>, vector<16x16xf32>, vector<16x16xf32> -> vector<16x16xf32>
    %cst_42 = arith.constant -1.000000e+30 : f32
    %42 = vector.shape_cast %36 : vector<1x16xi1> to vector<1x16xi1>
    %43 = vector.broadcast %42 : vector<1x16xi1> to vector<16x16xi1>
    %44 = vector.broadcast %cst_42 : f32 to vector<16x16xf32>
    %45 = arith.select %43, %41, %44 : vector<16x16xi1>, vector<16x16xf32>
    %cst_43 = arith.constant dense<0xFF800000> : vector<16xf32>
    %46 = vector.multi_reduction <maximumf>, %45, %cst_43 [1] : vector<16x16xf32> to vector<16xf32>
    %47 = vector.shape_cast %46 : vector<16xf32> to vector<16x1xf32>
    %48 = vector.broadcast %47 : vector<16x1xf32> to vector<16x16xf32>
    %49 = arith.subf %45, %48 : vector<16x16xf32>
    %50 = math.exp %49 : vector<16x16xf32>
    %cst_44 = arith.constant dense<0.000000e+00> : vector<16xf32>
    %51 = vector.multi_reduction <add>, %50, %cst_44 [1] : vector<16x16xf32> to vector<16xf32>
    %52 = vector.shape_cast %51 : vector<16xf32> to vector<16x1xf32>
    %53 = tpu.reciprocal %52 {approx = true} : vector<16x1xf32> -> vector<16x1xf32>
    %54 = vector.broadcast %53 : vector<16x1xf32> to vector<16x16xf32>
    %55 = arith.mulf %50, %54 : vector<16x16xf32>
    %cst_45 = arith.constant dense<0.000000e+00> : vector<16x16xf32>
    %56 = tpu.matmul %55, %40, %cst_45 {dimension_numbers = #tpu.dot_dimension_numbers<[1], [0], [0], [1], [0, 0, 1, 1], [], []>} : vector<16x16xf32>, vector<16x16xf32>, vector<16x16xf32> -> vector<16x16xf32>
    %57 = vector.extract_strided_slice %22 {offsets = [0, 0], sizes = [16, 32], strides = [1, 1]} : vector<32x32xf32> to vector<16x32xf32>
    %cst_46 = arith.constant dense<0.000000e+00> : vector<16x32xf32>
    %58 = tpu.matmul %56, %57, %cst_46 {dimension_numbers = #tpu.dot_dimension_numbers<[1], [0], [0], [1], [0, 0, 1, 1], [], []>} : vector<16x16xf32>, vector<16x32xf32>, vector<16x32xf32> -> vector<16x32xf32>
    %59 = arith.addf %37, %58 : vector<16x32xf32>
    %60 = vector.extract_strided_slice %34 {offsets = [0, 16], sizes = [16, 16], strides = [1, 1]} : vector<16x96xf32> to vector<16x16xf32>
    %61 = vector.extract_strided_slice %34 {offsets = [0, 48], sizes = [16, 16], strides = [1, 1]} : vector<16x96xf32> to vector<16x16xf32>
    %62 = vector.extract_strided_slice %34 {offsets = [0, 80], sizes = [16, 16], strides = [1, 1]} : vector<16x96xf32> to vector<16x16xf32>
    %cst_47 = arith.constant dense<0.000000e+00> : vector<16x16xf32>
    %63 = tpu.matmul %60, %61, %cst_47 {dimension_numbers = #tpu.dot_dimension_numbers<[1], [1], [0], [0], [0, 0, 1, 0], [], []>} : vector<16x16xf32>, vector<16x16xf32>, vector<16x16xf32> -> vector<16x16xf32>
    %cst_48 = arith.constant -1.000000e+30 : f32
    %64 = vector.shape_cast %36 : vector<1x16xi1> to vector<1x16xi1>
    %65 = vector.broadcast %64 : vector<1x16xi1> to vector<16x16xi1>
    %66 = vector.broadcast %cst_48 : f32 to vector<16x16xf32>
    %67 = arith.select %65, %63, %66 : vector<16x16xi1>, vector<16x16xf32>
    %cst_49 = arith.constant dense<0xFF800000> : vector<16xf32>
    %68 = vector.multi_reduction <maximumf>, %67, %cst_49 [1] : vector<16x16xf32> to vector<16xf32>
    %69 = vector.shape_cast %68 : vector<16xf32> to vector<16x1xf32>
    %70 = vector.broadcast %69 : vector<16x1xf32> to vector<16x16xf32>
    %71 = arith.subf %67, %70 : vector<16x16xf32>
    %72 = math.exp %71 : vector<16x16xf32>
    %cst_50 = arith.constant dense<0.000000e+00> : vector<16xf32>
    %73 = vector.multi_reduction <add>, %72, %cst_50 [1] : vector<16x16xf32> to vector<16xf32>
    %74 = vector.shape_cast %73 : vector<16xf32> to vector<16x1xf32>
    %75 = tpu.reciprocal %74 {approx = true} : vector<16x1xf32> -> vector<16x1xf32>
    %76 = vector.broadcast %75 : vector<16x1xf32> to vector<16x16xf32>
    %77 = arith.mulf %72, %76 : vector<16x16xf32>
    %cst_51 = arith.constant dense<0.000000e+00> : vector<16x16xf32>
    %78 = tpu.matmul %77, %62, %cst_51 {dimension_numbers = #tpu.dot_dimension_numbers<[1], [0], [0], [1], [0, 0, 1, 1], [], []>} : vector<16x16xf32>, vector<16x16xf32>, vector<16x16xf32> -> vector<16x16xf32>
    %79 = vector.extract_strided_slice %22 {offsets = [16, 0], sizes = [16, 32], strides = [1, 1]} : vector<32x32xf32> to vector<16x32xf32>
    %cst_52 = arith.constant dense<0.000000e+00> : vector<16x32xf32>
    %80 = tpu.matmul %78, %79, %cst_52 {dimension_numbers = #tpu.dot_dimension_numbers<[1], [0], [0], [1], [0, 0, 1, 1], [], []>} : vector<16x16xf32>, vector<16x32xf32>, vector<16x32xf32> -> vector<16x32xf32>
    %81 = arith.addf %59, %80 : vector<16x32xf32>
    %82 = vector.broadcast %23 : vector<1x32xf32> to vector<16x32xf32>
    %83 = arith.addf %81, %82 : vector<16x32xf32>
    %84 = arith.addf %5, %83 : vector<16x32xf32>
    %cst_53 = arith.constant dense<0.000000e+00> : vector<16xf32>
    %85 = vector.multi_reduction <add>, %84, %cst_53 [1] : vector<16x32xf32> to vector<16xf32>
    %86 = vector.shape_cast %85 : vector<16xf32> to vector<16x1xf32>
    %cst_54 = arith.constant 3.200000e+01 : f32
    %87 = vector.broadcast %cst_54 : f32 to vector<16x1xf32>
    %88 = arith.divf %86, %87 : vector<16x1xf32>
    %89 = vector.broadcast %88 : vector<16x1xf32> to vector<16x32xf32>
    %90 = arith.subf %84, %89 : vector<16x32xf32>
    %91 = arith.mulf %90, %90 : vector<16x32xf32>
    %cst_55 = arith.constant dense<0.000000e+00> : vector<16xf32>
    %92 = vector.multi_reduction <add>, %91, %cst_55 [1] : vector<16x32xf32> to vector<16xf32>
    %93 = vector.shape_cast %92 : vector<16xf32> to vector<16x1xf32>
    %cst_56 = arith.constant 3.200000e+01 : f32
    %94 = vector.broadcast %cst_56 : f32 to vector<16x1xf32>
    %95 = arith.divf %93, %94 : vector<16x1xf32>
    %96 = vector.broadcast %88 : vector<16x1xf32> to vector<16x32xf32>
    %97 = arith.subf %84, %96 : vector<16x32xf32>
    %cst_57 = arith.constant 9.99999974E-6 : f32
    %98 = vector.broadcast %cst_57 : f32 to vector<16x1xf32>
    %99 = arith.addf %95, %98 : vector<16x1xf32>
    %100 = math.rsqrt %99 : vector<16x1xf32>
    %101 = vector.broadcast %100 : vector<16x1xf32> to vector<16x32xf32>
    %102 = arith.mulf %97, %101 : vector<16x32xf32>
    %103 = vector.broadcast %28 : vector<1x32xf32> to vector<16x32xf32>
    %104 = arith.mulf %102, %103 : vector<16x32xf32>
    %105 = vector.broadcast %29 : vector<1x32xf32> to vector<16x32xf32>
    %106 = arith.addf %104, %105 : vector<16x32xf32>
    %cst_58 = arith.constant dense<0.000000e+00> : vector<16x32xf32>
    %107 = tpu.matmul %106, %24, %cst_58 {dimension_numbers = #tpu.dot_dimension_numbers<[1], [0], [0], [1], [0, 0, 1, 1], [], []>} : vector<16x32xf32>, vector<32x32xf32>, vector<16x32xf32> -> vector<16x32xf32>
    %108 = vector.broadcast %25 : vector<1x32xf32> to vector<16x32xf32>
    %109 = arith.addf %107, %108 : vector<16x32xf32>
    %cst_59 = arith.constant 0.000000e+00 : f32
    %110 = vector.broadcast %cst_59 : f32 to vector<16x32xf32>
    %111 = arith.maximumf %109, %110 : vector<16x32xf32>
    %cst_60 = arith.constant dense<0.000000e+00> : vector<16x32xf32>
    %112 = tpu.matmul %111, %26, %cst_60 {dimension_numbers = #tpu.dot_dimension_numbers<[1], [0], [0], [1], [0, 0, 1, 1], [], []>} : vector<16x32xf32>, vector<32x32xf32>, vector<16x32xf32> -> vector<16x32xf32>
    %113 = vector.broadcast %27 : vector<1x32xf32> to vector<16x32xf32>
    %114 = arith.addf %112, %113 : vector<16x32xf32>
    %115 = arith.addf %106, %114 : vector<16x32xf32>
    %cst_61 = arith.constant dense<0.000000e+00> : vector<16xf32>
    %116 = vector.multi_reduction <add>, %115, %cst_61 [1] : vector<16x32xf32> to vector<16xf32>
    %117 = vector.shape_cast %116 : vector<16xf32> to vector<16x1xf32>
    %cst_62 = arith.constant 3.200000e+01 : f32
    %118 = vector.broadcast %cst_62 : f32 to vector<16x1xf32>
    %119 = arith.divf %117, %118 : vector<16x1xf32>
    %120 = vector.broadcast %119 : vector<16x1xf32> to vector<16x32xf32>
    %121 = arith.subf %115, %120 : vector<16x32xf32>
    %122 = arith.mulf %121, %121 : vector<16x32xf32>
    %cst_63 = arith.constant dense<0.000000e+00> : vector<16xf32>
    %123 = vector.multi_reduction <add>, %122, %cst_63 [1] : vector<16x32xf32> to vector<16xf32>
    %124 = vector.shape_cast %123 : vector<16xf32> to vector<16x1xf32>
    %cst_64 = arith.constant 3.200000e+01 : f32
    %125 = vector.broadcast %cst_64 : f32 to vector<16x1xf32>
    %126 = arith.divf %124, %125 : vector<16x1xf32>
    %127 = vector.broadcast %119 : vector<16x1xf32> to vector<16x32xf32>
    %128 = arith.subf %115, %127 : vector<16x32xf32>
    %cst_65 = arith.constant 9.99999974E-6 : f32
    %129 = vector.broadcast %cst_65 : f32 to vector<16x1xf32>
    %130 = arith.addf %126, %129 : vector<16x1xf32>
    %131 = math.rsqrt %130 : vector<16x1xf32>
    %132 = vector.broadcast %131 : vector<16x1xf32> to vector<16x32xf32>
    %133 = arith.mulf %128, %132 : vector<16x32xf32>
    %134 = vector.broadcast %30 : vector<1x32xf32> to vector<16x32xf32>
    %135 = arith.mulf %133, %134 : vector<16x32xf32>
    %136 = vector.broadcast %31 : vector<1x32xf32> to vector<16x32xf32>
    %137 = arith.addf %135, %136 : vector<16x32xf32>
    %138 = vector.broadcast %7 : f32 to vector<16x32xf32>
    %139 = arith.mulf %138, %137 : vector<16x32xf32>
    %cst_66 = arith.constant 1.000000e+00 : f32
    %140 = arith.subf %cst_66, %7 : f32
    %141 = vector.broadcast %140 : f32 to vector<16x32xf32>
    %142 = arith.mulf %141, %5 : vector<16x32xf32>
    %143 = arith.addf %139, %142 : vector<16x32xf32>
    %144 = vector.broadcast %11 : vector<16x1xf32> to vector<16x16xf32>
    %145 = arith.mulf %6, %144 : vector<16x16xf32>
    %146 = vector.broadcast %19 : vector<1x16xf32> to vector<16x16xf32>
    %147 = arith.mulf %145, %146 : vector<16x16xf32>
    %cst_67 = arith.constant dense<0.000000e+00> : vector<16xf32>
    %148 = vector.multi_reduction <add>, %147, %cst_67 [1] : vector<16x16xf32> to vector<16xf32>
    %149 = vector.shape_cast %148 : vector<16xf32> to vector<16x1xf32>
    %cst_68 = arith.constant 1.000000e+00 : f32
    %150 = vector.broadcast %cst_68 : f32 to vector<16x1xf32>
    %151 = arith.addf %149, %150 : vector<16x1xf32>
    %152 = math.rsqrt %151 : vector<16x1xf32>
    %c0_69 = arith.constant 0 : index
    %c0_70 = arith.constant 0 : index
    %c0_71 = arith.constant 0 : index
    %153 = vector.load %arg17[%c0_69, %c0_70, %c0_71] : memref<4x32x32xf32, #tpu.memory_space<vmem>>, vector<1x32x32xf32>
    %154 = vector.shape_cast %153 : vector<1x32x32xf32> to vector<32x32xf32>
    %cst_72 = arith.constant dense<0.000000e+00> : vector<16x32xf32>
    %155 = tpu.matmul %143, %154, %cst_72 {dimension_numbers = #tpu.dot_dimension_numbers<[1], [0], [0], [1], [0, 0, 1, 1], [], []>} : vector<16x32xf32>, vector<32x32xf32>, vector<16x32xf32> -> vector<16x32xf32>
    %156 = vector.broadcast %152 : vector<16x1xf32> to vector<16x32xf32>
    %157 = arith.mulf %156, %155 : vector<16x32xf32>
    %cst_73 = arith.constant dense<0.000000e+00> : vector<16x32xf32>
    %158 = tpu.matmul %147, %157, %cst_73 {dimension_numbers = #tpu.dot_dimension_numbers<[1], [0], [0], [1], [0, 0, 1, 1], [], []>} : vector<16x16xf32>, vector<16x32xf32>, vector<16x32xf32> -> vector<16x32xf32>
    %159 = vector.broadcast %152 : vector<16x1xf32> to vector<16x32xf32>
    %160 = arith.mulf %159, %158 : vector<16x32xf32>
    %161 = arith.mulf %152, %152 : vector<16x1xf32>
    %162 = vector.broadcast %161 : vector<16x1xf32> to vector<16x32xf32>
    %163 = arith.mulf %162, %155 : vector<16x32xf32>
    %164 = arith.addf %160, %163 : vector<16x32xf32>
    %c0_74 = arith.constant 0 : index
    %c0_75 = arith.constant 0 : index
    %c0_76 = arith.constant 0 : index
    %165 = vector.load %arg18[%c0_74, %c0_75, %c0_76] : memref<4x1x32xf32, #tpu.memory_space<vmem>>, vector<1x1x32xf32>
    %166 = vector.shape_cast %165 : vector<1x1x32xf32> to vector<1x32xf32>
    %167 = vector.broadcast %166 : vector<1x32xf32> to vector<16x32xf32>
    %168 = arith.addf %164, %167 : vector<16x32xf32>
    %c0_77 = arith.constant 0 : index
    %c0_78 = arith.constant 0 : index
    %c0_79 = arith.constant 0 : index
    %169 = vector.load %arg19[%c0_77, %c0_78, %c0_79] : memref<4x32x32xf32, #tpu.memory_space<vmem>>, vector<1x32x32xf32>
    %170 = vector.shape_cast %169 : vector<1x32x32xf32> to vector<32x32xf32>
    %cst_80 = arith.constant dense<0.000000e+00> : vector<16x32xf32>
    %171 = tpu.matmul %168, %170, %cst_80 {dimension_numbers = #tpu.dot_dimension_numbers<[1], [0], [0], [1], [0, 0, 1, 1], [], []>} : vector<16x32xf32>, vector<32x32xf32>, vector<16x32xf32> -> vector<16x32xf32>
    %c0_81 = arith.constant 0 : index
    %c0_82 = arith.constant 0 : index
    %c0_83 = arith.constant 0 : index
    %172 = vector.load %arg20[%c0_81, %c0_82, %c0_83] : memref<4x1x32xf32, #tpu.memory_space<vmem>>, vector<1x1x32xf32>
    %173 = vector.shape_cast %172 : vector<1x1x32xf32> to vector<1x32xf32>
    %174 = vector.broadcast %173 : vector<1x32xf32> to vector<16x32xf32>
    %175 = arith.addf %171, %174 : vector<16x32xf32>
    %cst_84 = arith.constant 0.000000e+00 : f32
    %176 = vector.broadcast %cst_84 : f32 to vector<16x32xf32>
    %177 = arith.maximumf %175, %176 : vector<16x32xf32>
    %c0_85 = arith.constant 0 : index
    %c0_86 = arith.constant 0 : index
    %c0_87 = arith.constant 0 : index
    %178 = vector.load %arg21[%c0_85, %c0_86, %c0_87] : memref<4x1x32xf32, #tpu.memory_space<vmem>>, vector<1x1x32xf32>
    %179 = vector.shape_cast %178 : vector<1x1x32xf32> to vector<1x32xf32>
    %180 = vector.broadcast %179 : vector<1x32xf32> to vector<16x32xf32>
    %181 = arith.mulf %177, %180 : vector<16x32xf32>
    %c0_88 = arith.constant 0 : index
    %c0_89 = arith.constant 0 : index
    %c0_90 = arith.constant 0 : index
    %182 = vector.load %arg22[%c0_88, %c0_89, %c0_90] : memref<4x1x32xf32, #tpu.memory_space<vmem>>, vector<1x1x32xf32>
    %183 = vector.shape_cast %182 : vector<1x1x32xf32> to vector<1x32xf32>
    %184 = vector.broadcast %183 : vector<1x32xf32> to vector<16x32xf32>
    %185 = arith.addf %181, %184 : vector<16x32xf32>
    %cst_91 = arith.constant dense<0.000000e+00> : vector<16x32xf32>
    %186 = tpu.matmul %147, %185, %cst_91 {dimension_numbers = #tpu.dot_dimension_numbers<[1], [0], [0], [1], [0, 0, 1, 1], [], []>} : vector<16x16xf32>, vector<16x32xf32>, vector<16x32xf32> -> vector<16x32xf32>
    %c0_92 = arith.constant 0 : index
    %c0_93 = arith.constant 0 : index
    %c0_94 = arith.constant 0 : index
    %187 = vector.load %arg23[%c0_92, %c0_93, %c0_94] : memref<4x1x32xf32, #tpu.memory_space<vmem>>, vector<1x1x32xf32>
    %188 = vector.shape_cast %187 : vector<1x1x32xf32> to vector<1x32xf32>
    %189 = vector.broadcast %188 : vector<1x32xf32> to vector<16x32xf32>
    %190 = arith.mulf %186, %189 : vector<16x32xf32>
    %c0_95 = arith.constant 0 : index
    %c0_96 = arith.constant 0 : index
    %c0_97 = arith.constant 0 : index
    %191 = vector.load %arg24[%c0_95, %c0_96, %c0_97] : memref<4x1x32xf32, #tpu.memory_space<vmem>>, vector<1x1x32xf32>
    %192 = vector.shape_cast %191 : vector<1x1x32xf32> to vector<1x32xf32>
    %193 = vector.broadcast %192 : vector<1x32xf32> to vector<16x32xf32>
    %194 = arith.mulf %185, %193 : vector<16x32xf32>
    %195 = arith.addf %190, %194 : vector<16x32xf32>
    %cst_98 = arith.constant dense<0.000000e+00> : vector<16xf32>
    %196 = vector.multi_reduction <add>, %195, %cst_98 [1] : vector<16x32xf32> to vector<16xf32>
    %197 = vector.shape_cast %196 : vector<16xf32> to vector<16x1xf32>
    %c0_99 = arith.constant 0 : index
    %198 = memref.load %arg25[%c0_99] : memref<4xf32, #tpu.memory_space<smem>>
    %199 = vector.broadcast %198 : f32 to vector<16x1xf32>
    %200 = arith.addf %197, %199 : vector<16x1xf32>
    %201 = vector.shape_cast %197 : vector<16x1xf32> to vector<16x1xf32>
    %202 = vector.broadcast %201 : vector<16x1xf32> to vector<16x32xf32>
    %cst_100 = arith.constant dense<0.000000e+00> : vector<1x16xf32>
    %203 = tpu.matmul %8, %202, %cst_100 {dimension_numbers = #tpu.dot_dimension_numbers<[1], [1], [0], [0], [0, 0, 1, 0], [], []>} : vector<1x32xf32>, vector<16x32xf32>, vector<1x16xf32> -> vector<1x16xf32>
    %cst_101 = arith.constant 3.125000e-02 : f32
    %204 = vector.broadcast %cst_101 : f32 to vector<1x16xf32>
    %205 = arith.mulf %203, %204 : vector<1x16xf32>
    %206 = arith.cmpi ne, %9, %10 : vector<16x16xi32>
    %207 = vector.broadcast %205 : vector<1x16xf32> to vector<16x16xf32>
    %208 = vector.broadcast %197 : vector<16x1xf32> to vector<16x16xf32>
    %209 = arith.cmpf ogt, %207, %208 : vector<16x16xf32>
    %210 = vector.broadcast %205 : vector<1x16xf32> to vector<16x16xf32>
    %211 = vector.broadcast %197 : vector<16x1xf32> to vector<16x16xf32>
    %212 = arith.cmpf oeq, %210, %211 : vector<16x16xf32>
    %213 = arith.cmpi slt, %10, %9 : vector<16x16xi32>
    %214 = arith.andi %212, %213 : vector<16x16xi1>
    %215 = arith.ori %209, %214 : vector<16x16xi1>
    %216 = arith.andi %206, %215 : vector<16x16xi1>
    %cst_102 = arith.constant 0.000000e+00 : f32
    %217 = vector.shape_cast %19 : vector<1x16xf32> to vector<1x16xf32>
    %218 = vector.broadcast %217 : vector<1x16xf32> to vector<16x16xf32>
    %219 = vector.broadcast %cst_102 : f32 to vector<16x16xf32>
    %220 = arith.select %216, %218, %219 : vector<16x16xi1>, vector<16x16xf32>
    %cst_103 = arith.constant dense<0.000000e+00> : vector<16xf32>
    %221 = vector.multi_reduction <add>, %220, %cst_103 [1] : vector<16x16xf32> to vector<16xf32>
    %222 = vector.shape_cast %221 : vector<16xf32> to vector<16x1xf32>
    %cst_104 = arith.constant 8.000000e+00 : f32
    %223 = vector.broadcast %cst_104 : f32 to vector<16x1xf32>
    %224 = arith.cmpf olt, %222, %223 : vector<16x1xf32>
    %cst_105 = arith.constant 1.000000e+00 : f32
    %cst_106 = arith.constant 0.000000e+00 : f32
    %225 = vector.broadcast %cst_105 : f32 to vector<16x1xf32>
    %226 = vector.broadcast %cst_106 : f32 to vector<16x1xf32>
    %227 = arith.select %224, %225, %226 : vector<16x1xi1>, vector<16x1xf32>
    %228 = arith.mulf %11, %227 : vector<16x1xf32>
    %229 = math.tanh %200 : vector<16x1xf32>
    %230 = vector.broadcast %229 : vector<16x1xf32> to vector<16x32xf32>
    %231 = arith.mulf %185, %230 : vector<16x32xf32>
    %232 = vector.broadcast %228 : vector<16x1xf32> to vector<16x32xf32>
    %233 = arith.mulf %231, %232 : vector<16x32xf32>
    %234 = vector.shape_cast %228 : vector<16x1xf32> to vector<16x1xf32>
    %235 = vector.broadcast %234 : vector<16x1xf32> to vector<16x32xf32>
    %cst_107 = arith.constant dense<0.000000e+00> : vector<1x16xf32>
    %236 = tpu.matmul %8, %235, %cst_107 {dimension_numbers = #tpu.dot_dimension_numbers<[1], [1], [0], [0], [0, 0, 1, 0], [], []>} : vector<1x32xf32>, vector<16x32xf32>, vector<1x16xf32> -> vector<1x16xf32>
    %cst_108 = arith.constant 1.600000e+01 : f32
    %237 = vector.broadcast %cst_108 : f32 to vector<1x16xf32>
    %238 = arith.cmpf ogt, %236, %237 : vector<1x16xf32>
    %cst_109 = arith.constant 1.000000e+00 : f32
    %cst_110 = arith.constant 0.000000e+00 : f32
    %239 = vector.broadcast %cst_109 : f32 to vector<1x16xf32>
    %240 = vector.broadcast %cst_110 : f32 to vector<1x16xf32>
    %241 = arith.select %238, %239, %240 : vector<1x16xi1>, vector<1x16xf32>
    %c0_111 = arith.constant 0 : index
    %c0_112 = arith.constant 0 : index
    %242 = vector.load %arg5[%c0_111, %c0_112] : memref<32x96xf32, #tpu.memory_space<vmem>>, vector<32x96xf32>
    %c0_113 = arith.constant 0 : index
    %c0_114 = arith.constant 0 : index
    %243 = vector.load %arg6[%c0_113, %c0_114] : memref<1x96xf32, #tpu.memory_space<vmem>>, vector<1x96xf32>
    %c0_115 = arith.constant 0 : index
    %c0_116 = arith.constant 0 : index
    %244 = vector.load %arg7[%c0_115, %c0_116] : memref<32x32xf32, #tpu.memory_space<vmem>>, vector<32x32xf32>
    %c0_117 = arith.constant 0 : index
    %c0_118 = arith.constant 0 : index
    %245 = vector.load %arg8[%c0_117, %c0_118] : memref<1x32xf32, #tpu.memory_space<vmem>>, vector<1x32xf32>
    %c0_119 = arith.constant 0 : index
    %c0_120 = arith.constant 0 : index
    %246 = vector.load %arg9[%c0_119, %c0_120] : memref<32x32xf32, #tpu.memory_space<vmem>>, vector<32x32xf32>
    %c0_121 = arith.constant 0 : index
    %c0_122 = arith.constant 0 : index
    %247 = vector.load %arg10[%c0_121, %c0_122] : memref<1x32xf32, #tpu.memory_space<vmem>>, vector<1x32xf32>
    %c0_123 = arith.constant 0 : index
    %c0_124 = arith.constant 0 : index
    %248 = vector.load %arg11[%c0_123, %c0_124] : memref<32x32xf32, #tpu.memory_space<vmem>>, vector<32x32xf32>
    %c0_125 = arith.constant 0 : index
    %c0_126 = arith.constant 0 : index
    %249 = vector.load %arg12[%c0_125, %c0_126] : memref<1x32xf32, #tpu.memory_space<vmem>>, vector<1x32xf32>
    %c0_127 = arith.constant 0 : index
    %c0_128 = arith.constant 0 : index
    %250 = vector.load %arg13[%c0_127, %c0_128] : memref<1x32xf32, #tpu.memory_space<vmem>>, vector<1x32xf32>
    %c0_129 = arith.constant 0 : index
    %c0_130 = arith.constant 0 : index
    %251 = vector.load %arg14[%c0_129, %c0_130] : memref<1x32xf32, #tpu.memory_space<vmem>>, vector<1x32xf32>
    %c0_131 = arith.constant 0 : index
    %c0_132 = arith.constant 0 : index
    %252 = vector.load %arg15[%c0_131, %c0_132] : memref<1x32xf32, #tpu.memory_space<vmem>>, vector<1x32xf32>
    %c0_133 = arith.constant 0 : index
    %c0_134 = arith.constant 0 : index
    %253 = vector.load %arg16[%c0_133, %c0_134] : memref<1x32xf32, #tpu.memory_space<vmem>>, vector<1x32xf32>
    %cst_135 = arith.constant dense<0.000000e+00> : vector<16x96xf32>
    %254 = tpu.matmul %233, %242, %cst_135 {dimension_numbers = #tpu.dot_dimension_numbers<[1], [0], [0], [1], [0, 0, 1, 1], [], []>} : vector<16x32xf32>, vector<32x96xf32>, vector<16x96xf32> -> vector<16x96xf32>
    %255 = vector.broadcast %243 : vector<1x96xf32> to vector<16x96xf32>
    %256 = arith.addf %254, %255 : vector<16x96xf32>
    %cst_136 = arith.constant 5.000000e-01 : f32
    %257 = vector.broadcast %cst_136 : f32 to vector<1x16xf32>
    %258 = arith.cmpf ogt, %241, %257 : vector<1x16xf32>
    %cst_137 = arith.constant 0.000000e+00 : f32
    %259 = vector.broadcast %cst_137 : f32 to vector<16x32xf32>
    %260 = vector.extract_strided_slice %256 {offsets = [0, 0], sizes = [16, 16], strides = [1, 1]} : vector<16x96xf32> to vector<16x16xf32>
    %261 = vector.extract_strided_slice %256 {offsets = [0, 32], sizes = [16, 16], strides = [1, 1]} : vector<16x96xf32> to vector<16x16xf32>
    %262 = vector.extract_strided_slice %256 {offsets = [0, 64], sizes = [16, 16], strides = [1, 1]} : vector<16x96xf32> to vector<16x16xf32>
    %cst_138 = arith.constant dense<0.000000e+00> : vector<16x16xf32>
    %263 = tpu.matmul %260, %261, %cst_138 {dimension_numbers = #tpu.dot_dimension_numbers<[1], [1], [0], [0], [0, 0, 1, 0], [], []>} : vector<16x16xf32>, vector<16x16xf32>, vector<16x16xf32> -> vector<16x16xf32>
    %cst_139 = arith.constant -1.000000e+30 : f32
    %264 = vector.shape_cast %258 : vector<1x16xi1> to vector<1x16xi1>
    %265 = vector.broadcast %264 : vector<1x16xi1> to vector<16x16xi1>
    %266 = vector.broadcast %cst_139 : f32 to vector<16x16xf32>
    %267 = arith.select %265, %263, %266 : vector<16x16xi1>, vector<16x16xf32>
    %cst_140 = arith.constant dense<0xFF800000> : vector<16xf32>
    %268 = vector.multi_reduction <maximumf>, %267, %cst_140 [1] : vector<16x16xf32> to vector<16xf32>
    %269 = vector.shape_cast %268 : vector<16xf32> to vector<16x1xf32>
    %270 = vector.broadcast %269 : vector<16x1xf32> to vector<16x16xf32>
    %271 = arith.subf %267, %270 : vector<16x16xf32>
    %272 = math.exp %271 : vector<16x16xf32>
    %cst_141 = arith.constant dense<0.000000e+00> : vector<16xf32>
    %273 = vector.multi_reduction <add>, %272, %cst_141 [1] : vector<16x16xf32> to vector<16xf32>
    %274 = vector.shape_cast %273 : vector<16xf32> to vector<16x1xf32>
    %275 = tpu.reciprocal %274 {approx = true} : vector<16x1xf32> -> vector<16x1xf32>
    %276 = vector.broadcast %275 : vector<16x1xf32> to vector<16x16xf32>
    %277 = arith.mulf %272, %276 : vector<16x16xf32>
    %cst_142 = arith.constant dense<0.000000e+00> : vector<16x16xf32>
    %278 = tpu.matmul %277, %262, %cst_142 {dimension_numbers = #tpu.dot_dimension_numbers<[1], [0], [0], [1], [0, 0, 1, 1], [], []>} : vector<16x16xf32>, vector<16x16xf32>, vector<16x16xf32> -> vector<16x16xf32>
    %279 = vector.extract_strided_slice %244 {offsets = [0, 0], sizes = [16, 32], strides = [1, 1]} : vector<32x32xf32> to vector<16x32xf32>
    %cst_143 = arith.constant dense<0.000000e+00> : vector<16x32xf32>
    %280 = tpu.matmul %278, %279, %cst_143 {dimension_numbers = #tpu.dot_dimension_numbers<[1], [0], [0], [1], [0, 0, 1, 1], [], []>} : vector<16x16xf32>, vector<16x32xf32>, vector<16x32xf32> -> vector<16x32xf32>
    %281 = arith.addf %259, %280 : vector<16x32xf32>
    %282 = vector.extract_strided_slice %256 {offsets = [0, 16], sizes = [16, 16], strides = [1, 1]} : vector<16x96xf32> to vector<16x16xf32>
    %283 = vector.extract_strided_slice %256 {offsets = [0, 48], sizes = [16, 16], strides = [1, 1]} : vector<16x96xf32> to vector<16x16xf32>
    %284 = vector.extract_strided_slice %256 {offsets = [0, 80], sizes = [16, 16], strides = [1, 1]} : vector<16x96xf32> to vector<16x16xf32>
    %cst_144 = arith.constant dense<0.000000e+00> : vector<16x16xf32>
    %285 = tpu.matmul %282, %283, %cst_144 {dimension_numbers = #tpu.dot_dimension_numbers<[1], [1], [0], [0], [0, 0, 1, 0], [], []>} : vector<16x16xf32>, vector<16x16xf32>, vector<16x16xf32> -> vector<16x16xf32>
    %cst_145 = arith.constant -1.000000e+30 : f32
    %286 = vector.shape_cast %258 : vector<1x16xi1> to vector<1x16xi1>
    %287 = vector.broadcast %286 : vector<1x16xi1> to vector<16x16xi1>
    %288 = vector.broadcast %cst_145 : f32 to vector<16x16xf32>
    %289 = arith.select %287, %285, %288 : vector<16x16xi1>, vector<16x16xf32>
    %cst_146 = arith.constant dense<0xFF800000> : vector<16xf32>
    %290 = vector.multi_reduction <maximumf>, %289, %cst_146 [1] : vector<16x16xf32> to vector<16xf32>
    %291 = vector.shape_cast %290 : vector<16xf32> to vector<16x1xf32>
    %292 = vector.broadcast %291 : vector<16x1xf32> to vector<16x16xf32>
    %293 = arith.subf %289, %292 : vector<16x16xf32>
    %294 = math.exp %293 : vector<16x16xf32>
    %cst_147 = arith.constant dense<0.000000e+00> : vector<16xf32>
    %295 = vector.multi_reduction <add>, %294, %cst_147 [1] : vector<16x16xf32> to vector<16xf32>
    %296 = vector.shape_cast %295 : vector<16xf32> to vector<16x1xf32>
    %297 = tpu.reciprocal %296 {approx = true} : vector<16x1xf32> -> vector<16x1xf32>
    %298 = vector.broadcast %297 : vector<16x1xf32> to vector<16x16xf32>
    %299 = arith.mulf %294, %298 : vector<16x16xf32>
    %cst_148 = arith.constant dense<0.000000e+00> : vector<16x16xf32>
    %300 = tpu.matmul %299, %284, %cst_148 {dimension_numbers = #tpu.dot_dimension_numbers<[1], [0], [0], [1], [0, 0, 1, 1], [], []>} : vector<16x16xf32>, vector<16x16xf32>, vector<16x16xf32> -> vector<16x16xf32>
    %301 = vector.extract_strided_slice %244 {offsets = [16, 0], sizes = [16, 32], strides = [1, 1]} : vector<32x32xf32> to vector<16x32xf32>
    %cst_149 = arith.constant dense<0.000000e+00> : vector<16x32xf32>
    %302 = tpu.matmul %300, %301, %cst_149 {dimension_numbers = #tpu.dot_dimension_numbers<[1], [0], [0], [1], [0, 0, 1, 1], [], []>} : vector<16x16xf32>, vector<16x32xf32>, vector<16x32xf32> -> vector<16x32xf32>
    %303 = arith.addf %281, %302 : vector<16x32xf32>
    %304 = vector.broadcast %245 : vector<1x32xf32> to vector<16x32xf32>
    %305 = arith.addf %303, %304 : vector<16x32xf32>
    %306 = arith.addf %233, %305 : vector<16x32xf32>
    %cst_150 = arith.constant dense<0.000000e+00> : vector<16xf32>
    %307 = vector.multi_reduction <add>, %306, %cst_150 [1] : vector<16x32xf32> to vector<16xf32>
    %308 = vector.shape_cast %307 : vector<16xf32> to vector<16x1xf32>
    %cst_151 = arith.constant 3.200000e+01 : f32
    %309 = vector.broadcast %cst_151 : f32 to vector<16x1xf32>
    %310 = arith.divf %308, %309 : vector<16x1xf32>
    %311 = vector.broadcast %310 : vector<16x1xf32> to vector<16x32xf32>
    %312 = arith.subf %306, %311 : vector<16x32xf32>
    %313 = arith.mulf %312, %312 : vector<16x32xf32>
    %cst_152 = arith.constant dense<0.000000e+00> : vector<16xf32>
    %314 = vector.multi_reduction <add>, %313, %cst_152 [1] : vector<16x32xf32> to vector<16xf32>
    %315 = vector.shape_cast %314 : vector<16xf32> to vector<16x1xf32>
    %cst_153 = arith.constant 3.200000e+01 : f32
    %316 = vector.broadcast %cst_153 : f32 to vector<16x1xf32>
    %317 = arith.divf %315, %316 : vector<16x1xf32>
    %318 = vector.broadcast %310 : vector<16x1xf32> to vector<16x32xf32>
    %319 = arith.subf %306, %318 : vector<16x32xf32>
    %cst_154 = arith.constant 9.99999974E-6 : f32
    %320 = vector.broadcast %cst_154 : f32 to vector<16x1xf32>
    %321 = arith.addf %317, %320 : vector<16x1xf32>
    %322 = math.rsqrt %321 : vector<16x1xf32>
    %323 = vector.broadcast %322 : vector<16x1xf32> to vector<16x32xf32>
    %324 = arith.mulf %319, %323 : vector<16x32xf32>
    %325 = vector.broadcast %250 : vector<1x32xf32> to vector<16x32xf32>
    %326 = arith.mulf %324, %325 : vector<16x32xf32>
    %327 = vector.broadcast %251 : vector<1x32xf32> to vector<16x32xf32>
    %328 = arith.addf %326, %327 : vector<16x32xf32>
    %cst_155 = arith.constant dense<0.000000e+00> : vector<16x32xf32>
    %329 = tpu.matmul %328, %246, %cst_155 {dimension_numbers = #tpu.dot_dimension_numbers<[1], [0], [0], [1], [0, 0, 1, 1], [], []>} : vector<16x32xf32>, vector<32x32xf32>, vector<16x32xf32> -> vector<16x32xf32>
    %330 = vector.broadcast %247 : vector<1x32xf32> to vector<16x32xf32>
    %331 = arith.addf %329, %330 : vector<16x32xf32>
    %cst_156 = arith.constant 0.000000e+00 : f32
    %332 = vector.broadcast %cst_156 : f32 to vector<16x32xf32>
    %333 = arith.maximumf %331, %332 : vector<16x32xf32>
    %cst_157 = arith.constant dense<0.000000e+00> : vector<16x32xf32>
    %334 = tpu.matmul %333, %248, %cst_157 {dimension_numbers = #tpu.dot_dimension_numbers<[1], [0], [0], [1], [0, 0, 1, 1], [], []>} : vector<16x32xf32>, vector<32x32xf32>, vector<16x32xf32> -> vector<16x32xf32>
    %335 = vector.broadcast %249 : vector<1x32xf32> to vector<16x32xf32>
    %336 = arith.addf %334, %335 : vector<16x32xf32>
    %337 = arith.addf %328, %336 : vector<16x32xf32>
    %cst_158 = arith.constant dense<0.000000e+00> : vector<16xf32>
    %338 = vector.multi_reduction <add>, %337, %cst_158 [1] : vector<16x32xf32> to vector<16xf32>
    %339 = vector.shape_cast %338 : vector<16xf32> to vector<16x1xf32>
    %cst_159 = arith.constant 3.200000e+01 : f32
    %340 = vector.broadcast %cst_159 : f32 to vector<16x1xf32>
    %341 = arith.divf %339, %340 : vector<16x1xf32>
    %342 = vector.broadcast %341 : vector<16x1xf32> to vector<16x32xf32>
    %343 = arith.subf %337, %342 : vector<16x32xf32>
    %344 = arith.mulf %343, %343 : vector<16x32xf32>
    %cst_160 = arith.constant dense<0.000000e+00> : vector<16xf32>
    %345 = vector.multi_reduction <add>, %344, %cst_160 [1] : vector<16x32xf32> to vector<16xf32>
    %346 = vector.shape_cast %345 : vector<16xf32> to vector<16x1xf32>
    %cst_161 = arith.constant 3.200000e+01 : f32
    %347 = vector.broadcast %cst_161 : f32 to vector<16x1xf32>
    %348 = arith.divf %346, %347 : vector<16x1xf32>
    %349 = vector.broadcast %341 : vector<16x1xf32> to vector<16x32xf32>
    %350 = arith.subf %337, %349 : vector<16x32xf32>
    %cst_162 = arith.constant 9.99999974E-6 : f32
    %351 = vector.broadcast %cst_162 : f32 to vector<16x1xf32>
    %352 = arith.addf %348, %351 : vector<16x1xf32>
    %353 = math.rsqrt %352 : vector<16x1xf32>
    %354 = vector.broadcast %353 : vector<16x1xf32> to vector<16x32xf32>
    %355 = arith.mulf %350, %354 : vector<16x32xf32>
    %356 = vector.broadcast %252 : vector<1x32xf32> to vector<16x32xf32>
    %357 = arith.mulf %355, %356 : vector<16x32xf32>
    %358 = vector.broadcast %253 : vector<1x32xf32> to vector<16x32xf32>
    %359 = arith.addf %357, %358 : vector<16x32xf32>
    %360 = vector.broadcast %7 : f32 to vector<16x32xf32>
    %361 = arith.mulf %360, %359 : vector<16x32xf32>
    %cst_163 = arith.constant 1.000000e+00 : f32
    %362 = arith.subf %cst_163, %7 : f32
    %363 = vector.broadcast %362 : f32 to vector<16x32xf32>
    %364 = arith.mulf %363, %233 : vector<16x32xf32>
    %365 = arith.addf %361, %364 : vector<16x32xf32>
    %366 = vector.broadcast %228 : vector<16x1xf32> to vector<16x16xf32>
    %367 = arith.mulf %6, %366 : vector<16x16xf32>
    %368 = vector.broadcast %241 : vector<1x16xf32> to vector<16x16xf32>
    %369 = arith.mulf %367, %368 : vector<16x16xf32>
    %cst_164 = arith.constant dense<0.000000e+00> : vector<16xf32>
    %370 = vector.multi_reduction <add>, %369, %cst_164 [1] : vector<16x16xf32> to vector<16xf32>
    %371 = vector.shape_cast %370 : vector<16xf32> to vector<16x1xf32>
    %cst_165 = arith.constant 1.000000e+00 : f32
    %372 = vector.broadcast %cst_165 : f32 to vector<16x1xf32>
    %373 = arith.addf %371, %372 : vector<16x1xf32>
    %374 = math.rsqrt %373 : vector<16x1xf32>
    %c1 = arith.constant 1 : index
    %c0_166 = arith.constant 0 : index
    %c0_167 = arith.constant 0 : index
    %375 = vector.load %arg17[%c1, %c0_166, %c0_167] : memref<4x32x32xf32, #tpu.memory_space<vmem>>, vector<1x32x32xf32>
    %376 = vector.shape_cast %375 : vector<1x32x32xf32> to vector<32x32xf32>
    %cst_168 = arith.constant dense<0.000000e+00> : vector<16x32xf32>
    %377 = tpu.matmul %365, %376, %cst_168 {dimension_numbers = #tpu.dot_dimension_numbers<[1], [0], [0], [1], [0, 0, 1, 1], [], []>} : vector<16x32xf32>, vector<32x32xf32>, vector<16x32xf32> -> vector<16x32xf32>
    %378 = vector.broadcast %374 : vector<16x1xf32> to vector<16x32xf32>
    %379 = arith.mulf %378, %377 : vector<16x32xf32>
    %cst_169 = arith.constant dense<0.000000e+00> : vector<16x32xf32>
    %380 = tpu.matmul %369, %379, %cst_169 {dimension_numbers = #tpu.dot_dimension_numbers<[1], [0], [0], [1], [0, 0, 1, 1], [], []>} : vector<16x16xf32>, vector<16x32xf32>, vector<16x32xf32> -> vector<16x32xf32>
    %381 = vector.broadcast %374 : vector<16x1xf32> to vector<16x32xf32>
    %382 = arith.mulf %381, %380 : vector<16x32xf32>
    %383 = arith.mulf %374, %374 : vector<16x1xf32>
    %384 = vector.broadcast %383 : vector<16x1xf32> to vector<16x32xf32>
    %385 = arith.mulf %384, %377 : vector<16x32xf32>
    %386 = arith.addf %382, %385 : vector<16x32xf32>
    %c1_170 = arith.constant 1 : index
    %c0_171 = arith.constant 0 : index
    %c0_172 = arith.constant 0 : index
    %387 = vector.load %arg18[%c1_170, %c0_171, %c0_172] : memref<4x1x32xf32, #tpu.memory_space<vmem>>, vector<1x1x32xf32>
    %388 = vector.shape_cast %387 : vector<1x1x32xf32> to vector<1x32xf32>
    %389 = vector.broadcast %388 : vector<1x32xf32> to vector<16x32xf32>
    %390 = arith.addf %386, %389 : vector<16x32xf32>
    %c1_173 = arith.constant 1 : index
    %c0_174 = arith.constant 0 : index
    %c0_175 = arith.constant 0 : index
    %391 = vector.load %arg19[%c1_173, %c0_174, %c0_175] : memref<4x32x32xf32, #tpu.memory_space<vmem>>, vector<1x32x32xf32>
    %392 = vector.shape_cast %391 : vector<1x32x32xf32> to vector<32x32xf32>
    %cst_176 = arith.constant dense<0.000000e+00> : vector<16x32xf32>
    %393 = tpu.matmul %390, %392, %cst_176 {dimension_numbers = #tpu.dot_dimension_numbers<[1], [0], [0], [1], [0, 0, 1, 1], [], []>} : vector<16x32xf32>, vector<32x32xf32>, vector<16x32xf32> -> vector<16x32xf32>
    %c1_177 = arith.constant 1 : index
    %c0_178 = arith.constant 0 : index
    %c0_179 = arith.constant 0 : index
    %394 = vector.load %arg20[%c1_177, %c0_178, %c0_179] : memref<4x1x32xf32, #tpu.memory_space<vmem>>, vector<1x1x32xf32>
    %395 = vector.shape_cast %394 : vector<1x1x32xf32> to vector<1x32xf32>
    %396 = vector.broadcast %395 : vector<1x32xf32> to vector<16x32xf32>
    %397 = arith.addf %393, %396 : vector<16x32xf32>
    %cst_180 = arith.constant 0.000000e+00 : f32
    %398 = vector.broadcast %cst_180 : f32 to vector<16x32xf32>
    %399 = arith.maximumf %397, %398 : vector<16x32xf32>
    %c1_181 = arith.constant 1 : index
    %c0_182 = arith.constant 0 : index
    %c0_183 = arith.constant 0 : index
    %400 = vector.load %arg21[%c1_181, %c0_182, %c0_183] : memref<4x1x32xf32, #tpu.memory_space<vmem>>, vector<1x1x32xf32>
    %401 = vector.shape_cast %400 : vector<1x1x32xf32> to vector<1x32xf32>
    %402 = vector.broadcast %401 : vector<1x32xf32> to vector<16x32xf32>
    %403 = arith.mulf %399, %402 : vector<16x32xf32>
    %c1_184 = arith.constant 1 : index
    %c0_185 = arith.constant 0 : index
    %c0_186 = arith.constant 0 : index
    %404 = vector.load %arg22[%c1_184, %c0_185, %c0_186] : memref<4x1x32xf32, #tpu.memory_space<vmem>>, vector<1x1x32xf32>
    %405 = vector.shape_cast %404 : vector<1x1x32xf32> to vector<1x32xf32>
    %406 = vector.broadcast %405 : vector<1x32xf32> to vector<16x32xf32>
    %407 = arith.addf %403, %406 : vector<16x32xf32>
    %cst_187 = arith.constant dense<0.000000e+00> : vector<16x32xf32>
    %408 = tpu.matmul %369, %407, %cst_187 {dimension_numbers = #tpu.dot_dimension_numbers<[1], [0], [0], [1], [0, 0, 1, 1], [], []>} : vector<16x16xf32>, vector<16x32xf32>, vector<16x32xf32> -> vector<16x32xf32>
    %c1_188 = arith.constant 1 : index
    %c0_189 = arith.constant 0 : index
    %c0_190 = arith.constant 0 : index
    %409 = vector.load %arg23[%c1_188, %c0_189, %c0_190] : memref<4x1x32xf32, #tpu.memory_space<vmem>>, vector<1x1x32xf32>
    %410 = vector.shape_cast %409 : vector<1x1x32xf32> to vector<1x32xf32>
    %411 = vector.broadcast %410 : vector<1x32xf32> to vector<16x32xf32>
    %412 = arith.mulf %408, %411 : vector<16x32xf32>
    %c1_191 = arith.constant 1 : index
    %c0_192 = arith.constant 0 : index
    %c0_193 = arith.constant 0 : index
    %413 = vector.load %arg24[%c1_191, %c0_192, %c0_193] : memref<4x1x32xf32, #tpu.memory_space<vmem>>, vector<1x1x32xf32>
    %414 = vector.shape_cast %413 : vector<1x1x32xf32> to vector<1x32xf32>
    %415 = vector.broadcast %414 : vector<1x32xf32> to vector<16x32xf32>
    %416 = arith.mulf %407, %415 : vector<16x32xf32>
    %417 = arith.addf %412, %416 : vector<16x32xf32>
    %cst_194 = arith.constant dense<0.000000e+00> : vector<16xf32>
    %418 = vector.multi_reduction <add>, %417, %cst_194 [1] : vector<16x32xf32> to vector<16xf32>
    %419 = vector.shape_cast %418 : vector<16xf32> to vector<16x1xf32>
    %c1_195 = arith.constant 1 : index
    %420 = memref.load %arg25[%c1_195] : memref<4xf32, #tpu.memory_space<smem>>
    %421 = vector.broadcast %420 : f32 to vector<16x1xf32>
    %422 = arith.addf %419, %421 : vector<16x1xf32>
    %423 = vector.shape_cast %419 : vector<16x1xf32> to vector<16x1xf32>
    %424 = vector.broadcast %423 : vector<16x1xf32> to vector<16x32xf32>
    %cst_196 = arith.constant dense<0.000000e+00> : vector<1x16xf32>
    %425 = tpu.matmul %8, %424, %cst_196 {dimension_numbers = #tpu.dot_dimension_numbers<[1], [1], [0], [0], [0, 0, 1, 0], [], []>} : vector<1x32xf32>, vector<16x32xf32>, vector<1x16xf32> -> vector<1x16xf32>
    %cst_197 = arith.constant 3.125000e-02 : f32
    %426 = vector.broadcast %cst_197 : f32 to vector<1x16xf32>
    %427 = arith.mulf %425, %426 : vector<1x16xf32>
    %428 = arith.cmpi ne, %9, %10 : vector<16x16xi32>
    %429 = vector.broadcast %427 : vector<1x16xf32> to vector<16x16xf32>
    %430 = vector.broadcast %419 : vector<16x1xf32> to vector<16x16xf32>
    %431 = arith.cmpf ogt, %429, %430 : vector<16x16xf32>
    %432 = vector.broadcast %427 : vector<1x16xf32> to vector<16x16xf32>
    %433 = vector.broadcast %419 : vector<16x1xf32> to vector<16x16xf32>
    %434 = arith.cmpf oeq, %432, %433 : vector<16x16xf32>
    %435 = arith.cmpi slt, %10, %9 : vector<16x16xi32>
    %436 = arith.andi %434, %435 : vector<16x16xi1>
    %437 = arith.ori %431, %436 : vector<16x16xi1>
    %438 = arith.andi %428, %437 : vector<16x16xi1>
    %cst_198 = arith.constant 0.000000e+00 : f32
    %439 = vector.shape_cast %241 : vector<1x16xf32> to vector<1x16xf32>
    %440 = vector.broadcast %439 : vector<1x16xf32> to vector<16x16xf32>
    %441 = vector.broadcast %cst_198 : f32 to vector<16x16xf32>
    %442 = arith.select %438, %440, %441 : vector<16x16xi1>, vector<16x16xf32>
    %cst_199 = arith.constant dense<0.000000e+00> : vector<16xf32>
    %443 = vector.multi_reduction <add>, %442, %cst_199 [1] : vector<16x16xf32> to vector<16xf32>
    %444 = vector.shape_cast %443 : vector<16xf32> to vector<16x1xf32>
    %cst_200 = arith.constant 4.000000e+00 : f32
    %445 = vector.broadcast %cst_200 : f32 to vector<16x1xf32>
    %446 = arith.cmpf olt, %444, %445 : vector<16x1xf32>
    %cst_201 = arith.constant 1.000000e+00 : f32
    %cst_202 = arith.constant 0.000000e+00 : f32
    %447 = vector.broadcast %cst_201 : f32 to vector<16x1xf32>
    %448 = vector.broadcast %cst_202 : f32 to vector<16x1xf32>
    %449 = arith.select %446, %447, %448 : vector<16x1xi1>, vector<16x1xf32>
    %450 = arith.mulf %228, %449 : vector<16x1xf32>
    %451 = math.tanh %422 : vector<16x1xf32>
    %452 = vector.broadcast %451 : vector<16x1xf32> to vector<16x32xf32>
    %453 = arith.mulf %407, %452 : vector<16x32xf32>
    %454 = vector.broadcast %450 : vector<16x1xf32> to vector<16x32xf32>
    %455 = arith.mulf %453, %454 : vector<16x32xf32>
    %456 = vector.shape_cast %450 : vector<16x1xf32> to vector<16x1xf32>
    %457 = vector.broadcast %456 : vector<16x1xf32> to vector<16x32xf32>
    %cst_203 = arith.constant dense<0.000000e+00> : vector<1x16xf32>
    %458 = tpu.matmul %8, %457, %cst_203 {dimension_numbers = #tpu.dot_dimension_numbers<[1], [1], [0], [0], [0, 0, 1, 0], [], []>} : vector<1x32xf32>, vector<16x32xf32>, vector<1x16xf32> -> vector<1x16xf32>
    %cst_204 = arith.constant 1.600000e+01 : f32
    %459 = vector.broadcast %cst_204 : f32 to vector<1x16xf32>
    %460 = arith.cmpf ogt, %458, %459 : vector<1x16xf32>
    %cst_205 = arith.constant 1.000000e+00 : f32
    %cst_206 = arith.constant 0.000000e+00 : f32
    %461 = vector.broadcast %cst_205 : f32 to vector<1x16xf32>
    %462 = vector.broadcast %cst_206 : f32 to vector<1x16xf32>
    %463 = arith.select %460, %461, %462 : vector<1x16xi1>, vector<1x16xf32>
    %c0_207 = arith.constant 0 : index
    %c0_208 = arith.constant 0 : index
    %464 = vector.load %arg5[%c0_207, %c0_208] : memref<32x96xf32, #tpu.memory_space<vmem>>, vector<32x96xf32>
    %c0_209 = arith.constant 0 : index
    %c0_210 = arith.constant 0 : index
    %465 = vector.load %arg6[%c0_209, %c0_210] : memref<1x96xf32, #tpu.memory_space<vmem>>, vector<1x96xf32>
    %c0_211 = arith.constant 0 : index
    %c0_212 = arith.constant 0 : index
    %466 = vector.load %arg7[%c0_211, %c0_212] : memref<32x32xf32, #tpu.memory_space<vmem>>, vector<32x32xf32>
    %c0_213 = arith.constant 0 : index
    %c0_214 = arith.constant 0 : index
    %467 = vector.load %arg8[%c0_213, %c0_214] : memref<1x32xf32, #tpu.memory_space<vmem>>, vector<1x32xf32>
    %c0_215 = arith.constant 0 : index
    %c0_216 = arith.constant 0 : index
    %468 = vector.load %arg9[%c0_215, %c0_216] : memref<32x32xf32, #tpu.memory_space<vmem>>, vector<32x32xf32>
    %c0_217 = arith.constant 0 : index
    %c0_218 = arith.constant 0 : index
    %469 = vector.load %arg10[%c0_217, %c0_218] : memref<1x32xf32, #tpu.memory_space<vmem>>, vector<1x32xf32>
    %c0_219 = arith.constant 0 : index
    %c0_220 = arith.constant 0 : index
    %470 = vector.load %arg11[%c0_219, %c0_220] : memref<32x32xf32, #tpu.memory_space<vmem>>, vector<32x32xf32>
    %c0_221 = arith.constant 0 : index
    %c0_222 = arith.constant 0 : index
    %471 = vector.load %arg12[%c0_221, %c0_222] : memref<1x32xf32, #tpu.memory_space<vmem>>, vector<1x32xf32>
    %c0_223 = arith.constant 0 : index
    %c0_224 = arith.constant 0 : index
    %472 = vector.load %arg13[%c0_223, %c0_224] : memref<1x32xf32, #tpu.memory_space<vmem>>, vector<1x32xf32>
    %c0_225 = arith.constant 0 : index
    %c0_226 = arith.constant 0 : index
    %473 = vector.load %arg14[%c0_225, %c0_226] : memref<1x32xf32, #tpu.memory_space<vmem>>, vector<1x32xf32>
    %c0_227 = arith.constant 0 : index
    %c0_228 = arith.constant 0 : index
    %474 = vector.load %arg15[%c0_227, %c0_228] : memref<1x32xf32, #tpu.memory_space<vmem>>, vector<1x32xf32>
    %c0_229 = arith.constant 0 : index
    %c0_230 = arith.constant 0 : index
    %475 = vector.load %arg16[%c0_229, %c0_230] : memref<1x32xf32, #tpu.memory_space<vmem>>, vector<1x32xf32>
    %cst_231 = arith.constant dense<0.000000e+00> : vector<16x96xf32>
    %476 = tpu.matmul %455, %464, %cst_231 {dimension_numbers = #tpu.dot_dimension_numbers<[1], [0], [0], [1], [0, 0, 1, 1], [], []>} : vector<16x32xf32>, vector<32x96xf32>, vector<16x96xf32> -> vector<16x96xf32>
    %477 = vector.broadcast %465 : vector<1x96xf32> to vector<16x96xf32>
    %478 = arith.addf %476, %477 : vector<16x96xf32>
    %cst_232 = arith.constant 5.000000e-01 : f32
    %479 = vector.broadcast %cst_232 : f32 to vector<1x16xf32>
    %480 = arith.cmpf ogt, %463, %479 : vector<1x16xf32>
    %cst_233 = arith.constant 0.000000e+00 : f32
    %481 = vector.broadcast %cst_233 : f32 to vector<16x32xf32>
    %482 = vector.extract_strided_slice %478 {offsets = [0, 0], sizes = [16, 16], strides = [1, 1]} : vector<16x96xf32> to vector<16x16xf32>
    %483 = vector.extract_strided_slice %478 {offsets = [0, 32], sizes = [16, 16], strides = [1, 1]} : vector<16x96xf32> to vector<16x16xf32>
    %484 = vector.extract_strided_slice %478 {offsets = [0, 64], sizes = [16, 16], strides = [1, 1]} : vector<16x96xf32> to vector<16x16xf32>
    %cst_234 = arith.constant dense<0.000000e+00> : vector<16x16xf32>
    %485 = tpu.matmul %482, %483, %cst_234 {dimension_numbers = #tpu.dot_dimension_numbers<[1], [1], [0], [0], [0, 0, 1, 0], [], []>} : vector<16x16xf32>, vector<16x16xf32>, vector<16x16xf32> -> vector<16x16xf32>
    %cst_235 = arith.constant -1.000000e+30 : f32
    %486 = vector.shape_cast %480 : vector<1x16xi1> to vector<1x16xi1>
    %487 = vector.broadcast %486 : vector<1x16xi1> to vector<16x16xi1>
    %488 = vector.broadcast %cst_235 : f32 to vector<16x16xf32>
    %489 = arith.select %487, %485, %488 : vector<16x16xi1>, vector<16x16xf32>
    %cst_236 = arith.constant dense<0xFF800000> : vector<16xf32>
    %490 = vector.multi_reduction <maximumf>, %489, %cst_236 [1] : vector<16x16xf32> to vector<16xf32>
    %491 = vector.shape_cast %490 : vector<16xf32> to vector<16x1xf32>
    %492 = vector.broadcast %491 : vector<16x1xf32> to vector<16x16xf32>
    %493 = arith.subf %489, %492 : vector<16x16xf32>
    %494 = math.exp %493 : vector<16x16xf32>
    %cst_237 = arith.constant dense<0.000000e+00> : vector<16xf32>
    %495 = vector.multi_reduction <add>, %494, %cst_237 [1] : vector<16x16xf32> to vector<16xf32>
    %496 = vector.shape_cast %495 : vector<16xf32> to vector<16x1xf32>
    %497 = tpu.reciprocal %496 {approx = true} : vector<16x1xf32> -> vector<16x1xf32>
    %498 = vector.broadcast %497 : vector<16x1xf32> to vector<16x16xf32>
    %499 = arith.mulf %494, %498 : vector<16x16xf32>
    %cst_238 = arith.constant dense<0.000000e+00> : vector<16x16xf32>
    %500 = tpu.matmul %499, %484, %cst_238 {dimension_numbers = #tpu.dot_dimension_numbers<[1], [0], [0], [1], [0, 0, 1, 1], [], []>} : vector<16x16xf32>, vector<16x16xf32>, vector<16x16xf32> -> vector<16x16xf32>
    %501 = vector.extract_strided_slice %466 {offsets = [0, 0], sizes = [16, 32], strides = [1, 1]} : vector<32x32xf32> to vector<16x32xf32>
    %cst_239 = arith.constant dense<0.000000e+00> : vector<16x32xf32>
    %502 = tpu.matmul %500, %501, %cst_239 {dimension_numbers = #tpu.dot_dimension_numbers<[1], [0], [0], [1], [0, 0, 1, 1], [], []>} : vector<16x16xf32>, vector<16x32xf32>, vector<16x32xf32> -> vector<16x32xf32>
    %503 = arith.addf %481, %502 : vector<16x32xf32>
    %504 = vector.extract_strided_slice %478 {offsets = [0, 16], sizes = [16, 16], strides = [1, 1]} : vector<16x96xf32> to vector<16x16xf32>
    %505 = vector.extract_strided_slice %478 {offsets = [0, 48], sizes = [16, 16], strides = [1, 1]} : vector<16x96xf32> to vector<16x16xf32>
    %506 = vector.extract_strided_slice %478 {offsets = [0, 80], sizes = [16, 16], strides = [1, 1]} : vector<16x96xf32> to vector<16x16xf32>
    %cst_240 = arith.constant dense<0.000000e+00> : vector<16x16xf32>
    %507 = tpu.matmul %504, %505, %cst_240 {dimension_numbers = #tpu.dot_dimension_numbers<[1], [1], [0], [0], [0, 0, 1, 0], [], []>} : vector<16x16xf32>, vector<16x16xf32>, vector<16x16xf32> -> vector<16x16xf32>
    %cst_241 = arith.constant -1.000000e+30 : f32
    %508 = vector.shape_cast %480 : vector<1x16xi1> to vector<1x16xi1>
    %509 = vector.broadcast %508 : vector<1x16xi1> to vector<16x16xi1>
    %510 = vector.broadcast %cst_241 : f32 to vector<16x16xf32>
    %511 = arith.select %509, %507, %510 : vector<16x16xi1>, vector<16x16xf32>
    %cst_242 = arith.constant dense<0xFF800000> : vector<16xf32>
    %512 = vector.multi_reduction <maximumf>, %511, %cst_242 [1] : vector<16x16xf32> to vector<16xf32>
    %513 = vector.shape_cast %512 : vector<16xf32> to vector<16x1xf32>
    %514 = vector.broadcast %513 : vector<16x1xf32> to vector<16x16xf32>
    %515 = arith.subf %511, %514 : vector<16x16xf32>
    %516 = math.exp %515 : vector<16x16xf32>
    %cst_243 = arith.constant dense<0.000000e+00> : vector<16xf32>
    %517 = vector.multi_reduction <add>, %516, %cst_243 [1] : vector<16x16xf32> to vector<16xf32>
    %518 = vector.shape_cast %517 : vector<16xf32> to vector<16x1xf32>
    %519 = tpu.reciprocal %518 {approx = true} : vector<16x1xf32> -> vector<16x1xf32>
    %520 = vector.broadcast %519 : vector<16x1xf32> to vector<16x16xf32>
    %521 = arith.mulf %516, %520 : vector<16x16xf32>
    %cst_244 = arith.constant dense<0.000000e+00> : vector<16x16xf32>
    %522 = tpu.matmul %521, %506, %cst_244 {dimension_numbers = #tpu.dot_dimension_numbers<[1], [0], [0], [1], [0, 0, 1, 1], [], []>} : vector<16x16xf32>, vector<16x16xf32>, vector<16x16xf32> -> vector<16x16xf32>
    %523 = vector.extract_strided_slice %466 {offsets = [16, 0], sizes = [16, 32], strides = [1, 1]} : vector<32x32xf32> to vector<16x32xf32>
    %cst_245 = arith.constant dense<0.000000e+00> : vector<16x32xf32>
    %524 = tpu.matmul %522, %523, %cst_245 {dimension_numbers = #tpu.dot_dimension_numbers<[1], [0], [0], [1], [0, 0, 1, 1], [], []>} : vector<16x16xf32>, vector<16x32xf32>, vector<16x32xf32> -> vector<16x32xf32>
    %525 = arith.addf %503, %524 : vector<16x32xf32>
    %526 = vector.broadcast %467 : vector<1x32xf32> to vector<16x32xf32>
    %527 = arith.addf %525, %526 : vector<16x32xf32>
    %528 = arith.addf %455, %527 : vector<16x32xf32>
    %cst_246 = arith.constant dense<0.000000e+00> : vector<16xf32>
    %529 = vector.multi_reduction <add>, %528, %cst_246 [1] : vector<16x32xf32> to vector<16xf32>
    %530 = vector.shape_cast %529 : vector<16xf32> to vector<16x1xf32>
    %cst_247 = arith.constant 3.200000e+01 : f32
    %531 = vector.broadcast %cst_247 : f32 to vector<16x1xf32>
    %532 = arith.divf %530, %531 : vector<16x1xf32>
    %533 = vector.broadcast %532 : vector<16x1xf32> to vector<16x32xf32>
    %534 = arith.subf %528, %533 : vector<16x32xf32>
    %535 = arith.mulf %534, %534 : vector<16x32xf32>
    %cst_248 = arith.constant dense<0.000000e+00> : vector<16xf32>
    %536 = vector.multi_reduction <add>, %535, %cst_248 [1] : vector<16x32xf32> to vector<16xf32>
    %537 = vector.shape_cast %536 : vector<16xf32> to vector<16x1xf32>
    %cst_249 = arith.constant 3.200000e+01 : f32
    %538 = vector.broadcast %cst_249 : f32 to vector<16x1xf32>
    %539 = arith.divf %537, %538 : vector<16x1xf32>
    %540 = vector.broadcast %532 : vector<16x1xf32> to vector<16x32xf32>
    %541 = arith.subf %528, %540 : vector<16x32xf32>
    %cst_250 = arith.constant 9.99999974E-6 : f32
    %542 = vector.broadcast %cst_250 : f32 to vector<16x1xf32>
    %543 = arith.addf %539, %542 : vector<16x1xf32>
    %544 = math.rsqrt %543 : vector<16x1xf32>
    %545 = vector.broadcast %544 : vector<16x1xf32> to vector<16x32xf32>
    %546 = arith.mulf %541, %545 : vector<16x32xf32>
    %547 = vector.broadcast %472 : vector<1x32xf32> to vector<16x32xf32>
    %548 = arith.mulf %546, %547 : vector<16x32xf32>
    %549 = vector.broadcast %473 : vector<1x32xf32> to vector<16x32xf32>
    %550 = arith.addf %548, %549 : vector<16x32xf32>
    %cst_251 = arith.constant dense<0.000000e+00> : vector<16x32xf32>
    %551 = tpu.matmul %550, %468, %cst_251 {dimension_numbers = #tpu.dot_dimension_numbers<[1], [0], [0], [1], [0, 0, 1, 1], [], []>} : vector<16x32xf32>, vector<32x32xf32>, vector<16x32xf32> -> vector<16x32xf32>
    %552 = vector.broadcast %469 : vector<1x32xf32> to vector<16x32xf32>
    %553 = arith.addf %551, %552 : vector<16x32xf32>
    %cst_252 = arith.constant 0.000000e+00 : f32
    %554 = vector.broadcast %cst_252 : f32 to vector<16x32xf32>
    %555 = arith.maximumf %553, %554 : vector<16x32xf32>
    %cst_253 = arith.constant dense<0.000000e+00> : vector<16x32xf32>
    %556 = tpu.matmul %555, %470, %cst_253 {dimension_numbers = #tpu.dot_dimension_numbers<[1], [0], [0], [1], [0, 0, 1, 1], [], []>} : vector<16x32xf32>, vector<32x32xf32>, vector<16x32xf32> -> vector<16x32xf32>
    %557 = vector.broadcast %471 : vector<1x32xf32> to vector<16x32xf32>
    %558 = arith.addf %556, %557 : vector<16x32xf32>
    %559 = arith.addf %550, %558 : vector<16x32xf32>
    %cst_254 = arith.constant dense<0.000000e+00> : vector<16xf32>
    %560 = vector.multi_reduction <add>, %559, %cst_254 [1] : vector<16x32xf32> to vector<16xf32>
    %561 = vector.shape_cast %560 : vector<16xf32> to vector<16x1xf32>
    %cst_255 = arith.constant 3.200000e+01 : f32
    %562 = vector.broadcast %cst_255 : f32 to vector<16x1xf32>
    %563 = arith.divf %561, %562 : vector<16x1xf32>
    %564 = vector.broadcast %563 : vector<16x1xf32> to vector<16x32xf32>
    %565 = arith.subf %559, %564 : vector<16x32xf32>
    %566 = arith.mulf %565, %565 : vector<16x32xf32>
    %cst_256 = arith.constant dense<0.000000e+00> : vector<16xf32>
    %567 = vector.multi_reduction <add>, %566, %cst_256 [1] : vector<16x32xf32> to vector<16xf32>
    %568 = vector.shape_cast %567 : vector<16xf32> to vector<16x1xf32>
    %cst_257 = arith.constant 3.200000e+01 : f32
    %569 = vector.broadcast %cst_257 : f32 to vector<16x1xf32>
    %570 = arith.divf %568, %569 : vector<16x1xf32>
    %571 = vector.broadcast %563 : vector<16x1xf32> to vector<16x32xf32>
    %572 = arith.subf %559, %571 : vector<16x32xf32>
    %cst_258 = arith.constant 9.99999974E-6 : f32
    %573 = vector.broadcast %cst_258 : f32 to vector<16x1xf32>
    %574 = arith.addf %570, %573 : vector<16x1xf32>
    %575 = math.rsqrt %574 : vector<16x1xf32>
    %576 = vector.broadcast %575 : vector<16x1xf32> to vector<16x32xf32>
    %577 = arith.mulf %572, %576 : vector<16x32xf32>
    %578 = vector.broadcast %474 : vector<1x32xf32> to vector<16x32xf32>
    %579 = arith.mulf %577, %578 : vector<16x32xf32>
    %580 = vector.broadcast %475 : vector<1x32xf32> to vector<16x32xf32>
    %581 = arith.addf %579, %580 : vector<16x32xf32>
    %582 = vector.broadcast %7 : f32 to vector<16x32xf32>
    %583 = arith.mulf %582, %581 : vector<16x32xf32>
    %cst_259 = arith.constant 1.000000e+00 : f32
    %584 = arith.subf %cst_259, %7 : f32
    %585 = vector.broadcast %584 : f32 to vector<16x32xf32>
    %586 = arith.mulf %585, %455 : vector<16x32xf32>
    %587 = arith.addf %583, %586 : vector<16x32xf32>
    %588 = vector.broadcast %450 : vector<16x1xf32> to vector<16x16xf32>
    %589 = arith.mulf %6, %588 : vector<16x16xf32>
    %590 = vector.broadcast %463 : vector<1x16xf32> to vector<16x16xf32>
    %591 = arith.mulf %589, %590 : vector<16x16xf32>
    %cst_260 = arith.constant dense<0.000000e+00> : vector<16xf32>
    %592 = vector.multi_reduction <add>, %591, %cst_260 [1] : vector<16x16xf32> to vector<16xf32>
    %593 = vector.shape_cast %592 : vector<16xf32> to vector<16x1xf32>
    %cst_261 = arith.constant 1.000000e+00 : f32
    %594 = vector.broadcast %cst_261 : f32 to vector<16x1xf32>
    %595 = arith.addf %593, %594 : vector<16x1xf32>
    %596 = math.rsqrt %595 : vector<16x1xf32>
    %c2 = arith.constant 2 : index
    %c0_262 = arith.constant 0 : index
    %c0_263 = arith.constant 0 : index
    %597 = vector.load %arg17[%c2, %c0_262, %c0_263] : memref<4x32x32xf32, #tpu.memory_space<vmem>>, vector<1x32x32xf32>
    %598 = vector.shape_cast %597 : vector<1x32x32xf32> to vector<32x32xf32>
    %cst_264 = arith.constant dense<0.000000e+00> : vector<16x32xf32>
    %599 = tpu.matmul %587, %598, %cst_264 {dimension_numbers = #tpu.dot_dimension_numbers<[1], [0], [0], [1], [0, 0, 1, 1], [], []>} : vector<16x32xf32>, vector<32x32xf32>, vector<16x32xf32> -> vector<16x32xf32>
    %600 = vector.broadcast %596 : vector<16x1xf32> to vector<16x32xf32>
    %601 = arith.mulf %600, %599 : vector<16x32xf32>
    %cst_265 = arith.constant dense<0.000000e+00> : vector<16x32xf32>
    %602 = tpu.matmul %591, %601, %cst_265 {dimension_numbers = #tpu.dot_dimension_numbers<[1], [0], [0], [1], [0, 0, 1, 1], [], []>} : vector<16x16xf32>, vector<16x32xf32>, vector<16x32xf32> -> vector<16x32xf32>
    %603 = vector.broadcast %596 : vector<16x1xf32> to vector<16x32xf32>
    %604 = arith.mulf %603, %602 : vector<16x32xf32>
    %605 = arith.mulf %596, %596 : vector<16x1xf32>
    %606 = vector.broadcast %605 : vector<16x1xf32> to vector<16x32xf32>
    %607 = arith.mulf %606, %599 : vector<16x32xf32>
    %608 = arith.addf %604, %607 : vector<16x32xf32>
    %c2_266 = arith.constant 2 : index
    %c0_267 = arith.constant 0 : index
    %c0_268 = arith.constant 0 : index
    %609 = vector.load %arg18[%c2_266, %c0_267, %c0_268] : memref<4x1x32xf32, #tpu.memory_space<vmem>>, vector<1x1x32xf32>
    %610 = vector.shape_cast %609 : vector<1x1x32xf32> to vector<1x32xf32>
    %611 = vector.broadcast %610 : vector<1x32xf32> to vector<16x32xf32>
    %612 = arith.addf %608, %611 : vector<16x32xf32>
    %c2_269 = arith.constant 2 : index
    %c0_270 = arith.constant 0 : index
    %c0_271 = arith.constant 0 : index
    %613 = vector.load %arg19[%c2_269, %c0_270, %c0_271] : memref<4x32x32xf32, #tpu.memory_space<vmem>>, vector<1x32x32xf32>
    %614 = vector.shape_cast %613 : vector<1x32x32xf32> to vector<32x32xf32>
    %cst_272 = arith.constant dense<0.000000e+00> : vector<16x32xf32>
    %615 = tpu.matmul %612, %614, %cst_272 {dimension_numbers = #tpu.dot_dimension_numbers<[1], [0], [0], [1], [0, 0, 1, 1], [], []>} : vector<16x32xf32>, vector<32x32xf32>, vector<16x32xf32> -> vector<16x32xf32>
    %c2_273 = arith.constant 2 : index
    %c0_274 = arith.constant 0 : index
    %c0_275 = arith.constant 0 : index
    %616 = vector.load %arg20[%c2_273, %c0_274, %c0_275] : memref<4x1x32xf32, #tpu.memory_space<vmem>>, vector<1x1x32xf32>
    %617 = vector.shape_cast %616 : vector<1x1x32xf32> to vector<1x32xf32>
    %618 = vector.broadcast %617 : vector<1x32xf32> to vector<16x32xf32>
    %619 = arith.addf %615, %618 : vector<16x32xf32>
    %cst_276 = arith.constant 0.000000e+00 : f32
    %620 = vector.broadcast %cst_276 : f32 to vector<16x32xf32>
    %621 = arith.maximumf %619, %620 : vector<16x32xf32>
    %c2_277 = arith.constant 2 : index
    %c0_278 = arith.constant 0 : index
    %c0_279 = arith.constant 0 : index
    %622 = vector.load %arg21[%c2_277, %c0_278, %c0_279] : memref<4x1x32xf32, #tpu.memory_space<vmem>>, vector<1x1x32xf32>
    %623 = vector.shape_cast %622 : vector<1x1x32xf32> to vector<1x32xf32>
    %624 = vector.broadcast %623 : vector<1x32xf32> to vector<16x32xf32>
    %625 = arith.mulf %621, %624 : vector<16x32xf32>
    %c2_280 = arith.constant 2 : index
    %c0_281 = arith.constant 0 : index
    %c0_282 = arith.constant 0 : index
    %626 = vector.load %arg22[%c2_280, %c0_281, %c0_282] : memref<4x1x32xf32, #tpu.memory_space<vmem>>, vector<1x1x32xf32>
    %627 = vector.shape_cast %626 : vector<1x1x32xf32> to vector<1x32xf32>
    %628 = vector.broadcast %627 : vector<1x32xf32> to vector<16x32xf32>
    %629 = arith.addf %625, %628 : vector<16x32xf32>
    %cst_283 = arith.constant dense<0.000000e+00> : vector<16x32xf32>
    %630 = tpu.matmul %591, %629, %cst_283 {dimension_numbers = #tpu.dot_dimension_numbers<[1], [0], [0], [1], [0, 0, 1, 1], [], []>} : vector<16x16xf32>, vector<16x32xf32>, vector<16x32xf32> -> vector<16x32xf32>
    %c2_284 = arith.constant 2 : index
    %c0_285 = arith.constant 0 : index
    %c0_286 = arith.constant 0 : index
    %631 = vector.load %arg23[%c2_284, %c0_285, %c0_286] : memref<4x1x32xf32, #tpu.memory_space<vmem>>, vector<1x1x32xf32>
    %632 = vector.shape_cast %631 : vector<1x1x32xf32> to vector<1x32xf32>
    %633 = vector.broadcast %632 : vector<1x32xf32> to vector<16x32xf32>
    %634 = arith.mulf %630, %633 : vector<16x32xf32>
    %c2_287 = arith.constant 2 : index
    %c0_288 = arith.constant 0 : index
    %c0_289 = arith.constant 0 : index
    %635 = vector.load %arg24[%c2_287, %c0_288, %c0_289] : memref<4x1x32xf32, #tpu.memory_space<vmem>>, vector<1x1x32xf32>
    %636 = vector.shape_cast %635 : vector<1x1x32xf32> to vector<1x32xf32>
    %637 = vector.broadcast %636 : vector<1x32xf32> to vector<16x32xf32>
    %638 = arith.mulf %629, %637 : vector<16x32xf32>
    %639 = arith.addf %634, %638 : vector<16x32xf32>
    %cst_290 = arith.constant dense<0.000000e+00> : vector<16xf32>
    %640 = vector.multi_reduction <add>, %639, %cst_290 [1] : vector<16x32xf32> to vector<16xf32>
    %641 = vector.shape_cast %640 : vector<16xf32> to vector<16x1xf32>
    %c2_291 = arith.constant 2 : index
    %642 = memref.load %arg25[%c2_291] : memref<4xf32, #tpu.memory_space<smem>>
    %643 = vector.broadcast %642 : f32 to vector<16x1xf32>
    %644 = arith.addf %641, %643 : vector<16x1xf32>
    %645 = vector.shape_cast %641 : vector<16x1xf32> to vector<16x1xf32>
    %646 = vector.broadcast %645 : vector<16x1xf32> to vector<16x32xf32>
    %cst_292 = arith.constant dense<0.000000e+00> : vector<1x16xf32>
    %647 = tpu.matmul %8, %646, %cst_292 {dimension_numbers = #tpu.dot_dimension_numbers<[1], [1], [0], [0], [0, 0, 1, 0], [], []>} : vector<1x32xf32>, vector<16x32xf32>, vector<1x16xf32> -> vector<1x16xf32>
    %cst_293 = arith.constant 3.125000e-02 : f32
    %648 = vector.broadcast %cst_293 : f32 to vector<1x16xf32>
    %649 = arith.mulf %647, %648 : vector<1x16xf32>
    %650 = arith.cmpi ne, %9, %10 : vector<16x16xi32>
    %651 = vector.broadcast %649 : vector<1x16xf32> to vector<16x16xf32>
    %652 = vector.broadcast %641 : vector<16x1xf32> to vector<16x16xf32>
    %653 = arith.cmpf ogt, %651, %652 : vector<16x16xf32>
    %654 = vector.broadcast %649 : vector<1x16xf32> to vector<16x16xf32>
    %655 = vector.broadcast %641 : vector<16x1xf32> to vector<16x16xf32>
    %656 = arith.cmpf oeq, %654, %655 : vector<16x16xf32>
    %657 = arith.cmpi slt, %10, %9 : vector<16x16xi32>
    %658 = arith.andi %656, %657 : vector<16x16xi1>
    %659 = arith.ori %653, %658 : vector<16x16xi1>
    %660 = arith.andi %650, %659 : vector<16x16xi1>
    %cst_294 = arith.constant 0.000000e+00 : f32
    %661 = vector.shape_cast %463 : vector<1x16xf32> to vector<1x16xf32>
    %662 = vector.broadcast %661 : vector<1x16xf32> to vector<16x16xf32>
    %663 = vector.broadcast %cst_294 : f32 to vector<16x16xf32>
    %664 = arith.select %660, %662, %663 : vector<16x16xi1>, vector<16x16xf32>
    %cst_295 = arith.constant dense<0.000000e+00> : vector<16xf32>
    %665 = vector.multi_reduction <add>, %664, %cst_295 [1] : vector<16x16xf32> to vector<16xf32>
    %666 = vector.shape_cast %665 : vector<16xf32> to vector<16x1xf32>
    %cst_296 = arith.constant 2.000000e+00 : f32
    %667 = vector.broadcast %cst_296 : f32 to vector<16x1xf32>
    %668 = arith.cmpf olt, %666, %667 : vector<16x1xf32>
    %cst_297 = arith.constant 1.000000e+00 : f32
    %cst_298 = arith.constant 0.000000e+00 : f32
    %669 = vector.broadcast %cst_297 : f32 to vector<16x1xf32>
    %670 = vector.broadcast %cst_298 : f32 to vector<16x1xf32>
    %671 = arith.select %668, %669, %670 : vector<16x1xi1>, vector<16x1xf32>
    %672 = arith.mulf %450, %671 : vector<16x1xf32>
    %673 = math.tanh %644 : vector<16x1xf32>
    %674 = vector.broadcast %673 : vector<16x1xf32> to vector<16x32xf32>
    %675 = arith.mulf %629, %674 : vector<16x32xf32>
    %676 = vector.broadcast %672 : vector<16x1xf32> to vector<16x32xf32>
    %677 = arith.mulf %675, %676 : vector<16x32xf32>
    %678 = vector.shape_cast %672 : vector<16x1xf32> to vector<16x1xf32>
    %679 = vector.broadcast %678 : vector<16x1xf32> to vector<16x32xf32>
    %cst_299 = arith.constant dense<0.000000e+00> : vector<1x16xf32>
    %680 = tpu.matmul %8, %679, %cst_299 {dimension_numbers = #tpu.dot_dimension_numbers<[1], [1], [0], [0], [0, 0, 1, 0], [], []>} : vector<1x32xf32>, vector<16x32xf32>, vector<1x16xf32> -> vector<1x16xf32>
    %cst_300 = arith.constant 1.600000e+01 : f32
    %681 = vector.broadcast %cst_300 : f32 to vector<1x16xf32>
    %682 = arith.cmpf ogt, %680, %681 : vector<1x16xf32>
    %cst_301 = arith.constant 1.000000e+00 : f32
    %cst_302 = arith.constant 0.000000e+00 : f32
    %683 = vector.broadcast %cst_301 : f32 to vector<1x16xf32>
    %684 = vector.broadcast %cst_302 : f32 to vector<1x16xf32>
    %685 = arith.select %682, %683, %684 : vector<1x16xi1>, vector<1x16xf32>
    %686 = vector.broadcast %672 : vector<16x1xf32> to vector<16x16xf32>
    %687 = arith.mulf %6, %686 : vector<16x16xf32>
    %688 = vector.broadcast %685 : vector<1x16xf32> to vector<16x16xf32>
    %689 = arith.mulf %687, %688 : vector<16x16xf32>
    %cst_303 = arith.constant dense<0.000000e+00> : vector<16xf32>
    %690 = vector.multi_reduction <add>, %689, %cst_303 [1] : vector<16x16xf32> to vector<16xf32>
    %691 = vector.shape_cast %690 : vector<16xf32> to vector<16x1xf32>
    %cst_304 = arith.constant 1.000000e+00 : f32
    %692 = vector.broadcast %cst_304 : f32 to vector<16x1xf32>
    %693 = arith.addf %691, %692 : vector<16x1xf32>
    %694 = math.rsqrt %693 : vector<16x1xf32>
    %c3 = arith.constant 3 : index
    %c0_305 = arith.constant 0 : index
    %c0_306 = arith.constant 0 : index
    %695 = vector.load %arg17[%c3, %c0_305, %c0_306] : memref<4x32x32xf32, #tpu.memory_space<vmem>>, vector<1x32x32xf32>
    %696 = vector.shape_cast %695 : vector<1x32x32xf32> to vector<32x32xf32>
    %cst_307 = arith.constant dense<0.000000e+00> : vector<16x32xf32>
    %697 = tpu.matmul %677, %696, %cst_307 {dimension_numbers = #tpu.dot_dimension_numbers<[1], [0], [0], [1], [0, 0, 1, 1], [], []>} : vector<16x32xf32>, vector<32x32xf32>, vector<16x32xf32> -> vector<16x32xf32>
    %698 = vector.broadcast %694 : vector<16x1xf32> to vector<16x32xf32>
    %699 = arith.mulf %698, %697 : vector<16x32xf32>
    %cst_308 = arith.constant dense<0.000000e+00> : vector<16x32xf32>
    %700 = tpu.matmul %689, %699, %cst_308 {dimension_numbers = #tpu.dot_dimension_numbers<[1], [0], [0], [1], [0, 0, 1, 1], [], []>} : vector<16x16xf32>, vector<16x32xf32>, vector<16x32xf32> -> vector<16x32xf32>
    %701 = vector.broadcast %694 : vector<16x1xf32> to vector<16x32xf32>
    %702 = arith.mulf %701, %700 : vector<16x32xf32>
    %703 = arith.mulf %694, %694 : vector<16x1xf32>
    %704 = vector.broadcast %703 : vector<16x1xf32> to vector<16x32xf32>
    %705 = arith.mulf %704, %697 : vector<16x32xf32>
    %706 = arith.addf %702, %705 : vector<16x32xf32>
    %c3_309 = arith.constant 3 : index
    %c0_310 = arith.constant 0 : index
    %c0_311 = arith.constant 0 : index
    %707 = vector.load %arg18[%c3_309, %c0_310, %c0_311] : memref<4x1x32xf32, #tpu.memory_space<vmem>>, vector<1x1x32xf32>
    %708 = vector.shape_cast %707 : vector<1x1x32xf32> to vector<1x32xf32>
    %709 = vector.broadcast %708 : vector<1x32xf32> to vector<16x32xf32>
    %710 = arith.addf %706, %709 : vector<16x32xf32>
    %c3_312 = arith.constant 3 : index
    %c0_313 = arith.constant 0 : index
    %c0_314 = arith.constant 0 : index
    %711 = vector.load %arg19[%c3_312, %c0_313, %c0_314] : memref<4x32x32xf32, #tpu.memory_space<vmem>>, vector<1x32x32xf32>
    %712 = vector.shape_cast %711 : vector<1x32x32xf32> to vector<32x32xf32>
    %cst_315 = arith.constant dense<0.000000e+00> : vector<16x32xf32>
    %713 = tpu.matmul %710, %712, %cst_315 {dimension_numbers = #tpu.dot_dimension_numbers<[1], [0], [0], [1], [0, 0, 1, 1], [], []>} : vector<16x32xf32>, vector<32x32xf32>, vector<16x32xf32> -> vector<16x32xf32>
    %c3_316 = arith.constant 3 : index
    %c0_317 = arith.constant 0 : index
    %c0_318 = arith.constant 0 : index
    %714 = vector.load %arg20[%c3_316, %c0_317, %c0_318] : memref<4x1x32xf32, #tpu.memory_space<vmem>>, vector<1x1x32xf32>
    %715 = vector.shape_cast %714 : vector<1x1x32xf32> to vector<1x32xf32>
    %716 = vector.broadcast %715 : vector<1x32xf32> to vector<16x32xf32>
    %717 = arith.addf %713, %716 : vector<16x32xf32>
    %cst_319 = arith.constant 0.000000e+00 : f32
    %718 = vector.broadcast %cst_319 : f32 to vector<16x32xf32>
    %719 = arith.maximumf %717, %718 : vector<16x32xf32>
    %c3_320 = arith.constant 3 : index
    %c0_321 = arith.constant 0 : index
    %c0_322 = arith.constant 0 : index
    %720 = vector.load %arg21[%c3_320, %c0_321, %c0_322] : memref<4x1x32xf32, #tpu.memory_space<vmem>>, vector<1x1x32xf32>
    %721 = vector.shape_cast %720 : vector<1x1x32xf32> to vector<1x32xf32>
    %722 = vector.broadcast %721 : vector<1x32xf32> to vector<16x32xf32>
    %723 = arith.mulf %719, %722 : vector<16x32xf32>
    %c3_323 = arith.constant 3 : index
    %c0_324 = arith.constant 0 : index
    %c0_325 = arith.constant 0 : index
    %724 = vector.load %arg22[%c3_323, %c0_324, %c0_325] : memref<4x1x32xf32, #tpu.memory_space<vmem>>, vector<1x1x32xf32>
    %725 = vector.shape_cast %724 : vector<1x1x32xf32> to vector<1x32xf32>
    %726 = vector.broadcast %725 : vector<1x32xf32> to vector<16x32xf32>
    %727 = arith.addf %723, %726 : vector<16x32xf32>
    %cst_326 = arith.constant dense<0.000000e+00> : vector<16x32xf32>
    %728 = tpu.matmul %689, %727, %cst_326 {dimension_numbers = #tpu.dot_dimension_numbers<[1], [0], [0], [1], [0, 0, 1, 1], [], []>} : vector<16x16xf32>, vector<16x32xf32>, vector<16x32xf32> -> vector<16x32xf32>
    %c3_327 = arith.constant 3 : index
    %c0_328 = arith.constant 0 : index
    %c0_329 = arith.constant 0 : index
    %729 = vector.load %arg23[%c3_327, %c0_328, %c0_329] : memref<4x1x32xf32, #tpu.memory_space<vmem>>, vector<1x1x32xf32>
    %730 = vector.shape_cast %729 : vector<1x1x32xf32> to vector<1x32xf32>
    %731 = vector.broadcast %730 : vector<1x32xf32> to vector<16x32xf32>
    %732 = arith.mulf %728, %731 : vector<16x32xf32>
    %c3_330 = arith.constant 3 : index
    %c0_331 = arith.constant 0 : index
    %c0_332 = arith.constant 0 : index
    %733 = vector.load %arg24[%c3_330, %c0_331, %c0_332] : memref<4x1x32xf32, #tpu.memory_space<vmem>>, vector<1x1x32xf32>
    %734 = vector.shape_cast %733 : vector<1x1x32xf32> to vector<1x32xf32>
    %735 = vector.broadcast %734 : vector<1x32xf32> to vector<16x32xf32>
    %736 = arith.mulf %727, %735 : vector<16x32xf32>
    %737 = arith.addf %732, %736 : vector<16x32xf32>
    %cst_333 = arith.constant dense<0.000000e+00> : vector<16xf32>
    %738 = vector.multi_reduction <add>, %737, %cst_333 [1] : vector<16x32xf32> to vector<16xf32>
    %739 = vector.shape_cast %738 : vector<16xf32> to vector<16x1xf32>
    %c3_334 = arith.constant 3 : index
    %740 = memref.load %arg25[%c3_334] : memref<4xf32, #tpu.memory_space<smem>>
    %741 = vector.broadcast %740 : f32 to vector<16x1xf32>
    %742 = arith.addf %739, %741 : vector<16x1xf32>
    %743 = vector.shape_cast %739 : vector<16x1xf32> to vector<16x1xf32>
    %744 = vector.broadcast %743 : vector<16x1xf32> to vector<16x32xf32>
    %cst_335 = arith.constant dense<0.000000e+00> : vector<1x16xf32>
    %745 = tpu.matmul %8, %744, %cst_335 {dimension_numbers = #tpu.dot_dimension_numbers<[1], [1], [0], [0], [0, 0, 1, 0], [], []>} : vector<1x32xf32>, vector<16x32xf32>, vector<1x16xf32> -> vector<1x16xf32>
    %cst_336 = arith.constant 3.125000e-02 : f32
    %746 = vector.broadcast %cst_336 : f32 to vector<1x16xf32>
    %747 = arith.mulf %745, %746 : vector<1x16xf32>
    %748 = arith.cmpi ne, %9, %10 : vector<16x16xi32>
    %749 = vector.broadcast %747 : vector<1x16xf32> to vector<16x16xf32>
    %750 = vector.broadcast %739 : vector<16x1xf32> to vector<16x16xf32>
    %751 = arith.cmpf ogt, %749, %750 : vector<16x16xf32>
    %752 = vector.broadcast %747 : vector<1x16xf32> to vector<16x16xf32>
    %753 = vector.broadcast %739 : vector<16x1xf32> to vector<16x16xf32>
    %754 = arith.cmpf oeq, %752, %753 : vector<16x16xf32>
    %755 = arith.cmpi slt, %10, %9 : vector<16x16xi32>
    %756 = arith.andi %754, %755 : vector<16x16xi1>
    %757 = arith.ori %751, %756 : vector<16x16xi1>
    %758 = arith.andi %748, %757 : vector<16x16xi1>
    %cst_337 = arith.constant 0.000000e+00 : f32
    %759 = vector.shape_cast %685 : vector<1x16xf32> to vector<1x16xf32>
    %760 = vector.broadcast %759 : vector<1x16xf32> to vector<16x16xf32>
    %761 = vector.broadcast %cst_337 : f32 to vector<16x16xf32>
    %762 = arith.select %758, %760, %761 : vector<16x16xi1>, vector<16x16xf32>
    %cst_338 = arith.constant dense<0.000000e+00> : vector<16xf32>
    %763 = vector.multi_reduction <add>, %762, %cst_338 [1] : vector<16x16xf32> to vector<16xf32>
    %764 = vector.shape_cast %763 : vector<16xf32> to vector<16x1xf32>
    %cst_339 = arith.constant 1.000000e+00 : f32
    %765 = vector.broadcast %cst_339 : f32 to vector<16x1xf32>
    %766 = arith.cmpf olt, %764, %765 : vector<16x1xf32>
    %cst_340 = arith.constant 1.000000e+00 : f32
    %cst_341 = arith.constant 0.000000e+00 : f32
    %767 = vector.broadcast %cst_340 : f32 to vector<16x1xf32>
    %768 = vector.broadcast %cst_341 : f32 to vector<16x1xf32>
    %769 = arith.select %766, %767, %768 : vector<16x1xi1>, vector<16x1xf32>
    %770 = arith.mulf %672, %769 : vector<16x1xf32>
    %771 = math.tanh %742 : vector<16x1xf32>
    %772 = vector.broadcast %771 : vector<16x1xf32> to vector<16x32xf32>
    %773 = arith.mulf %727, %772 : vector<16x32xf32>
    %774 = vector.broadcast %770 : vector<16x1xf32> to vector<16x32xf32>
    %775 = arith.mulf %773, %774 : vector<16x32xf32>
    %cst_342 = arith.constant 1.000000e+00 : f32
    %776 = vector.broadcast %cst_342 : f32 to vector<1x16xf32>
    %cst_343 = arith.constant dense<0.000000e+00> : vector<1x32xf32>
    %777 = tpu.matmul %776, %775, %cst_343 {dimension_numbers = #tpu.dot_dimension_numbers<[1], [0], [0], [1], [0, 0, 1, 1], [], []>} : vector<1x16xf32>, vector<16x32xf32>, vector<1x32xf32> -> vector<1x32xf32>
    %cst_344 = arith.constant 1.000000e+00 : f32
    %778 = vector.broadcast %cst_344 : f32 to vector<1x32xf32>
    %779 = arith.mulf %777, %778 : vector<1x32xf32>
    %c0_345 = arith.constant 0 : index
    %c0_346 = arith.constant 0 : index
    %780 = vector.load %arg26[%c0_345, %c0_346] : memref<1x32xf32, #tpu.memory_space<vmem>>, vector<1x32xf32>
    tpu.vector_store %arg26[%c0_345, %c0_346], %779 {strides = array<i32>} : memref<1x32xf32, #tpu.memory_space<vmem>>, vector<1x32xf32>,
    return
  }
}

</mosaic_0001>

<llo_original>
// kernel: trans_gcn_forward.1
$region0: #{trans_gcn_forward.1}
  #allocation0 [shape = 'u32[]', space=smem, size = 0x4, offset = 0x4, fixed_abs, tag = 'smem constant byte address 0x4 - core index']
  #allocation1 [shape = 'u32[144,128]{1,0:T(1,128)}', space=vmem, size = 0x12000, scoped, tag = 'internal scratch']
  #allocation2 [shape = 'f32[1]{0:T(128)S(6)}', space=smem, size = 0x200, scoped, tag = 'scoped memory for trans_gcn_forward.1']
  %s0 = inlined_call_operand.vmem [shape: f32[16,8], index: 0, kind: input, shape index: {}]
  %s1 = inlined_call_operand.vmem [shape: f32[16,16], index: 1, kind: input, shape index: {}]
  %s2 = inlined_call_operand.<no memory space> [shape: f32[1], index: 2, kind: input, shape index: {}]
  %s3 = inlined_call_operand.vmem [shape: f32[8,32], index: 3, kind: input, shape index: {}]
  %s4 = inlined_call_operand.vmem [shape: f32[1,32], index: 4, kind: input, shape index: {}]
  %s5 = inlined_call_operand.vmem [shape: f32[32,96], index: 5, kind: input, shape index: {}]
  %s6 = inlined_call_operand.vmem [shape: f32[1,96], index: 6, kind: input, shape index: {}]
  %s7 = inlined_call_operand.vmem [shape: f32[32,32], index: 7, kind: input, shape index: {}]
  %s8 = inlined_call_operand.vmem [shape: f32[1,32], index: 8, kind: input, shape index: {}]
  %s9 = inlined_call_operand.vmem [shape: f32[32,32], index: 9, kind: input, shape index: {}]
  %s10 = inlined_call_operand.vmem [shape: f32[1,32], index: 10, kind: input, shape index: {}]
  %s11 = inlined_call_operand.vmem [shape: f32[32,32], index: 11, kind: input, shape index: {}]
  %s12 = inlined_call_operand.vmem [shape: f32[1,32], index: 12, kind: input, shape index: {}]
  %s13 = inlined_call_operand.vmem [shape: f32[1,32], index: 13, kind: input, shape index: {}]
  %s14 = inlined_call_operand.vmem [shape: f32[1,32], index: 14, kind: input, shape index: {}]
  %s15 = inlined_call_operand.vmem [shape: f32[1,32], index: 15, kind: input, shape index: {}]
  %s16 = inlined_call_operand.vmem [shape: f32[1,32], index: 16, kind: input, shape index: {}]
  %s17 = inlined_call_operand.vmem [shape: f32[4,32,32], index: 17, kind: input, shape index: {}]
  %s18 = inlined_call_operand.vmem [shape: f32[4,1,32], index: 18, kind: input, shape index: {}]
  %s19 = inlined_call_operand.vmem [shape: f32[4,32,32], index: 19, kind: input, shape index: {}]
  %s20 = inlined_call_operand.vmem [shape: f32[4,1,32], index: 20, kind: input, shape index: {}]
  %s21 = inlined_call_operand.vmem [shape: f32[4,1,32], index: 21, kind: input, shape index: {}]
  %s22 = inlined_call_operand.vmem [shape: f32[4,1,32], index: 22, kind: input, shape index: {}]
  %s23 = inlined_call_operand.vmem [shape: f32[4,1,32], index: 23, kind: input, shape index: {}]
  %s24 = inlined_call_operand.vmem [shape: f32[4,1,32], index: 24, kind: input, shape index: {}]
  %s25 = inlined_call_operand.vmem [shape: f32[4], index: 25, kind: input, shape index: {}]
  %s26 = inlined_call_operand.hbm [shape: f32[1,32], index: 26, kind: output, shape index: {}]
  %s27 = sld [smem:[#allocation0]]
  $region118: #{trans_gcn_forward.1} parent=0
    _
  %s29 = ssub.s32 1, %s27
  %s30 = scalar_select 0, %s29, %s27
  %31 = sst [smem:[#allocation2]] %s2
  $region1: #{trans_gcn_forward.1} parent=0
    #allocation3 [shape = 'u8[512]{0}', space=smem, size = 0x200, scoped, tag = 'input window, operand 25, single buffered']
    #allocation4 [shape = 's32[1]{0}', space=sflag, size = 0x4, scoped, tag = 'scoped memory for trans_gcn_forward.1']
    #allocation5 [shape = 's32[1]{0}', space=sflag, size = 0x4, scoped, tag = 'scoped memory for trans_gcn_forward.1']
    #allocation6 [shape = 'u8[512]{0}', space=vmem, size = 0x400, scoped, tag = 'output window, operand 0, single buffered']
    %32 = vsyncpa [#allocation5], 0
    %33 = vsyncpa [#allocation4], 0
    // Predicated region
    $region2: #{trans_gcn_forward.1} parent=1 // pred_check
      _
    $region3: #{trans_gcn_forward.1} parent=1 // pred_check_branch
      %35 = sbr.rel (0) target = $region5
    $region4: #{trans_gcn_forward.1} parent=1 // pred_region
      _
    $region5: #{trans_gcn_forward.1} parent=1 // pred_fallthru
      _
    // Predicated region
    $region6: #{trans_gcn_forward.1} parent=1 // pred_check
      _
    $region7: #{trans_gcn_forward.1} parent=1 // pred_check_branch
      %37 = sbr.rel (0) target = $region9
    $region8: #{trans_gcn_forward.1} parent=1 // pred_region
      _
    $region9: #{trans_gcn_forward.1} parent=1 // pred_fallthru
      _
    // Predicated region
    $region10: #{trans_gcn_forward.1} parent=1 // pred_check
      _
    $region11: #{trans_gcn_forward.1} parent=1 // pred_check_branch
      %39 = sbr.rel (0) target = $region13
    $region12: #{trans_gcn_forward.1} parent=1 // pred_region
      _
    $region13: #{trans_gcn_forward.1} parent=1 // pred_fallthru
      _
    // Predicated region
    $region14: #{trans_gcn_forward.1} parent=1 // pred_check
      _
    $region15: #{trans_gcn_forward.1} parent=1 // pred_check_branch
      %41 = sbr.rel (0) target = $region17
    $region16: #{trans_gcn_forward.1} parent=1 // pred_region
      _
    $region17: #{trans_gcn_forward.1} parent=1 // pred_fallthru
      _
    // Predicated region
    $region18: #{trans_gcn_forward.1} parent=1 // pred_check
      _
    $region19: #{trans_gcn_forward.1} parent=1 // pred_check_branch
      %43 = sbr.rel (0) target = $region21
    $region20: #{trans_gcn_forward.1} parent=1 // pred_region
      _
    $region21: #{trans_gcn_forward.1} parent=1 // pred_fallthru
      _
    // Predicated region
    $region22: #{trans_gcn_forward.1} parent=1 // pred_check
      _
    $region23: #{trans_gcn_forward.1} parent=1 // pred_check_branch
      %45 = sbr.rel (0) target = $region25
    $region24: #{trans_gcn_forward.1} parent=1 // pred_region
      _
    $region25: #{trans_gcn_forward.1} parent=1 // pred_fallthru
      _
    // Predicated region
    $region26: #{trans_gcn_forward.1} parent=1 // pred_check
      _
    $region27: #{trans_gcn_forward.1} parent=1 // pred_check_branch
      %47 = sbr.rel (0) target = $region29
    $region28: #{trans_gcn_forward.1} parent=1 // pred_region
      _
    $region29: #{trans_gcn_forward.1} parent=1 // pred_fallthru
      _
    // Predicated region
    $region30: #{trans_gcn_forward.1} parent=1 // pred_check
      _
    $region31: #{trans_gcn_forward.1} parent=1 // pred_check_branch
      %49 = sbr.rel (0) target = $region33
    $region32: #{trans_gcn_forward.1} parent=1 // pred_region
      _
    $region33: #{trans_gcn_forward.1} parent=1 // pred_fallthru
      _
    // Predicated region
    $region34: #{trans_gcn_forward.1} parent=1 // pred_check
      _
    $region35: #{trans_gcn_forward.1} parent=1 // pred_check_branch
      %51 = sbr.rel (0) target = $region37
    $region36: #{trans_gcn_forward.1} parent=1 // pred_region
      _
    $region37: #{trans_gcn_forward.1} parent=1 // pred_fallthru
      _
    // Predicated region
    $region38: #{trans_gcn_forward.1} parent=1 // pred_check
      _
    $region39: #{trans_gcn_forward.1} parent=1 // pred_check_branch
      %53 = sbr.rel (0) target = $region41
    $region40: #{trans_gcn_forward.1} parent=1 // pred_region
      _
    $region41: #{trans_gcn_forward.1} parent=1 // pred_fallthru
      _
    // Predicated region
    $region42: #{trans_gcn_forward.1} parent=1 // pred_check
      _
    $region43: #{trans_gcn_forward.1} parent=1 // pred_check_branch
      %55 = sbr.rel (0) target = $region45
    $region44: #{trans_gcn_forward.1} parent=1 // pred_region
      _
    $region45: #{trans_gcn_forward.1} parent=1 // pred_fallthru
      _
    // Predicated region
    $region46: #{trans_gcn_forward.1} parent=1 // pred_check
      _
    $region47: #{trans_gcn_forward.1} parent=1 // pred_check_branch
      %57 = sbr.rel (0) target = $region49
    $region48: #{trans_gcn_forward.1} parent=1 // pred_region
      _
    $region49: #{trans_gcn_forward.1} parent=1 // pred_fallthru
      _
    // Predicated region
    $region50: #{trans_gcn_forward.1} parent=1 // pred_check
      _
    $region51: #{trans_gcn_forward.1} parent=1 // pred_check_branch
      %59 = sbr.rel (0) target = $region53
    $region52: #{trans_gcn_forward.1} parent=1 // pred_region
      _
    $region53: #{trans_gcn_forward.1} parent=1 // pred_fallthru
      _
    // Predicated region
    $region54: #{trans_gcn_forward.1} parent=1 // pred_check
      _
    $region55: #{trans_gcn_forward.1} parent=1 // pred_check_branch
      %61 = sbr.rel (0) target = $region57
    $region56: #{trans_gcn_forward.1} parent=1 // pred_region
      _
    $region57: #{trans_gcn_forward.1} parent=1 // pred_fallthru
      _
    // Predicated region
    $region58: #{trans_gcn_forward.1} parent=1 // pred_check
      _
    $region59: #{trans_gcn_forward.1} parent=1 // pred_check_branch
      %63 = sbr.rel (0) target = $region61
    $region60: #{trans_gcn_forward.1} parent=1 // pred_region
      _
    $region61: #{trans_gcn_forward.1} parent=1 // pred_fallthru
      _
    // Predicated region
    $region62: #{trans_gcn_forward.1} parent=1 // pred_check
      _
    $region63: #{trans_gcn_forward.1} parent=1 // pred_check_branch
      %65 = sbr.rel (0) target = $region65
    $region64: #{trans_gcn_forward.1} parent=1 // pred_region
      _
    $region65: #{trans_gcn_forward.1} parent=1 // pred_fallthru
      _
    // Predicated region
    $region66: #{trans_gcn_forward.1} parent=1 // pred_check
      _
    $region67: #{trans_gcn_forward.1} parent=1 // pred_check_branch
      %67 = sbr.rel (0) target = $region69
    $region68: #{trans_gcn_forward.1} parent=1 // pred_region
      _
    $region69: #{trans_gcn_forward.1} parent=1 // pred_fallthru
      _
    // Predicated region
    $region70: #{trans_gcn_forward.1} parent=1 // pred_check
      _
    $region71: #{trans_gcn_forward.1} parent=1 // pred_check_branch
      %69 = sbr.rel (0) target = $region73
    $region72: #{trans_gcn_forward.1} parent=1 // pred_region
      _
    $region73: #{trans_gcn_forward.1} parent=1 // pred_fallthru
      _
    // Predicated region
    $region74: #{trans_gcn_forward.1} parent=1 // pred_check
      _
    $region75: #{trans_gcn_forward.1} parent=1 // pred_check_branch
      %71 = sbr.rel (0) target = $region77
    $region76: #{trans_gcn_forward.1} parent=1 // pred_region
      _
    $region77: #{trans_gcn_forward.1} parent=1 // pred_fallthru
      _
    // Predicated region
    $region78: #{trans_gcn_forward.1} parent=1 // pred_check
      _
    $region79: #{trans_gcn_forward.1} parent=1 // pred_check_branch
      %73 = sbr.rel (0) target = $region81
    $region80: #{trans_gcn_forward.1} parent=1 // pred_region
      _
    $region81: #{trans_gcn_forward.1} parent=1 // pred_fallthru
      _
    // Predicated region
    $region82: #{trans_gcn_forward.1} parent=1 // pred_check
      _
    $region83: #{trans_gcn_forward.1} parent=1 // pred_check_branch
      %75 = sbr.rel (0) target = $region85
    $region84: #{trans_gcn_forward.1} parent=1 // pred_region
      _
    $region85: #{trans_gcn_forward.1} parent=1 // pred_fallthru
      _
    // Predicated region
    $region86: #{trans_gcn_forward.1} parent=1 // pred_check
      _
    $region87: #{trans_gcn_forward.1} parent=1 // pred_check_branch
      %77 = sbr.rel (0) target = $region89
    $region88: #{trans_gcn_forward.1} parent=1 // pred_region
      _
    $region89: #{trans_gcn_forward.1} parent=1 // pred_fallthru
      _
    // Predicated region
    $region90: #{trans_gcn_forward.1} parent=1 // pred_check
      _
    $region91: #{trans_gcn_forward.1} parent=1 // pred_check_branch
      %79 = sbr.rel (0) target = $region93
    $region92: #{trans_gcn_forward.1} parent=1 // pred_region
      _
    $region93: #{trans_gcn_forward.1} parent=1 // pred_fallthru
      _
    // Predicated region
    $region94: #{trans_gcn_forward.1} parent=1 // pred_check
      _
    $region95: #{trans_gcn_forward.1} parent=1 // pred_check_branch
      %81 = sbr.rel (0) target = $region97
    $region96: #{trans_gcn_forward.1} parent=1 // pred_region
      _
    $region97: #{trans_gcn_forward.1} parent=1 // pred_fallthru
      _
    // Predicated region
    $region98: #{trans_gcn_forward.1} parent=1 // pred_check
      _
    $region99: #{trans_gcn_forward.1} parent=1 // pred_check_branch
      %83 = sbr.rel (0) target = $region101
    $region100: #{trans_gcn_forward.1} parent=1 // pred_region
      _
    $region101: #{trans_gcn_forward.1} parent=1 // pred_fallthru
      _
    // Predicated region
    $region102: #{trans_gcn_forward.1} parent=1 // pred_check
      _
    $region103: #{trans_gcn_forward.1} parent=1 // pred_check_branch
      %85 = sbr.rel (0) target = $region105
    $region104: #{trans_gcn_forward.1} parent=1 // pred_region
      %s87 = ssub.s32 16, 16
      %88 = vsyncadd [#allocation5], %s87
      %s90 = sshll.u32 %s25, 4
      %s91 = int_to_ptr.vmem [resolvable:$true] %s90
      %93 = dma.vmem_to_smem %s91, 16, [#allocation3], [#allocation5]
    $region105: #{trans_gcn_forward.1} parent=1 // pred_fallthru
      _
    // Predicated region
    $region106: #{trans_gcn_forward.1} parent=1 // pred_check
      _
    $region107: #{trans_gcn_forward.1} parent=1 // pred_check_branch
      %95 = sbr.rel (0) target = $region109
    $region108: #{trans_gcn_forward.1} parent=1 // pred_region
      %96 = dma.done [#allocation5], 16
    $region109: #{trans_gcn_forward.1} parent=1 // pred_fallthru
      _
    %97 = sfence
    %v98 = vld [vmem:[%s0] sm:$0xff]
    %v99 = vld [vmem:[%s0 + $0x8] sm:$0xff]
    %v100 = vld [vmem:[%s3] sm:$0xff]
    %v101 = vld [vmem:[%s4] sm:$0x1]
    %v103 = vlaneseq
    %v104 = vshrl.u32 %v103, 7
    %v105 = vsub.s32 0, %v104
    %v106 = vrot.slane %v101, %v105
    %vm108 = vcmask 64512
    %v110 = vsel %vm108, %v98, 0
    %v113 = vsel %vm108, %v99, 0
    %115 = vmatprep.subr.mxu0 0.0
    %116 = vmatpush1.msra.mxu0 0.0
    %117 = vmatprep.subr.mxu0 0.0
    %118 = vmatpush1.msra.mxu0 0.0
    %119 = vmatprep.subr.mxu0 0.0
    %120 = vmatpush1.msra.mxu0 0.0
    %121 = vmatprep.subr.mxu0 0.0
    %122 = vmatpush1.msra.mxu0 0.0
    %123 = vmatprep.subr.mxu0 0.0
    %124 = vmatpush1.msra.mxu0 0.0
    %125 = vmatprep.subr.mxu0 0.0
    %126 = vmatpush1.msra.mxu0 0.0
    %127 = vmatprep.subr.mxu0 0.0
    %128 = vmatpush1.msra.mxu0 0.0
    %129 = vmatprep.subr.mxu0 0.0
    %130 = vmatpush1.msra.mxu0 0.0
    %131 = vmatprep.subr.mxu0 0.0
    %132 = vmatpush1.msra.mxu0 0.0
    %133 = vmatprep.subr.mxu0 0.0
    %134 = vmatpush1.msra.mxu0 0.0
    %135 = vmatprep.subr.mxu0 0.0
    %136 = vmatpush1.msra.mxu0 0.0
    %137 = vmatprep.subr.mxu0 0.0
    %138 = vmatpush1.msra.mxu0 0.0
    %139 = vmatprep.subr.mxu0 0.0
    %140 = vmatpush1.msra.mxu0 0.0
    %141 = vmatprep.subr.mxu0 0.0
    %142 = vmatpush1.msra.mxu0 0.0
    %143 = vmatprep.subr.mxu0 0.0
    %144 = vmatpush1.msra.mxu0 0.0
    %145 = vmatprep.subr.mxu0 0.0
    %146 = vmatpush1.msra.mxu0 %v100
    %147 = vmatprep.subr.mxu0 0.0
    %148 = vmatpush2.msra.mxu0 0.0
    %149 = vmatprep.subr.mxu0 0.0
    %150 = vmatpush2.msra.mxu0 0.0
    %151 = vmatprep.subr.mxu0 0.0
    %152 = vmatpush2.msra.mxu0 0.0
    %153 = vmatprep.subr.mxu0 0.0
    %154 = vmatpush2.msra.mxu0 0.0
    %155 = vmatprep.subr.mxu0 0.0
    %156 = vmatpush2.msra.mxu0 0.0
    %157 = vmatprep.subr.mxu0 0.0
    %158 = vmatpush2.msra.mxu0 0.0
    %159 = vmatprep.subr.mxu0 0.0
    %160 = vmatpush2.msra.mxu0 0.0
    %161 = vmatprep.subr.mxu0 0.0
    %162 = vmatpush2.msra.mxu0 0.0
    %163 = vmatprep.subr.mxu0 0.0
    %164 = vmatpush2.msra.mxu0 0.0
    %165 = vmatprep.subr.mxu0 0.0
    %166 = vmatpush2.msra.mxu0 0.0
    %167 = vmatprep.subr.mxu0 0.0
    %168 = vmatpush2.msra.mxu0 0.0
    %169 = vmatprep.subr.mxu0 0.0
    %170 = vmatpush2.msra.mxu0 0.0
    %171 = vmatprep.subr.mxu0 0.0
    %172 = vmatpush2.msra.mxu0 0.0
    %173 = vmatprep.subr.mxu0 0.0
    %174 = vmatpush2.msra.mxu0 0.0
    %175 = vmatprep.subr.mxu0 0.0
    %176 = vmatpush2.msra.mxu0 0.0
    %177 = vmatprep.subr.mxu0 0.0
    %178 = vmatpush2.msra.mxu0 0.0
    %179 = vmatprep.mubr.f32.mxu0 0.0
    %180 = vmatmul.mubr.f32.gmra.mxu0 %v110
    %v181 = vpop.f32.mrf.mxu0
    %v182 = vadd.f32 %v106, %v181
    %v183 = vpop.f32.mrf.mxu0
    %184 = vmatprep.mubr.f32.mxu0 0.0
    %185 = vmatmul.mubr.f32.gmra.mxu0 %v113
    %v186 = vpop.f32.mrf.mxu0
    %v187 = vadd.f32 %v106, %v186
    %v188 = vpop.f32.mrf.mxu0
    %189 = vdwg.mxu0
    %v190 = vld [vmem:[%s1] sm:$0xff]
    %v191 = vld [vmem:[%s1 + $0x8] sm:$0xff]
    %s192 = sld [smem:[#allocation2]]
    %v193 = vlaneseq
    %v194 = vshrl.u32 %v193, 7
    %v195 = vadd.s32 %v194, 8
    %v196 = vlaneseq
    %v197 = vand.u32 %v196, 127
    %vm198 = vcmask 261120
    %v200 = vsel %vm198, 1.0, 0
    %202 = vmatprep.subr.mxu0 0.0
    %203 = vmatpush1.xpose.msra.mxu0 0.0
    %204 = vmatprep.subr.mxu0 0.0
    %205 = vmatpush1.xpose.msra.mxu0 0.0
    %206 = vmatprep.subr.mxu0 0.0
    %207 = vmatpush1.xpose.msra.mxu0 0.0
    %208 = vmatprep.subr.mxu0 0.0
    %209 = vmatpush1.xpose.msra.mxu0 0.0
    %210 = vmatprep.subr.mxu0 0.0
    %211 = vmatpush1.xpose.msra.mxu0 0.0
    %212 = vmatprep.subr.mxu0 0.0
    %213 = vmatpush1.xpose.msra.mxu0 0.0
    %214 = vmatprep.subr.mxu0 0.0
    %215 = vmatpush1.xpose.msra.mxu0 0.0
    %216 = vmatprep.subr.mxu0 0.0
    %217 = vmatpush1.xpose.msra.mxu0 0.0
    %218 = vmatprep.subr.mxu0 0.0
    %219 = vmatpush1.xpose.msra.mxu0 0.0
    %220 = vmatprep.subr.mxu0 0.0
    %221 = vmatpush1.xpose.msra.mxu0 0.0
    %222 = vmatprep.subr.mxu0 0.0
    %223 = vmatpush1.xpose.msra.mxu0 0.0
    %224 = vmatprep.subr.mxu0 0.0
    %225 = vmatpush1.xpose.msra.mxu0 0.0
    %226 = vmatprep.subr.mxu0 0.0
    %227 = vmatpush1.xpose.msra.mxu0 0.0
    %228 = vmatprep.subr.mxu0 0.0
    %229 = vmatpush1.xpose.msra.mxu0 0.0
    %230 = vmatprep.subr.mxu0 0.0
    %231 = vmatpush1.xpose.msra.mxu0 %v200
    %232 = vmatprep.subr.mxu0 0.0
    %233 = vmatpush1.xpose.msra.mxu0 %v200
    %234 = vmatprep.subr.mxu0 0.0
    %235 = vmatpush2.xpose.msra.mxu0 0.0
    %236 = vmatprep.subr.mxu0 0.0
    %237 = vmatpush2.xpose.msra.mxu0 0.0
    %238 = vmatprep.subr.mxu0 0.0
    %239 = vmatpush2.xpose.msra.mxu0 0.0
    %240 = vmatprep.subr.mxu0 0.0
    %241 = vmatpush2.xpose.msra.mxu0 0.0
    %242 = vmatprep.subr.mxu0 0.0
    %243 = vmatpush2.xpose.msra.mxu0 0.0
    %244 = vmatprep.subr.mxu0 0.0
    %245 = vmatpush2.xpose.msra.mxu0 0.0
    %246 = vmatprep.subr.mxu0 0.0
    %247 = vmatpush2.xpose.msra.mxu0 0.0
    %248 = vmatprep.subr.mxu0 0.0
    %249 = vmatpush2.xpose.msra.mxu0 0.0
    %250 = vmatprep.subr.mxu0 0.0
    %251 = vmatpush2.xpose.msra.mxu0 0.0
    %252 = vmatprep.subr.mxu0 0.0
    %253 = vmatpush2.xpose.msra.mxu0 0.0
    %254 = vmatprep.subr.mxu0 0.0
    %255 = vmatpush2.xpose.msra.mxu0 0.0
    %256 = vmatprep.subr.mxu0 0.0
    %257 = vmatpush2.xpose.msra.mxu0 0.0
    %258 = vmatprep.subr.mxu0 0.0
    %259 = vmatpush2.xpose.msra.mxu0 0.0
    %260 = vmatprep.subr.mxu0 0.0
    %261 = vmatpush2.xpose.msra.mxu0 0.0
    %262 = vmatprep.subr.mxu0 0.0
    %263 = vmatpush2.xpose.msra.mxu0 0.0
    %264 = vmatprep.subr.mxu0 0.0
    %265 = vmatpush2.xpose.msra.mxu0 0.0
    %266 = vmatprep.mubr.f32.mxu0 0.0
    %267 = vmatmul.mubr.f32.gmra.mxu0 %v200
    %v268 = vpop.f32.mrf.mxu0
    %v269 = vadd.f32 0.0, %v268
    %v270 = vpop.f32.mrf.mxu0
    %271 = vdwg.mxu0
    %vm272 = vcmp.gt.f32.partialorder %v269, 16.0
    %v273 = vsel %vm272, 1.0, 0.0
    %v274 = vld [vmem:[%s5] sm:$0xff]
    %v275 = vld [vmem:[%s5 + $0x8] sm:$0xff]
    %v276 = vld [vmem:[%s5 + $0x10] sm:$0xff]
    %v277 = vld [vmem:[%s5 + $0x18] sm:$0xff]
    %v278 = vld [vmem:[%s6] sm:$0x1]
    %v279 = vld [vmem:[%s7] sm:$0xff]
    %v280 = vld [vmem:[%s7 + $0x8] sm:$0xff]
    %v281 = vld [vmem:[%s7 + $0x10] sm:$0xff]
    %v282 = vld [vmem:[%s7 + $0x18] sm:$0xff]
    %v283 = vld [vmem:[%s8] sm:$0x1]
    %v284 = vld [vmem:[%s9] sm:$0xff]
    %v285 = vld [vmem:[%s9 + $0x8] sm:$0xff]
    %v286 = vld [vmem:[%s9 + $0x10] sm:$0xff]
    %v287 = vld [vmem:[%s9 + $0x18] sm:$0xff]
    %v288 = vld [vmem:[%s10] sm:$0x1]
    %v289 = vld [vmem:[%s11] sm:$0xff]
    %v290 = vld [vmem:[%s11 + $0x8] sm:$0xff]
    %v291 = vld [vmem:[%s11 + $0x10] sm:$0xff]
    %v292 = vld [vmem:[%s11 + $0x18] sm:$0xff]
    %v293 = vld [vmem:[%s12] sm:$0x1]
    %v294 = vld [vmem:[%s13] sm:$0x1]
    %v295 = vld [vmem:[%s14] sm:$0x1]
    %v296 = vld [vmem:[%s15] sm:$0x1]
    %v297 = vld [vmem:[%s16] sm:$0x1]
    %v299 = vlaneseq
    %v300 = vshrl.u32 %v299, 7
    %v301 = vsub.s32 0, %v300
    %v302 = vrot.slane %v278, %v301
    %v305 = vsel %vm198, %v182, 0
    %v308 = vsel %vm198, %v187, 0
    %310 = vmatprep.subr.mxu0 0.0
    %311 = vmatpush1.msra.mxu0 0.0
    %312 = vmatprep.subr.mxu0 0.0
    %313 = vmatpush1.msra.mxu0 0.0
    %314 = vmatprep.subr.mxu0 0.0
    %315 = vmatpush1.msra.mxu0 0.0
    %316 = vmatprep.subr.mxu0 0.0
    %317 = vmatpush1.msra.mxu0 0.0
    %318 = vmatprep.subr.mxu0 0.0
    %319 = vmatpush1.msra.mxu0 0.0
    %320 = vmatprep.subr.mxu0 0.0
    %321 = vmatpush1.msra.mxu0 0.0
    %322 = vmatprep.subr.mxu0 0.0
    %323 = vmatpush1.msra.mxu0 0.0
    %324 = vmatprep.subr.mxu0 0.0
    %325 = vmatpush1.msra.mxu0 0.0
    %326 = vmatprep.subr.mxu0 0.0
    %327 = vmatpush1.msra.mxu0 0.0
    %328 = vmatprep.subr.mxu0 0.0
    %329 = vmatpush1.msra.mxu0 0.0
    %330 = vmatprep.subr.mxu0 0.0
    %331 = vmatpush1.msra.mxu0 0.0
    %332 = vmatprep.subr.mxu0 0.0
    %333 = vmatpush1.msra.mxu0 0.0
    %334 = vmatprep.subr.mxu0 0.0
    %335 = vmatpush1.msra.mxu0 %v277
    %336 = vmatprep.subr.mxu0 0.0
    %337 = vmatpush1.msra.mxu0 %v276
    %338 = vmatprep.subr.mxu0 0.0
    %339 = vmatpush1.msra.mxu0 %v275
    %340 = vmatprep.subr.mxu0 0.0
    %341 = vmatpush1.msra.mxu0 %v274
    %342 = vmatprep.subr.mxu0 0.0
    %343 = vmatpush2.msra.mxu0 0.0
    %344 = vmatprep.subr.mxu0 0.0
    %345 = vmatpush2.msra.mxu0 0.0
    %346 = vmatprep.subr.mxu0 0.0
    %347 = vmatpush2.msra.mxu0 0.0
    %348 = vmatprep.subr.mxu0 0.0
    %349 = vmatpush2.msra.mxu0 0.0
    %350 = vmatprep.subr.mxu0 0.0
    %351 = vmatpush2.msra.mxu0 0.0
    %352 = vmatprep.subr.mxu0 0.0
    %353 = vmatpush2.msra.mxu0 0.0
    %354 = vmatprep.subr.mxu0 0.0
    %355 = vmatpush2.msra.mxu0 0.0
    %356 = vmatprep.subr.mxu0 0.0
    %357 = vmatpush2.msra.mxu0 0.0
    %358 = vmatprep.subr.mxu0 0.0
    %359 = vmatpush2.msra.mxu0 0.0
    %360 = vmatprep.subr.mxu0 0.0
    %361 = vmatpush2.msra.mxu0 0.0
    %362 = vmatprep.subr.mxu0 0.0
    %363 = vmatpush2.msra.mxu0 0.0
    %364 = vmatprep.subr.mxu0 0.0
    %365 = vmatpush2.msra.mxu0 0.0
    %366 = vmatprep.subr.mxu0 0.0
    %367 = vmatpush2.msra.mxu0 0.0
    %368 = vmatprep.subr.mxu0 0.0
    %369 = vmatpush2.msra.mxu0 0.0
    %370 = vmatprep.subr.mxu0 0.0
    %371 = vmatpush2.msra.mxu0 0.0
    %372 = vmatprep.subr.mxu0 0.0
    %373 = vmatpush2.msra.mxu0 0.0
    %374 = vmatprep.mubr.f32.mxu0 0.0
    %375 = vmatmul.mubr.f32.gmra.mxu0 %v305
    %v376 = vpop.f32.mrf.mxu0
    %v377 = vadd.f32 %v302, %v376
    %v378 = vpop.f32.mrf.mxu0
    %379 = vmatprep.mubr.f32.mxu0 0.0
    %380 = vmatmul.mubr.f32.gmra.mxu0 %v308
    %v381 = vpop.f32.mrf.mxu0
    %v382 = vadd.f32 %v302, %v381
    %v383 = vpop.f32.mrf.mxu0
    %384 = vdwg.mxu0
    %vm385 = vcmp.gt.f32.partialorder %v273, 0.5
    %388 = vrot.lane.b32.xlu0 %v377, 96
    %v389 = vpop.permute.xlu0 %388
    %390 = vrot.lane.b32.xlu0 %v382, 96
    %v391 = vpop.permute.xlu0 %390
    %vm392 = vcmask 130048
    %v393 = vsel %vm392, %v377, 0
    %v395 = vsel %vm392, %v382, 0
    %v397 = vsel %vm392, %v389, 0
    %v399 = vsel %vm392, %v391, 0
    %401 = vmatprep.subr.mxu0 0.0
    %402 = vmatpush1.xpose.msra.mxu0 0.0
    %403 = vmatprep.subr.mxu0 0.0
    %404 = vmatpush1.xpose.msra.mxu0 0.0
    %405 = vmatprep.subr.mxu0 0.0
    %406 = vmatpush1.xpose.msra.mxu0 0.0
    %407 = vmatprep.subr.mxu0 0.0
    %408 = vmatpush1.xpose.msra.mxu0 0.0
    %409 = vmatprep.subr.mxu0 0.0
    %410 = vmatpush1.xpose.msra.mxu0 0.0
    %411 = vmatprep.subr.mxu0 0.0
    %412 = vmatpush1.xpose.msra.mxu0 0.0
    %413 = vmatprep.subr.mxu0 0.0
    %414 = vmatpush1.xpose.msra.mxu0 0.0
    %415 = vmatprep.subr.mxu0 0.0
    %416 = vmatpush1.xpose.msra.mxu0 0.0
    %417 = vmatprep.subr.mxu0 0.0
    %418 = vmatpush1.xpose.msra.mxu0 0.0
    %419 = vmatprep.subr.mxu0 0.0
    %420 = vmatpush1.xpose.msra.mxu0 0.0
    %421 = vmatprep.subr.mxu0 0.0
    %422 = vmatpush1.xpose.msra.mxu0 0.0
    %423 = vmatprep.subr.mxu0 0.0
    %424 = vmatpush1.xpose.msra.mxu0 0.0
    %425 = vmatprep.subr.mxu0 0.0
    %426 = vmatpush1.xpose.msra.mxu0 0.0
    %427 = vmatprep.subr.mxu0 0.0
    %428 = vmatpush1.xpose.msra.mxu0 0.0
    %429 = vmatprep.subr.mxu0 0.0
    %430 = vmatpush1.xpose.msra.mxu0 %v399
    %431 = vmatprep.subr.mxu0 0.0
    %432 = vmatpush1.xpose.msra.mxu0 %v397
    %433 = vmatprep.subr.mxu0 0.0
    %434 = vmatpush2.xpose.msra.mxu0 0.0
    %435 = vmatprep.subr.mxu0 0.0
    %436 = vmatpush2.xpose.msra.mxu0 0.0
    %437 = vmatprep.subr.mxu0 0.0
    %438 = vmatpush2.xpose.msra.mxu0 0.0
    %439 = vmatprep.subr.mxu0 0.0
    %440 = vmatpush2.xpose.msra.mxu0 0.0
    %441 = vmatprep.subr.mxu0 0.0
    %442 = vmatpush2.xpose.msra.mxu0 0.0
    %443 = vmatprep.subr.mxu0 0.0
    %444 = vmatpush2.xpose.msra.mxu0 0.0
    %445 = vmatprep.subr.mxu0 0.0
    %446 = vmatpush2.xpose.msra.mxu0 0.0
    %447 = vmatprep.subr.mxu0 0.0
    %448 = vmatpush2.xpose.msra.mxu0 0.0
    %449 = vmatprep.subr.mxu0 0.0
    %450 = vmatpush2.xpose.msra.mxu0 0.0
    %451 = vmatprep.subr.mxu0 0.0
    %452 = vmatpush2.xpose.msra.mxu0 0.0
    %453 = vmatprep.subr.mxu0 0.0
    %454 = vmatpush2.xpose.msra.mxu0 0.0
    %455 = vmatprep.subr.mxu0 0.0
    %456 = vmatpush2.xpose.msra.mxu0 0.0
    %457 = vmatprep.subr.mxu0 0.0
    %458 = vmatpush2.xpose.msra.mxu0 0.0
    %459 = vmatprep.subr.mxu0 0.0
    %460 = vmatpush2.xpose.msra.mxu0 0.0
    %461 = vmatprep.subr.mxu0 0.0
    %462 = vmatpush2.xpose.msra.mxu0 0.0
    %463 = vmatprep.subr.mxu0 0.0
    %464 = vmatpush2.xpose.msra.mxu0 0.0
    %465 = vmatprep.mubr.f32.mxu0 0.0
    %466 = vmatmul.mubr.f32.gmra.mxu0 %v393
    %v467 = vpop.f32.mrf.mxu0
    %v468 = vadd.f32 0.0, %v467
    %v469 = vpop.f32.mrf.mxu0
    %470 = vmatprep.mubr.f32.mxu0 0.0
    %471 = vmatmul.mubr.f32.gmra.mxu0 %v395
    %v472 = vpop.f32.mrf.mxu0
    %v473 = vadd.f32 0.0, %v472
    %v474 = vpop.f32.mrf.mxu0
    %475 = vdwg.mxu0
    %v476 = vsel %vm385, 1, 0
    %v477 = vlaneseq
    %v478 = vshrl.u32 %v477, 7
    %v479 = vsub.s32 0, %v478
    %v480 = vrot.slane %v476, %v479
    %vm481 = vcmp.eq.s32.totalorder %v480, 1
    %v482 = vsel %vm481, %v468, -1e+30
    %v483 = vsel %vm481, %v473, -1e+30
    %v484 = vsel %vm392, %v482, -inf
    %485 = vmax.xlane.f32.xlu0 %v484
    %v486 = vpop.xlane.xlu0 %485
    %v487 = vsel %vm392, %v483, -inf
    %488 = vmax.xlane.f32.xlu0 %v487
    %v489 = vpop.xlane.xlu0 %488
    %v490 = vsub.f32 %v482, %v486
    %v491 = vsub.f32 %v483, %v489
    %v492 = vmul.f32 %v490, 1.442695
    %v493 = vpow.pop %v492
    %v494 = vmul.f32 %v491, 1.442695
    %v495 = vpow.pop %v494
    %v496 = vsel %vm392, %v493, 0.0
    %497 = vadd.xlane.f32.xlu0 %v496
    %v498 = vpop.xlane.xlu0 %497
    %v499 = vsel %vm392, %v495, 0.0
    %500 = vadd.xlane.f32.xlu0 %v499
    %v501 = vpop.xlane.xlu0 %500
    %v502 = vrcp.pop %v498
    %v503 = vrcp.pop %v501
    %v504 = vmul.f32 %v493, %v502
    %v505 = vmul.f32 %v495, %v503
    %506 = vrot.lane.b32.xlu0 %v377, 64
    %v507 = vpop.permute.xlu0 %506
    %508 = vrot.lane.b32.xlu0 %v382, 64
    %v509 = vpop.permute.xlu0 %508
    %v513 = vsel %vm392, %v504, 0
    %v516 = vsel %vm392, %v505, 0
    %518 = vmatprep.subr.mxu0 0.0
    %519 = vmatpush1.msra.mxu0 0.0
    %520 = vmatprep.subr.mxu0 0.0
    %521 = vmatpush1.msra.mxu0 0.0
    %522 = vmatprep.subr.mxu0 0.0
    %523 = vmatpush1.msra.mxu0 0.0
    %524 = vmatprep.subr.mxu0 0.0
    %525 = vmatpush1.msra.mxu0 0.0
    %526 = vmatprep.subr.mxu0 0.0
    %527 = vmatpush1.msra.mxu0 0.0
    %528 = vmatprep.subr.mxu0 0.0
    %529 = vmatpush1.msra.mxu0 0.0
    %530 = vmatprep.subr.mxu0 0.0
    %531 = vmatpush1.msra.mxu0 0.0
    %532 = vmatprep.subr.mxu0 0.0
    %533 = vmatpush1.msra.mxu0 0.0
    %534 = vmatprep.subr.mxu0 0.0
    %535 = vmatpush1.msra.mxu0 0.0
    %536 = vmatprep.subr.mxu0 0.0
    %537 = vmatpush1.msra.mxu0 0.0
    %538 = vmatprep.subr.mxu0 0.0
    %539 = vmatpush1.msra.mxu0 0.0
    %540 = vmatprep.subr.mxu0 0.0
    %541 = vmatpush1.msra.mxu0 0.0
    %542 = vmatprep.subr.mxu0 0.0
    %543 = vmatpush1.msra.mxu0 0.0
    %544 = vmatprep.subr.mxu0 0.0
    %545 = vmatpush1.msra.mxu0 0.0
    %546 = vmatprep.subr.mxu0 0.0
    %547 = vmatpush1.msra.mxu0 %v509
    %548 = vmatprep.subr.mxu0 0.0
    %549 = vmatpush1.msra.mxu0 %v507
    %550 = vmatprep.subr.mxu0 0.0
    %551 = vmatpush2.msra.mxu0 0.0
    %552 = vmatprep.subr.mxu0 0.0
    %553 = vmatpush2.msra.mxu0 0.0
    %554 = vmatprep.subr.mxu0 0.0
    %555 = vmatpush2.msra.mxu0 0.0
    %556 = vmatprep.subr.mxu0 0.0
    %557 = vmatpush2.msra.mxu0 0.0
    %558 = vmatprep.subr.mxu0 0.0
    %559 = vmatpush2.msra.mxu0 0.0
    %560 = vmatprep.subr.mxu0 0.0
    %561 = vmatpush2.msra.mxu0 0.0
    %562 = vmatprep.subr.mxu0 0.0
    %563 = vmatpush2.msra.mxu0 0.0
    %564 = vmatprep.subr.mxu0 0.0
    %565 = vmatpush2.msra.mxu0 0.0
    %566 = vmatprep.subr.mxu0 0.0
    %567 = vmatpush2.msra.mxu0 0.0
    %568 = vmatprep.subr.mxu0 0.0
    %569 = vmatpush2.msra.mxu0 0.0
    %570 = vmatprep.subr.mxu0 0.0
    %571 = vmatpush2.msra.mxu0 0.0
    %572 = vmatprep.subr.mxu0 0.0
    %573 = vmatpush2.msra.mxu0 0.0
    %574 = vmatprep.subr.mxu0 0.0
    %575 = vmatpush2.msra.mxu0 0.0
    %576 = vmatprep.subr.mxu0 0.0
    %577 = vmatpush2.msra.mxu0 0.0
    %578 = vmatprep.subr.mxu0 0.0
    %579 = vmatpush2.msra.mxu0 0.0
    %580 = vmatprep.subr.mxu0 0.0
    %581 = vmatpush2.msra.mxu0 0.0
    %582 = vmatprep.mubr.f32.mxu0 0.0
    %583 = vmatmul.mubr.f32.gmra.mxu0 %v513
    %v584 = vpop.f32.mrf.mxu0
    %v585 = vadd.f32 0.0, %v584
    %v586 = vpop.f32.mrf.mxu0
    %587 = vmatprep.mubr.f32.mxu0 0.0
    %588 = vmatmul.mubr.f32.gmra.mxu0 %v516
    %v589 = vpop.f32.mrf.mxu0
    %v590 = vadd.f32 0.0, %v589
    %v591 = vpop.f32.mrf.mxu0
    %592 = vdwg.mxu0
    %593 = vrot.lane.b32.xlu0 %v377, 112
    %v594 = vpop.permute.xlu0 %593
    %595 = vrot.lane.b32.xlu0 %v382, 112
    %v596 = vpop.permute.xlu0 %595
    %597 = vrot.lane.b32.xlu0 %v377, 80
    %v598 = vpop.permute.xlu0 %597
    %599 = vrot.lane.b32.xlu0 %v382, 80
    %v600 = vpop.permute.xlu0 %599
    %v601 = vsel %vm392, %v594, 0
    %v603 = vsel %vm392, %v596, 0
    %v605 = vsel %vm392, %v598, 0
    %v607 = vsel %vm392, %v600, 0
    %609 = vmatprep.subr.mxu0 0.0
    %610 = vmatpush1.xpose.msra.mxu0 0.0
    %611 = vmatprep.subr.mxu0 0.0
    %612 = vmatpush1.xpose.msra.mxu0 0.0
    %613 = vmatprep.subr.mxu0 0.0
    %614 = vmatpush1.xpose.msra.mxu0 0.0
    %615 = vmatprep.subr.mxu0 0.0
    %616 = vmatpush1.xpose.msra.mxu0 0.0
    %617 = vmatprep.subr.mxu0 0.0
    %618 = vmatpush1.xpose.msra.mxu0 0.0
    %619 = vmatprep.subr.mxu0 0.0
    %620 = vmatpush1.xpose.msra.mxu0 0.0
    %621 = vmatprep.subr.mxu0 0.0
    %622 = vmatpush1.xpose.msra.mxu0 0.0
    %623 = vmatprep.subr.mxu0 0.0
    %624 = vmatpush1.xpose.msra.mxu0 0.0
    %625 = vmatprep.subr.mxu0 0.0
    %626 = vmatpush1.xpose.msra.mxu0 0.0
    %627 = vmatprep.subr.mxu0 0.0
    %628 = vmatpush1.xpose.msra.mxu0 0.0
    %629 = vmatprep.subr.mxu0 0.0
    %630 = vmatpush1.xpose.msra.mxu0 0.0
    %631 = vmatprep.subr.mxu0 0.0
    %632 = vmatpush1.xpose.msra.mxu0 0.0
    %633 = vmatprep.subr.mxu0 0.0
    %634 = vmatpush1.xpose.msra.mxu0 0.0
    %635 = vmatprep.subr.mxu0 0.0
    %636 = vmatpush1.xpose.msra.mxu0 0.0
    %637 = vmatprep.subr.mxu0 0.0
    %638 = vmatpush1.xpose.msra.mxu0 %v607
    %639 = vmatprep.subr.mxu0 0.0
    %640 = vmatpush1.xpose.msra.mxu0 %v605
    %641 = vmatprep.subr.mxu0 0.0
    %642 = vmatpush2.xpose.msra.mxu0 0.0
    %643 = vmatprep.subr.mxu0 0.0
    %644 = vmatpush2.xpose.msra.mxu0 0.0
    %645 = vmatprep.subr.mxu0 0.0
    %646 = vmatpush2.xpose.msra.mxu0 0.0
    %647 = vmatprep.subr.mxu0 0.0
    %648 = vmatpush2.xpose.msra.mxu0 0.0
    %649 = vmatprep.subr.mxu0 0.0
    %650 = vmatpush2.xpose.msra.mxu0 0.0
    %651 = vmatprep.subr.mxu0 0.0
    %652 = vmatpush2.xpose.msra.mxu0 0.0
    %653 = vmatprep.subr.mxu0 0.0
    %654 = vmatpush2.xpose.msra.mxu0 0.0
    %655 = vmatprep.subr.mxu0 0.0
    %656 = vmatpush2.xpose.msra.mxu0 0.0
    %657 = vmatprep.subr.mxu0 0.0
    %658 = vmatpush2.xpose.msra.mxu0 0.0
    %659 = vmatprep.subr.mxu0 0.0
    %660 = vmatpush2.xpose.msra.mxu0 0.0
    %661 = vmatprep.subr.mxu0 0.0
    %662 = vmatpush2.xpose.msra.mxu0 0.0
    %663 = vmatprep.subr.mxu0 0.0
    %664 = vmatpush2.xpose.msra.mxu0 0.0
    %665 = vmatprep.subr.mxu0 0.0
    %666 = vmatpush2.xpose.msra.mxu0 0.0
    %667 = vmatprep.subr.mxu0 0.0
    %668 = vmatpush2.xpose.msra.mxu0 0.0
    %669 = vmatprep.subr.mxu0 0.0
    %670 = vmatpush2.xpose.msra.mxu0 0.0
    %671 = vmatprep.subr.mxu0 0.0
    %672 = vmatpush2.xpose.msra.mxu0 0.0
    %673 = vmatprep.mubr.f32.mxu0 0.0
    %674 = vmatmul.mubr.f32.gmra.mxu0 %v601
    %v675 = vpop.f32.mrf.mxu0
    %v676 = vadd.f32 0.0, %v675
    %v677 = vpop.f32.mrf.mxu0
    %678 = vmatprep.mubr.f32.mxu0 0.0
    %679 = vmatmul.mubr.f32.gmra.mxu0 %v603
    %v680 = vpop.f32.mrf.mxu0
    %v681 = vadd.f32 0.0, %v680
    %v682 = vpop.f32.mrf.mxu0
    %683 = vdwg.mxu0
    %v684 = vsel %vm481, %v676, -1e+30
    %v685 = vsel %vm481, %v681, -1e+30
    %v686 = vsel %vm392, %v684, -inf
    %687 = vmax.xlane.f32.xlu0 %v686
    %v688 = vpop.xlane.xlu0 %687
    %v689 = vsel %vm392, %v685, -inf
    %690 = vmax.xlane.f32.xlu0 %v689
    %v691 = vpop.xlane.xlu0 %690
    %v692 = vsub.f32 %v684, %v688
    %v693 = vsub.f32 %v685, %v691
    %v694 = vmul.f32 %v692, 1.442695
    %v695 = vpow.pop %v694
    %v696 = vmul.f32 %v693, 1.442695
    %v697 = vpow.pop %v696
    %v698 = vsel %vm392, %v695, 0.0
    %699 = vadd.xlane.f32.xlu0 %v698
    %v700 = vpop.xlane.xlu0 %699
    %v701 = vsel %vm392, %v697, 0.0
    %702 = vadd.xlane.f32.xlu0 %v701
    %v703 = vpop.xlane.xlu0 %702
    %v704 = vrcp.pop %v700
    %v705 = vrcp.pop %v703
    %v706 = vmul.f32 %v695, %v704
    %v707 = vmul.f32 %v697, %v705
    %708 = vrot.lane.b32.xlu0 %v377, 48
    %v709 = vpop.permute.xlu0 %708
    %710 = vrot.lane.b32.xlu0 %v382, 48
    %v711 = vpop.permute.xlu0 %710
    %v715 = vsel %vm392, %v706, 0
    %v718 = vsel %vm392, %v707, 0
    %720 = vmatprep.subr.mxu0 0.0
    %721 = vmatpush1.msra.mxu0 0.0
    %722 = vmatprep.subr.mxu0 0.0
    %723 = vmatpush1.msra.mxu0 0.0
    %724 = vmatprep.subr.mxu0 0.0
    %725 = vmatpush1.msra.mxu0 0.0
    %726 = vmatprep.subr.mxu0 0.0
    %727 = vmatpush1.msra.mxu0 0.0
    %728 = vmatprep.subr.mxu0 0.0
    %729 = vmatpush1.msra.mxu0 0.0
    %730 = vmatprep.subr.mxu0 0.0
    %731 = vmatpush1.msra.mxu0 0.0
    %732 = vmatprep.subr.mxu0 0.0
    %733 = vmatpush1.msra.mxu0 0.0
    %734 = vmatprep.subr.mxu0 0.0
    %735 = vmatpush1.msra.mxu0 0.0
    %736 = vmatprep.subr.mxu0 0.0
    %737 = vmatpush1.msra.mxu0 0.0
    %738 = vmatprep.subr.mxu0 0.0
    %739 = vmatpush1.msra.mxu0 0.0
    %740 = vmatprep.subr.mxu0 0.0
    %741 = vmatpush1.msra.mxu0 0.0
    %742 = vmatprep.subr.mxu0 0.0
    %743 = vmatpush1.msra.mxu0 0.0
    %744 = vmatprep.subr.mxu0 0.0
    %745 = vmatpush1.msra.mxu0 0.0
    %746 = vmatprep.subr.mxu0 0.0
    %747 = vmatpush1.msra.mxu0 0.0
    %748 = vmatprep.subr.mxu0 0.0
    %749 = vmatpush1.msra.mxu0 %v711
    %750 = vmatprep.subr.mxu0 0.0
    %751 = vmatpush1.msra.mxu0 %v709
    %752 = vmatprep.subr.mxu0 0.0
    %753 = vmatpush2.msra.mxu0 0.0
    %754 = vmatprep.subr.mxu0 0.0
    %755 = vmatpush2.msra.mxu0 0.0
    %756 = vmatprep.subr.mxu0 0.0
    %757 = vmatpush2.msra.mxu0 0.0
    %758 = vmatprep.subr.mxu0 0.0
    %759 = vmatpush2.msra.mxu0 0.0
    %760 = vmatprep.subr.mxu0 0.0
    %761 = vmatpush2.msra.mxu0 0.0
    %762 = vmatprep.subr.mxu0 0.0
    %763 = vmatpush2.msra.mxu0 0.0
    %764 = vmatprep.subr.mxu0 0.0
    %765 = vmatpush2.msra.mxu0 0.0
    %766 = vmatprep.subr.mxu0 0.0
    %767 = vmatpush2.msra.mxu0 0.0
    %768 = vmatprep.subr.mxu0 0.0
    %769 = vmatpush2.msra.mxu0 0.0
    %770 = vmatprep.subr.mxu0 0.0
    %771 = vmatpush2.msra.mxu0 0.0
    %772 = vmatprep.subr.mxu0 0.0
    %773 = vmatpush2.msra.mxu0 0.0
    %774 = vmatprep.subr.mxu0 0.0
    %775 = vmatpush2.msra.mxu0 0.0
    %776 = vmatprep.subr.mxu0 0.0
    %777 = vmatpush2.msra.mxu0 0.0
    %778 = vmatprep.subr.mxu0 0.0
    %779 = vmatpush2.msra.mxu0 0.0
    %780 = vmatprep.subr.mxu0 0.0
    %781 = vmatpush2.msra.mxu0 0.0
    %782 = vmatprep.subr.mxu0 0.0
    %783 = vmatpush2.msra.mxu0 0.0
    %784 = vmatprep.mubr.f32.mxu0 0.0
    %785 = vmatmul.mubr.f32.gmra.mxu0 %v715
    %v786 = vpop.f32.mrf.mxu0
    %v787 = vadd.f32 0.0, %v786
    %v788 = vpop.f32.mrf.mxu0
    %789 = vmatprep.mubr.f32.mxu0 0.0
    %790 = vmatmul.mubr.f32.gmra.mxu0 %v718
    %v791 = vpop.f32.mrf.mxu0
    %v792 = vadd.f32 0.0, %v791
    %v793 = vpop.f32.mrf.mxu0
    %794 = vdwg.mxu0
    %v796 = vsel %vm392, %v787, 0
    %v799 = vsel %vm392, %v792, 0
    %801 = vmatprep.subr.mxu0 0.0
    %802 = vmatpush1.msra.mxu0 0.0
    %803 = vmatprep.subr.mxu0 0.0
    %804 = vmatpush1.msra.mxu0 0.0
    %805 = vmatprep.subr.mxu0 0.0
    %806 = vmatpush1.msra.mxu0 0.0
    %807 = vmatprep.subr.mxu0 0.0
    %808 = vmatpush1.msra.mxu0 0.0
    %809 = vmatprep.subr.mxu0 0.0
    %810 = vmatpush1.msra.mxu0 0.0
    %811 = vmatprep.subr.mxu0 0.0
    %812 = vmatpush1.msra.mxu0 0.0
    %813 = vmatprep.subr.mxu0 0.0
    %814 = vmatpush1.msra.mxu0 0.0
    %815 = vmatprep.subr.mxu0 0.0
    %816 = vmatpush1.msra.mxu0 0.0
    %817 = vmatprep.subr.mxu0 0.0
    %818 = vmatpush1.msra.mxu0 0.0
    %819 = vmatprep.subr.mxu0 0.0
    %820 = vmatpush1.msra.mxu0 0.0
    %821 = vmatprep.subr.mxu0 0.0
    %822 = vmatpush1.msra.mxu0 0.0
    %823 = vmatprep.subr.mxu0 0.0
    %824 = vmatpush1.msra.mxu0 0.0
    %825 = vmatprep.subr.mxu0 0.0
    %826 = vmatpush1.msra.mxu0 0.0
    %827 = vmatprep.subr.mxu0 0.0
    %828 = vmatpush1.msra.mxu0 0.0
    %829 = vmatprep.subr.mxu0 0.0
    %830 = vmatpush1.msra.mxu0 %v282
    %831 = vmatprep.subr.mxu0 0.0
    %832 = vmatpush1.msra.mxu0 %v281
    %833 = vmatprep.subr.mxu0 0.0
    %834 = vmatpush2.msra.mxu0 0.0
    %835 = vmatprep.subr.mxu0 0.0
    %836 = vmatpush2.msra.mxu0 0.0
    %837 = vmatprep.subr.mxu0 0.0
    %838 = vmatpush2.msra.mxu0 0.0
    %839 = vmatprep.subr.mxu0 0.0
    %840 = vmatpush2.msra.mxu0 0.0
    %841 = vmatprep.subr.mxu0 0.0
    %842 = vmatpush2.msra.mxu0 0.0
    %843 = vmatprep.subr.mxu0 0.0
    %844 = vmatpush2.msra.mxu0 0.0
    %845 = vmatprep.subr.mxu0 0.0
    %846 = vmatpush2.msra.mxu0 0.0
    %847 = vmatprep.subr.mxu0 0.0
    %848 = vmatpush2.msra.mxu0 0.0
    %849 = vmatprep.subr.mxu0 0.0
    %850 = vmatpush2.msra.mxu0 0.0
    %851 = vmatprep.subr.mxu0 0.0
    %852 = vmatpush2.msra.mxu0 0.0
    %853 = vmatprep.subr.mxu0 0.0
    %854 = vmatpush2.msra.mxu0 0.0
    %855 = vmatprep.subr.mxu0 0.0
    %856 = vmatpush2.msra.mxu0 0.0
    %857 = vmatprep.subr.mxu0 0.0
    %858 = vmatpush2.msra.mxu0 0.0
    %859 = vmatprep.subr.mxu0 0.0
    %860 = vmatpush2.msra.mxu0 0.0
    %861 = vmatprep.subr.mxu0 0.0
    %862 = vmatpush2.msra.mxu0 0.0
    %863 = vmatprep.subr.mxu0 0.0
    %864 = vmatpush2.msra.mxu0 0.0
    %865 = vmatprep.mubr.f32.mxu0 0.0
    %866 = vmatmul.mubr.f32.gmra.mxu0 %v796
    %v867 = vpop.f32.mrf.mxu0
    %v868 = vadd.f32 0.0, %v867
    %v869 = vpop.f32.mrf.mxu0
    %870 = vmatprep.mubr.f32.mxu0 0.0
    %871 = vmatmul.mubr.f32.gmra.mxu0 %v799
    %v872 = vpop.f32.mrf.mxu0
    %v873 = vadd.f32 0.0, %v872
    %v874 = vpop.f32.mrf.mxu0
    %875 = vdwg.mxu0
    %v877 = vsel %vm392, %v585, 0
    %v880 = vsel %vm392, %v590, 0
    %882 = vmatprep.subr.mxu0 0.0
    %883 = vmatpush1.msra.mxu0 0.0
    %884 = vmatprep.subr.mxu0 0.0
    %885 = vmatpush1.msra.mxu0 0.0
    %886 = vmatprep.subr.mxu0 0.0
    %887 = vmatpush1.msra.mxu0 0.0
    %888 = vmatprep.subr.mxu0 0.0
    %889 = vmatpush1.msra.mxu0 0.0
    %890 = vmatprep.subr.mxu0 0.0
    %891 = vmatpush1.msra.mxu0 0.0
    %892 = vmatprep.subr.mxu0 0.0
    %893 = vmatpush1.msra.mxu0 0.0
    %894 = vmatprep.subr.mxu0 0.0
    %895 = vmatpush1.msra.mxu0 0.0
    %896 = vmatprep.subr.mxu0 0.0
    %897 = vmatpush1.msra.mxu0 0.0
    %898 = vmatprep.subr.mxu0 0.0
    %899 = vmatpush1.msra.mxu0 0.0
    %900 = vmatprep.subr.mxu0 0.0
    %901 = vmatpush1.msra.mxu0 0.0
    %902 = vmatprep.subr.mxu0 0.0
    %903 = vmatpush1.msra.mxu0 0.0
    %904 = vmatprep.subr.mxu0 0.0
    %905 = vmatpush1.msra.mxu0 0.0
    %906 = vmatprep.subr.mxu0 0.0
    %907 = vmatpush1.msra.mxu0 0.0
    %908 = vmatprep.subr.mxu0 0.0
    %909 = vmatpush1.msra.mxu0 0.0
    %910 = vmatprep.subr.mxu0 0.0
    %911 = vmatpush1.msra.mxu0 %v280
    %912 = vmatprep.subr.mxu0 0.0
    %913 = vmatpush1.msra.mxu0 %v279
    %914 = vmatprep.subr.mxu0 0.0
    %915 = vmatpush2.msra.mxu0 0.0
    %916 = vmatprep.subr.mxu0 0.0
    %917 = vmatpush2.msra.mxu0 0.0
    %918 = vmatprep.subr.mxu0 0.0
    %919 = vmatpush2.msra.mxu0 0.0
    %920 = vmatprep.subr.mxu0 0.0
    %921 = vmatpush2.msra.mxu0 0.0
    %922 = vmatprep.subr.mxu0 0.0
    %923 = vmatpush2.msra.mxu0 0.0
    %924 = vmatprep.subr.mxu0 0.0
    %925 = vmatpush2.msra.mxu0 0.0
    %926 = vmatprep.subr.mxu0 0.0
    %927 = vmatpush2.msra.mxu0 0.0
    %928 = vmatprep.subr.mxu0 0.0
    %929 = vmatpush2.msra.mxu0 0.0
    %930 = vmatprep.subr.mxu0 0.0
    %931 = vmatpush2.msra.mxu0 0.0
    %932 = vmatprep.subr.mxu0 0.0
    %933 = vmatpush2.msra.mxu0 0.0
    %934 = vmatprep.subr.mxu0 0.0
    %935 = vmatpush2.msra.mxu0 0.0
    %936 = vmatprep.subr.mxu0 0.0
    %937 = vmatpush2.msra.mxu0 0.0
    %938 = vmatprep.subr.mxu0 0.0
    %939 = vmatpush2.msra.mxu0 0.0
    %940 = vmatprep.subr.mxu0 0.0
    %941 = vmatpush2.msra.mxu0 0.0
    %942 = vmatprep.subr.mxu0 0.0
    %943 = vmatpush2.msra.mxu0 0.0
    %944 = vmatprep.subr.mxu0 0.0
    %945 = vmatpush2.msra.mxu0 0.0
    %946 = vmatprep.mubr.f32.mxu0 0.0
    %947 = vmatmul.mubr.f32.gmra.mxu0 %v877
    %v948 = vpop.f32.mrf.mxu0
    %v949 = vadd.f32 %v868, %v948
    %v950 = vpop.f32.mrf.mxu0
    %951 = vmatprep.mubr.f32.mxu0 0.0
    %952 = vmatmul.mubr.f32.gmra.mxu0 %v880
    %v953 = vpop.f32.mrf.mxu0
    %v954 = vadd.f32 %v873, %v953
    %v955 = vpop.f32.mrf.mxu0
    %956 = vdwg.mxu0
    %v958 = vlaneseq
    %v959 = vshrl.u32 %v958, 7
    %v960 = vsub.s32 0, %v959
    %v961 = vrot.slane %v283, %v960
    %v963 = vadd.f32 %v949, %v961
    %v964 = vadd.f32 %v954, %v961
    %v965 = vadd.f32 %v182, %v963
    %v966 = vadd.f32 %v187, %v964
    %v967 = vsel %vm198, %v965, 0.0
    %968 = vadd.xlane.f32.xlu0 %v967
    %v969 = vpop.xlane.xlu0 %968
    %v970 = vsel %vm198, %v966, 0.0
    %971 = vadd.xlane.f32.xlu0 %v970
    %v972 = vpop.xlane.xlu0 %971
    %v973 = vrcp.pop 32.0
    %v974 = vmul.f32 %v969, %v973
    %v975 = vmul.f32 %v972, %v973
    %v976 = vsub.f32 %v965, %v974
    %v977 = vsub.f32 %v966, %v975
    %v978 = vmul.f32 %v976, %v976
    %v979 = vmul.f32 %v977, %v977
    %v980 = vsel %vm198, %v978, 0.0
    %981 = vadd.xlane.f32.xlu0 %v980
    %v982 = vpop.xlane.xlu0 %981
    %v983 = vsel %vm198, %v979, 0.0
    %984 = vadd.xlane.f32.xlu0 %v983
    %v985 = vpop.xlane.xlu0 %984
    %v986 = vmul.f32 %v982, %v973
    %v987 = vmul.f32 %v985, %v973
    %v988 = vadd.f32 %v986, 1e-05
    %v989 = vadd.f32 %v987, 1e-05
    %v990 = vrsqrt.pop %v988
    %v991 = vrsqrt.pop %v989
    %v992 = vmul.f32 %v976, %v990
    %v993 = vmul.f32 %v977, %v991
    %v995 = vlaneseq
    %v996 = vshrl.u32 %v995, 7
    %v997 = vsub.s32 0, %v996
    %v998 = vrot.slane %v294, %v997
    %v1000 = vmul.f32 %v992, %v998
    %v1001 = vmul.f32 %v993, %v998
    %v1003 = vlaneseq
    %v1004 = vshrl.u32 %v1003, 7
    %v1005 = vsub.s32 0, %v1004
    %v1006 = vrot.slane %v295, %v1005
    %v1008 = vadd.f32 %v1000, %v1006
    %v1009 = vadd.f32 %v1001, %v1006
    %v1011 = vlaneseq
    %v1012 = vshrl.u32 %v1011, 7
    %v1013 = vsub.s32 0, %v1012
    %v1014 = vrot.slane %v288, %v1013
    %v1017 = vsel %vm198, %v1008, 0
    %v1020 = vsel %vm198, %v1009, 0
    %1022 = vmatprep.subr.mxu0 0.0
    %1023 = vmatpush1.msra.mxu0 0.0
    %1024 = vmatprep.subr.mxu0 0.0
    %1025 = vmatpush1.msra.mxu0 0.0
    %1026 = vmatprep.subr.mxu0 0.0
    %1027 = vmatpush1.msra.mxu0 0.0
    %1028 = vmatprep.subr.mxu0 0.0
    %1029 = vmatpush1.msra.mxu0 0.0
    %1030 = vmatprep.subr.mxu0 0.0
    %1031 = vmatpush1.msra.mxu0 0.0
    %1032 = vmatprep.subr.mxu0 0.0
    %1033 = vmatpush1.msra.mxu0 0.0
    %1034 = vmatprep.subr.mxu0 0.0
    %1035 = vmatpush1.msra.mxu0 0.0
    %1036 = vmatprep.subr.mxu0 0.0
    %1037 = vmatpush1.msra.mxu0 0.0
    %1038 = vmatprep.subr.mxu0 0.0
    %1039 = vmatpush1.msra.mxu0 0.0
    %1040 = vmatprep.subr.mxu0 0.0
    %1041 = vmatpush1.msra.mxu0 0.0
    %1042 = vmatprep.subr.mxu0 0.0
    %1043 = vmatpush1.msra.mxu0 0.0
    %1044 = vmatprep.subr.mxu0 0.0
    %1045 = vmatpush1.msra.mxu0 0.0
    %1046 = vmatprep.subr.mxu0 0.0
    %1047 = vmatpush1.msra.mxu0 %v287
    %1048 = vmatprep.subr.mxu0 0.0
    %1049 = vmatpush1.msra.mxu0 %v286
    %1050 = vmatprep.subr.mxu0 0.0
    %1051 = vmatpush1.msra.mxu0 %v285
    %1052 = vmatprep.subr.mxu0 0.0
    %1053 = vmatpush1.msra.mxu0 %v284
    %1054 = vmatprep.subr.mxu0 0.0
    %1055 = vmatpush2.msra.mxu0 0.0
    %1056 = vmatprep.subr.mxu0 0.0
    %1057 = vmatpush2.msra.mxu0 0.0
    %1058 = vmatprep.subr.mxu0 0.0
    %1059 = vmatpush2.msra.mxu0 0.0
    %1060 = vmatprep.subr.mxu0 0.0
    %1061 = vmatpush2.msra.mxu0 0.0
    %1062 = vmatprep.subr.mxu0 0.0
    %1063 = vmatpush2.msra.mxu0 0.0
    %1064 = vmatprep.subr.mxu0 0.0
    %1065 = vmatpush2.msra.mxu0 0.0
    %1066 = vmatprep.subr.mxu0 0.0
    %1067 = vmatpush2.msra.mxu0 0.0
    %1068 = vmatprep.subr.mxu0 0.0
    %1069 = vmatpush2.msra.mxu0 0.0
    %1070 = vmatprep.subr.mxu0 0.0
    %1071 = vmatpush2.msra.mxu0 0.0
    %1072 = vmatprep.subr.mxu0 0.0
    %1073 = vmatpush2.msra.mxu0 0.0
    %1074 = vmatprep.subr.mxu0 0.0
    %1075 = vmatpush2.msra.mxu0 0.0
    %1076 = vmatprep.subr.mxu0 0.0
    %1077 = vmatpush2.msra.mxu0 0.0
    %1078 = vmatprep.subr.mxu0 0.0
    %1079 = vmatpush2.msra.mxu0 0.0
    %1080 = vmatprep.subr.mxu0 0.0
    %1081 = vmatpush2.msra.mxu0 0.0
    %1082 = vmatprep.subr.mxu0 0.0
    %1083 = vmatpush2.msra.mxu0 0.0
    %1084 = vmatprep.subr.mxu0 0.0
    %1085 = vmatpush2.msra.mxu0 0.0
    %1086 = vmatprep.mubr.f32.mxu0 0.0
    %1087 = vmatmul.mubr.f32.gmra.mxu0 %v1017
    %v1088 = vpop.f32.mrf.mxu0
    %v1089 = vadd.f32 %v1014, %v1088
    %v1090 = vpop.f32.mrf.mxu0
    %1091 = vmatprep.mubr.f32.mxu0 0.0
    %1092 = vmatmul.mubr.f32.gmra.mxu0 %v1020
    %v1093 = vpop.f32.mrf.mxu0
    %v1094 = vadd.f32 %v1014, %v1093
    %v1095 = vpop.f32.mrf.mxu0
    %1096 = vdwg.mxu0
    %v1097 = vmax.f32 %v1089, 0.0
    %v1098 = vmax.f32 %v1094, 0.0
    %v1100 = vlaneseq
    %v1101 = vshrl.u32 %v1100, 7
    %v1102 = vsub.s32 0, %v1101
    %v1103 = vrot.slane %v293, %v1102
    %v1106 = vsel %vm198, %v1097, 0
    %v1109 = vsel %vm198, %v1098, 0
    %1111 = vmatprep.subr.mxu0 0.0
    %1112 = vmatpush1.msra.mxu0 0.0
    %1113 = vmatprep.subr.mxu0 0.0
    %1114 = vmatpush1.msra.mxu0 0.0
    %1115 = vmatprep.subr.mxu0 0.0
    %1116 = vmatpush1.msra.mxu0 0.0
    %1117 = vmatprep.subr.mxu0 0.0
    %1118 = vmatpush1.msra.mxu0 0.0
    %1119 = vmatprep.subr.mxu0 0.0
    %1120 = vmatpush1.msra.mxu0 0.0
    %1121 = vmatprep.subr.mxu0 0.0
    %1122 = vmatpush1.msra.mxu0 0.0
    %1123 = vmatprep.subr.mxu0 0.0
    %1124 = vmatpush1.msra.mxu0 0.0
    %1125 = vmatprep.subr.mxu0 0.0
    %1126 = vmatpush1.msra.mxu0 0.0
    %1127 = vmatprep.subr.mxu0 0.0
    %1128 = vmatpush1.msra.mxu0 0.0
    %1129 = vmatprep.subr.mxu0 0.0
    %1130 = vmatpush1.msra.mxu0 0.0
    %1131 = vmatprep.subr.mxu0 0.0
    %1132 = vmatpush1.msra.mxu0 0.0
    %1133 = vmatprep.subr.mxu0 0.0
    %1134 = vmatpush1.msra.mxu0 0.0
    %1135 = vmatprep.subr.mxu0 0.0
    %1136 = vmatpush1.msra.mxu0 %v292
    %1137 = vmatprep.subr.mxu0 0.0
    %1138 = vmatpush1.msra.mxu0 %v291
    %1139 = vmatprep.subr.mxu0 0.0
    %1140 = vmatpush1.msra.mxu0 %v290
    %1141 = vmatprep.subr.mxu0 0.0
    %1142 = vmatpush1.msra.mxu0 %v289
    %1143 = vmatprep.subr.mxu0 0.0
    %1144 = vmatpush2.msra.mxu0 0.0
    %1145 = vmatprep.subr.mxu0 0.0
    %1146 = vmatpush2.msra.mxu0 0.0
    %1147 = vmatprep.subr.mxu0 0.0
    %1148 = vmatpush2.msra.mxu0 0.0
    %1149 = vmatprep.subr.mxu0 0.0
    %1150 = vmatpush2.msra.mxu0 0.0
    %1151 = vmatprep.subr.mxu0 0.0
    %1152 = vmatpush2.msra.mxu0 0.0
    %1153 = vmatprep.subr.mxu0 0.0
    %1154 = vmatpush2.msra.mxu0 0.0
    %1155 = vmatprep.subr.mxu0 0.0
    %1156 = vmatpush2.msra.mxu0 0.0
    %1157 = vmatprep.subr.mxu0 0.0
    %1158 = vmatpush2.msra.mxu0 0.0
    %1159 = vmatprep.subr.mxu0 0.0
    %1160 = vmatpush2.msra.mxu0 0.0
    %1161 = vmatprep.subr.mxu0 0.0
    %1162 = vmatpush2.msra.mxu0 0.0
    %1163 = vmatprep.subr.mxu0 0.0
    %1164 = vmatpush2.msra.mxu0 0.0
    %1165 = vmatprep.subr.mxu0 0.0
    %1166 = vmatpush2.msra.mxu0 0.0
    %1167 = vmatprep.subr.mxu0 0.0
    %1168 = vmatpush2.msra.mxu0 0.0
    %1169 = vmatprep.subr.mxu0 0.0
    %1170 = vmatpush2.msra.mxu0 0.0
    %1171 = vmatprep.subr.mxu0 0.0
    %1172 = vmatpush2.msra.mxu0 0.0
    %1173 = vmatprep.subr.mxu0 0.0
    %1174 = vmatpush2.msra.mxu0 0.0
    %1175 = vmatprep.mubr.f32.mxu0 0.0
    %1176 = vmatmul.mubr.f32.gmra.mxu0 %v1106
    %v1177 = vpop.f32.mrf.mxu0
    %v1178 = vadd.f32 %v1103, %v1177
    %v1179 = vpop.f32.mrf.mxu0
    %1180 = vmatprep.mubr.f32.mxu0 0.0
    %1181 = vmatmul.mubr.f32.gmra.mxu0 %v1109
    %v1182 = vpop.f32.mrf.mxu0
    %v1183 = vadd.f32 %v1103, %v1182
    %v1184 = vpop.f32.mrf.mxu0
    %1185 = vdwg.mxu0
    %v1186 = vadd.f32 %v1008, %v1178
    %v1187 = vadd.f32 %v1009, %v1183
    %v1188 = vsel %vm198, %v1186, 0.0
    %1189 = vadd.xlane.f32.xlu0 %v1188
    %v1190 = vpop.xlane.xlu0 %1189
    %v1191 = vsel %vm198, %v1187, 0.0
    %1192 = vadd.xlane.f32.xlu0 %v1191
    %v1193 = vpop.xlane.xlu0 %1192
    %v1194 = vmul.f32 %v1190, %v973
    %v1195 = vmul.f32 %v1193, %v973
    %v1196 = vsub.f32 %v1186, %v1194
    %v1197 = vsub.f32 %v1187, %v1195
    %v1198 = vmul.f32 %v1196, %v1196
    %v1199 = vmul.f32 %v1197, %v1197
    %v1200 = vsel %vm198, %v1198, 0.0
    %1201 = vadd.xlane.f32.xlu0 %v1200
    %v1202 = vpop.xlane.xlu0 %1201
    %v1203 = vsel %vm198, %v1199, 0.0
    %1204 = vadd.xlane.f32.xlu0 %v1203
    %v1205 = vpop.xlane.xlu0 %1204
    %v1206 = vmul.f32 %v1202, %v973
    %v1207 = vmul.f32 %v1205, %v973
    %v1208 = vadd.f32 %v1206, 1e-05
    %v1209 = vadd.f32 %v1207, 1e-05
    %v1210 = vrsqrt.pop %v1208
    %v1211 = vrsqrt.pop %v1209
    %v1212 = vmul.f32 %v1196, %v1210
    %v1213 = vmul.f32 %v1197, %v1211
    %v1215 = vlaneseq
    %v1216 = vshrl.u32 %v1215, 7
    %v1217 = vsub.s32 0, %v1216
    %v1218 = vrot.slane %v296, %v1217
    %v1220 = vmul.f32 %v1212, %v1218
    %v1221 = vmul.f32 %v1213, %v1218
    %v1223 = vlaneseq
    %v1224 = vshrl.u32 %v1223, 7
    %v1225 = vsub.s32 0, %v1224
    %v1226 = vrot.slane %v297, %v1225
    %v1228 = vadd.f32 %v1220, %v1226
    %v1229 = vadd.f32 %v1221, %v1226
    %v1230 = vstv %s192
    %v1231 = vmul.f32 %v1230, %v1228
    %v1232 = vmul.f32 %v1230, %v1229
    %s1233 = ssub.f32 1.0, %s192
    %v1234 = vstv %s1233
    %v1235 = vmul.f32 %v1234, %v182
    %v1236 = vmul.f32 %v1234, %v187
    %v1237 = vadd.f32 %v1231, %v1235
    %v1238 = vadd.f32 %v1232, %v1236
    %v1239 = vlaneseq
    %v1240 = vshrl.u32 %v1239, 7
    %v1241 = vsub.s32 0, %v1240
    %v1242 = vrot.slane %v273, %v1241
    %v1243 = vmul.f32 %v190, %v1242
    %v1244 = vmul.f32 %v191, %v1242
    %v1245 = vsel %vm392, %v1243, 0.0
    %1246 = vadd.xlane.f32.xlu0 %v1245
    %v1247 = vpop.xlane.xlu0 %1246
    %v1248 = vsel %vm392, %v1244, 0.0
    %1249 = vadd.xlane.f32.xlu0 %v1248
    %v1250 = vpop.xlane.xlu0 %1249
    %v1251 = vadd.f32 %v1247, 1.0
    %v1252 = vadd.f32 %v1250, 1.0
    %v1253 = vrsqrt.pop %v1251
    %v1254 = vrsqrt.pop %v1252
    %v1255 = vld [vmem:[%s17] sm:$0xff]
    %v1256 = vld [vmem:[%s17 + $0x8] sm:$0xff]
    %v1257 = vld [vmem:[%s17 + $0x10] sm:$0xff]
    %v1258 = vld [vmem:[%s17 + $0x18] sm:$0xff]
    %v1260 = vsel %vm198, %v1237, 0
    %v1263 = vsel %vm198, %v1238, 0
    %1265 = vmatprep.subr.mxu0 0.0
    %1266 = vmatpush1.msra.mxu0 0.0
    %1267 = vmatprep.subr.mxu0 0.0
    %1268 = vmatpush1.msra.mxu0 0.0
    %1269 = vmatprep.subr.mxu0 0.0
    %1270 = vmatpush1.msra.mxu0 0.0
    %1271 = vmatprep.subr.mxu0 0.0
    %1272 = vmatpush1.msra.mxu0 0.0
    %1273 = vmatprep.subr.mxu0 0.0
    %1274 = vmatpush1.msra.mxu0 0.0
    %1275 = vmatprep.subr.mxu0 0.0
    %1276 = vmatpush1.msra.mxu0 0.0
    %1277 = vmatprep.subr.mxu0 0.0
    %1278 = vmatpush1.msra.mxu0 0.0
    %1279 = vmatprep.subr.mxu0 0.0
    %1280 = vmatpush1.msra.mxu0 0.0
    %1281 = vmatprep.subr.mxu0 0.0
    %1282 = vmatpush1.msra.mxu0 0.0
    %1283 = vmatprep.subr.mxu0 0.0
    %1284 = vmatpush1.msra.mxu0 0.0
    %1285 = vmatprep.subr.mxu0 0.0
    %1286 = vmatpush1.msra.mxu0 0.0
    %1287 = vmatprep.subr.mxu0 0.0
    %1288 = vmatpush1.msra.mxu0 0.0
    %1289 = vmatprep.subr.mxu0 0.0
    %1290 = vmatpush1.msra.mxu0 %v1258
    %1291 = vmatprep.subr.mxu0 0.0
    %1292 = vmatpush1.msra.mxu0 %v1257
    %1293 = vmatprep.subr.mxu0 0.0
    %1294 = vmatpush1.msra.mxu0 %v1256
    %1295 = vmatprep.subr.mxu0 0.0
    %1296 = vmatpush1.msra.mxu0 %v1255
    %1297 = vmatprep.subr.mxu0 0.0
    %1298 = vmatpush2.msra.mxu0 0.0
    %1299 = vmatprep.subr.mxu0 0.0
    %1300 = vmatpush2.msra.mxu0 0.0
    %1301 = vmatprep.subr.mxu0 0.0
    %1302 = vmatpush2.msra.mxu0 0.0
    %1303 = vmatprep.subr.mxu0 0.0
    %1304 = vmatpush2.msra.mxu0 0.0
    %1305 = vmatprep.subr.mxu0 0.0
    %1306 = vmatpush2.msra.mxu0 0.0
    %1307 = vmatprep.subr.mxu0 0.0
    %1308 = vmatpush2.msra.mxu0 0.0
    %1309 = vmatprep.subr.mxu0 0.0
    %1310 = vmatpush2.msra.mxu0 0.0
    %1311 = vmatprep.subr.mxu0 0.0
    %1312 = vmatpush2.msra.mxu0 0.0
    %1313 = vmatprep.subr.mxu0 0.0
    %1314 = vmatpush2.msra.mxu0 0.0
    %1315 = vmatprep.subr.mxu0 0.0
    %1316 = vmatpush2.msra.mxu0 0.0
    %1317 = vmatprep.subr.mxu0 0.0
    %1318 = vmatpush2.msra.mxu0 0.0
    %1319 = vmatprep.subr.mxu0 0.0
    %1320 = vmatpush2.msra.mxu0 0.0
    %1321 = vmatprep.subr.mxu0 0.0
    %1322 = vmatpush2.msra.mxu0 0.0
    %1323 = vmatprep.subr.mxu0 0.0
    %1324 = vmatpush2.msra.mxu0 0.0
    %1325 = vmatprep.subr.mxu0 0.0
    %1326 = vmatpush2.msra.mxu0 0.0
    %1327 = vmatprep.subr.mxu0 0.0
    %1328 = vmatpush2.msra.mxu0 0.0
    %1329 = vmatprep.mubr.f32.mxu0 0.0
    %1330 = vmatmul.mubr.f32.gmra.mxu0 %v1260
    %v1331 = vpop.f32.mrf.mxu0
    %v1332 = vadd.f32 0.0, %v1331
    %v1333 = vpop.f32.mrf.mxu0
    %1334 = vmatprep.mubr.f32.mxu0 0.0
    %1335 = vmatmul.mubr.f32.gmra.mxu0 %v1263
    %v1336 = vpop.f32.mrf.mxu0
    %v1337 = vadd.f32 0.0, %v1336
    %v1338 = vpop.f32.mrf.mxu0
    %1339 = vdwg.mxu0
    %v1340 = vmul.f32 %v1253, %v1332
    %v1341 = vmul.f32 %v1254, %v1337
    %v1343 = vsel %vm392, %v1243, 0
    %v1346 = vsel %vm392, %v1244, 0
    %1348 = vmatprep.subr.mxu0 0.0
    %1349 = vmatpush1.msra.mxu0 0.0
    %1350 = vmatprep.subr.mxu0 0.0
    %1351 = vmatpush1.msra.mxu0 0.0
    %1352 = vmatprep.subr.mxu0 0.0
    %1353 = vmatpush1.msra.mxu0 0.0
    %1354 = vmatprep.subr.mxu0 0.0
    %1355 = vmatpush1.msra.mxu0 0.0
    %1356 = vmatprep.subr.mxu0 0.0
    %1357 = vmatpush1.msra.mxu0 0.0
    %1358 = vmatprep.subr.mxu0 0.0
    %1359 = vmatpush1.msra.mxu0 0.0
    %1360 = vmatprep.subr.mxu0 0.0
    %1361 = vmatpush1.msra.mxu0 0.0
    %1362 = vmatprep.subr.mxu0 0.0
    %1363 = vmatpush1.msra.mxu0 0.0
    %1364 = vmatprep.subr.mxu0 0.0
    %1365 = vmatpush1.msra.mxu0 0.0
    %1366 = vmatprep.subr.mxu0 0.0
    %1367 = vmatpush1.msra.mxu0 0.0
    %1368 = vmatprep.subr.mxu0 0.0
    %1369 = vmatpush1.msra.mxu0 0.0
    %1370 = vmatprep.subr.mxu0 0.0
    %1371 = vmatpush1.msra.mxu0 0.0
    %1372 = vmatprep.subr.mxu0 0.0
    %1373 = vmatpush1.msra.mxu0 0.0
    %1374 = vmatprep.subr.mxu0 0.0
    %1375 = vmatpush1.msra.mxu0 0.0
    %1376 = vmatprep.subr.mxu0 0.0
    %1377 = vmatpush1.msra.mxu0 %v1341
    %1378 = vmatprep.subr.mxu0 0.0
    %1379 = vmatpush1.msra.mxu0 %v1340
    %1380 = vmatprep.subr.mxu0 0.0
    %1381 = vmatpush2.msra.mxu0 0.0
    %1382 = vmatprep.subr.mxu0 0.0
    %1383 = vmatpush2.msra.mxu0 0.0
    %1384 = vmatprep.subr.mxu0 0.0
    %1385 = vmatpush2.msra.mxu0 0.0
    %1386 = vmatprep.subr.mxu0 0.0
    %1387 = vmatpush2.msra.mxu0 0.0
    %1388 = vmatprep.subr.mxu0 0.0
    %1389 = vmatpush2.msra.mxu0 0.0
    %1390 = vmatprep.subr.mxu0 0.0
    %1391 = vmatpush2.msra.mxu0 0.0
    %1392 = vmatprep.subr.mxu0 0.0
    %1393 = vmatpush2.msra.mxu0 0.0
    %1394 = vmatprep.subr.mxu0 0.0
    %1395 = vmatpush2.msra.mxu0 0.0
    %1396 = vmatprep.subr.mxu0 0.0
    %1397 = vmatpush2.msra.mxu0 0.0
    %1398 = vmatprep.subr.mxu0 0.0
    %1399 = vmatpush2.msra.mxu0 0.0
    %1400 = vmatprep.subr.mxu0 0.0
    %1401 = vmatpush2.msra.mxu0 0.0
    %1402 = vmatprep.subr.mxu0 0.0
    %1403 = vmatpush2.msra.mxu0 0.0
    %1404 = vmatprep.subr.mxu0 0.0
    %1405 = vmatpush2.msra.mxu0 0.0
    %1406 = vmatprep.subr.mxu0 0.0
    %1407 = vmatpush2.msra.mxu0 0.0
    %1408 = vmatprep.subr.mxu0 0.0
    %1409 = vmatpush2.msra.mxu0 0.0
    %1410 = vmatprep.subr.mxu0 0.0
    %1411 = vmatpush2.msra.mxu0 0.0
    %1412 = vmatprep.mubr.f32.mxu0 0.0
    %1413 = vmatmul.mubr.f32.gmra.mxu0 %v1343
    %v1414 = vpop.f32.mrf.mxu0
    %v1415 = vadd.f32 0.0, %v1414
    %v1416 = vpop.f32.mrf.mxu0
    %1417 = vmatprep.mubr.f32.mxu0 0.0
    %1418 = vmatmul.mubr.f32.gmra.mxu0 %v1346
    %v1419 = vpop.f32.mrf.mxu0
    %v1420 = vadd.f32 0.0, %v1419
    %v1421 = vpop.f32.mrf.mxu0
    %1422 = vdwg.mxu0
    %v1423 = vmul.f32 %v1253, %v1415
    %v1424 = vmul.f32 %v1254, %v1420
    %v1425 = vmul.f32 %v1253, %v1253
    %v1426 = vmul.f32 %v1254, %v1254
    %v1427 = vmul.f32 %v1425, %v1332
    %v1428 = vmul.f32 %v1426, %v1337
    %v1429 = vadd.f32 %v1423, %v1427
    %v1430 = vadd.f32 %v1424, %v1428
    %v1431 = vld [vmem:[%s18] sm:$0x1]
    %v1433 = vlaneseq
    %v1434 = vshrl.u32 %v1433, 7
    %v1435 = vsub.s32 0, %v1434
    %v1436 = vrot.slane %v1431, %v1435
    %v1438 = vadd.f32 %v1429, %v1436
    %v1439 = vadd.f32 %v1430, %v1436
    %v1440 = vld [vmem:[%s19] sm:$0xff]
    %v1441 = vld [vmem:[%s19 + $0x8] sm:$0xff]
    %v1442 = vld [vmem:[%s19 + $0x10] sm:$0xff]
    %v1443 = vld [vmem:[%s19 + $0x18] sm:$0xff]
    %v1444 = vld [vmem:[%s20] sm:$0x1]
    %v1446 = vlaneseq
    %v1447 = vshrl.u32 %v1446, 7
    %v1448 = vsub.s32 0, %v1447
    %v1449 = vrot.slane %v1444, %v1448
    %v1452 = vsel %vm198, %v1438, 0
    %v1455 = vsel %vm198, %v1439, 0
    %1457 = vmatprep.subr.mxu0 0.0
    %1458 = vmatpush1.msra.mxu0 0.0
    %1459 = vmatprep.subr.mxu0 0.0
    %1460 = vmatpush1.msra.mxu0 0.0
    %1461 = vmatprep.subr.mxu0 0.0
    %1462 = vmatpush1.msra.mxu0 0.0
    %1463 = vmatprep.subr.mxu0 0.0
    %1464 = vmatpush1.msra.mxu0 0.0
    %1465 = vmatprep.subr.mxu0 0.0
    %1466 = vmatpush1.msra.mxu0 0.0
    %1467 = vmatprep.subr.mxu0 0.0
    %1468 = vmatpush1.msra.mxu0 0.0
    %1469 = vmatprep.subr.mxu0 0.0
    %1470 = vmatpush1.msra.mxu0 0.0
    %1471 = vmatprep.subr.mxu0 0.0
    %1472 = vmatpush1.msra.mxu0 0.0
    %1473 = vmatprep.subr.mxu0 0.0
    %1474 = vmatpush1.msra.mxu0 0.0
    %1475 = vmatprep.subr.mxu0 0.0
    %1476 = vmatpush1.msra.mxu0 0.0
    %1477 = vmatprep.subr.mxu0 0.0
    %1478 = vmatpush1.msra.mxu0 0.0
    %1479 = vmatprep.subr.mxu0 0.0
    %1480 = vmatpush1.msra.mxu0 0.0
    %1481 = vmatprep.subr.mxu0 0.0
    %1482 = vmatpush1.msra.mxu0 %v1443
    %1483 = vmatprep.subr.mxu0 0.0
    %1484 = vmatpush1.msra.mxu0 %v1442
    %1485 = vmatprep.subr.mxu0 0.0
    %1486 = vmatpush1.msra.mxu0 %v1441
    %1487 = vmatprep.subr.mxu0 0.0
    %1488 = vmatpush1.msra.mxu0 %v1440
    %1489 = vmatprep.subr.mxu0 0.0
    %1490 = vmatpush2.msra.mxu0 0.0
    %1491 = vmatprep.subr.mxu0 0.0
    %1492 = vmatpush2.msra.mxu0 0.0
    %1493 = vmatprep.subr.mxu0 0.0
    %1494 = vmatpush2.msra.mxu0 0.0
    %1495 = vmatprep.subr.mxu0 0.0
    %1496 = vmatpush2.msra.mxu0 0.0
    %1497 = vmatprep.subr.mxu0 0.0
    %1498 = vmatpush2.msra.mxu0 0.0
    %1499 = vmatprep.subr.mxu0 0.0
    %1500 = vmatpush2.msra.mxu0 0.0
    %1501 = vmatprep.subr.mxu0 0.0
    %1502 = vmatpush2.msra.mxu0 0.0
    %1503 = vmatprep.subr.mxu0 0.0
    %1504 = vmatpush2.msra.mxu0 0.0
    %1505 = vmatprep.subr.mxu0 0.0
    %1506 = vmatpush2.msra.mxu0 0.0
    %1507 = vmatprep.subr.mxu0 0.0
    %1508 = vmatpush2.msra.mxu0 0.0
    %1509 = vmatprep.subr.mxu0 0.0
    %1510 = vmatpush2.msra.mxu0 0.0
    %1511 = vmatprep.subr.mxu0 0.0
    %1512 = vmatpush2.msra.mxu0 0.0
    %1513 = vmatprep.subr.mxu0 0.0
    %1514 = vmatpush2.msra.mxu0 0.0
    %1515 = vmatprep.subr.mxu0 0.0
    %1516 = vmatpush2.msra.mxu0 0.0
    %1517 = vmatprep.subr.mxu0 0.0
    %1518 = vmatpush2.msra.mxu0 0.0
    %1519 = vmatprep.subr.mxu0 0.0
    %1520 = vmatpush2.msra.mxu0 0.0
    %1521 = vmatprep.mubr.f32.mxu0 0.0
    %1522 = vmatmul.mubr.f32.gmra.mxu0 %v1452
    %v1523 = vpop.f32.mrf.mxu0
    %v1524 = vadd.f32 %v1449, %v1523
    %v1525 = vpop.f32.mrf.mxu0
    %1526 = vmatprep.mubr.f32.mxu0 0.0
    %1527 = vmatmul.mubr.f32.gmra.mxu0 %v1455
    %v1528 = vpop.f32.mrf.mxu0
    %v1529 = vadd.f32 %v1449, %v1528
    %v1530 = vpop.f32.mrf.mxu0
    %1531 = vdwg.mxu0
    %v1532 = vmax.f32 %v1524, 0.0
    %v1533 = vmax.f32 %v1529, 0.0
    %v1534 = vld [vmem:[%s21] sm:$0x1]
    %v1536 = vlaneseq
    %v1537 = vshrl.u32 %v1536, 7
    %v1538 = vsub.s32 0, %v1537
    %v1539 = vrot.slane %v1534, %v1538
    %v1541 = vmul.f32 %v1532, %v1539
    %v1542 = vmul.f32 %v1533, %v1539
    %v1543 = vld [vmem:[%s22] sm:$0x1]
    %v1545 = vlaneseq
    %v1546 = vshrl.u32 %v1545, 7
    %v1547 = vsub.s32 0, %v1546
    %v1548 = vrot.slane %v1543, %v1547
    %v1550 = vadd.f32 %v1541, %v1548
    %v1551 = vadd.f32 %v1542, %v1548
    %1552 = vmatprep.subr.mxu0 0.0
    %1553 = vmatpush1.msra.mxu0 0.0
    %1554 = vmatprep.subr.mxu0 0.0
    %1555 = vmatpush1.msra.mxu0 0.0
    %1556 = vmatprep.subr.mxu0 0.0
    %1557 = vmatpush1.msra.mxu0 0.0
    %1558 = vmatprep.subr.mxu0 0.0
    %1559 = vmatpush1.msra.mxu0 0.0
    %1560 = vmatprep.subr.mxu0 0.0
    %1561 = vmatpush1.msra.mxu0 0.0
    %1562 = vmatprep.subr.mxu0 0.0
    %1563 = vmatpush1.msra.mxu0 0.0
    %1564 = vmatprep.subr.mxu0 0.0
    %1565 = vmatpush1.msra.mxu0 0.0
    %1566 = vmatprep.subr.mxu0 0.0
    %1567 = vmatpush1.msra.mxu0 0.0
    %1568 = vmatprep.subr.mxu0 0.0
    %1569 = vmatpush1.msra.mxu0 0.0
    %1570 = vmatprep.subr.mxu0 0.0
    %1571 = vmatpush1.msra.mxu0 0.0
    %1572 = vmatprep.subr.mxu0 0.0
    %1573 = vmatpush1.msra.mxu0 0.0
    %1574 = vmatprep.subr.mxu0 0.0
    %1575 = vmatpush1.msra.mxu0 0.0
    %1576 = vmatprep.subr.mxu0 0.0
    %1577 = vmatpush1.msra.mxu0 0.0
    %1578 = vmatprep.subr.mxu0 0.0
    %1579 = vmatpush1.msra.mxu0 0.0
    %1580 = vmatprep.subr.mxu0 0.0
    %1581 = vmatpush1.msra.mxu0 %v1551
    %1582 = vmatprep.subr.mxu0 0.0
    %1583 = vmatpush1.msra.mxu0 %v1550
    %1584 = vmatprep.subr.mxu0 0.0
    %1585 = vmatpush2.msra.mxu0 0.0
    %1586 = vmatprep.subr.mxu0 0.0
    %1587 = vmatpush2.msra.mxu0 0.0
    %1588 = vmatprep.subr.mxu0 0.0
    %1589 = vmatpush2.msra.mxu0 0.0
    %1590 = vmatprep.subr.mxu0 0.0
    %1591 = vmatpush2.msra.mxu0 0.0
    %1592 = vmatprep.subr.mxu0 0.0
    %1593 = vmatpush2.msra.mxu0 0.0
    %1594 = vmatprep.subr.mxu0 0.0
    %1595 = vmatpush2.msra.mxu0 0.0
    %1596 = vmatprep.subr.mxu0 0.0
    %1597 = vmatpush2.msra.mxu0 0.0
    %1598 = vmatprep.subr.mxu0 0.0
    %1599 = vmatpush2.msra.mxu0 0.0
    %1600 = vmatprep.subr.mxu0 0.0
    %1601 = vmatpush2.msra.mxu0 0.0
    %1602 = vmatprep.subr.mxu0 0.0
    %1603 = vmatpush2.msra.mxu0 0.0
    %1604 = vmatprep.subr.mxu0 0.0
    %1605 = vmatpush2.msra.mxu0 0.0
    %1606 = vmatprep.subr.mxu0 0.0
    %1607 = vmatpush2.msra.mxu0 0.0
    %1608 = vmatprep.subr.mxu0 0.0
    %1609 = vmatpush2.msra.mxu0 0.0
    %1610 = vmatprep.subr.mxu0 0.0
    %1611 = vmatpush2.msra.mxu0 0.0
    %1612 = vmatprep.subr.mxu0 0.0
    %1613 = vmatpush2.msra.mxu0 0.0
    %1614 = vmatprep.subr.mxu0 0.0
    %1615 = vmatpush2.msra.mxu0 0.0
    %1616 = vmatprep.mubr.f32.mxu0 0.0
    %1617 = vmatmul.mubr.f32.gmra.mxu0 %v1343
    %v1618 = vpop.f32.mrf.mxu0
    %v1619 = vadd.f32 0.0, %v1618
    %v1620 = vpop.f32.mrf.mxu0
    %1621 = vmatprep.mubr.f32.mxu0 0.0
    %1622 = vmatmul.mubr.f32.gmra.mxu0 %v1346
    %v1623 = vpop.f32.mrf.mxu0
    %v1624 = vadd.f32 0.0, %v1623
    %v1625 = vpop.f32.mrf.mxu0
    %1626 = vdwg.mxu0
    %v1627 = vld [vmem:[%s23] sm:$0x1]
    %v1629 = vlaneseq
    %v1630 = vshrl.u32 %v1629, 7
    %v1631 = vsub.s32 0, %v1630
    %v1632 = vrot.slane %v1627, %v1631
    %v1634 = vmul.f32 %v1619, %v1632
    %v1635 = vmul.f32 %v1624, %v1632
    %v1636 = vld [vmem:[%s24] sm:$0x1]
    %v1638 = vlaneseq
    %v1639 = vshrl.u32 %v1638, 7
    %v1640 = vsub.s32 0, %v1639
    %v1641 = vrot.slane %v1636, %v1640
    %v1643 = vmul.f32 %v1550, %v1641
    %v1644 = vmul.f32 %v1551, %v1641
    %v1645 = vadd.f32 %v1634, %v1643
    %v1646 = vadd.f32 %v1635, %v1644
    %v1647 = vsel %vm198, %v1645, 0.0
    %1648 = vadd.xlane.f32.xlu0 %v1647
    %v1649 = vpop.xlane.xlu0 %1648
    %v1650 = vsel %vm198, %v1646, 0.0
    %1651 = vadd.xlane.f32.xlu0 %v1650
    %v1652 = vpop.xlane.xlu0 %1651
    %s1653 = sld [smem:[#allocation3]]
    %v1654 = vstv %s1653
    %v1655 = vadd.f32 %v1649, %v1654
    %v1656 = vadd.f32 %v1652, %v1654
    %v1658 = vsel %vm198, %v1649, 0
    %v1661 = vsel %vm198, %v1652, 0
    %1663 = vmatprep.subr.mxu0 0.0
    %1664 = vmatpush1.xpose.msra.mxu0 0.0
    %1665 = vmatprep.subr.mxu0 0.0
    %1666 = vmatpush1.xpose.msra.mxu0 0.0
    %1667 = vmatprep.subr.mxu0 0.0
    %1668 = vmatpush1.xpose.msra.mxu0 0.0
    %1669 = vmatprep.subr.mxu0 0.0
    %1670 = vmatpush1.xpose.msra.mxu0 0.0
    %1671 = vmatprep.subr.mxu0 0.0
    %1672 = vmatpush1.xpose.msra.mxu0 0.0
    %1673 = vmatprep.subr.mxu0 0.0
    %1674 = vmatpush1.xpose.msra.mxu0 0.0
    %1675 = vmatprep.subr.mxu0 0.0
    %1676 = vmatpush1.xpose.msra.mxu0 0.0
    %1677 = vmatprep.subr.mxu0 0.0
    %1678 = vmatpush1.xpose.msra.mxu0 0.0
    %1679 = vmatprep.subr.mxu0 0.0
    %1680 = vmatpush1.xpose.msra.mxu0 0.0
    %1681 = vmatprep.subr.mxu0 0.0
    %1682 = vmatpush1.xpose.msra.mxu0 0.0
    %1683 = vmatprep.subr.mxu0 0.0
    %1684 = vmatpush1.xpose.msra.mxu0 0.0
    %1685 = vmatprep.subr.mxu0 0.0
    %1686 = vmatpush1.xpose.msra.mxu0 0.0
    %1687 = vmatprep.subr.mxu0 0.0
    %1688 = vmatpush1.xpose.msra.mxu0 0.0
    %1689 = vmatprep.subr.mxu0 0.0
    %1690 = vmatpush1.xpose.msra.mxu0 0.0
    %1691 = vmatprep.subr.mxu0 0.0
    %1692 = vmatpush1.xpose.msra.mxu0 %v1661
    %1693 = vmatprep.subr.mxu0 0.0
    %1694 = vmatpush1.xpose.msra.mxu0 %v1658
    %1695 = vmatprep.subr.mxu0 0.0
    %1696 = vmatpush2.xpose.msra.mxu0 0.0
    %1697 = vmatprep.subr.mxu0 0.0
    %1698 = vmatpush2.xpose.msra.mxu0 0.0
    %1699 = vmatprep.subr.mxu0 0.0
    %1700 = vmatpush2.xpose.msra.mxu0 0.0
    %1701 = vmatprep.subr.mxu0 0.0
    %1702 = vmatpush2.xpose.msra.mxu0 0.0
    %1703 = vmatprep.subr.mxu0 0.0
    %1704 = vmatpush2.xpose.msra.mxu0 0.0
    %1705 = vmatprep.subr.mxu0 0.0
    %1706 = vmatpush2.xpose.msra.mxu0 0.0
    %1707 = vmatprep.subr.mxu0 0.0
    %1708 = vmatpush2.xpose.msra.mxu0 0.0
    %1709 = vmatprep.subr.mxu0 0.0
    %1710 = vmatpush2.xpose.msra.mxu0 0.0
    %1711 = vmatprep.subr.mxu0 0.0
    %1712 = vmatpush2.xpose.msra.mxu0 0.0
    %1713 = vmatprep.subr.mxu0 0.0
    %1714 = vmatpush2.xpose.msra.mxu0 0.0
    %1715 = vmatprep.subr.mxu0 0.0
    %1716 = vmatpush2.xpose.msra.mxu0 0.0
    %1717 = vmatprep.subr.mxu0 0.0
    %1718 = vmatpush2.xpose.msra.mxu0 0.0
    %1719 = vmatprep.subr.mxu0 0.0
    %1720 = vmatpush2.xpose.msra.mxu0 0.0
    %1721 = vmatprep.subr.mxu0 0.0
    %1722 = vmatpush2.xpose.msra.mxu0 0.0
    %1723 = vmatprep.subr.mxu0 0.0
    %1724 = vmatpush2.xpose.msra.mxu0 0.0
    %1725 = vmatprep.subr.mxu0 0.0
    %1726 = vmatpush2.xpose.msra.mxu0 0.0
    %1727 = vmatprep.mubr.f32.mxu0 0.0
    %1728 = vmatmul.mubr.f32.gmra.mxu0 %v200
    %v1729 = vpop.f32.mrf.mxu0
    %v1730 = vadd.f32 0.0, %v1729
    %v1731 = vpop.f32.mrf.mxu0
    %1732 = vdwg.mxu0
    %v1733 = vmul.f32 %v1730, 0.03125
    %vm1734 = vcmp.ne.s32.totalorder %v194, %v197
    %vm1735 = vcmp.ne.s32.totalorder %v195, %v197
    %v1736 = vlaneseq
    %v1737 = vshrl.u32 %v1736, 7
    %v1738 = vsub.s32 0, %v1737
    %v1739 = vrot.slane %v1733, %v1738
    %vm1740 = vcmp.gt.f32.partialorder %v1739, %v1649
    %vm1741 = vcmp.gt.f32.partialorder %v1739, %v1652
    %vm1742 = vcmp.eq.f32.partialorder %v1739, %v1649
    %vm1743 = vcmp.eq.f32.partialorder %v1739, %v1652
    %vm1744 = vcmp.lt.s32.totalorder %v197, %v194
    %vm1745 = vcmp.lt.s32.totalorder %v197, %v195
    %vm1746 = vmand %vm1742, %vm1744
    %vm1747 = vmand %vm1743, %vm1745
    %vm1748 = vmor %vm1740, %vm1746
    %vm1749 = vmor %vm1741, %vm1747
    %vm1750 = vmand %vm1734, %vm1748
    %vm1751 = vmand %vm1735, %vm1749
    %v1752 = vsel %vm1750, %v1242, 0.0
    %v1753 = vsel %vm1751, %v1242, 0.0
    %v1754 = vsel %vm392, %v1752, 0.0
    %1755 = vadd.xlane.f32.xlu0 %v1754
    %v1756 = vpop.xlane.xlu0 %1755
    %v1757 = vsel %vm392, %v1753, 0.0
    %1758 = vadd.xlane.f32.xlu0 %v1757
    %v1759 = vpop.xlane.xlu0 %1758
    %vm1760 = vcmp.lt.f32.partialorder %v1756, 8.0
    %vm1761 = vcmp.lt.f32.partialorder %v1759, 8.0
    %v1762 = vsel %vm1760, 1.0, 0.0
    %v1763 = vsel %vm1761, 1.0, 0.0
    %v1764 = vtanh.pop %v1655
    %v1765 = vtanh.pop %v1656
    %v1766 = vmul.f32 %v1550, %v1764
    %v1767 = vmul.f32 %v1551, %v1765
    %v1768 = vmul.f32 %v1766, %v1762
    %v1769 = vmul.f32 %v1767, %v1763
    %v1771 = vsel %vm198, %v1762, 0
    %v1774 = vsel %vm198, %v1763, 0
    %1776 = vmatprep.subr.mxu0 0.0
    %1777 = vmatpush1.xpose.msra.mxu0 0.0
    %1778 = vmatprep.subr.mxu0 0.0
    %1779 = vmatpush1.xpose.msra.mxu0 0.0
    %1780 = vmatprep.subr.mxu0 0.0
    %1781 = vmatpush1.xpose.msra.mxu0 0.0
    %1782 = vmatprep.subr.mxu0 0.0
    %1783 = vmatpush1.xpose.msra.mxu0 0.0
    %1784 = vmatprep.subr.mxu0 0.0
    %1785 = vmatpush1.xpose.msra.mxu0 0.0
    %1786 = vmatprep.subr.mxu0 0.0
    %1787 = vmatpush1.xpose.msra.mxu0 0.0
    %1788 = vmatprep.subr.mxu0 0.0
    %1789 = vmatpush1.xpose.msra.mxu0 0.0
    %1790 = vmatprep.subr.mxu0 0.0
    %1791 = vmatpush1.xpose.msra.mxu0 0.0
    %1792 = vmatprep.subr.mxu0 0.0
    %1793 = vmatpush1.xpose.msra.mxu0 0.0
    %1794 = vmatprep.subr.mxu0 0.0
    %1795 = vmatpush1.xpose.msra.mxu0 0.0
    %1796 = vmatprep.subr.mxu0 0.0
    %1797 = vmatpush1.xpose.msra.mxu0 0.0
    %1798 = vmatprep.subr.mxu0 0.0
    %1799 = vmatpush1.xpose.msra.mxu0 0.0
    %1800 = vmatprep.subr.mxu0 0.0
    %1801 = vmatpush1.xpose.msra.mxu0 0.0
    %1802 = vmatprep.subr.mxu0 0.0
    %1803 = vmatpush1.xpose.msra.mxu0 0.0
    %1804 = vmatprep.subr.mxu0 0.0
    %1805 = vmatpush1.xpose.msra.mxu0 %v1774
    %1806 = vmatprep.subr.mxu0 0.0
    %1807 = vmatpush1.xpose.msra.mxu0 %v1771
    %1808 = vmatprep.subr.mxu0 0.0
    %1809 = vmatpush2.xpose.msra.mxu0 0.0
    %1810 = vmatprep.subr.mxu0 0.0
    %1811 = vmatpush2.xpose.msra.mxu0 0.0
    %1812 = vmatprep.subr.mxu0 0.0
    %1813 = vmatpush2.xpose.msra.mxu0 0.0
    %1814 = vmatprep.subr.mxu0 0.0
    %1815 = vmatpush2.xpose.msra.mxu0 0.0
    %1816 = vmatprep.subr.mxu0 0.0
    %1817 = vmatpush2.xpose.msra.mxu0 0.0
    %1818 = vmatprep.subr.mxu0 0.0
    %1819 = vmatpush2.xpose.msra.mxu0 0.0
    %1820 = vmatprep.subr.mxu0 0.0
    %1821 = vmatpush2.xpose.msra.mxu0 0.0
    %1822 = vmatprep.subr.mxu0 0.0
    %1823 = vmatpush2.xpose.msra.mxu0 0.0
    %1824 = vmatprep.subr.mxu0 0.0
    %1825 = vmatpush2.xpose.msra.mxu0 0.0
    %1826 = vmatprep.subr.mxu0 0.0
    %1827 = vmatpush2.xpose.msra.mxu0 0.0
    %1828 = vmatprep.subr.mxu0 0.0
    %1829 = vmatpush2.xpose.msra.mxu0 0.0
    %1830 = vmatprep.subr.mxu0 0.0
    %1831 = vmatpush2.xpose.msra.mxu0 0.0
    %1832 = vmatprep.subr.mxu0 0.0
    %1833 = vmatpush2.xpose.msra.mxu0 0.0
    %1834 = vmatprep.subr.mxu0 0.0
    %1835 = vmatpush2.xpose.msra.mxu0 0.0
    %1836 = vmatprep.subr.mxu0 0.0
    %1837 = vmatpush2.xpose.msra.mxu0 0.0
    %1838 = vmatprep.subr.mxu0 0.0
    %1839 = vmatpush2.xpose.msra.mxu0 0.0
    %1840 = vmatprep.mubr.f32.mxu0 0.0
    %1841 = vmatmul.mubr.f32.gmra.mxu0 %v200
    %v1842 = vpop.f32.mrf.mxu0
    %v1843 = vadd.f32 0.0, %v1842
    %v1844 = vpop.f32.mrf.mxu0
    %1845 = vdwg.mxu0
    %vm1846 = vcmp.gt.f32.partialorder %v1843, 16.0
    %v1847 = vsel %vm1846, 1.0, 0.0
    %v1849 = vsel %vm198, %v1768, 0
    %v1852 = vsel %vm198, %v1769, 0
    %1854 = vmatprep.subr.mxu0 0.0
    %1855 = vmatpush1.msra.mxu0 0.0
    %1856 = vmatprep.subr.mxu0 0.0
    %1857 = vmatpush1.msra.mxu0 0.0
    %1858 = vmatprep.subr.mxu0 0.0
    %1859 = vmatpush1.msra.mxu0 0.0
    %1860 = vmatprep.subr.mxu0 0.0
    %1861 = vmatpush1.msra.mxu0 0.0
    %1862 = vmatprep.subr.mxu0 0.0
    %1863 = vmatpush1.msra.mxu0 0.0
    %1864 = vmatprep.subr.mxu0 0.0
    %1865 = vmatpush1.msra.mxu0 0.0
    %1866 = vmatprep.subr.mxu0 0.0
    %1867 = vmatpush1.msra.mxu0 0.0
    %1868 = vmatprep.subr.mxu0 0.0
    %1869 = vmatpush1.msra.mxu0 0.0
    %1870 = vmatprep.subr.mxu0 0.0
    %1871 = vmatpush1.msra.mxu0 0.0
    %1872 = vmatprep.subr.mxu0 0.0
    %1873 = vmatpush1.msra.mxu0 0.0
    %1874 = vmatprep.subr.mxu0 0.0
    %1875 = vmatpush1.msra.mxu0 0.0
    %1876 = vmatprep.subr.mxu0 0.0
    %1877 = vmatpush1.msra.mxu0 0.0
    %1878 = vmatprep.subr.mxu0 0.0
    %1879 = vmatpush1.msra.mxu0 %v277
    %1880 = vmatprep.subr.mxu0 0.0
    %1881 = vmatpush1.msra.mxu0 %v276
    %1882 = vmatprep.subr.mxu0 0.0
    %1883 = vmatpush1.msra.mxu0 %v275
    %1884 = vmatprep.subr.mxu0 0.0
    %1885 = vmatpush1.msra.mxu0 %v274
    %1886 = vmatprep.subr.mxu0 0.0
    %1887 = vmatpush2.msra.mxu0 0.0
    %1888 = vmatprep.subr.mxu0 0.0
    %1889 = vmatpush2.msra.mxu0 0.0
    %1890 = vmatprep.subr.mxu0 0.0
    %1891 = vmatpush2.msra.mxu0 0.0
    %1892 = vmatprep.subr.mxu0 0.0
    %1893 = vmatpush2.msra.mxu0 0.0
    %1894 = vmatprep.subr.mxu0 0.0
    %1895 = vmatpush2.msra.mxu0 0.0
    %1896 = vmatprep.subr.mxu0 0.0
    %1897 = vmatpush2.msra.mxu0 0.0
    %1898 = vmatprep.subr.mxu0 0.0
    %1899 = vmatpush2.msra.mxu0 0.0
    %1900 = vmatprep.subr.mxu0 0.0
    %1901 = vmatpush2.msra.mxu0 0.0
    %1902 = vmatprep.subr.mxu0 0.0
    %1903 = vmatpush2.msra.mxu0 0.0
    %1904 = vmatprep.subr.mxu0 0.0
    %1905 = vmatpush2.msra.mxu0 0.0
    %1906 = vmatprep.subr.mxu0 0.0
    %1907 = vmatpush2.msra.mxu0 0.0
    %1908 = vmatprep.subr.mxu0 0.0
    %1909 = vmatpush2.msra.mxu0 0.0
    %1910 = vmatprep.subr.mxu0 0.0
    %1911 = vmatpush2.msra.mxu0 0.0
    %1912 = vmatprep.subr.mxu0 0.0
    %1913 = vmatpush2.msra.mxu0 0.0
    %1914 = vmatprep.subr.mxu0 0.0
    %1915 = vmatpush2.msra.mxu0 0.0
    %1916 = vmatprep.subr.mxu0 0.0
    %1917 = vmatpush2.msra.mxu0 0.0
    %1918 = vmatprep.mubr.f32.mxu0 0.0
    %1919 = vmatmul.mubr.f32.gmra.mxu0 %v1849
    %v1920 = vpop.f32.mrf.mxu0
    %v1921 = vadd.f32 %v302, %v1920
    %v1922 = vpop.f32.mrf.mxu0
    %1923 = vmatprep.mubr.f32.mxu0 0.0
    %1924 = vmatmul.mubr.f32.gmra.mxu0 %v1852
    %v1925 = vpop.f32.mrf.mxu0
    %v1926 = vadd.f32 %v302, %v1925
    %v1927 = vpop.f32.mrf.mxu0
    %1928 = vdwg.mxu0
    %vm1929 = vcmp.gt.f32.partialorder %v1847, 0.5
    %1932 = vrot.lane.b32.xlu0 %v1921, 96
    %v1933 = vpop.permute.xlu0 %1932
    %1934 = vrot.lane.b32.xlu0 %v1926, 96
    %v1935 = vpop.permute.xlu0 %1934
    %v1936 = vsel %vm392, %v1921, 0
    %v1938 = vsel %vm392, %v1926, 0
    %v1940 = vsel %vm392, %v1933, 0
    %v1942 = vsel %vm392, %v1935, 0
    %1944 = vmatprep.subr.mxu0 0.0
    %1945 = vmatpush1.xpose.msra.mxu0 0.0
    %1946 = vmatprep.subr.mxu0 0.0
    %1947 = vmatpush1.xpose.msra.mxu0 0.0
    %1948 = vmatprep.subr.mxu0 0.0
    %1949 = vmatpush1.xpose.msra.mxu0 0.0
    %1950 = vmatprep.subr.mxu0 0.0
    %1951 = vmatpush1.xpose.msra.mxu0 0.0
    %1952 = vmatprep.subr.mxu0 0.0
    %1953 = vmatpush1.xpose.msra.mxu0 0.0
    %1954 = vmatprep.subr.mxu0 0.0
    %1955 = vmatpush1.xpose.msra.mxu0 0.0
    %1956 = vmatprep.subr.mxu0 0.0
    %1957 = vmatpush1.xpose.msra.mxu0 0.0
    %1958 = vmatprep.subr.mxu0 0.0
    %1959 = vmatpush1.xpose.msra.mxu0 0.0
    %1960 = vmatprep.subr.mxu0 0.0
    %1961 = vmatpush1.xpose.msra.mxu0 0.0
    %1962 = vmatprep.subr.mxu0 0.0
    %1963 = vmatpush1.xpose.msra.mxu0 0.0
    %1964 = vmatprep.subr.mxu0 0.0
    %1965 = vmatpush1.xpose.msra.mxu0 0.0
    %1966 = vmatprep.subr.mxu0 0.0
    %1967 = vmatpush1.xpose.msra.mxu0 0.0
    %1968 = vmatprep.subr.mxu0 0.0
    %1969 = vmatpush1.xpose.msra.mxu0 0.0
    %1970 = vmatprep.subr.mxu0 0.0
    %1971 = vmatpush1.xpose.msra.mxu0 0.0
    %1972 = vmatprep.subr.mxu0 0.0
    %1973 = vmatpush1.xpose.msra.mxu0 %v1942
    %1974 = vmatprep.subr.mxu0 0.0
    %1975 = vmatpush1.xpose.msra.mxu0 %v1940
    %1976 = vmatprep.subr.mxu0 0.0
    %1977 = vmatpush2.xpose.msra.mxu0 0.0
    %1978 = vmatprep.subr.mxu0 0.0
    %1979 = vmatpush2.xpose.msra.mxu0 0.0
    %1980 = vmatprep.subr.mxu0 0.0
    %1981 = vmatpush2.xpose.msra.mxu0 0.0
    %1982 = vmatprep.subr.mxu0 0.0
    %1983 = vmatpush2.xpose.msra.mxu0 0.0
    %1984 = vmatprep.subr.mxu0 0.0
    %1985 = vmatpush2.xpose.msra.mxu0 0.0
    %1986 = vmatprep.subr.mxu0 0.0
    %1987 = vmatpush2.xpose.msra.mxu0 0.0
    %1988 = vmatprep.subr.mxu0 0.0
    %1989 = vmatpush2.xpose.msra.mxu0 0.0
    %1990 = vmatprep.subr.mxu0 0.0
    %1991 = vmatpush2.xpose.msra.mxu0 0.0
    %1992 = vmatprep.subr.mxu0 0.0
    %1993 = vmatpush2.xpose.msra.mxu0 0.0
    %1994 = vmatprep.subr.mxu0 0.0
    %1995 = vmatpush2.xpose.msra.mxu0 0.0
    %1996 = vmatprep.subr.mxu0 0.0
    %1997 = vmatpush2.xpose.msra.mxu0 0.0
    %1998 = vmatprep.subr.mxu0 0.0
    %1999 = vmatpush2.xpose.msra.mxu0 0.0
    %2000 = vmatprep.subr.mxu0 0.0
    %2001 = vmatpush2.xpose.msra.mxu0 0.0
    %2002 = vmatprep.subr.mxu0 0.0
    %2003 = vmatpush2.xpose.msra.mxu0 0.0
    %2004 = vmatprep.subr.mxu0 0.0
    %2005 = vmatpush2.xpose.msra.mxu0 0.0
    %2006 = vmatprep.subr.mxu0 0.0
    %2007 = vmatpush2.xpose.msra.mxu0 0.0
    %2008 = vmatprep.mubr.f32.mxu0 0.0
    %2009 = vmatmul.mubr.f32.gmra.mxu0 %v1936
    %v2010 = vpop.f32.mrf.mxu0
    %v2011 = vadd.f32 0.0, %v2010
    %v2012 = vpop.f32.mrf.mxu0
    %2013 = vmatprep.mubr.f32.mxu0 0.0
    %2014 = vmatmul.mubr.f32.gmra.mxu0 %v1938
    %v2015 = vpop.f32.mrf.mxu0
    %v2016 = vadd.f32 0.0, %v2015
    %v2017 = vpop.f32.mrf.mxu0
    %2018 = vdwg.mxu0
    %v2019 = vsel %vm1929, 1, 0
    %v2020 = vlaneseq
    %v2021 = vshrl.u32 %v2020, 7
    %v2022 = vsub.s32 0, %v2021
    %v2023 = vrot.slane %v2019, %v2022
    %vm2024 = vcmp.eq.s32.totalorder %v2023, 1
    %v2025 = vsel %vm2024, %v2011, -1e+30
    %v2026 = vsel %vm2024, %v2016, -1e+30
    %v2027 = vsel %vm392, %v2025, -inf
    %2028 = vmax.xlane.f32.xlu0 %v2027
    %v2029 = vpop.xlane.xlu0 %2028
    %v2030 = vsel %vm392, %v2026, -inf
    %2031 = vmax.xlane.f32.xlu0 %v2030
    %v2032 = vpop.xlane.xlu0 %2031
    %v2033 = vsub.f32 %v2025, %v2029
    %v2034 = vsub.f32 %v2026, %v2032
    %v2035 = vmul.f32 %v2033, 1.442695
    %v2036 = vpow.pop %v2035
    %v2037 = vmul.f32 %v2034, 1.442695
    %v2038 = vpow.pop %v2037
    %v2039 = vsel %vm392, %v2036, 0.0
    %2040 = vadd.xlane.f32.xlu0 %v2039
    %v2041 = vpop.xlane.xlu0 %2040
    %v2042 = vsel %vm392, %v2038, 0.0
    %2043 = vadd.xlane.f32.xlu0 %v2042
    %v2044 = vpop.xlane.xlu0 %2043
    %v2045 = vrcp.pop %v2041
    %v2046 = vrcp.pop %v2044
    %v2047 = vmul.f32 %v2036, %v2045
    %v2048 = vmul.f32 %v2038, %v2046
    %2049 = vrot.lane.b32.xlu0 %v1921, 64
    %v2050 = vpop.permute.xlu0 %2049
    %2051 = vrot.lane.b32.xlu0 %v1926, 64
    %v2052 = vpop.permute.xlu0 %2051
    %v2056 = vsel %vm392, %v2047, 0
    %v2059 = vsel %vm392, %v2048, 0
    %2061 = vmatprep.subr.mxu0 0.0
    %2062 = vmatpush1.msra.mxu0 0.0
    %2063 = vmatprep.subr.mxu0 0.0
    %2064 = vmatpush1.msra.mxu0 0.0
    %2065 = vmatprep.subr.mxu0 0.0
    %2066 = vmatpush1.msra.mxu0 0.0
    %2067 = vmatprep.subr.mxu0 0.0
    %2068 = vmatpush1.msra.mxu0 0.0
    %2069 = vmatprep.subr.mxu0 0.0
    %2070 = vmatpush1.msra.mxu0 0.0
    %2071 = vmatprep.subr.mxu0 0.0
    %2072 = vmatpush1.msra.mxu0 0.0
    %2073 = vmatprep.subr.mxu0 0.0
    %2074 = vmatpush1.msra.mxu0 0.0
    %2075 = vmatprep.subr.mxu0 0.0
    %2076 = vmatpush1.msra.mxu0 0.0
    %2077 = vmatprep.subr.mxu0 0.0
    %2078 = vmatpush1.msra.mxu0 0.0
    %2079 = vmatprep.subr.mxu0 0.0
    %2080 = vmatpush1.msra.mxu0 0.0
    %2081 = vmatprep.subr.mxu0 0.0
    %2082 = vmatpush1.msra.mxu0 0.0
    %2083 = vmatprep.subr.mxu0 0.0
    %2084 = vmatpush1.msra.mxu0 0.0
    %2085 = vmatprep.subr.mxu0 0.0
    %2086 = vmatpush1.msra.mxu0 0.0
    %2087 = vmatprep.subr.mxu0 0.0
    %2088 = vmatpush1.msra.mxu0 0.0
    %2089 = vmatprep.subr.mxu0 0.0
    %2090 = vmatpush1.msra.mxu0 %v2052
    %2091 = vmatprep.subr.mxu0 0.0
    %2092 = vmatpush1.msra.mxu0 %v2050
    %2093 = vmatprep.subr.mxu0 0.0
    %2094 = vmatpush2.msra.mxu0 0.0
    %2095 = vmatprep.subr.mxu0 0.0
    %2096 = vmatpush2.msra.mxu0 0.0
    %2097 = vmatprep.subr.mxu0 0.0
    %2098 = vmatpush2.msra.mxu0 0.0
    %2099 = vmatprep.subr.mxu0 0.0
    %2100 = vmatpush2.msra.mxu0 0.0
    %2101 = vmatprep.subr.mxu0 0.0
    %2102 = vmatpush2.msra.mxu0 0.0
    %2103 = vmatprep.subr.mxu0 0.0
    %2104 = vmatpush2.msra.mxu0 0.0
    %2105 = vmatprep.subr.mxu0 0.0
    %2106 = vmatpush2.msra.mxu0 0.0
    %2107 = vmatprep.subr.mxu0 0.0
    %2108 = vmatpush2.msra.mxu0 0.0
    %2109 = vmatprep.subr.mxu0 0.0
    %2110 = vmatpush2.msra.mxu0 0.0
    %2111 = vmatprep.subr.mxu0 0.0
    %2112 = vmatpush2.msra.mxu0 0.0
    %2113 = vmatprep.subr.mxu0 0.0
    %2114 = vmatpush2.msra.mxu0 0.0
    %2115 = vmatprep.subr.mxu0 0.0
    %2116 = vmatpush2.msra.mxu0 0.0
    %2117 = vmatprep.subr.mxu0 0.0
    %2118 = vmatpush2.msra.mxu0 0.0
    %2119 = vmatprep.subr.mxu0 0.0
    %2120 = vmatpush2.msra.mxu0 0.0
    %2121 = vmatprep.subr.mxu0 0.0
    %2122 = vmatpush2.msra.mxu0 0.0
    %2123 = vmatprep.subr.mxu0 0.0
    %2124 = vmatpush2.msra.mxu0 0.0
    %2125 = vmatprep.mubr.f32.mxu0 0.0
    %2126 = vmatmul.mubr.f32.gmra.mxu0 %v2056
    %v2127 = vpop.f32.mrf.mxu0
    %v2128 = vadd.f32 0.0, %v2127
    %v2129 = vpop.f32.mrf.mxu0
    %2130 = vmatprep.mubr.f32.mxu0 0.0
    %2131 = vmatmul.mubr.f32.gmra.mxu0 %v2059
    %v2132 = vpop.f32.mrf.mxu0
    %v2133 = vadd.f32 0.0, %v2132
    %v2134 = vpop.f32.mrf.mxu0
    %2135 = vdwg.mxu0
    %2136 = vrot.lane.b32.xlu0 %v1921, 112
    %v2137 = vpop.permute.xlu0 %2136
    %2138 = vrot.lane.b32.xlu0 %v1926, 112
    %v2139 = vpop.permute.xlu0 %2138
    %2140 = vrot.lane.b32.xlu0 %v1921, 80
    %v2141 = vpop.permute.xlu0 %2140
    %2142 = vrot.lane.b32.xlu0 %v1926, 80
    %v2143 = vpop.permute.xlu0 %2142
    %v2144 = vsel %vm392, %v2137, 0
    %v2146 = vsel %vm392, %v2139, 0
    %v2148 = vsel %vm392, %v2141, 0
    %v2150 = vsel %vm392, %v2143, 0
    %2152 = vmatprep.subr.mxu0 0.0
    %2153 = vmatpush1.xpose.msra.mxu0 0.0
    %2154 = vmatprep.subr.mxu0 0.0
    %2155 = vmatpush1.xpose.msra.mxu0 0.0
    %2156 = vmatprep.subr.mxu0 0.0
    %2157 = vmatpush1.xpose.msra.mxu0 0.0
    %2158 = vmatprep.subr.mxu0 0.0
    %2159 = vmatpush1.xpose.msra.mxu0 0.0
    %2160 = vmatprep.subr.mxu0 0.0
    %2161 = vmatpush1.xpose.msra.mxu0 0.0
    %2162 = vmatprep.subr.mxu0 0.0
    %2163 = vmatpush1.xpose.msra.mxu0 0.0
    %2164 = vmatprep.subr.mxu0 0.0
    %2165 = vmatpush1.xpose.msra.mxu0 0.0
    %2166 = vmatprep.subr.mxu0 0.0
    %2167 = vmatpush1.xpose.msra.mxu0 0.0
    %2168 = vmatprep.subr.mxu0 0.0
    %2169 = vmatpush1.xpose.msra.mxu0 0.0
    %2170 = vmatprep.subr.mxu0 0.0
    %2171 = vmatpush1.xpose.msra.mxu0 0.0
    %2172 = vmatprep.subr.mxu0 0.0
    %2173 = vmatpush1.xpose.msra.mxu0 0.0
    %2174 = vmatprep.subr.mxu0 0.0
    %2175 = vmatpush1.xpose.msra.mxu0 0.0
    %2176 = vmatprep.subr.mxu0 0.0
    %2177 = vmatpush1.xpose.msra.mxu0 0.0
    %2178 = vmatprep.subr.mxu0 0.0
    %2179 = vmatpush1.xpose.msra.mxu0 0.0
    %2180 = vmatprep.subr.mxu0 0.0
    %2181 = vmatpush1.xpose.msra.mxu0 %v2150
    %2182 = vmatprep.subr.mxu0 0.0
    %2183 = vmatpush1.xpose.msra.mxu0 %v2148
    %2184 = vmatprep.subr.mxu0 0.0
    %2185 = vmatpush2.xpose.msra.mxu0 0.0
    %2186 = vmatprep.subr.mxu0 0.0
    %2187 = vmatpush2.xpose.msra.mxu0 0.0
    %2188 = vmatprep.subr.mxu0 0.0
    %2189 = vmatpush2.xpose.msra.mxu0 0.0
    %2190 = vmatprep.subr.mxu0 0.0
    %2191 = vmatpush2.xpose.msra.mxu0 0.0
    %2192 = vmatprep.subr.mxu0 0.0
    %2193 = vmatpush2.xpose.msra.mxu0 0.0
    %2194 = vmatprep.subr.mxu0 0.0
    %2195 = vmatpush2.xpose.msra.mxu0 0.0
    %2196 = vmatprep.subr.mxu0 0.0
    %2197 = vmatpush2.xpose.msra.mxu0 0.0
    %2198 = vmatprep.subr.mxu0 0.0
    %2199 = vmatpush2.xpose.msra.mxu0 0.0
    %2200 = vmatprep.subr.mxu0 0.0
    %2201 = vmatpush2.xpose.msra.mxu0 0.0
    %2202 = vmatprep.subr.mxu0 0.0
    %2203 = vmatpush2.xpose.msra.mxu0 0.0
    %2204 = vmatprep.subr.mxu0 0.0
    %2205 = vmatpush2.xpose.msra.mxu0 0.0
    %2206 = vmatprep.subr.mxu0 0.0
    %2207 = vmatpush2.xpose.msra.mxu0 0.0
    %2208 = vmatprep.subr.mxu0 0.0
    %2209 = vmatpush2.xpose.msra.mxu0 0.0
    %2210 = vmatprep.subr.mxu0 0.0
    %2211 = vmatpush2.xpose.msra.mxu0 0.0
    %2212 = vmatprep.subr.mxu0 0.0
    %2213 = vmatpush2.xpose.msra.mxu0 0.0
    %2214 = vmatprep.subr.mxu0 0.0
    %2215 = vmatpush2.xpose.msra.mxu0 0.0
    %2216 = vmatprep.mubr.f32.mxu0 0.0
    %2217 = vmatmul.mubr.f32.gmra.mxu0 %v2144
    %v2218 = vpop.f32.mrf.mxu0
    %v2219 = vadd.f32 0.0, %v2218
    %v2220 = vpop.f32.mrf.mxu0
    %2221 = vmatprep.mubr.f32.mxu0 0.0
    %2222 = vmatmul.mubr.f32.gmra.mxu0 %v2146
    %v2223 = vpop.f32.mrf.mxu0
    %v2224 = vadd.f32 0.0, %v2223
    %v2225 = vpop.f32.mrf.mxu0
    %2226 = vdwg.mxu0
    %v2227 = vsel %vm2024, %v2219, -1e+30
    %v2228 = vsel %vm2024, %v2224, -1e+30
    %v2229 = vsel %vm392, %v2227, -inf
    %2230 = vmax.xlane.f32.xlu0 %v2229
    %v2231 = vpop.xlane.xlu0 %2230
    %v2232 = vsel %vm392, %v2228, -inf
    %2233 = vmax.xlane.f32.xlu0 %v2232
    %v2234 = vpop.xlane.xlu0 %2233
    %v2235 = vsub.f32 %v2227, %v2231
    %v2236 = vsub.f32 %v2228, %v2234
    %v2237 = vmul.f32 %v2235, 1.442695
    %v2238 = vpow.pop %v2237
    %v2239 = vmul.f32 %v2236, 1.442695
    %v2240 = vpow.pop %v2239
    %v2241 = vsel %vm392, %v2238, 0.0
    %2242 = vadd.xlane.f32.xlu0 %v2241
    %v2243 = vpop.xlane.xlu0 %2242
    %v2244 = vsel %vm392, %v2240, 0.0
    %2245 = vadd.xlane.f32.xlu0 %v2244
    %v2246 = vpop.xlane.xlu0 %2245
    %v2247 = vrcp.pop %v2243
    %v2248 = vrcp.pop %v2246
    %v2249 = vmul.f32 %v2238, %v2247
    %v2250 = vmul.f32 %v2240, %v2248
    %2251 = vrot.lane.b32.xlu0 %v1921, 48
    %v2252 = vpop.permute.xlu0 %2251
    %2253 = vrot.lane.b32.xlu0 %v1926, 48
    %v2254 = vpop.permute.xlu0 %2253
    %v2258 = vsel %vm392, %v2249, 0
    %v2261 = vsel %vm392, %v2250, 0
    %2263 = vmatprep.subr.mxu0 0.0
    %2264 = vmatpush1.msra.mxu0 0.0
    %2265 = vmatprep.subr.mxu0 0.0
    %2266 = vmatpush1.msra.mxu0 0.0
    %2267 = vmatprep.subr.mxu0 0.0
    %2268 = vmatpush1.msra.mxu0 0.0
    %2269 = vmatprep.subr.mxu0 0.0
    %2270 = vmatpush1.msra.mxu0 0.0
    %2271 = vmatprep.subr.mxu0 0.0
    %2272 = vmatpush1.msra.mxu0 0.0
    %2273 = vmatprep.subr.mxu0 0.0
    %2274 = vmatpush1.msra.mxu0 0.0
    %2275 = vmatprep.subr.mxu0 0.0
    %2276 = vmatpush1.msra.mxu0 0.0
    %2277 = vmatprep.subr.mxu0 0.0
    %2278 = vmatpush1.msra.mxu0 0.0
    %2279 = vmatprep.subr.mxu0 0.0
    %2280 = vmatpush1.msra.mxu0 0.0
    %2281 = vmatprep.subr.mxu0 0.0
    %2282 = vmatpush1.msra.mxu0 0.0
    %2283 = vmatprep.subr.mxu0 0.0
    %2284 = vmatpush1.msra.mxu0 0.0
    %2285 = vmatprep.subr.mxu0 0.0
    %2286 = vmatpush1.msra.mxu0 0.0
    %2287 = vmatprep.subr.mxu0 0.0
    %2288 = vmatpush1.msra.mxu0 0.0
    %2289 = vmatprep.subr.mxu0 0.0
    %2290 = vmatpush1.msra.mxu0 0.0
    %2291 = vmatprep.subr.mxu0 0.0
    %2292 = vmatpush1.msra.mxu0 %v2254
    %2293 = vmatprep.subr.mxu0 0.0
    %2294 = vmatpush1.msra.mxu0 %v2252
    %2295 = vmatprep.subr.mxu0 0.0
    %2296 = vmatpush2.msra.mxu0 0.0
    %2297 = vmatprep.subr.mxu0 0.0
    %2298 = vmatpush2.msra.mxu0 0.0
    %2299 = vmatprep.subr.mxu0 0.0
    %2300 = vmatpush2.msra.mxu0 0.0
    %2301 = vmatprep.subr.mxu0 0.0
    %2302 = vmatpush2.msra.mxu0 0.0
    %2303 = vmatprep.subr.mxu0 0.0
    %2304 = vmatpush2.msra.mxu0 0.0
    %2305 = vmatprep.subr.mxu0 0.0
    %2306 = vmatpush2.msra.mxu0 0.0
    %2307 = vmatprep.subr.mxu0 0.0
    %2308 = vmatpush2.msra.mxu0 0.0
    %2309 = vmatprep.subr.mxu0 0.0
    %2310 = vmatpush2.msra.mxu0 0.0
    %2311 = vmatprep.subr.mxu0 0.0
    %2312 = vmatpush2.msra.mxu0 0.0
    %2313 = vmatprep.subr.mxu0 0.0
    %2314 = vmatpush2.msra.mxu0 0.0
    %2315 = vmatprep.subr.mxu0 0.0
    %2316 = vmatpush2.msra.mxu0 0.0
    %2317 = vmatprep.subr.mxu0 0.0
    %2318 = vmatpush2.msra.mxu0 0.0
    %2319 = vmatprep.subr.mxu0 0.0
    %2320 = vmatpush2.msra.mxu0 0.0
    %2321 = vmatprep.subr.mxu0 0.0
    %2322 = vmatpush2.msra.mxu0 0.0
    %2323 = vmatprep.subr.mxu0 0.0
    %2324 = vmatpush2.msra.mxu0 0.0
    %2325 = vmatprep.subr.mxu0 0.0
    %2326 = vmatpush2.msra.mxu0 0.0
    %2327 = vmatprep.mubr.f32.mxu0 0.0
    %2328 = vmatmul.mubr.f32.gmra.mxu0 %v2258
    %v2329 = vpop.f32.mrf.mxu0
    %v2330 = vadd.f32 0.0, %v2329
    %v2331 = vpop.f32.mrf.mxu0
    %2332 = vmatprep.mubr.f32.mxu0 0.0
    %2333 = vmatmul.mubr.f32.gmra.mxu0 %v2261
    %v2334 = vpop.f32.mrf.mxu0
    %v2335 = vadd.f32 0.0, %v2334
    %v2336 = vpop.f32.mrf.mxu0
    %2337 = vdwg.mxu0
    %v2339 = vsel %vm392, %v2330, 0
    %v2342 = vsel %vm392, %v2335, 0
    %2344 = vmatprep.subr.mxu0 0.0
    %2345 = vmatpush1.msra.mxu0 0.0
    %2346 = vmatprep.subr.mxu0 0.0
    %2347 = vmatpush1.msra.mxu0 0.0
    %2348 = vmatprep.subr.mxu0 0.0
    %2349 = vmatpush1.msra.mxu0 0.0
    %2350 = vmatprep.subr.mxu0 0.0
    %2351 = vmatpush1.msra.mxu0 0.0
    %2352 = vmatprep.subr.mxu0 0.0
    %2353 = vmatpush1.msra.mxu0 0.0
    %2354 = vmatprep.subr.mxu0 0.0
    %2355 = vmatpush1.msra.mxu0 0.0
    %2356 = vmatprep.subr.mxu0 0.0
    %2357 = vmatpush1.msra.mxu0 0.0
    %2358 = vmatprep.subr.mxu0 0.0
    %2359 = vmatpush1.msra.mxu0 0.0
    %2360 = vmatprep.subr.mxu0 0.0
    %2361 = vmatpush1.msra.mxu0 0.0
    %2362 = vmatprep.subr.mxu0 0.0
    %2363 = vmatpush1.msra.mxu0 0.0
    %2364 = vmatprep.subr.mxu0 0.0
    %2365 = vmatpush1.msra.mxu0 0.0
    %2366 = vmatprep.subr.mxu0 0.0
    %2367 = vmatpush1.msra.mxu0 0.0
    %2368 = vmatprep.subr.mxu0 0.0
    %2369 = vmatpush1.msra.mxu0 0.0
    %2370 = vmatprep.subr.mxu0 0.0
    %2371 = vmatpush1.msra.mxu0 0.0
    %2372 = vmatprep.subr.mxu0 0.0
    %2373 = vmatpush1.msra.mxu0 %v282
    %2374 = vmatprep.subr.mxu0 0.0
    %2375 = vmatpush1.msra.mxu0 %v281
    %2376 = vmatprep.subr.mxu0 0.0
    %2377 = vmatpush2.msra.mxu0 0.0
    %2378 = vmatprep.subr.mxu0 0.0
    %2379 = vmatpush2.msra.mxu0 0.0
    %2380 = vmatprep.subr.mxu0 0.0
    %2381 = vmatpush2.msra.mxu0 0.0
    %2382 = vmatprep.subr.mxu0 0.0
    %2383 = vmatpush2.msra.mxu0 0.0
    %2384 = vmatprep.subr.mxu0 0.0
    %2385 = vmatpush2.msra.mxu0 0.0
    %2386 = vmatprep.subr.mxu0 0.0
    %2387 = vmatpush2.msra.mxu0 0.0
    %2388 = vmatprep.subr.mxu0 0.0
    %2389 = vmatpush2.msra.mxu0 0.0
    %2390 = vmatprep.subr.mxu0 0.0
    %2391 = vmatpush2.msra.mxu0 0.0
    %2392 = vmatprep.subr.mxu0 0.0
    %2393 = vmatpush2.msra.mxu0 0.0
    %2394 = vmatprep.subr.mxu0 0.0
    %2395 = vmatpush2.msra.mxu0 0.0
    %2396 = vmatprep.subr.mxu0 0.0
    %2397 = vmatpush2.msra.mxu0 0.0
    %2398 = vmatprep.subr.mxu0 0.0
    %2399 = vmatpush2.msra.mxu0 0.0
    %2400 = vmatprep.subr.mxu0 0.0
    %2401 = vmatpush2.msra.mxu0 0.0
    %2402 = vmatprep.subr.mxu0 0.0
    %2403 = vmatpush2.msra.mxu0 0.0
    %2404 = vmatprep.subr.mxu0 0.0
    %2405 = vmatpush2.msra.mxu0 0.0
    %2406 = vmatprep.subr.mxu0 0.0
    %2407 = vmatpush2.msra.mxu0 0.0
    %2408 = vmatprep.mubr.f32.mxu0 0.0
    %2409 = vmatmul.mubr.f32.gmra.mxu0 %v2339
    %v2410 = vpop.f32.mrf.mxu0
    %v2411 = vadd.f32 0.0, %v2410
    %v2412 = vpop.f32.mrf.mxu0
    %2413 = vmatprep.mubr.f32.mxu0 0.0
    %2414 = vmatmul.mubr.f32.gmra.mxu0 %v2342
    %v2415 = vpop.f32.mrf.mxu0
    %v2416 = vadd.f32 0.0, %v2415
    %v2417 = vpop.f32.mrf.mxu0
    %2418 = vdwg.mxu0
    %v2420 = vsel %vm392, %v2128, 0
    %v2423 = vsel %vm392, %v2133, 0
    %2425 = vmatprep.subr.mxu0 0.0
    %2426 = vmatpush1.msra.mxu0 0.0
    %2427 = vmatprep.subr.mxu0 0.0
    %2428 = vmatpush1.msra.mxu0 0.0
    %2429 = vmatprep.subr.mxu0 0.0
    %2430 = vmatpush1.msra.mxu0 0.0
    %2431 = vmatprep.subr.mxu0 0.0
    %2432 = vmatpush1.msra.mxu0 0.0
    %2433 = vmatprep.subr.mxu0 0.0
    %2434 = vmatpush1.msra.mxu0 0.0
    %2435 = vmatprep.subr.mxu0 0.0
    %2436 = vmatpush1.msra.mxu0 0.0
    %2437 = vmatprep.subr.mxu0 0.0
    %2438 = vmatpush1.msra.mxu0 0.0
    %2439 = vmatprep.subr.mxu0 0.0
    %2440 = vmatpush1.msra.mxu0 0.0
    %2441 = vmatprep.subr.mxu0 0.0
    %2442 = vmatpush1.msra.mxu0 0.0
    %2443 = vmatprep.subr.mxu0 0.0
    %2444 = vmatpush1.msra.mxu0 0.0
    %2445 = vmatprep.subr.mxu0 0.0
    %2446 = vmatpush1.msra.mxu0 0.0
    %2447 = vmatprep.subr.mxu0 0.0
    %2448 = vmatpush1.msra.mxu0 0.0
    %2449 = vmatprep.subr.mxu0 0.0
    %2450 = vmatpush1.msra.mxu0 0.0
    %2451 = vmatprep.subr.mxu0 0.0
    %2452 = vmatpush1.msra.mxu0 0.0
    %2453 = vmatprep.subr.mxu0 0.0
    %2454 = vmatpush1.msra.mxu0 %v280
    %2455 = vmatprep.subr.mxu0 0.0
    %2456 = vmatpush1.msra.mxu0 %v279
    %2457 = vmatprep.subr.mxu0 0.0
    %2458 = vmatpush2.msra.mxu0 0.0
    %2459 = vmatprep.subr.mxu0 0.0
    %2460 = vmatpush2.msra.mxu0 0.0
    %2461 = vmatprep.subr.mxu0 0.0
    %2462 = vmatpush2.msra.mxu0 0.0
    %2463 = vmatprep.subr.mxu0 0.0
    %2464 = vmatpush2.msra.mxu0 0.0
    %2465 = vmatprep.subr.mxu0 0.0
    %2466 = vmatpush2.msra.mxu0 0.0
    %2467 = vmatprep.subr.mxu0 0.0
    %2468 = vmatpush2.msra.mxu0 0.0
    %2469 = vmatprep.subr.mxu0 0.0
    %2470 = vmatpush2.msra.mxu0 0.0
    %2471 = vmatprep.subr.mxu0 0.0
    %2472 = vmatpush2.msra.mxu0 0.0
    %2473 = vmatprep.subr.mxu0 0.0
    %2474 = vmatpush2.msra.mxu0 0.0
    %2475 = vmatprep.subr.mxu0 0.0
    %2476 = vmatpush2.msra.mxu0 0.0
    %2477 = vmatprep.subr.mxu0 0.0
    %2478 = vmatpush2.msra.mxu0 0.0
    %2479 = vmatprep.subr.mxu0 0.0
    %2480 = vmatpush2.msra.mxu0 0.0
    %2481 = vmatprep.subr.mxu0 0.0
    %2482 = vmatpush2.msra.mxu0 0.0
    %2483 = vmatprep.subr.mxu0 0.0
    %2484 = vmatpush2.msra.mxu0 0.0
    %2485 = vmatprep.subr.mxu0 0.0
    %2486 = vmatpush2.msra.mxu0 0.0
    %2487 = vmatprep.subr.mxu0 0.0
    %2488 = vmatpush2.msra.mxu0 0.0
    %2489 = vmatprep.mubr.f32.mxu0 0.0
    %2490 = vmatmul.mubr.f32.gmra.mxu0 %v2420
    %v2491 = vpop.f32.mrf.mxu0
    %v2492 = vadd.f32 %v2411, %v2491
    %v2493 = vpop.f32.mrf.mxu0
    %2494 = vmatprep.mubr.f32.mxu0 0.0
    %2495 = vmatmul.mubr.f32.gmra.mxu0 %v2423
    %v2496 = vpop.f32.mrf.mxu0
    %v2497 = vadd.f32 %v2416, %v2496
    %v2498 = vpop.f32.mrf.mxu0
    %2499 = vdwg.mxu0
    %v2500 = vadd.f32 %v2492, %v961
    %v2501 = vadd.f32 %v2497, %v961
    %v2502 = vadd.f32 %v1768, %v2500
    %v2503 = vadd.f32 %v1769, %v2501
    %v2504 = vsel %vm198, %v2502, 0.0
    %2505 = vadd.xlane.f32.xlu0 %v2504
    %v2506 = vpop.xlane.xlu0 %2505
    %v2507 = vsel %vm198, %v2503, 0.0
    %2508 = vadd.xlane.f32.xlu0 %v2507
    %v2509 = vpop.xlane.xlu0 %2508
    %v2510 = vmul.f32 %v2506, %v973
    %v2511 = vmul.f32 %v2509, %v973
    %v2512 = vsub.f32 %v2502, %v2510
    %v2513 = vsub.f32 %v2503, %v2511
    %v2514 = vmul.f32 %v2512, %v2512
    %v2515 = vmul.f32 %v2513, %v2513
    %v2516 = vsel %vm198, %v2514, 0.0
    %2517 = vadd.xlane.f32.xlu0 %v2516
    %v2518 = vpop.xlane.xlu0 %2517
    %v2519 = vsel %vm198, %v2515, 0.0
    %2520 = vadd.xlane.f32.xlu0 %v2519
    %v2521 = vpop.xlane.xlu0 %2520
    %v2522 = vmul.f32 %v2518, %v973
    %v2523 = vmul.f32 %v2521, %v973
    %v2524 = vadd.f32 %v2522, 1e-05
    %v2525 = vadd.f32 %v2523, 1e-05
    %v2526 = vrsqrt.pop %v2524
    %v2527 = vrsqrt.pop %v2525
    %v2528 = vmul.f32 %v2512, %v2526
    %v2529 = vmul.f32 %v2513, %v2527
    %v2530 = vmul.f32 %v2528, %v998
    %v2531 = vmul.f32 %v2529, %v998
    %v2532 = vadd.f32 %v2530, %v1006
    %v2533 = vadd.f32 %v2531, %v1006
    %v2535 = vsel %vm198, %v2532, 0
    %v2538 = vsel %vm198, %v2533, 0
    %2540 = vmatprep.subr.mxu0 0.0
    %2541 = vmatpush1.msra.mxu0 0.0
    %2542 = vmatprep.subr.mxu0 0.0
    %2543 = vmatpush1.msra.mxu0 0.0
    %2544 = vmatprep.subr.mxu0 0.0
    %2545 = vmatpush1.msra.mxu0 0.0
    %2546 = vmatprep.subr.mxu0 0.0
    %2547 = vmatpush1.msra.mxu0 0.0
    %2548 = vmatprep.subr.mxu0 0.0
    %2549 = vmatpush1.msra.mxu0 0.0
    %2550 = vmatprep.subr.mxu0 0.0
    %2551 = vmatpush1.msra.mxu0 0.0
    %2552 = vmatprep.subr.mxu0 0.0
    %2553 = vmatpush1.msra.mxu0 0.0
    %2554 = vmatprep.subr.mxu0 0.0
    %2555 = vmatpush1.msra.mxu0 0.0
    %2556 = vmatprep.subr.mxu0 0.0
    %2557 = vmatpush1.msra.mxu0 0.0
    %2558 = vmatprep.subr.mxu0 0.0
    %2559 = vmatpush1.msra.mxu0 0.0
    %2560 = vmatprep.subr.mxu0 0.0
    %2561 = vmatpush1.msra.mxu0 0.0
    %2562 = vmatprep.subr.mxu0 0.0
    %2563 = vmatpush1.msra.mxu0 0.0
    %2564 = vmatprep.subr.mxu0 0.0
    %2565 = vmatpush1.msra.mxu0 %v287
    %2566 = vmatprep.subr.mxu0 0.0
    %2567 = vmatpush1.msra.mxu0 %v286
    %2568 = vmatprep.subr.mxu0 0.0
    %2569 = vmatpush1.msra.mxu0 %v285
    %2570 = vmatprep.subr.mxu0 0.0
    %2571 = vmatpush1.msra.mxu0 %v284
    %2572 = vmatprep.subr.mxu0 0.0
    %2573 = vmatpush2.msra.mxu0 0.0
    %2574 = vmatprep.subr.mxu0 0.0
    %2575 = vmatpush2.msra.mxu0 0.0
    %2576 = vmatprep.subr.mxu0 0.0
    %2577 = vmatpush2.msra.mxu0 0.0
    %2578 = vmatprep.subr.mxu0 0.0
    %2579 = vmatpush2.msra.mxu0 0.0
    %2580 = vmatprep.subr.mxu0 0.0
    %2581 = vmatpush2.msra.mxu0 0.0
    %2582 = vmatprep.subr.mxu0 0.0
    %2583 = vmatpush2.msra.mxu0 0.0
    %2584 = vmatprep.subr.mxu0 0.0
    %2585 = vmatpush2.msra.mxu0 0.0
    %2586 = vmatprep.subr.mxu0 0.0
    %2587 = vmatpush2.msra.mxu0 0.0
    %2588 = vmatprep.subr.mxu0 0.0
    %2589 = vmatpush2.msra.mxu0 0.0
    %2590 = vmatprep.subr.mxu0 0.0
    %2591 = vmatpush2.msra.mxu0 0.0
    %2592 = vmatprep.subr.mxu0 0.0
    %2593 = vmatpush2.msra.mxu0 0.0
    %2594 = vmatprep.subr.mxu0 0.0
    %2595 = vmatpush2.msra.mxu0 0.0
    %2596 = vmatprep.subr.mxu0 0.0
    %2597 = vmatpush2.msra.mxu0 0.0
    %2598 = vmatprep.subr.mxu0 0.0
    %2599 = vmatpush2.msra.mxu0 0.0
    %2600 = vmatprep.subr.mxu0 0.0
    %2601 = vmatpush2.msra.mxu0 0.0
    %2602 = vmatprep.subr.mxu0 0.0
    %2603 = vmatpush2.msra.mxu0 0.0
    %2604 = vmatprep.mubr.f32.mxu0 0.0
    %2605 = vmatmul.mubr.f32.gmra.mxu0 %v2535
    %v2606 = vpop.f32.mrf.mxu0
    %v2607 = vadd.f32 %v1014, %v2606
    %v2608 = vpop.f32.mrf.mxu0
    %2609 = vmatprep.mubr.f32.mxu0 0.0
    %2610 = vmatmul.mubr.f32.gmra.mxu0 %v2538
    %v2611 = vpop.f32.mrf.mxu0
    %v2612 = vadd.f32 %v1014, %v2611
    %v2613 = vpop.f32.mrf.mxu0
    %2614 = vdwg.mxu0
    %v2615 = vmax.f32 %v2607, 0.0
    %v2616 = vmax.f32 %v2612, 0.0
    %v2618 = vsel %vm198, %v2615, 0
    %v2621 = vsel %vm198, %v2616, 0
    %2623 = vmatprep.subr.mxu0 0.0
    %2624 = vmatpush1.msra.mxu0 0.0
    %2625 = vmatprep.subr.mxu0 0.0
    %2626 = vmatpush1.msra.mxu0 0.0
    %2627 = vmatprep.subr.mxu0 0.0
    %2628 = vmatpush1.msra.mxu0 0.0
    %2629 = vmatprep.subr.mxu0 0.0
    %2630 = vmatpush1.msra.mxu0 0.0
    %2631 = vmatprep.subr.mxu0 0.0
    %2632 = vmatpush1.msra.mxu0 0.0
    %2633 = vmatprep.subr.mxu0 0.0
    %2634 = vmatpush1.msra.mxu0 0.0
    %2635 = vmatprep.subr.mxu0 0.0
    %2636 = vmatpush1.msra.mxu0 0.0
    %2637 = vmatprep.subr.mxu0 0.0
    %2638 = vmatpush1.msra.mxu0 0.0
    %2639 = vmatprep.subr.mxu0 0.0
    %2640 = vmatpush1.msra.mxu0 0.0
    %2641 = vmatprep.subr.mxu0 0.0
    %2642 = vmatpush1.msra.mxu0 0.0
    %2643 = vmatprep.subr.mxu0 0.0
    %2644 = vmatpush1.msra.mxu0 0.0
    %2645 = vmatprep.subr.mxu0 0.0
    %2646 = vmatpush1.msra.mxu0 0.0
    %2647 = vmatprep.subr.mxu0 0.0
    %2648 = vmatpush1.msra.mxu0 %v292
    %2649 = vmatprep.subr.mxu0 0.0
    %2650 = vmatpush1.msra.mxu0 %v291
    %2651 = vmatprep.subr.mxu0 0.0
    %2652 = vmatpush1.msra.mxu0 %v290
    %2653 = vmatprep.subr.mxu0 0.0
    %2654 = vmatpush1.msra.mxu0 %v289
    %2655 = vmatprep.subr.mxu0 0.0
    %2656 = vmatpush2.msra.mxu0 0.0
    %2657 = vmatprep.subr.mxu0 0.0
    %2658 = vmatpush2.msra.mxu0 0.0
    %2659 = vmatprep.subr.mxu0 0.0
    %2660 = vmatpush2.msra.mxu0 0.0
    %2661 = vmatprep.subr.mxu0 0.0
    %2662 = vmatpush2.msra.mxu0 0.0
    %2663 = vmatprep.subr.mxu0 0.0
    %2664 = vmatpush2.msra.mxu0 0.0
    %2665 = vmatprep.subr.mxu0 0.0
    %2666 = vmatpush2.msra.mxu0 0.0
    %2667 = vmatprep.subr.mxu0 0.0
    %2668 = vmatpush2.msra.mxu0 0.0
    %2669 = vmatprep.subr.mxu0 0.0
    %2670 = vmatpush2.msra.mxu0 0.0
    %2671 = vmatprep.subr.mxu0 0.0
    %2672 = vmatpush2.msra.mxu0 0.0
    %2673 = vmatprep.subr.mxu0 0.0
    %2674 = vmatpush2.msra.mxu0 0.0
    %2675 = vmatprep.subr.mxu0 0.0
    %2676 = vmatpush2.msra.mxu0 0.0
    %2677 = vmatprep.subr.mxu0 0.0
    %2678 = vmatpush2.msra.mxu0 0.0
    %2679 = vmatprep.subr.mxu0 0.0
    %2680 = vmatpush2.msra.mxu0 0.0
    %2681 = vmatprep.subr.mxu0 0.0
    %2682 = vmatpush2.msra.mxu0 0.0
    %2683 = vmatprep.subr.mxu0 0.0
    %2684 = vmatpush2.msra.mxu0 0.0
    %2685 = vmatprep.subr.mxu0 0.0
    %2686 = vmatpush2.msra.mxu0 0.0
    %2687 = vmatprep.mubr.f32.mxu0 0.0
    %2688 = vmatmul.mubr.f32.gmra.mxu0 %v2618
    %v2689 = vpop.f32.mrf.mxu0
    %v2690 = vadd.f32 %v1103, %v2689
    %v2691 = vpop.f32.mrf.mxu0
    %2692 = vmatprep.mubr.f32.mxu0 0.0
    %2693 = vmatmul.mubr.f32.gmra.mxu0 %v2621
    %v2694 = vpop.f32.mrf.mxu0
    %v2695 = vadd.f32 %v1103, %v2694
    %v2696 = vpop.f32.mrf.mxu0
    %2697 = vdwg.mxu0
    %v2698 = vadd.f32 %v2532, %v2690
    %v2699 = vadd.f32 %v2533, %v2695
    %v2700 = vsel %vm198, %v2698, 0.0
    %2701 = vadd.xlane.f32.xlu0 %v2700
    %v2702 = vpop.xlane.xlu0 %2701
    %v2703 = vsel %vm198, %v2699, 0.0
    %2704 = vadd.xlane.f32.xlu0 %v2703
    %v2705 = vpop.xlane.xlu0 %2704
    %v2706 = vmul.f32 %v2702, %v973
    %v2707 = vmul.f32 %v2705, %v973
    %v2708 = vsub.f32 %v2698, %v2706
    %v2709 = vsub.f32 %v2699, %v2707
    %v2710 = vmul.f32 %v2708, %v2708
    %v2711 = vmul.f32 %v2709, %v2709
    %v2712 = vsel %vm198, %v2710, 0.0
    %2713 = vadd.xlane.f32.xlu0 %v2712
    %v2714 = vpop.xlane.xlu0 %2713
    %v2715 = vsel %vm198, %v2711, 0.0
    %2716 = vadd.xlane.f32.xlu0 %v2715
    %v2717 = vpop.xlane.xlu0 %2716
    %v2718 = vmul.f32 %v2714, %v973
    %v2719 = vmul.f32 %v2717, %v973
    %v2720 = vadd.f32 %v2718, 1e-05
    %v2721 = vadd.f32 %v2719, 1e-05
    %v2722 = vrsqrt.pop %v2720
    %v2723 = vrsqrt.pop %v2721
    %v2724 = vmul.f32 %v2708, %v2722
    %v2725 = vmul.f32 %v2709, %v2723
    %v2726 = vmul.f32 %v2724, %v1218
    %v2727 = vmul.f32 %v2725, %v1218
    %v2728 = vadd.f32 %v2726, %v1226
    %v2729 = vadd.f32 %v2727, %v1226
    %v2730 = vmul.f32 %v1230, %v2728
    %v2731 = vmul.f32 %v1230, %v2729
    %v2732 = vmul.f32 %v1234, %v1768
    %v2733 = vmul.f32 %v1234, %v1769
    %v2734 = vadd.f32 %v2730, %v2732
    %v2735 = vadd.f32 %v2731, %v2733
    %v2736 = vmul.f32 %v190, %v1762
    %v2737 = vmul.f32 %v191, %v1763
    %v2738 = vlaneseq
    %v2739 = vshrl.u32 %v2738, 7
    %v2740 = vsub.s32 0, %v2739
    %v2741 = vrot.slane %v1847, %v2740
    %v2742 = vmul.f32 %v2736, %v2741
    %v2743 = vmul.f32 %v2737, %v2741
    %v2744 = vsel %vm392, %v2742, 0.0
    %2745 = vadd.xlane.f32.xlu0 %v2744
    %v2746 = vpop.xlane.xlu0 %2745
    %v2747 = vsel %vm392, %v2743, 0.0
    %2748 = vadd.xlane.f32.xlu0 %v2747
    %v2749 = vpop.xlane.xlu0 %2748
    %v2750 = vadd.f32 %v2746, 1.0
    %v2751 = vadd.f32 %v2749, 1.0
    %v2752 = vrsqrt.pop %v2750
    %v2753 = vrsqrt.pop %v2751
    %s2754 = scalar_lea.vmem %s17, 32
    %v2755 = vld [vmem:[%s2754] sm:$0xff]
    %v2756 = vld [vmem:[%s2754 + $0x8] sm:$0xff]
    %v2757 = vld [vmem:[%s2754 + $0x10] sm:$0xff]
    %v2758 = vld [vmem:[%s2754 + $0x18] sm:$0xff]
    %v2760 = vsel %vm198, %v2734, 0
    %v2763 = vsel %vm198, %v2735, 0
    %2765 = vmatprep.subr.mxu0 0.0
    %2766 = vmatpush1.msra.mxu0 0.0
    %2767 = vmatprep.subr.mxu0 0.0
    %2768 = vmatpush1.msra.mxu0 0.0
    %2769 = vmatprep.subr.mxu0 0.0
    %2770 = vmatpush1.msra.mxu0 0.0
    %2771 = vmatprep.subr.mxu0 0.0
    %2772 = vmatpush1.msra.mxu0 0.0
    %2773 = vmatprep.subr.mxu0 0.0
    %2774 = vmatpush1.msra.mxu0 0.0
    %2775 = vmatprep.subr.mxu0 0.0
    %2776 = vmatpush1.msra.mxu0 0.0
    %2777 = vmatprep.subr.mxu0 0.0
    %2778 = vmatpush1.msra.mxu0 0.0
    %2779 = vmatprep.subr.mxu0 0.0
    %2780 = vmatpush1.msra.mxu0 0.0
    %2781 = vmatprep.subr.mxu0 0.0
    %2782 = vmatpush1.msra.mxu0 0.0
    %2783 = vmatprep.subr.mxu0 0.0
    %2784 = vmatpush1.msra.mxu0 0.0
    %2785 = vmatprep.subr.mxu0 0.0
    %2786 = vmatpush1.msra.mxu0 0.0
    %2787 = vmatprep.subr.mxu0 0.0
    %2788 = vmatpush1.msra.mxu0 0.0
    %2789 = vmatprep.subr.mxu0 0.0
    %2790 = vmatpush1.msra.mxu0 %v2758
    %2791 = vmatprep.subr.mxu0 0.0
    %2792 = vmatpush1.msra.mxu0 %v2757
    %2793 = vmatprep.subr.mxu0 0.0
    %2794 = vmatpush1.msra.mxu0 %v2756
    %2795 = vmatprep.subr.mxu0 0.0
    %2796 = vmatpush1.msra.mxu0 %v2755
    %2797 = vmatprep.subr.mxu0 0.0
    %2798 = vmatpush2.msra.mxu0 0.0
    %2799 = vmatprep.subr.mxu0 0.0
    %2800 = vmatpush2.msra.mxu0 0.0
    %2801 = vmatprep.subr.mxu0 0.0
    %2802 = vmatpush2.msra.mxu0 0.0
    %2803 = vmatprep.subr.mxu0 0.0
    %2804 = vmatpush2.msra.mxu0 0.0
    %2805 = vmatprep.subr.mxu0 0.0
    %2806 = vmatpush2.msra.mxu0 0.0
    %2807 = vmatprep.subr.mxu0 0.0
    %2808 = vmatpush2.msra.mxu0 0.0
    %2809 = vmatprep.subr.mxu0 0.0
    %2810 = vmatpush2.msra.mxu0 0.0
    %2811 = vmatprep.subr.mxu0 0.0
    %2812 = vmatpush2.msra.mxu0 0.0
    %2813 = vmatprep.subr.mxu0 0.0
    %2814 = vmatpush2.msra.mxu0 0.0
    %2815 = vmatprep.subr.mxu0 0.0
    %2816 = vmatpush2.msra.mxu0 0.0
    %2817 = vmatprep.subr.mxu0 0.0
    %2818 = vmatpush2.msra.mxu0 0.0
    %2819 = vmatprep.subr.mxu0 0.0
    %2820 = vmatpush2.msra.mxu0 0.0
    %2821 = vmatprep.subr.mxu0 0.0
    %2822 = vmatpush2.msra.mxu0 0.0
    %2823 = vmatprep.subr.mxu0 0.0
    %2824 = vmatpush2.msra.mxu0 0.0
    %2825 = vmatprep.subr.mxu0 0.0
    %2826 = vmatpush2.msra.mxu0 0.0
    %2827 = vmatprep.subr.mxu0 0.0
    %2828 = vmatpush2.msra.mxu0 0.0
    %2829 = vmatprep.mubr.f32.mxu0 0.0
    %2830 = vmatmul.mubr.f32.gmra.mxu0 %v2760
    %v2831 = vpop.f32.mrf.mxu0
    %v2832 = vadd.f32 0.0, %v2831
    %v2833 = vpop.f32.mrf.mxu0
    %2834 = vmatprep.mubr.f32.mxu0 0.0
    %2835 = vmatmul.mubr.f32.gmra.mxu0 %v2763
    %v2836 = vpop.f32.mrf.mxu0
    %v2837 = vadd.f32 0.0, %v2836
    %v2838 = vpop.f32.mrf.mxu0
    %2839 = vdwg.mxu0
    %v2840 = vmul.f32 %v2752, %v2832
    %v2841 = vmul.f32 %v2753, %v2837
    %v2843 = vsel %vm392, %v2742, 0
    %v2846 = vsel %vm392, %v2743, 0
    %2848 = vmatprep.subr.mxu0 0.0
    %2849 = vmatpush1.msra.mxu0 0.0
    %2850 = vmatprep.subr.mxu0 0.0
    %2851 = vmatpush1.msra.mxu0 0.0
    %2852 = vmatprep.subr.mxu0 0.0
    %2853 = vmatpush1.msra.mxu0 0.0
    %2854 = vmatprep.subr.mxu0 0.0
    %2855 = vmatpush1.msra.mxu0 0.0
    %2856 = vmatprep.subr.mxu0 0.0
    %2857 = vmatpush1.msra.mxu0 0.0
    %2858 = vmatprep.subr.mxu0 0.0
    %2859 = vmatpush1.msra.mxu0 0.0
    %2860 = vmatprep.subr.mxu0 0.0
    %2861 = vmatpush1.msra.mxu0 0.0
    %2862 = vmatprep.subr.mxu0 0.0
    %2863 = vmatpush1.msra.mxu0 0.0
    %2864 = vmatprep.subr.mxu0 0.0
    %2865 = vmatpush1.msra.mxu0 0.0
    %2866 = vmatprep.subr.mxu0 0.0
    %2867 = vmatpush1.msra.mxu0 0.0
    %2868 = vmatprep.subr.mxu0 0.0
    %2869 = vmatpush1.msra.mxu0 0.0
    %2870 = vmatprep.subr.mxu0 0.0
    %2871 = vmatpush1.msra.mxu0 0.0
    %2872 = vmatprep.subr.mxu0 0.0
    %2873 = vmatpush1.msra.mxu0 0.0
    %2874 = vmatprep.subr.mxu0 0.0
    %2875 = vmatpush1.msra.mxu0 0.0
    %2876 = vmatprep.subr.mxu0 0.0
    %2877 = vmatpush1.msra.mxu0 %v2841
    %2878 = vmatprep.subr.mxu0 0.0
    %2879 = vmatpush1.msra.mxu0 %v2840
    %2880 = vmatprep.subr.mxu0 0.0
    %2881 = vmatpush2.msra.mxu0 0.0
    %2882 = vmatprep.subr.mxu0 0.0
    %2883 = vmatpush2.msra.mxu0 0.0
    %2884 = vmatprep.subr.mxu0 0.0
    %2885 = vmatpush2.msra.mxu0 0.0
    %2886 = vmatprep.subr.mxu0 0.0
    %2887 = vmatpush2.msra.mxu0 0.0
    %2888 = vmatprep.subr.mxu0 0.0
    %2889 = vmatpush2.msra.mxu0 0.0
    %2890 = vmatprep.subr.mxu0 0.0
    %2891 = vmatpush2.msra.mxu0 0.0
    %2892 = vmatprep.subr.mxu0 0.0
    %2893 = vmatpush2.msra.mxu0 0.0
    %2894 = vmatprep.subr.mxu0 0.0
    %2895 = vmatpush2.msra.mxu0 0.0
    %2896 = vmatprep.subr.mxu0 0.0
    %2897 = vmatpush2.msra.mxu0 0.0
    %2898 = vmatprep.subr.mxu0 0.0
    %2899 = vmatpush2.msra.mxu0 0.0
    %2900 = vmatprep.subr.mxu0 0.0
    %2901 = vmatpush2.msra.mxu0 0.0
    %2902 = vmatprep.subr.mxu0 0.0
    %2903 = vmatpush2.msra.mxu0 0.0
    %2904 = vmatprep.subr.mxu0 0.0
    %2905 = vmatpush2.msra.mxu0 0.0
    %2906 = vmatprep.subr.mxu0 0.0
    %2907 = vmatpush2.msra.mxu0 0.0
    %2908 = vmatprep.subr.mxu0 0.0
    %2909 = vmatpush2.msra.mxu0 0.0
    %2910 = vmatprep.subr.mxu0 0.0
    %2911 = vmatpush2.msra.mxu0 0.0
    %2912 = vmatprep.mubr.f32.mxu0 0.0
    %2913 = vmatmul.mubr.f32.gmra.mxu0 %v2843
    %v2914 = vpop.f32.mrf.mxu0
    %v2915 = vadd.f32 0.0, %v2914
    %v2916 = vpop.f32.mrf.mxu0
    %2917 = vmatprep.mubr.f32.mxu0 0.0
    %2918 = vmatmul.mubr.f32.gmra.mxu0 %v2846
    %v2919 = vpop.f32.mrf.mxu0
    %v2920 = vadd.f32 0.0, %v2919
    %v2921 = vpop.f32.mrf.mxu0
    %2922 = vdwg.mxu0
    %v2923 = vmul.f32 %v2752, %v2915
    %v2924 = vmul.f32 %v2753, %v2920
    %v2925 = vmul.f32 %v2752, %v2752
    %v2926 = vmul.f32 %v2753, %v2753
    %v2927 = vmul.f32 %v2925, %v2832
    %v2928 = vmul.f32 %v2926, %v2837
    %v2929 = vadd.f32 %v2923, %v2927
    %v2930 = vadd.f32 %v2924, %v2928
    %s2931 = scalar_lea.vmem %s18, 1
    %v2932 = vld [vmem:[%s2931] sm:$0x1]
    %v2934 = vlaneseq
    %v2935 = vshrl.u32 %v2934, 7
    %v2936 = vsub.s32 0, %v2935
    %v2937 = vrot.slane %v2932, %v2936
    %v2939 = vadd.f32 %v2929, %v2937
    %v2940 = vadd.f32 %v2930, %v2937
    %s2941 = scalar_lea.vmem %s19, 32
    %v2942 = vld [vmem:[%s2941] sm:$0xff]
    %v2943 = vld [vmem:[%s2941 + $0x8] sm:$0xff]
    %v2944 = vld [vmem:[%s2941 + $0x10] sm:$0xff]
    %v2945 = vld [vmem:[%s2941 + $0x18] sm:$0xff]
    %s2946 = scalar_lea.vmem %s20, 1
    %v2947 = vld [vmem:[%s2946] sm:$0x1]
    %v2949 = vlaneseq
    %v2950 = vshrl.u32 %v2949, 7
    %v2951 = vsub.s32 0, %v2950
    %v2952 = vrot.slane %v2947, %v2951
    %v2955 = vsel %vm198, %v2939, 0
    %v2958 = vsel %vm198, %v2940, 0
    %2960 = vmatprep.subr.mxu0 0.0
    %2961 = vmatpush1.msra.mxu0 0.0
    %2962 = vmatprep.subr.mxu0 0.0
    %2963 = vmatpush1.msra.mxu0 0.0
    %2964 = vmatprep.subr.mxu0 0.0
    %2965 = vmatpush1.msra.mxu0 0.0
    %2966 = vmatprep.subr.mxu0 0.0
    %2967 = vmatpush1.msra.mxu0 0.0
    %2968 = vmatprep.subr.mxu0 0.0
    %2969 = vmatpush1.msra.mxu0 0.0
    %2970 = vmatprep.subr.mxu0 0.0
    %2971 = vmatpush1.msra.mxu0 0.0
    %2972 = vmatprep.subr.mxu0 0.0
    %2973 = vmatpush1.msra.mxu0 0.0
    %2974 = vmatprep.subr.mxu0 0.0
    %2975 = vmatpush1.msra.mxu0 0.0
    %2976 = vmatprep.subr.mxu0 0.0
    %2977 = vmatpush1.msra.mxu0 0.0
    %2978 = vmatprep.subr.mxu0 0.0
    %2979 = vmatpush1.msra.mxu0 0.0
    %2980 = vmatprep.subr.mxu0 0.0
    %2981 = vmatpush1.msra.mxu0 0.0
    %2982 = vmatprep.subr.mxu0 0.0
    %2983 = vmatpush1.msra.mxu0 0.0
    %2984 = vmatprep.subr.mxu0 0.0
    %2985 = vmatpush1.msra.mxu0 %v2945
    %2986 = vmatprep.subr.mxu0 0.0
    %2987 = vmatpush1.msra.mxu0 %v2944
    %2988 = vmatprep.subr.mxu0 0.0
    %2989 = vmatpush1.msra.mxu0 %v2943
    %2990 = vmatprep.subr.mxu0 0.0
    %2991 = vmatpush1.msra.mxu0 %v2942
    %2992 = vmatprep.subr.mxu0 0.0
    %2993 = vmatpush2.msra.mxu0 0.0
    %2994 = vmatprep.subr.mxu0 0.0
    %2995 = vmatpush2.msra.mxu0 0.0
    %2996 = vmatprep.subr.mxu0 0.0
    %2997 = vmatpush2.msra.mxu0 0.0
    %2998 = vmatprep.subr.mxu0 0.0
    %2999 = vmatpush2.msra.mxu0 0.0
    %3000 = vmatprep.subr.mxu0 0.0
    %3001 = vmatpush2.msra.mxu0 0.0
    %3002 = vmatprep.subr.mxu0 0.0
    %3003 = vmatpush2.msra.mxu0 0.0
    %3004 = vmatprep.subr.mxu0 0.0
    %3005 = vmatpush2.msra.mxu0 0.0
    %3006 = vmatprep.subr.mxu0 0.0
    %3007 = vmatpush2.msra.mxu0 0.0
    %3008 = vmatprep.subr.mxu0 0.0
    %3009 = vmatpush2.msra.mxu0 0.0
    %3010 = vmatprep.subr.mxu0 0.0
    %3011 = vmatpush2.msra.mxu0 0.0
    %3012 = vmatprep.subr.mxu0 0.0
    %3013 = vmatpush2.msra.mxu0 0.0
    %3014 = vmatprep.subr.mxu0 0.0
    %3015 = vmatpush2.msra.mxu0 0.0
    %3016 = vmatprep.subr.mxu0 0.0
    %3017 = vmatpush2.msra.mxu0 0.0
    %3018 = vmatprep.subr.mxu0 0.0
    %3019 = vmatpush2.msra.mxu0 0.0
    %3020 = vmatprep.subr.mxu0 0.0
    %3021 = vmatpush2.msra.mxu0 0.0
    %3022 = vmatprep.subr.mxu0 0.0
    %3023 = vmatpush2.msra.mxu0 0.0
    %3024 = vmatprep.mubr.f32.mxu0 0.0
    %3025 = vmatmul.mubr.f32.gmra.mxu0 %v2955
    %v3026 = vpop.f32.mrf.mxu0
    %v3027 = vadd.f32 %v2952, %v3026
    %v3028 = vpop.f32.mrf.mxu0
    %3029 = vmatprep.mubr.f32.mxu0 0.0
    %3030 = vmatmul.mubr.f32.gmra.mxu0 %v2958
    %v3031 = vpop.f32.mrf.mxu0
    %v3032 = vadd.f32 %v2952, %v3031
    %v3033 = vpop.f32.mrf.mxu0
    %3034 = vdwg.mxu0
    %v3035 = vmax.f32 %v3027, 0.0
    %v3036 = vmax.f32 %v3032, 0.0
    %s3037 = scalar_lea.vmem %s21, 1
    %v3038 = vld [vmem:[%s3037] sm:$0x1]
    %v3040 = vlaneseq
    %v3041 = vshrl.u32 %v3040, 7
    %v3042 = vsub.s32 0, %v3041
    %v3043 = vrot.slane %v3038, %v3042
    %v3045 = vmul.f32 %v3035, %v3043
    %v3046 = vmul.f32 %v3036, %v3043
    %s3047 = scalar_lea.vmem %s22, 1
    %v3048 = vld [vmem:[%s3047] sm:$0x1]
    %v3050 = vlaneseq
    %v3051 = vshrl.u32 %v3050, 7
    %v3052 = vsub.s32 0, %v3051
    %v3053 = vrot.slane %v3048, %v3052
    %v3055 = vadd.f32 %v3045, %v3053
    %v3056 = vadd.f32 %v3046, %v3053
    %3057 = vmatprep.subr.mxu0 0.0
    %3058 = vmatpush1.msra.mxu0 0.0
    %3059 = vmatprep.subr.mxu0 0.0
    %3060 = vmatpush1.msra.mxu0 0.0
    %3061 = vmatprep.subr.mxu0 0.0
    %3062 = vmatpush1.msra.mxu0 0.0
    %3063 = vmatprep.subr.mxu0 0.0
    %3064 = vmatpush1.msra.mxu0 0.0
    %3065 = vmatprep.subr.mxu0 0.0
    %3066 = vmatpush1.msra.mxu0 0.0
    %3067 = vmatprep.subr.mxu0 0.0
    %3068 = vmatpush1.msra.mxu0 0.0
    %3069 = vmatprep.subr.mxu0 0.0
    %3070 = vmatpush1.msra.mxu0 0.0
    %3071 = vmatprep.subr.mxu0 0.0
    %3072 = vmatpush1.msra.mxu0 0.0
    %3073 = vmatprep.subr.mxu0 0.0
    %3074 = vmatpush1.msra.mxu0 0.0
    %3075 = vmatprep.subr.mxu0 0.0
    %3076 = vmatpush1.msra.mxu0 0.0
    %3077 = vmatprep.subr.mxu0 0.0
    %3078 = vmatpush1.msra.mxu0 0.0
    %3079 = vmatprep.subr.mxu0 0.0
    %3080 = vmatpush1.msra.mxu0 0.0
    %3081 = vmatprep.subr.mxu0 0.0
    %3082 = vmatpush1.msra.mxu0 0.0
    %3083 = vmatprep.subr.mxu0 0.0
    %3084 = vmatpush1.msra.mxu0 0.0
    %3085 = vmatprep.subr.mxu0 0.0
    %3086 = vmatpush1.msra.mxu0 %v3056
    %3087 = vmatprep.subr.mxu0 0.0
    %3088 = vmatpush1.msra.mxu0 %v3055
    %3089 = vmatprep.subr.mxu0 0.0
    %3090 = vmatpush2.msra.mxu0 0.0
    %3091 = vmatprep.subr.mxu0 0.0
    %3092 = vmatpush2.msra.mxu0 0.0
    %3093 = vmatprep.subr.mxu0 0.0
    %3094 = vmatpush2.msra.mxu0 0.0
    %3095 = vmatprep.subr.mxu0 0.0
    %3096 = vmatpush2.msra.mxu0 0.0
    %3097 = vmatprep.subr.mxu0 0.0
    %3098 = vmatpush2.msra.mxu0 0.0
    %3099 = vmatprep.subr.mxu0 0.0
    %3100 = vmatpush2.msra.mxu0 0.0
    %3101 = vmatprep.subr.mxu0 0.0
    %3102 = vmatpush2.msra.mxu0 0.0
    %3103 = vmatprep.subr.mxu0 0.0
    %3104 = vmatpush2.msra.mxu0 0.0
    %3105 = vmatprep.subr.mxu0 0.0
    %3106 = vmatpush2.msra.mxu0 0.0
    %3107 = vmatprep.subr.mxu0 0.0
    %3108 = vmatpush2.msra.mxu0 0.0
    %3109 = vmatprep.subr.mxu0 0.0
    %3110 = vmatpush2.msra.mxu0 0.0
    %3111 = vmatprep.subr.mxu0 0.0
    %3112 = vmatpush2.msra.mxu0 0.0
    %3113 = vmatprep.subr.mxu0 0.0
    %3114 = vmatpush2.msra.mxu0 0.0
    %3115 = vmatprep.subr.mxu0 0.0
    %3116 = vmatpush2.msra.mxu0 0.0
    %3117 = vmatprep.subr.mxu0 0.0
    %3118 = vmatpush2.msra.mxu0 0.0
    %3119 = vmatprep.subr.mxu0 0.0
    %3120 = vmatpush2.msra.mxu0 0.0
    %3121 = vmatprep.mubr.f32.mxu0 0.0
    %3122 = vmatmul.mubr.f32.gmra.mxu0 %v2843
    %v3123 = vpop.f32.mrf.mxu0
    %v3124 = vadd.f32 0.0, %v3123
    %v3125 = vpop.f32.mrf.mxu0
    %3126 = vmatprep.mubr.f32.mxu0 0.0
    %3127 = vmatmul.mubr.f32.gmra.mxu0 %v2846
    %v3128 = vpop.f32.mrf.mxu0
    %v3129 = vadd.f32 0.0, %v3128
    %v3130 = vpop.f32.mrf.mxu0
    %3131 = vdwg.mxu0
    %s3132 = scalar_lea.vmem %s23, 1
    %v3133 = vld [vmem:[%s3132] sm:$0x1]
    %v3135 = vlaneseq
    %v3136 = vshrl.u32 %v3135, 7
    %v3137 = vsub.s32 0, %v3136
    %v3138 = vrot.slane %v3133, %v3137
    %v3140 = vmul.f32 %v3124, %v3138
    %v3141 = vmul.f32 %v3129, %v3138
    %s3142 = scalar_lea.vmem %s24, 1
    %v3143 = vld [vmem:[%s3142] sm:$0x1]
    %v3145 = vlaneseq
    %v3146 = vshrl.u32 %v3145, 7
    %v3147 = vsub.s32 0, %v3146
    %v3148 = vrot.slane %v3143, %v3147
    %v3150 = vmul.f32 %v3055, %v3148
    %v3151 = vmul.f32 %v3056, %v3148
    %v3152 = vadd.f32 %v3140, %v3150
    %v3153 = vadd.f32 %v3141, %v3151
    %v3154 = vsel %vm198, %v3152, 0.0
    %3155 = vadd.xlane.f32.xlu0 %v3154
    %v3156 = vpop.xlane.xlu0 %3155
    %v3157 = vsel %vm198, %v3153, 0.0
    %3158 = vadd.xlane.f32.xlu0 %v3157
    %v3159 = vpop.xlane.xlu0 %3158
    %s3160 = sld [smem:[#allocation3 + $0x1]]
    %v3161 = vstv %s3160
    %v3162 = vadd.f32 %v3156, %v3161
    %v3163 = vadd.f32 %v3159, %v3161
    %v3165 = vsel %vm198, %v3156, 0
    %v3168 = vsel %vm198, %v3159, 0
    %3170 = vmatprep.subr.mxu0 0.0
    %3171 = vmatpush1.xpose.msra.mxu0 0.0
    %3172 = vmatprep.subr.mxu0 0.0
    %3173 = vmatpush1.xpose.msra.mxu0 0.0
    %3174 = vmatprep.subr.mxu0 0.0
    %3175 = vmatpush1.xpose.msra.mxu0 0.0
    %3176 = vmatprep.subr.mxu0 0.0
    %3177 = vmatpush1.xpose.msra.mxu0 0.0
    %3178 = vmatprep.subr.mxu0 0.0
    %3179 = vmatpush1.xpose.msra.mxu0 0.0
    %3180 = vmatprep.subr.mxu0 0.0
    %3181 = vmatpush1.xpose.msra.mxu0 0.0
    %3182 = vmatprep.subr.mxu0 0.0
    %3183 = vmatpush1.xpose.msra.mxu0 0.0
    %3184 = vmatprep.subr.mxu0 0.0
    %3185 = vmatpush1.xpose.msra.mxu0 0.0
    %3186 = vmatprep.subr.mxu0 0.0
    %3187 = vmatpush1.xpose.msra.mxu0 0.0
    %3188 = vmatprep.subr.mxu0 0.0
    %3189 = vmatpush1.xpose.msra.mxu0 0.0
    %3190 = vmatprep.subr.mxu0 0.0
    %3191 = vmatpush1.xpose.msra.mxu0 0.0
    %3192 = vmatprep.subr.mxu0 0.0
    %3193 = vmatpush1.xpose.msra.mxu0 0.0
    %3194 = vmatprep.subr.mxu0 0.0
    %3195 = vmatpush1.xpose.msra.mxu0 0.0
    %3196 = vmatprep.subr.mxu0 0.0
    %3197 = vmatpush1.xpose.msra.mxu0 0.0
    %3198 = vmatprep.subr.mxu0 0.0
    %3199 = vmatpush1.xpose.msra.mxu0 %v3168
    %3200 = vmatprep.subr.mxu0 0.0
    %3201 = vmatpush1.xpose.msra.mxu0 %v3165
    %3202 = vmatprep.subr.mxu0 0.0
    %3203 = vmatpush2.xpose.msra.mxu0 0.0
    %3204 = vmatprep.subr.mxu0 0.0
    %3205 = vmatpush2.xpose.msra.mxu0 0.0
    %3206 = vmatprep.subr.mxu0 0.0
    %3207 = vmatpush2.xpose.msra.mxu0 0.0
    %3208 = vmatprep.subr.mxu0 0.0
    %3209 = vmatpush2.xpose.msra.mxu0 0.0
    %3210 = vmatprep.subr.mxu0 0.0
    %3211 = vmatpush2.xpose.msra.mxu0 0.0
    %3212 = vmatprep.subr.mxu0 0.0
    %3213 = vmatpush2.xpose.msra.mxu0 0.0
    %3214 = vmatprep.subr.mxu0 0.0
    %3215 = vmatpush2.xpose.msra.mxu0 0.0
    %3216 = vmatprep.subr.mxu0 0.0
    %3217 = vmatpush2.xpose.msra.mxu0 0.0
    %3218 = vmatprep.subr.mxu0 0.0
    %3219 = vmatpush2.xpose.msra.mxu0 0.0
    %3220 = vmatprep.subr.mxu0 0.0
    %3221 = vmatpush2.xpose.msra.mxu0 0.0
    %3222 = vmatprep.subr.mxu0 0.0
    %3223 = vmatpush2.xpose.msra.mxu0 0.0
    %3224 = vmatprep.subr.mxu0 0.0
    %3225 = vmatpush2.xpose.msra.mxu0 0.0
    %3226 = vmatprep.subr.mxu0 0.0
    %3227 = vmatpush2.xpose.msra.mxu0 0.0
    %3228 = vmatprep.subr.mxu0 0.0
    %3229 = vmatpush2.xpose.msra.mxu0 0.0
    %3230 = vmatprep.subr.mxu0 0.0
    %3231 = vmatpush2.xpose.msra.mxu0 0.0
    %3232 = vmatprep.subr.mxu0 0.0
    %3233 = vmatpush2.xpose.msra.mxu0 0.0
    %3234 = vmatprep.mubr.f32.mxu0 0.0
    %3235 = vmatmul.mubr.f32.gmra.mxu0 %v200
    %v3236 = vpop.f32.mrf.mxu0
    %v3237 = vadd.f32 0.0, %v3236
    %v3238 = vpop.f32.mrf.mxu0
    %3239 = vdwg.mxu0
    %v3240 = vmul.f32 %v3237, 0.03125
    %v3241 = vlaneseq
    %v3242 = vshrl.u32 %v3241, 7
    %v3243 = vsub.s32 0, %v3242
    %v3244 = vrot.slane %v3240, %v3243
    %vm3245 = vcmp.gt.f32.partialorder %v3244, %v3156
    %vm3246 = vcmp.gt.f32.partialorder %v3244, %v3159
    %vm3247 = vcmp.eq.f32.partialorder %v3244, %v3156
    %vm3248 = vcmp.eq.f32.partialorder %v3244, %v3159
    %vm3249 = vmand %vm3247, %vm1744
    %vm3250 = vmand %vm3248, %vm1745
    %vm3251 = vmor %vm3245, %vm3249
    %vm3252 = vmor %vm3246, %vm3250
    %vm3253 = vmand %vm1734, %vm3251
    %vm3254 = vmand %vm1735, %vm3252
    %v3255 = vsel %vm3253, %v2741, 0.0
    %v3256 = vsel %vm3254, %v2741, 0.0
    %v3257 = vsel %vm392, %v3255, 0.0
    %3258 = vadd.xlane.f32.xlu0 %v3257
    %v3259 = vpop.xlane.xlu0 %3258
    %v3260 = vsel %vm392, %v3256, 0.0
    %3261 = vadd.xlane.f32.xlu0 %v3260
    %v3262 = vpop.xlane.xlu0 %3261
    %vm3263 = vcmp.lt.f32.partialorder %v3259, 4.0
    %vm3264 = vcmp.lt.f32.partialorder %v3262, 4.0
    %v3265 = vsel %vm3263, 1.0, 0.0
    %v3266 = vsel %vm3264, 1.0, 0.0
    %v3267 = vmul.f32 %v1762, %v3265
    %v3268 = vmul.f32 %v1763, %v3266
    %v3269 = vtanh.pop %v3162
    %v3270 = vtanh.pop %v3163
    %v3271 = vmul.f32 %v3055, %v3269
    %v3272 = vmul.f32 %v3056, %v3270
    %v3273 = vmul.f32 %v3271, %v3267
    %v3274 = vmul.f32 %v3272, %v3268
    %v3276 = vsel %vm198, %v3267, 0
    %v3279 = vsel %vm198, %v3268, 0
    %3281 = vmatprep.subr.mxu0 0.0
    %3282 = vmatpush1.xpose.msra.mxu0 0.0
    %3283 = vmatprep.subr.mxu0 0.0
    %3284 = vmatpush1.xpose.msra.mxu0 0.0
    %3285 = vmatprep.subr.mxu0 0.0
    %3286 = vmatpush1.xpose.msra.mxu0 0.0
    %3287 = vmatprep.subr.mxu0 0.0
    %3288 = vmatpush1.xpose.msra.mxu0 0.0
    %3289 = vmatprep.subr.mxu0 0.0
    %3290 = vmatpush1.xpose.msra.mxu0 0.0
    %3291 = vmatprep.subr.mxu0 0.0
    %3292 = vmatpush1.xpose.msra.mxu0 0.0
    %3293 = vmatprep.subr.mxu0 0.0
    %3294 = vmatpush1.xpose.msra.mxu0 0.0
    %3295 = vmatprep.subr.mxu0 0.0
    %3296 = vmatpush1.xpose.msra.mxu0 0.0
    %3297 = vmatprep.subr.mxu0 0.0
    %3298 = vmatpush1.xpose.msra.mxu0 0.0
    %3299 = vmatprep.subr.mxu0 0.0
    %3300 = vmatpush1.xpose.msra.mxu0 0.0
    %3301 = vmatprep.subr.mxu0 0.0
    %3302 = vmatpush1.xpose.msra.mxu0 0.0
    %3303 = vmatprep.subr.mxu0 0.0
    %3304 = vmatpush1.xpose.msra.mxu0 0.0
    %3305 = vmatprep.subr.mxu0 0.0
    %3306 = vmatpush1.xpose.msra.mxu0 0.0
    %3307 = vmatprep.subr.mxu0 0.0
    %3308 = vmatpush1.xpose.msra.mxu0 0.0
    %3309 = vmatprep.subr.mxu0 0.0
    %3310 = vmatpush1.xpose.msra.mxu0 %v3279
    %3311 = vmatprep.subr.mxu0 0.0
    %3312 = vmatpush1.xpose.msra.mxu0 %v3276
    %3313 = vmatprep.subr.mxu0 0.0
    %3314 = vmatpush2.xpose.msra.mxu0 0.0
    %3315 = vmatprep.subr.mxu0 0.0
    %3316 = vmatpush2.xpose.msra.mxu0 0.0
    %3317 = vmatprep.subr.mxu0 0.0
    %3318 = vmatpush2.xpose.msra.mxu0 0.0
    %3319 = vmatprep.subr.mxu0 0.0
    %3320 = vmatpush2.xpose.msra.mxu0 0.0
    %3321 = vmatprep.subr.mxu0 0.0
    %3322 = vmatpush2.xpose.msra.mxu0 0.0
    %3323 = vmatprep.subr.mxu0 0.0
    %3324 = vmatpush2.xpose.msra.mxu0 0.0
    %3325 = vmatprep.subr.mxu0 0.0
    %3326 = vmatpush2.xpose.msra.mxu0 0.0
    %3327 = vmatprep.subr.mxu0 0.0
    %3328 = vmatpush2.xpose.msra.mxu0 0.0
    %3329 = vmatprep.subr.mxu0 0.0
    %3330 = vmatpush2.xpose.msra.mxu0 0.0
    %3331 = vmatprep.subr.mxu0 0.0
    %3332 = vmatpush2.xpose.msra.mxu0 0.0
    %3333 = vmatprep.subr.mxu0 0.0
    %3334 = vmatpush2.xpose.msra.mxu0 0.0
    %3335 = vmatprep.subr.mxu0 0.0
    %3336 = vmatpush2.xpose.msra.mxu0 0.0
    %3337 = vmatprep.subr.mxu0 0.0
    %3338 = vmatpush2.xpose.msra.mxu0 0.0
    %3339 = vmatprep.subr.mxu0 0.0
    %3340 = vmatpush2.xpose.msra.mxu0 0.0
    %3341 = vmatprep.subr.mxu0 0.0
    %3342 = vmatpush2.xpose.msra.mxu0 0.0
    %3343 = vmatprep.subr.mxu0 0.0
    %3344 = vmatpush2.xpose.msra.mxu0 0.0
    %3345 = vmatprep.mubr.f32.mxu0 0.0
    %3346 = vmatmul.mubr.f32.gmra.mxu0 %v200
    %v3347 = vpop.f32.mrf.mxu0
    %v3348 = vadd.f32 0.0, %v3347
    %v3349 = vpop.f32.mrf.mxu0
    %3350 = vdwg.mxu0
    %vm3351 = vcmp.gt.f32.partialorder %v3348, 16.0
    %v3352 = vsel %vm3351, 1.0, 0.0
    %v3354 = vsel %vm198, %v3273, 0
    %v3357 = vsel %vm198, %v3274, 0
    %3359 = vmatprep.subr.mxu0 0.0
    %3360 = vmatpush1.msra.mxu0 0.0
    %3361 = vmatprep.subr.mxu0 0.0
    %3362 = vmatpush1.msra.mxu0 0.0
    %3363 = vmatprep.subr.mxu0 0.0
    %3364 = vmatpush1.msra.mxu0 0.0
    %3365 = vmatprep.subr.mxu0 0.0
    %3366 = vmatpush1.msra.mxu0 0.0
    %3367 = vmatprep.subr.mxu0 0.0
    %3368 = vmatpush1.msra.mxu0 0.0
    %3369 = vmatprep.subr.mxu0 0.0
    %3370 = vmatpush1.msra.mxu0 0.0
    %3371 = vmatprep.subr.mxu0 0.0
    %3372 = vmatpush1.msra.mxu0 0.0
    %3373 = vmatprep.subr.mxu0 0.0
    %3374 = vmatpush1.msra.mxu0 0.0
    %3375 = vmatprep.subr.mxu0 0.0
    %3376 = vmatpush1.msra.mxu0 0.0
    %3377 = vmatprep.subr.mxu0 0.0
    %3378 = vmatpush1.msra.mxu0 0.0
    %3379 = vmatprep.subr.mxu0 0.0
    %3380 = vmatpush1.msra.mxu0 0.0
    %3381 = vmatprep.subr.mxu0 0.0
    %3382 = vmatpush1.msra.mxu0 0.0
    %3383 = vmatprep.subr.mxu0 0.0
    %3384 = vmatpush1.msra.mxu0 %v277
    %3385 = vmatprep.subr.mxu0 0.0
    %3386 = vmatpush1.msra.mxu0 %v276
    %3387 = vmatprep.subr.mxu0 0.0
    %3388 = vmatpush1.msra.mxu0 %v275
    %3389 = vmatprep.subr.mxu0 0.0
    %3390 = vmatpush1.msra.mxu0 %v274
    %3391 = vmatprep.subr.mxu0 0.0
    %3392 = vmatpush2.msra.mxu0 0.0
    %3393 = vmatprep.subr.mxu0 0.0
    %3394 = vmatpush2.msra.mxu0 0.0
    %3395 = vmatprep.subr.mxu0 0.0
    %3396 = vmatpush2.msra.mxu0 0.0
    %3397 = vmatprep.subr.mxu0 0.0
    %3398 = vmatpush2.msra.mxu0 0.0
    %3399 = vmatprep.subr.mxu0 0.0
    %3400 = vmatpush2.msra.mxu0 0.0
    %3401 = vmatprep.subr.mxu0 0.0
    %3402 = vmatpush2.msra.mxu0 0.0
    %3403 = vmatprep.subr.mxu0 0.0
    %3404 = vmatpush2.msra.mxu0 0.0
    %3405 = vmatprep.subr.mxu0 0.0
    %3406 = vmatpush2.msra.mxu0 0.0
    %3407 = vmatprep.subr.mxu0 0.0
    %3408 = vmatpush2.msra.mxu0 0.0
    %3409 = vmatprep.subr.mxu0 0.0
    %3410 = vmatpush2.msra.mxu0 0.0
    %3411 = vmatprep.subr.mxu0 0.0
    %3412 = vmatpush2.msra.mxu0 0.0
    %3413 = vmatprep.subr.mxu0 0.0
    %3414 = vmatpush2.msra.mxu0 0.0
    %3415 = vmatprep.subr.mxu0 0.0
    %3416 = vmatpush2.msra.mxu0 0.0
    %3417 = vmatprep.subr.mxu0 0.0
    %3418 = vmatpush2.msra.mxu0 0.0
    %3419 = vmatprep.subr.mxu0 0.0
    %3420 = vmatpush2.msra.mxu0 0.0
    %3421 = vmatprep.subr.mxu0 0.0
    %3422 = vmatpush2.msra.mxu0 0.0
    %3423 = vmatprep.mubr.f32.mxu0 0.0
    %3424 = vmatmul.mubr.f32.gmra.mxu0 %v3354
    %v3425 = vpop.f32.mrf.mxu0
    %v3426 = vadd.f32 %v302, %v3425
    %v3427 = vpop.f32.mrf.mxu0
    %3428 = vmatprep.mubr.f32.mxu0 0.0
    %3429 = vmatmul.mubr.f32.gmra.mxu0 %v3357
    %v3430 = vpop.f32.mrf.mxu0
    %v3431 = vadd.f32 %v302, %v3430
    %v3432 = vpop.f32.mrf.mxu0
    %3433 = vdwg.mxu0
    %vm3434 = vcmp.gt.f32.partialorder %v3352, 0.5
    %3437 = vrot.lane.b32.xlu0 %v3426, 96
    %v3438 = vpop.permute.xlu0 %3437
    %3439 = vrot.lane.b32.xlu0 %v3431, 96
    %v3440 = vpop.permute.xlu0 %3439
    %v3441 = vsel %vm392, %v3426, 0
    %v3443 = vsel %vm392, %v3431, 0
    %v3445 = vsel %vm392, %v3438, 0
    %v3447 = vsel %vm392, %v3440, 0
    %3449 = vmatprep.subr.mxu0 0.0
    %3450 = vmatpush1.xpose.msra.mxu0 0.0
    %3451 = vmatprep.subr.mxu0 0.0
    %3452 = vmatpush1.xpose.msra.mxu0 0.0
    %3453 = vmatprep.subr.mxu0 0.0
    %3454 = vmatpush1.xpose.msra.mxu0 0.0
    %3455 = vmatprep.subr.mxu0 0.0
    %3456 = vmatpush1.xpose.msra.mxu0 0.0
    %3457 = vmatprep.subr.mxu0 0.0
    %3458 = vmatpush1.xpose.msra.mxu0 0.0
    %3459 = vmatprep.subr.mxu0 0.0
    %3460 = vmatpush1.xpose.msra.mxu0 0.0
    %3461 = vmatprep.subr.mxu0 0.0
    %3462 = vmatpush1.xpose.msra.mxu0 0.0
    %3463 = vmatprep.subr.mxu0 0.0
    %3464 = vmatpush1.xpose.msra.mxu0 0.0
    %3465 = vmatprep.subr.mxu0 0.0
    %3466 = vmatpush1.xpose.msra.mxu0 0.0
    %3467 = vmatprep.subr.mxu0 0.0
    %3468 = vmatpush1.xpose.msra.mxu0 0.0
    %3469 = vmatprep.subr.mxu0 0.0
    %3470 = vmatpush1.xpose.msra.mxu0 0.0
    %3471 = vmatprep.subr.mxu0 0.0
    %3472 = vmatpush1.xpose.msra.mxu0 0.0
    %3473 = vmatprep.subr.mxu0 0.0
    %3474 = vmatpush1.xpose.msra.mxu0 0.0
    %3475 = vmatprep.subr.mxu0 0.0
    %3476 = vmatpush1.xpose.msra.mxu0 0.0
    %3477 = vmatprep.subr.mxu0 0.0
    %3478 = vmatpush1.xpose.msra.mxu0 %v3447
    %3479 = vmatprep.subr.mxu0 0.0
    %3480 = vmatpush1.xpose.msra.mxu0 %v3445
    %3481 = vmatprep.subr.mxu0 0.0
    %3482 = vmatpush2.xpose.msra.mxu0 0.0
    %3483 = vmatprep.subr.mxu0 0.0
    %3484 = vmatpush2.xpose.msra.mxu0 0.0
    %3485 = vmatprep.subr.mxu0 0.0
    %3486 = vmatpush2.xpose.msra.mxu0 0.0
    %3487 = vmatprep.subr.mxu0 0.0
    %3488 = vmatpush2.xpose.msra.mxu0 0.0
    %3489 = vmatprep.subr.mxu0 0.0
    %3490 = vmatpush2.xpose.msra.mxu0 0.0
    %3491 = vmatprep.subr.mxu0 0.0
    %3492 = vmatpush2.xpose.msra.mxu0 0.0
    %3493 = vmatprep.subr.mxu0 0.0
    %3494 = vmatpush2.xpose.msra.mxu0 0.0
    %3495 = vmatprep.subr.mxu0 0.0
    %3496 = vmatpush2.xpose.msra.mxu0 0.0
    %3497 = vmatprep.subr.mxu0 0.0
    %3498 = vmatpush2.xpose.msra.mxu0 0.0
    %3499 = vmatprep.subr.mxu0 0.0
    %3500 = vmatpush2.xpose.msra.mxu0 0.0
    %3501 = vmatprep.subr.mxu0 0.0
    %3502 = vmatpush2.xpose.msra.mxu0 0.0
    %3503 = vmatprep.subr.mxu0 0.0
    %3504 = vmatpush2.xpose.msra.mxu0 0.0
    %3505 = vmatprep.subr.mxu0 0.0
    %3506 = vmatpush2.xpose.msra.mxu0 0.0
    %3507 = vmatprep.subr.mxu0 0.0
    %3508 = vmatpush2.xpose.msra.mxu0 0.0
    %3509 = vmatprep.subr.mxu0 0.0
    %3510 = vmatpush2.xpose.msra.mxu0 0.0
    %3511 = vmatprep.subr.mxu0 0.0
    %3512 = vmatpush2.xpose.msra.mxu0 0.0
    %3513 = vmatprep.mubr.f32.mxu0 0.0
    %3514 = vmatmul.mubr.f32.gmra.mxu0 %v3441
    %v3515 = vpop.f32.mrf.mxu0
    %v3516 = vadd.f32 0.0, %v3515
    %v3517 = vpop.f32.mrf.mxu0
    %3518 = vmatprep.mubr.f32.mxu0 0.0
    %3519 = vmatmul.mubr.f32.gmra.mxu0 %v3443
    %v3520 = vpop.f32.mrf.mxu0
    %v3521 = vadd.f32 0.0, %v3520
    %v3522 = vpop.f32.mrf.mxu0
    %3523 = vdwg.mxu0
    %v3524 = vsel %vm3434, 1, 0
    %v3525 = vlaneseq
    %v3526 = vshrl.u32 %v3525, 7
    %v3527 = vsub.s32 0, %v3526
    %v3528 = vrot.slane %v3524, %v3527
    %vm3529 = vcmp.eq.s32.totalorder %v3528, 1
    %v3530 = vsel %vm3529, %v3516, -1e+30
    %v3531 = vsel %vm3529, %v3521, -1e+30
    %v3532 = vsel %vm392, %v3530, -inf
    %3533 = vmax.xlane.f32.xlu0 %v3532
    %v3534 = vpop.xlane.xlu0 %3533
    %v3535 = vsel %vm392, %v3531, -inf
    %3536 = vmax.xlane.f32.xlu0 %v3535
    %v3537 = vpop.xlane.xlu0 %3536
    %v3538 = vsub.f32 %v3530, %v3534
    %v3539 = vsub.f32 %v3531, %v3537
    %v3540 = vmul.f32 %v3538, 1.442695
    %v3541 = vpow.pop %v3540
    %v3542 = vmul.f32 %v3539, 1.442695
    %v3543 = vpow.pop %v3542
    %v3544 = vsel %vm392, %v3541, 0.0
    %3545 = vadd.xlane.f32.xlu0 %v3544
    %v3546 = vpop.xlane.xlu0 %3545
    %v3547 = vsel %vm392, %v3543, 0.0
    %3548 = vadd.xlane.f32.xlu0 %v3547
    %v3549 = vpop.xlane.xlu0 %3548
    %v3550 = vrcp.pop %v3546
    %v3551 = vrcp.pop %v3549
    %v3552 = vmul.f32 %v3541, %v3550
    %v3553 = vmul.f32 %v3543, %v3551
    %3554 = vrot.lane.b32.xlu0 %v3426, 64
    %v3555 = vpop.permute.xlu0 %3554
    %3556 = vrot.lane.b32.xlu0 %v3431, 64
    %v3557 = vpop.permute.xlu0 %3556
    %v3561 = vsel %vm392, %v3552, 0
    %v3564 = vsel %vm392, %v3553, 0
    %3566 = vmatprep.subr.mxu0 0.0
    %3567 = vmatpush1.msra.mxu0 0.0
    %3568 = vmatprep.subr.mxu0 0.0
    %3569 = vmatpush1.msra.mxu0 0.0
    %3570 = vmatprep.subr.mxu0 0.0
    %3571 = vmatpush1.msra.mxu0 0.0
    %3572 = vmatprep.subr.mxu0 0.0
    %3573 = vmatpush1.msra.mxu0 0.0
    %3574 = vmatprep.subr.mxu0 0.0
    %3575 = vmatpush1.msra.mxu0 0.0
    %3576 = vmatprep.subr.mxu0 0.0
    %3577 = vmatpush1.msra.mxu0 0.0
    %3578 = vmatprep.subr.mxu0 0.0
    %3579 = vmatpush1.msra.mxu0 0.0
    %3580 = vmatprep.subr.mxu0 0.0
    %3581 = vmatpush1.msra.mxu0 0.0
    %3582 = vmatprep.subr.mxu0 0.0
    %3583 = vmatpush1.msra.mxu0 0.0
    %3584 = vmatprep.subr.mxu0 0.0
    %3585 = vmatpush1.msra.mxu0 0.0
    %3586 = vmatprep.subr.mxu0 0.0
    %3587 = vmatpush1.msra.mxu0 0.0
    %3588 = vmatprep.subr.mxu0 0.0
    %3589 = vmatpush1.msra.mxu0 0.0
    %3590 = vmatprep.subr.mxu0 0.0
    %3591 = vmatpush1.msra.mxu0 0.0
    %3592 = vmatprep.subr.mxu0 0.0
    %3593 = vmatpush1.msra.mxu0 0.0
    %3594 = vmatprep.subr.mxu0 0.0
    %3595 = vmatpush1.msra.mxu0 %v3557
    %3596 = vmatprep.subr.mxu0 0.0
    %3597 = vmatpush1.msra.mxu0 %v3555
    %3598 = vmatprep.subr.mxu0 0.0
    %3599 = vmatpush2.msra.mxu0 0.0
    %3600 = vmatprep.subr.mxu0 0.0
    %3601 = vmatpush2.msra.mxu0 0.0
    %3602 = vmatprep.subr.mxu0 0.0
    %3603 = vmatpush2.msra.mxu0 0.0
    %3604 = vmatprep.subr.mxu0 0.0
    %3605 = vmatpush2.msra.mxu0 0.0
    %3606 = vmatprep.subr.mxu0 0.0
    %3607 = vmatpush2.msra.mxu0 0.0
    %3608 = vmatprep.subr.mxu0 0.0
    %3609 = vmatpush2.msra.mxu0 0.0
    %3610 = vmatprep.subr.mxu0 0.0
    %3611 = vmatpush2.msra.mxu0 0.0
    %3612 = vmatprep.subr.mxu0 0.0
    %3613 = vmatpush2.msra.mxu0 0.0
    %3614 = vmatprep.subr.mxu0 0.0
    %3615 = vmatpush2.msra.mxu0 0.0
    %3616 = vmatprep.subr.mxu0 0.0
    %3617 = vmatpush2.msra.mxu0 0.0
    %3618 = vmatprep.subr.mxu0 0.0
    %3619 = vmatpush2.msra.mxu0 0.0
    %3620 = vmatprep.subr.mxu0 0.0
    %3621 = vmatpush2.msra.mxu0 0.0
    %3622 = vmatprep.subr.mxu0 0.0
    %3623 = vmatpush2.msra.mxu0 0.0
    %3624 = vmatprep.subr.mxu0 0.0
    %3625 = vmatpush2.msra.mxu0 0.0
    %3626 = vmatprep.subr.mxu0 0.0
    %3627 = vmatpush2.msra.mxu0 0.0
    %3628 = vmatprep.subr.mxu0 0.0
    %3629 = vmatpush2.msra.mxu0 0.0
    %3630 = vmatprep.mubr.f32.mxu0 0.0
    %3631 = vmatmul.mubr.f32.gmra.mxu0 %v3561
    %v3632 = vpop.f32.mrf.mxu0
    %v3633 = vadd.f32 0.0, %v3632
    %v3634 = vpop.f32.mrf.mxu0
    %3635 = vmatprep.mubr.f32.mxu0 0.0
    %3636 = vmatmul.mubr.f32.gmra.mxu0 %v3564
    %v3637 = vpop.f32.mrf.mxu0
    %v3638 = vadd.f32 0.0, %v3637
    %v3639 = vpop.f32.mrf.mxu0
    %3640 = vdwg.mxu0
    %3641 = vrot.lane.b32.xlu0 %v3426, 112
    %v3642 = vpop.permute.xlu0 %3641
    %3643 = vrot.lane.b32.xlu0 %v3431, 112
    %v3644 = vpop.permute.xlu0 %3643
    %3645 = vrot.lane.b32.xlu0 %v3426, 80
    %v3646 = vpop.permute.xlu0 %3645
    %3647 = vrot.lane.b32.xlu0 %v3431, 80
    %v3648 = vpop.permute.xlu0 %3647
    %v3649 = vsel %vm392, %v3642, 0
    %v3651 = vsel %vm392, %v3644, 0
    %v3653 = vsel %vm392, %v3646, 0
    %v3655 = vsel %vm392, %v3648, 0
    %3657 = vmatprep.subr.mxu0 0.0
    %3658 = vmatpush1.xpose.msra.mxu0 0.0
    %3659 = vmatprep.subr.mxu0 0.0
    %3660 = vmatpush1.xpose.msra.mxu0 0.0
    %3661 = vmatprep.subr.mxu0 0.0
    %3662 = vmatpush1.xpose.msra.mxu0 0.0
    %3663 = vmatprep.subr.mxu0 0.0
    %3664 = vmatpush1.xpose.msra.mxu0 0.0
    %3665 = vmatprep.subr.mxu0 0.0
    %3666 = vmatpush1.xpose.msra.mxu0 0.0
    %3667 = vmatprep.subr.mxu0 0.0
    %3668 = vmatpush1.xpose.msra.mxu0 0.0
    %3669 = vmatprep.subr.mxu0 0.0
    %3670 = vmatpush1.xpose.msra.mxu0 0.0
    %3671 = vmatprep.subr.mxu0 0.0
    %3672 = vmatpush1.xpose.msra.mxu0 0.0
    %3673 = vmatprep.subr.mxu0 0.0
    %3674 = vmatpush1.xpose.msra.mxu0 0.0
    %3675 = vmatprep.subr.mxu0 0.0
    %3676 = vmatpush1.xpose.msra.mxu0 0.0
    %3677 = vmatprep.subr.mxu0 0.0
    %3678 = vmatpush1.xpose.msra.mxu0 0.0
    %3679 = vmatprep.subr.mxu0 0.0
    %3680 = vmatpush1.xpose.msra.mxu0 0.0
    %3681 = vmatprep.subr.mxu0 0.0
    %3682 = vmatpush1.xpose.msra.mxu0 0.0
    %3683 = vmatprep.subr.mxu0 0.0
    %3684 = vmatpush1.xpose.msra.mxu0 0.0
    %3685 = vmatprep.subr.mxu0 0.0
    %3686 = vmatpush1.xpose.msra.mxu0 %v3655
    %3687 = vmatprep.subr.mxu0 0.0
    %3688 = vmatpush1.xpose.msra.mxu0 %v3653
    %3689 = vmatprep.subr.mxu0 0.0
    %3690 = vmatpush2.xpose.msra.mxu0 0.0
    %3691 = vmatprep.subr.mxu0 0.0
    %3692 = vmatpush2.xpose.msra.mxu0 0.0
    %3693 = vmatprep.subr.mxu0 0.0
    %3694 = vmatpush2.xpose.msra.mxu0 0.0
    %3695 = vmatprep.subr.mxu0 0.0
    %3696 = vmatpush2.xpose.msra.mxu0 0.0
    %3697 = vmatprep.subr.mxu0 0.0
    %3698 = vmatpush2.xpose.msra.mxu0 0.0
    %3699 = vmatprep.subr.mxu0 0.0
    %3700 = vmatpush2.xpose.msra.mxu0 0.0
    %3701 = vmatprep.subr.mxu0 0.0
    %3702 = vmatpush2.xpose.msra.mxu0 0.0
    %3703 = vmatprep.subr.mxu0 0.0
    %3704 = vmatpush2.xpose.msra.mxu0 0.0
    %3705 = vmatprep.subr.mxu0 0.0
    %3706 = vmatpush2.xpose.msra.mxu0 0.0
    %3707 = vmatprep.subr.mxu0 0.0
    %3708 = vmatpush2.xpose.msra.mxu0 0.0
    %3709 = vmatprep.subr.mxu0 0.0
    %3710 = vmatpush2.xpose.msra.mxu0 0.0
    %3711 = vmatprep.subr.mxu0 0.0
    %3712 = vmatpush2.xpose.msra.mxu0 0.0
    %3713 = vmatprep.subr.mxu0 0.0
    %3714 = vmatpush2.xpose.msra.mxu0 0.0
    %3715 = vmatprep.subr.mxu0 0.0
    %3716 = vmatpush2.xpose.msra.mxu0 0.0
    %3717 = vmatprep.subr.mxu0 0.0
    %3718 = vmatpush2.xpose.msra.mxu0 0.0
    %3719 = vmatprep.subr.mxu0 0.0
    %3720 = vmatpush2.xpose.msra.mxu0 0.0
    %3721 = vmatprep.mubr.f32.mxu0 0.0
    %3722 = vmatmul.mubr.f32.gmra.mxu0 %v3649
    %v3723 = vpop.f32.mrf.mxu0
    %v3724 = vadd.f32 0.0, %v3723
    %v3725 = vpop.f32.mrf.mxu0
    %3726 = vmatprep.mubr.f32.mxu0 0.0
    %3727 = vmatmul.mubr.f32.gmra.mxu0 %v3651
    %v3728 = vpop.f32.mrf.mxu0
    %v3729 = vadd.f32 0.0, %v3728
    %v3730 = vpop.f32.mrf.mxu0
    %3731 = vdwg.mxu0
    %v3732 = vsel %vm3529, %v3724, -1e+30
    %v3733 = vsel %vm3529, %v3729, -1e+30
    %v3734 = vsel %vm392, %v3732, -inf
    %3735 = vmax.xlane.f32.xlu0 %v3734
    %v3736 = vpop.xlane.xlu0 %3735
    %v3737 = vsel %vm392, %v3733, -inf
    %3738 = vmax.xlane.f32.xlu0 %v3737
    %v3739 = vpop.xlane.xlu0 %3738
    %v3740 = vsub.f32 %v3732, %v3736
    %v3741 = vsub.f32 %v3733, %v3739
    %v3742 = vmul.f32 %v3740, 1.442695
    %v3743 = vpow.pop %v3742
    %v3744 = vmul.f32 %v3741, 1.442695
    %v3745 = vpow.pop %v3744
    %v3746 = vsel %vm392, %v3743, 0.0
    %3747 = vadd.xlane.f32.xlu0 %v3746
    %v3748 = vpop.xlane.xlu0 %3747
    %v3749 = vsel %vm392, %v3745, 0.0
    %3750 = vadd.xlane.f32.xlu0 %v3749
    %v3751 = vpop.xlane.xlu0 %3750
    %v3752 = vrcp.pop %v3748
    %v3753 = vrcp.pop %v3751
    %v3754 = vmul.f32 %v3743, %v3752
    %v3755 = vmul.f32 %v3745, %v3753
    %3756 = vrot.lane.b32.xlu0 %v3426, 48
    %v3757 = vpop.permute.xlu0 %3756
    %3758 = vrot.lane.b32.xlu0 %v3431, 48
    %v3759 = vpop.permute.xlu0 %3758
    %v3763 = vsel %vm392, %v3754, 0
    %v3766 = vsel %vm392, %v3755, 0
    %3768 = vmatprep.subr.mxu0 0.0
    %3769 = vmatpush1.msra.mxu0 0.0
    %3770 = vmatprep.subr.mxu0 0.0
    %3771 = vmatpush1.msra.mxu0 0.0
    %3772 = vmatprep.subr.mxu0 0.0
    %3773 = vmatpush1.msra.mxu0 0.0
    %3774 = vmatprep.subr.mxu0 0.0
    %3775 = vmatpush1.msra.mxu0 0.0
    %3776 = vmatprep.subr.mxu0 0.0
    %3777 = vmatpush1.msra.mxu0 0.0
    %3778 = vmatprep.subr.mxu0 0.0
    %3779 = vmatpush1.msra.mxu0 0.0
    %3780 = vmatprep.subr.mxu0 0.0
    %3781 = vmatpush1.msra.mxu0 0.0
    %3782 = vmatprep.subr.mxu0 0.0
    %3783 = vmatpush1.msra.mxu0 0.0
    %3784 = vmatprep.subr.mxu0 0.0
    %3785 = vmatpush1.msra.mxu0 0.0
    %3786 = vmatprep.subr.mxu0 0.0
    %3787 = vmatpush1.msra.mxu0 0.0
    %3788 = vmatprep.subr.mxu0 0.0
    %3789 = vmatpush1.msra.mxu0 0.0
    %3790 = vmatprep.subr.mxu0 0.0
    %3791 = vmatpush1.msra.mxu0 0.0
    %3792 = vmatprep.subr.mxu0 0.0
    %3793 = vmatpush1.msra.mxu0 0.0
    %3794 = vmatprep.subr.mxu0 0.0
    %3795 = vmatpush1.msra.mxu0 0.0
    %3796 = vmatprep.subr.mxu0 0.0
    %3797 = vmatpush1.msra.mxu0 %v3759
    %3798 = vmatprep.subr.mxu0 0.0
    %3799 = vmatpush1.msra.mxu0 %v3757
    %3800 = vmatprep.subr.mxu0 0.0
    %3801 = vmatpush2.msra.mxu0 0.0
    %3802 = vmatprep.subr.mxu0 0.0
    %3803 = vmatpush2.msra.mxu0 0.0
    %3804 = vmatprep.subr.mxu0 0.0
    %3805 = vmatpush2.msra.mxu0 0.0
    %3806 = vmatprep.subr.mxu0 0.0
    %3807 = vmatpush2.msra.mxu0 0.0
    %3808 = vmatprep.subr.mxu0 0.0
    %3809 = vmatpush2.msra.mxu0 0.0
    %3810 = vmatprep.subr.mxu0 0.0
    %3811 = vmatpush2.msra.mxu0 0.0
    %3812 = vmatprep.subr.mxu0 0.0
    %3813 = vmatpush2.msra.mxu0 0.0
    %3814 = vmatprep.subr.mxu0 0.0
    %3815 = vmatpush2.msra.mxu0 0.0
    %3816 = vmatprep.subr.mxu0 0.0
    %3817 = vmatpush2.msra.mxu0 0.0
    %3818 = vmatprep.subr.mxu0 0.0
    %3819 = vmatpush2.msra.mxu0 0.0
    %3820 = vmatprep.subr.mxu0 0.0
    %3821 = vmatpush2.msra.mxu0 0.0
    %3822 = vmatprep.subr.mxu0 0.0
    %3823 = vmatpush2.msra.mxu0 0.0
    %3824 = vmatprep.subr.mxu0 0.0
    %3825 = vmatpush2.msra.mxu0 0.0
    %3826 = vmatprep.subr.mxu0 0.0
    %3827 = vmatpush2.msra.mxu0 0.0
    %3828 = vmatprep.subr.mxu0 0.0
    %3829 = vmatpush2.msra.mxu0 0.0
    %3830 = vmatprep.subr.mxu0 0.0
    %3831 = vmatpush2.msra.mxu0 0.0
    %3832 = vmatprep.mubr.f32.mxu0 0.0
    %3833 = vmatmul.mubr.f32.gmra.mxu0 %v3763
    %v3834 = vpop.f32.mrf.mxu0
    %v3835 = vadd.f32 0.0, %v3834
    %v3836 = vpop.f32.mrf.mxu0
    %3837 = vmatprep.mubr.f32.mxu0 0.0
    %3838 = vmatmul.mubr.f32.gmra.mxu0 %v3766
    %v3839 = vpop.f32.mrf.mxu0
    %v3840 = vadd.f32 0.0, %v3839
    %v3841 = vpop.f32.mrf.mxu0
    %3842 = vdwg.mxu0
    %v3844 = vsel %vm392, %v3835, 0
    %v3847 = vsel %vm392, %v3840, 0
    %3849 = vmatprep.subr.mxu0 0.0
    %3850 = vmatpush1.msra.mxu0 0.0
    %3851 = vmatprep.subr.mxu0 0.0
    %3852 = vmatpush1.msra.mxu0 0.0
    %3853 = vmatprep.subr.mxu0 0.0
    %3854 = vmatpush1.msra.mxu0 0.0
    %3855 = vmatprep.subr.mxu0 0.0
    %3856 = vmatpush1.msra.mxu0 0.0
    %3857 = vmatprep.subr.mxu0 0.0
    %3858 = vmatpush1.msra.mxu0 0.0
    %3859 = vmatprep.subr.mxu0 0.0
    %3860 = vmatpush1.msra.mxu0 0.0
    %3861 = vmatprep.subr.mxu0 0.0
    %3862 = vmatpush1.msra.mxu0 0.0
    %3863 = vmatprep.subr.mxu0 0.0
    %3864 = vmatpush1.msra.mxu0 0.0
    %3865 = vmatprep.subr.mxu0 0.0
    %3866 = vmatpush1.msra.mxu0 0.0
    %3867 = vmatprep.subr.mxu0 0.0
    %3868 = vmatpush1.msra.mxu0 0.0
    %3869 = vmatprep.subr.mxu0 0.0
    %3870 = vmatpush1.msra.mxu0 0.0
    %3871 = vmatprep.subr.mxu0 0.0
    %3872 = vmatpush1.msra.mxu0 0.0
    %3873 = vmatprep.subr.mxu0 0.0
    %3874 = vmatpush1.msra.mxu0 0.0
    %3875 = vmatprep.subr.mxu0 0.0
    %3876 = vmatpush1.msra.mxu0 0.0
    %3877 = vmatprep.subr.mxu0 0.0
    %3878 = vmatpush1.msra.mxu0 %v282
    %3879 = vmatprep.subr.mxu0 0.0
    %3880 = vmatpush1.msra.mxu0 %v281
    %3881 = vmatprep.subr.mxu0 0.0
    %3882 = vmatpush2.msra.mxu0 0.0
    %3883 = vmatprep.subr.mxu0 0.0
    %3884 = vmatpush2.msra.mxu0 0.0
    %3885 = vmatprep.subr.mxu0 0.0
    %3886 = vmatpush2.msra.mxu0 0.0
    %3887 = vmatprep.subr.mxu0 0.0
    %3888 = vmatpush2.msra.mxu0 0.0
    %3889 = vmatprep.subr.mxu0 0.0
    %3890 = vmatpush2.msra.mxu0 0.0
    %3891 = vmatprep.subr.mxu0 0.0
    %3892 = vmatpush2.msra.mxu0 0.0
    %3893 = vmatprep.subr.mxu0 0.0
    %3894 = vmatpush2.msra.mxu0 0.0
    %3895 = vmatprep.subr.mxu0 0.0
    %3896 = vmatpush2.msra.mxu0 0.0
    %3897 = vmatprep.subr.mxu0 0.0
    %3898 = vmatpush2.msra.mxu0 0.0
    %3899 = vmatprep.subr.mxu0 0.0
    %3900 = vmatpush2.msra.mxu0 0.0
    %3901 = vmatprep.subr.mxu0 0.0
    %3902 = vmatpush2.msra.mxu0 0.0
    %3903 = vmatprep.subr.mxu0 0.0
    %3904 = vmatpush2.msra.mxu0 0.0
    %3905 = vmatprep.subr.mxu0 0.0
    %3906 = vmatpush2.msra.mxu0 0.0
    %3907 = vmatprep.subr.mxu0 0.0
    %3908 = vmatpush2.msra.mxu0 0.0
    %3909 = vmatprep.subr.mxu0 0.0
    %3910 = vmatpush2.msra.mxu0 0.0
    %3911 = vmatprep.subr.mxu0 0.0
    %3912 = vmatpush2.msra.mxu0 0.0
    %3913 = vmatprep.mubr.f32.mxu0 0.0
    %3914 = vmatmul.mubr.f32.gmra.mxu0 %v3844
    %v3915 = vpop.f32.mrf.mxu0
    %v3916 = vadd.f32 0.0, %v3915
    %v3917 = vpop.f32.mrf.mxu0
    %3918 = vmatprep.mubr.f32.mxu0 0.0
    %3919 = vmatmul.mubr.f32.gmra.mxu0 %v3847
    %v3920 = vpop.f32.mrf.mxu0
    %v3921 = vadd.f32 0.0, %v3920
    %v3922 = vpop.f32.mrf.mxu0
    %3923 = vdwg.mxu0
    %v3925 = vsel %vm392, %v3633, 0
    %v3928 = vsel %vm392, %v3638, 0
    %3930 = vmatprep.subr.mxu0 0.0
    %3931 = vmatpush1.msra.mxu0 0.0
    %3932 = vmatprep.subr.mxu0 0.0
    %3933 = vmatpush1.msra.mxu0 0.0
    %3934 = vmatprep.subr.mxu0 0.0
    %3935 = vmatpush1.msra.mxu0 0.0
    %3936 = vmatprep.subr.mxu0 0.0
    %3937 = vmatpush1.msra.mxu0 0.0
    %3938 = vmatprep.subr.mxu0 0.0
    %3939 = vmatpush1.msra.mxu0 0.0
    %3940 = vmatprep.subr.mxu0 0.0
    %3941 = vmatpush1.msra.mxu0 0.0
    %3942 = vmatprep.subr.mxu0 0.0
    %3943 = vmatpush1.msra.mxu0 0.0
    %3944 = vmatprep.subr.mxu0 0.0
    %3945 = vmatpush1.msra.mxu0 0.0
    %3946 = vmatprep.subr.mxu0 0.0
    %3947 = vmatpush1.msra.mxu0 0.0
    %3948 = vmatprep.subr.mxu0 0.0
    %3949 = vmatpush1.msra.mxu0 0.0
    %3950 = vmatprep.subr.mxu0 0.0
    %3951 = vmatpush1.msra.mxu0 0.0
    %3952 = vmatprep.subr.mxu0 0.0
    %3953 = vmatpush1.msra.mxu0 0.0
    %3954 = vmatprep.subr.mxu0 0.0
    %3955 = vmatpush1.msra.mxu0 0.0
    %3956 = vmatprep.subr.mxu0 0.0
    %3957 = vmatpush1.msra.mxu0 0.0
    %3958 = vmatprep.subr.mxu0 0.0
    %3959 = vmatpush1.msra.mxu0 %v280
    %3960 = vmatprep.subr.mxu0 0.0
    %3961 = vmatpush1.msra.mxu0 %v279
    %3962 = vmatprep.subr.mxu0 0.0
    %3963 = vmatpush2.msra.mxu0 0.0
    %3964 = vmatprep.subr.mxu0 0.0
    %3965 = vmatpush2.msra.mxu0 0.0
    %3966 = vmatprep.subr.mxu0 0.0
    %3967 = vmatpush2.msra.mxu0 0.0
    %3968 = vmatprep.subr.mxu0 0.0
    %3969 = vmatpush2.msra.mxu0 0.0
    %3970 = vmatprep.subr.mxu0 0.0
    %3971 = vmatpush2.msra.mxu0 0.0
    %3972 = vmatprep.subr.mxu0 0.0
    %3973 = vmatpush2.msra.mxu0 0.0
    %3974 = vmatprep.subr.mxu0 0.0
    %3975 = vmatpush2.msra.mxu0 0.0
    %3976 = vmatprep.subr.mxu0 0.0
    %3977 = vmatpush2.msra.mxu0 0.0
    %3978 = vmatprep.subr.mxu0 0.0
    %3979 = vmatpush2.msra.mxu0 0.0
    %3980 = vmatprep.subr.mxu0 0.0
    %3981 = vmatpush2.msra.mxu0 0.0
    %3982 = vmatprep.subr.mxu0 0.0
    %3983 = vmatpush2.msra.mxu0 0.0
    %3984 = vmatprep.subr.mxu0 0.0
    %3985 = vmatpush2.msra.mxu0 0.0
    %3986 = vmatprep.subr.mxu0 0.0
    %3987 = vmatpush2.msra.mxu0 0.0
    %3988 = vmatprep.subr.mxu0 0.0
    %3989 = vmatpush2.msra.mxu0 0.0
    %3990 = vmatprep.subr.mxu0 0.0
    %3991 = vmatpush2.msra.mxu0 0.0
    %3992 = vmatprep.subr.mxu0 0.0
    %3993 = vmatpush2.msra.mxu0 0.0
    %3994 = vmatprep.mubr.f32.mxu0 0.0
    %3995 = vmatmul.mubr.f32.gmra.mxu0 %v3925
    %v3996 = vpop.f32.mrf.mxu0
    %v3997 = vadd.f32 %v3916, %v3996
    %v3998 = vpop.f32.mrf.mxu0
    %3999 = vmatprep.mubr.f32.mxu0 0.0
    %4000 = vmatmul.mubr.f32.gmra.mxu0 %v3928
    %v4001 = vpop.f32.mrf.mxu0
    %v4002 = vadd.f32 %v3921, %v4001
    %v4003 = vpop.f32.mrf.mxu0
    %4004 = vdwg.mxu0
    %v4005 = vadd.f32 %v3997, %v961
    %v4006 = vadd.f32 %v4002, %v961
    %v4007 = vadd.f32 %v3273, %v4005
    %v4008 = vadd.f32 %v3274, %v4006
    %v4009 = vsel %vm198, %v4007, 0.0
    %4010 = vadd.xlane.f32.xlu0 %v4009
    %v4011 = vpop.xlane.xlu0 %4010
    %v4012 = vsel %vm198, %v4008, 0.0
    %4013 = vadd.xlane.f32.xlu0 %v4012
    %v4014 = vpop.xlane.xlu0 %4013
    %v4015 = vmul.f32 %v4011, %v973
    %v4016 = vmul.f32 %v4014, %v973
    %v4017 = vsub.f32 %v4007, %v4015
    %v4018 = vsub.f32 %v4008, %v4016
    %v4019 = vmul.f32 %v4017, %v4017
    %v4020 = vmul.f32 %v4018, %v4018
    %v4021 = vsel %vm198, %v4019, 0.0
    %4022 = vadd.xlane.f32.xlu0 %v4021
    %v4023 = vpop.xlane.xlu0 %4022
    %v4024 = vsel %vm198, %v4020, 0.0
    %4025 = vadd.xlane.f32.xlu0 %v4024
    %v4026 = vpop.xlane.xlu0 %4025
    %v4027 = vmul.f32 %v4023, %v973
    %v4028 = vmul.f32 %v4026, %v973
    %v4029 = vadd.f32 %v4027, 1e-05
    %v4030 = vadd.f32 %v4028, 1e-05
    %v4031 = vrsqrt.pop %v4029
    %v4032 = vrsqrt.pop %v4030
    %v4033 = vmul.f32 %v4017, %v4031
    %v4034 = vmul.f32 %v4018, %v4032
    %v4035 = vmul.f32 %v4033, %v998
    %v4036 = vmul.f32 %v4034, %v998
    %v4037 = vadd.f32 %v4035, %v1006
    %v4038 = vadd.f32 %v4036, %v1006
    %v4040 = vsel %vm198, %v4037, 0
    %v4043 = vsel %vm198, %v4038, 0
    %4045 = vmatprep.subr.mxu0 0.0
    %4046 = vmatpush1.msra.mxu0 0.0
    %4047 = vmatprep.subr.mxu0 0.0
    %4048 = vmatpush1.msra.mxu0 0.0
    %4049 = vmatprep.subr.mxu0 0.0
    %4050 = vmatpush1.msra.mxu0 0.0
    %4051 = vmatprep.subr.mxu0 0.0
    %4052 = vmatpush1.msra.mxu0 0.0
    %4053 = vmatprep.subr.mxu0 0.0
    %4054 = vmatpush1.msra.mxu0 0.0
    %4055 = vmatprep.subr.mxu0 0.0
    %4056 = vmatpush1.msra.mxu0 0.0
    %4057 = vmatprep.subr.mxu0 0.0
    %4058 = vmatpush1.msra.mxu0 0.0
    %4059 = vmatprep.subr.mxu0 0.0
    %4060 = vmatpush1.msra.mxu0 0.0
    %4061 = vmatprep.subr.mxu0 0.0
    %4062 = vmatpush1.msra.mxu0 0.0
    %4063 = vmatprep.subr.mxu0 0.0
    %4064 = vmatpush1.msra.mxu0 0.0
    %4065 = vmatprep.subr.mxu0 0.0
    %4066 = vmatpush1.msra.mxu0 0.0
    %4067 = vmatprep.subr.mxu0 0.0
    %4068 = vmatpush1.msra.mxu0 0.0
    %4069 = vmatprep.subr.mxu0 0.0
    %4070 = vmatpush1.msra.mxu0 %v287
    %4071 = vmatprep.subr.mxu0 0.0
    %4072 = vmatpush1.msra.mxu0 %v286
    %4073 = vmatprep.subr.mxu0 0.0
    %4074 = vmatpush1.msra.mxu0 %v285
    %4075 = vmatprep.subr.mxu0 0.0
    %4076 = vmatpush1.msra.mxu0 %v284
    %4077 = vmatprep.subr.mxu0 0.0
    %4078 = vmatpush2.msra.mxu0 0.0
    %4079 = vmatprep.subr.mxu0 0.0
    %4080 = vmatpush2.msra.mxu0 0.0
    %4081 = vmatprep.subr.mxu0 0.0
    %4082 = vmatpush2.msra.mxu0 0.0
    %4083 = vmatprep.subr.mxu0 0.0
    %4084 = vmatpush2.msra.mxu0 0.0
    %4085 = vmatprep.subr.mxu0 0.0
    %4086 = vmatpush2.msra.mxu0 0.0
    %4087 = vmatprep.subr.mxu0 0.0
    %4088 = vmatpush2.msra.mxu0 0.0
    %4089 = vmatprep.subr.mxu0 0.0
    %4090 = vmatpush2.msra.mxu0 0.0
    %4091 = vmatprep.subr.mxu0 0.0
    %4092 = vmatpush2.msra.mxu0 0.0
    %4093 = vmatprep.subr.mxu0 0.0
    %4094 = vmatpush2.msra.mxu0 0.0
    %4095 = vmatprep.subr.mxu0 0.0
    %4096 = vmatpush2.msra.mxu0 0.0
    %4097 = vmatprep.subr.mxu0 0.0
    %4098 = vmatpush2.msra.mxu0 0.0
    %4099 = vmatprep.subr.mxu0 0.0
    %4100 = vmatpush2.msra.mxu0 0.0
    %4101 = vmatprep.subr.mxu0 0.0
    %4102 = vmatpush2.msra.mxu0 0.0
    %4103 = vmatprep.subr.mxu0 0.0
    %4104 = vmatpush2.msra.mxu0 0.0
    %4105 = vmatprep.subr.mxu0 0.0
    %4106 = vmatpush2.msra.mxu0 0.0
    %4107 = vmatprep.subr.mxu0 0.0
    %4108 = vmatpush2.msra.mxu0 0.0
    %4109 = vmatprep.mubr.f32.mxu0 0.0
    %4110 = vmatmul.mubr.f32.gmra.mxu0 %v4040
    %v4111 = vpop.f32.mrf.mxu0
    %v4112 = vadd.f32 %v1014, %v4111
    %v4113 = vpop.f32.mrf.mxu0
    %4114 = vmatprep.mubr.f32.mxu0 0.0
    %4115 = vmatmul.mubr.f32.gmra.mxu0 %v4043
    %v4116 = vpop.f32.mrf.mxu0
    %v4117 = vadd.f32 %v1014, %v4116
    %v4118 = vpop.f32.mrf.mxu0
    %4119 = vdwg.mxu0
    %v4120 = vmax.f32 %v4112, 0.0
    %v4121 = vmax.f32 %v4117, 0.0
    %v4123 = vsel %vm198, %v4120, 0
    %v4126 = vsel %vm198, %v4121, 0
    %4128 = vmatprep.subr.mxu0 0.0
    %4129 = vmatpush1.msra.mxu0 0.0
    %4130 = vmatprep.subr.mxu0 0.0
    %4131 = vmatpush1.msra.mxu0 0.0
    %4132 = vmatprep.subr.mxu0 0.0
    %4133 = vmatpush1.msra.mxu0 0.0
    %4134 = vmatprep.subr.mxu0 0.0
    %4135 = vmatpush1.msra.mxu0 0.0
    %4136 = vmatprep.subr.mxu0 0.0
    %4137 = vmatpush1.msra.mxu0 0.0
    %4138 = vmatprep.subr.mxu0 0.0
    %4139 = vmatpush1.msra.mxu0 0.0
    %4140 = vmatprep.subr.mxu0 0.0
    %4141 = vmatpush1.msra.mxu0 0.0
    %4142 = vmatprep.subr.mxu0 0.0
    %4143 = vmatpush1.msra.mxu0 0.0
    %4144 = vmatprep.subr.mxu0 0.0
    %4145 = vmatpush1.msra.mxu0 0.0
    %4146 = vmatprep.subr.mxu0 0.0
    %4147 = vmatpush1.msra.mxu0 0.0
    %4148 = vmatprep.subr.mxu0 0.0
    %4149 = vmatpush1.msra.mxu0 0.0
    %4150 = vmatprep.subr.mxu0 0.0
    %4151 = vmatpush1.msra.mxu0 0.0
    %4152 = vmatprep.subr.mxu0 0.0
    %4153 = vmatpush1.msra.mxu0 %v292
    %4154 = vmatprep.subr.mxu0 0.0
    %4155 = vmatpush1.msra.mxu0 %v291
    %4156 = vmatprep.subr.mxu0 0.0
    %4157 = vmatpush1.msra.mxu0 %v290
    %4158 = vmatprep.subr.mxu0 0.0
    %4159 = vmatpush1.msra.mxu0 %v289
    %4160 = vmatprep.subr.mxu0 0.0
    %4161 = vmatpush2.msra.mxu0 0.0
    %4162 = vmatprep.subr.mxu0 0.0
    %4163 = vmatpush2.msra.mxu0 0.0
    %4164 = vmatprep.subr.mxu0 0.0
    %4165 = vmatpush2.msra.mxu0 0.0
    %4166 = vmatprep.subr.mxu0 0.0
    %4167 = vmatpush2.msra.mxu0 0.0
    %4168 = vmatprep.subr.mxu0 0.0
    %4169 = vmatpush2.msra.mxu0 0.0
    %4170 = vmatprep.subr.mxu0 0.0
    %4171 = vmatpush2.msra.mxu0 0.0
    %4172 = vmatprep.subr.mxu0 0.0
    %4173 = vmatpush2.msra.mxu0 0.0
    %4174 = vmatprep.subr.mxu0 0.0
    %4175 = vmatpush2.msra.mxu0 0.0
    %4176 = vmatprep.subr.mxu0 0.0
    %4177 = vmatpush2.msra.mxu0 0.0
    %4178 = vmatprep.subr.mxu0 0.0
    %4179 = vmatpush2.msra.mxu0 0.0
    %4180 = vmatprep.subr.mxu0 0.0
    %4181 = vmatpush2.msra.mxu0 0.0
    %4182 = vmatprep.subr.mxu0 0.0
    %4183 = vmatpush2.msra.mxu0 0.0
    %4184 = vmatprep.subr.mxu0 0.0
    %4185 = vmatpush2.msra.mxu0 0.0
    %4186 = vmatprep.subr.mxu0 0.0
    %4187 = vmatpush2.msra.mxu0 0.0
    %4188 = vmatprep.subr.mxu0 0.0
    %4189 = vmatpush2.msra.mxu0 0.0
    %4190 = vmatprep.subr.mxu0 0.0
    %4191 = vmatpush2.msra.mxu0 0.0
    %4192 = vmatprep.mubr.f32.mxu0 0.0
    %4193 = vmatmul.mubr.f32.gmra.mxu0 %v4123
    %v4194 = vpop.f32.mrf.mxu0
    %v4195 = vadd.f32 %v1103, %v4194
    %v4196 = vpop.f32.mrf.mxu0
    %4197 = vmatprep.mubr.f32.mxu0 0.0
    %4198 = vmatmul.mubr.f32.gmra.mxu0 %v4126
    %v4199 = vpop.f32.mrf.mxu0
    %v4200 = vadd.f32 %v1103, %v4199
    %v4201 = vpop.f32.mrf.mxu0
    %4202 = vdwg.mxu0
    %v4203 = vadd.f32 %v4037, %v4195
    %v4204 = vadd.f32 %v4038, %v4200
    %v4205 = vsel %vm198, %v4203, 0.0
    %4206 = vadd.xlane.f32.xlu0 %v4205
    %v4207 = vpop.xlane.xlu0 %4206
    %v4208 = vsel %vm198, %v4204, 0.0
    %4209 = vadd.xlane.f32.xlu0 %v4208
    %v4210 = vpop.xlane.xlu0 %4209
    %v4211 = vmul.f32 %v4207, %v973
    %v4212 = vmul.f32 %v4210, %v973
    %v4213 = vsub.f32 %v4203, %v4211
    %v4214 = vsub.f32 %v4204, %v4212
    %v4215 = vmul.f32 %v4213, %v4213
    %v4216 = vmul.f32 %v4214, %v4214
    %v4217 = vsel %vm198, %v4215, 0.0
    %4218 = vadd.xlane.f32.xlu0 %v4217
    %v4219 = vpop.xlane.xlu0 %4218
    %v4220 = vsel %vm198, %v4216, 0.0
    %4221 = vadd.xlane.f32.xlu0 %v4220
    %v4222 = vpop.xlane.xlu0 %4221
    %v4223 = vmul.f32 %v4219, %v973
    %v4224 = vmul.f32 %v4222, %v973
    %v4225 = vadd.f32 %v4223, 1e-05
    %v4226 = vadd.f32 %v4224, 1e-05
    %v4227 = vrsqrt.pop %v4225
    %v4228 = vrsqrt.pop %v4226
    %v4229 = vmul.f32 %v4213, %v4227
    %v4230 = vmul.f32 %v4214, %v4228
    %v4231 = vmul.f32 %v4229, %v1218
    %v4232 = vmul.f32 %v4230, %v1218
    %v4233 = vadd.f32 %v4231, %v1226
    %v4234 = vadd.f32 %v4232, %v1226
    %v4235 = vmul.f32 %v1230, %v4233
    %v4236 = vmul.f32 %v1230, %v4234
    %v4237 = vmul.f32 %v1234, %v3273
    %v4238 = vmul.f32 %v1234, %v3274
    %v4239 = vadd.f32 %v4235, %v4237
    %v4240 = vadd.f32 %v4236, %v4238
    %v4241 = vmul.f32 %v190, %v3267
    %v4242 = vmul.f32 %v191, %v3268
    %v4243 = vlaneseq
    %v4244 = vshrl.u32 %v4243, 7
    %v4245 = vsub.s32 0, %v4244
    %v4246 = vrot.slane %v3352, %v4245
    %v4247 = vmul.f32 %v4241, %v4246
    %v4248 = vmul.f32 %v4242, %v4246
    %v4249 = vsel %vm392, %v4247, 0.0
    %4250 = vadd.xlane.f32.xlu0 %v4249
    %v4251 = vpop.xlane.xlu0 %4250
    %v4252 = vsel %vm392, %v4248, 0.0
    %4253 = vadd.xlane.f32.xlu0 %v4252
    %v4254 = vpop.xlane.xlu0 %4253
    %v4255 = vadd.f32 %v4251, 1.0
    %v4256 = vadd.f32 %v4254, 1.0
    %v4257 = vrsqrt.pop %v4255
    %v4258 = vrsqrt.pop %v4256
    %s4259 = scalar_lea.vmem %s17, 64
    %v4260 = vld [vmem:[%s4259] sm:$0xff]
    %v4261 = vld [vmem:[%s4259 + $0x8] sm:$0xff]
    %v4262 = vld [vmem:[%s4259 + $0x10] sm:$0xff]
    %v4263 = vld [vmem:[%s4259 + $0x18] sm:$0xff]
    %v4265 = vsel %vm198, %v4239, 0
    %v4268 = vsel %vm198, %v4240, 0
    %4270 = vmatprep.subr.mxu0 0.0
    %4271 = vmatpush1.msra.mxu0 0.0
    %4272 = vmatprep.subr.mxu0 0.0
    %4273 = vmatpush1.msra.mxu0 0.0
    %4274 = vmatprep.subr.mxu0 0.0
    %4275 = vmatpush1.msra.mxu0 0.0
    %4276 = vmatprep.subr.mxu0 0.0
    %4277 = vmatpush1.msra.mxu0 0.0
    %4278 = vmatprep.subr.mxu0 0.0
    %4279 = vmatpush1.msra.mxu0 0.0
    %4280 = vmatprep.subr.mxu0 0.0
    %4281 = vmatpush1.msra.mxu0 0.0
    %4282 = vmatprep.subr.mxu0 0.0
    %4283 = vmatpush1.msra.mxu0 0.0
    %4284 = vmatprep.subr.mxu0 0.0
    %4285 = vmatpush1.msra.mxu0 0.0
    %4286 = vmatprep.subr.mxu0 0.0
    %4287 = vmatpush1.msra.mxu0 0.0
    %4288 = vmatprep.subr.mxu0 0.0
    %4289 = vmatpush1.msra.mxu0 0.0
    %4290 = vmatprep.subr.mxu0 0.0
    %4291 = vmatpush1.msra.mxu0 0.0
    %4292 = vmatprep.subr.mxu0 0.0
    %4293 = vmatpush1.msra.mxu0 0.0
    %4294 = vmatprep.subr.mxu0 0.0
    %4295 = vmatpush1.msra.mxu0 %v4263
    %4296 = vmatprep.subr.mxu0 0.0
    %4297 = vmatpush1.msra.mxu0 %v4262
    %4298 = vmatprep.subr.mxu0 0.0
    %4299 = vmatpush1.msra.mxu0 %v4261
    %4300 = vmatprep.subr.mxu0 0.0
    %4301 = vmatpush1.msra.mxu0 %v4260
    %4302 = vmatprep.subr.mxu0 0.0
    %4303 = vmatpush2.msra.mxu0 0.0
    %4304 = vmatprep.subr.mxu0 0.0
    %4305 = vmatpush2.msra.mxu0 0.0
    %4306 = vmatprep.subr.mxu0 0.0
    %4307 = vmatpush2.msra.mxu0 0.0
    %4308 = vmatprep.subr.mxu0 0.0
    %4309 = vmatpush2.msra.mxu0 0.0
    %4310 = vmatprep.subr.mxu0 0.0
    %4311 = vmatpush2.msra.mxu0 0.0
    %4312 = vmatprep.subr.mxu0 0.0
    %4313 = vmatpush2.msra.mxu0 0.0
    %4314 = vmatprep.subr.mxu0 0.0
    %4315 = vmatpush2.msra.mxu0 0.0
    %4316 = vmatprep.subr.mxu0 0.0
    %4317 = vmatpush2.msra.mxu0 0.0
    %4318 = vmatprep.subr.mxu0 0.0
    %4319 = vmatpush2.msra.mxu0 0.0
    %4320 = vmatprep.subr.mxu0 0.0
    %4321 = vmatpush2.msra.mxu0 0.0
    %4322 = vmatprep.subr.mxu0 0.0
    %4323 = vmatpush2.msra.mxu0 0.0
    %4324 = vmatprep.subr.mxu0 0.0
    %4325 = vmatpush2.msra.mxu0 0.0
    %4326 = vmatprep.subr.mxu0 0.0
    %4327 = vmatpush2.msra.mxu0 0.0
    %4328 = vmatprep.subr.mxu0 0.0
    %4329 = vmatpush2.msra.mxu0 0.0
    %4330 = vmatprep.subr.mxu0 0.0
    %4331 = vmatpush2.msra.mxu0 0.0
    %4332 = vmatprep.subr.mxu0 0.0
    %4333 = vmatpush2.msra.mxu0 0.0
    %4334 = vmatprep.mubr.f32.mxu0 0.0
    %4335 = vmatmul.mubr.f32.gmra.mxu0 %v4265
    %v4336 = vpop.f32.mrf.mxu0
    %v4337 = vadd.f32 0.0, %v4336
    %v4338 = vpop.f32.mrf.mxu0
    %4339 = vmatprep.mubr.f32.mxu0 0.0
    %4340 = vmatmul.mubr.f32.gmra.mxu0 %v4268
    %v4341 = vpop.f32.mrf.mxu0
    %v4342 = vadd.f32 0.0, %v4341
    %v4343 = vpop.f32.mrf.mxu0
    %4344 = vdwg.mxu0
    %v4345 = vmul.f32 %v4257, %v4337
    %v4346 = vmul.f32 %v4258, %v4342
    %v4348 = vsel %vm392, %v4247, 0
    %v4351 = vsel %vm392, %v4248, 0
    %4353 = vmatprep.subr.mxu0 0.0
    %4354 = vmatpush1.msra.mxu0 0.0
    %4355 = vmatprep.subr.mxu0 0.0
    %4356 = vmatpush1.msra.mxu0 0.0
    %4357 = vmatprep.subr.mxu0 0.0
    %4358 = vmatpush1.msra.mxu0 0.0
    %4359 = vmatprep.subr.mxu0 0.0
    %4360 = vmatpush1.msra.mxu0 0.0
    %4361 = vmatprep.subr.mxu0 0.0
    %4362 = vmatpush1.msra.mxu0 0.0
    %4363 = vmatprep.subr.mxu0 0.0
    %4364 = vmatpush1.msra.mxu0 0.0
    %4365 = vmatprep.subr.mxu0 0.0
    %4366 = vmatpush1.msra.mxu0 0.0
    %4367 = vmatprep.subr.mxu0 0.0
    %4368 = vmatpush1.msra.mxu0 0.0
    %4369 = vmatprep.subr.mxu0 0.0
    %4370 = vmatpush1.msra.mxu0 0.0
    %4371 = vmatprep.subr.mxu0 0.0
    %4372 = vmatpush1.msra.mxu0 0.0
    %4373 = vmatprep.subr.mxu0 0.0
    %4374 = vmatpush1.msra.mxu0 0.0
    %4375 = vmatprep.subr.mxu0 0.0
    %4376 = vmatpush1.msra.mxu0 0.0
    %4377 = vmatprep.subr.mxu0 0.0
    %4378 = vmatpush1.msra.mxu0 0.0
    %4379 = vmatprep.subr.mxu0 0.0
    %4380 = vmatpush1.msra.mxu0 0.0
    %4381 = vmatprep.subr.mxu0 0.0
    %4382 = vmatpush1.msra.mxu0 %v4346
    %4383 = vmatprep.subr.mxu0 0.0
    %4384 = vmatpush1.msra.mxu0 %v4345
    %4385 = vmatprep.subr.mxu0 0.0
    %4386 = vmatpush2.msra.mxu0 0.0
    %4387 = vmatprep.subr.mxu0 0.0
    %4388 = vmatpush2.msra.mxu0 0.0
    %4389 = vmatprep.subr.mxu0 0.0
    %4390 = vmatpush2.msra.mxu0 0.0
    %4391 = vmatprep.subr.mxu0 0.0
    %4392 = vmatpush2.msra.mxu0 0.0
    %4393 = vmatprep.subr.mxu0 0.0
    %4394 = vmatpush2.msra.mxu0 0.0
    %4395 = vmatprep.subr.mxu0 0.0
    %4396 = vmatpush2.msra.mxu0 0.0
    %4397 = vmatprep.subr.mxu0 0.0
    %4398 = vmatpush2.msra.mxu0 0.0
    %4399 = vmatprep.subr.mxu0 0.0
    %4400 = vmatpush2.msra.mxu0 0.0
    %4401 = vmatprep.subr.mxu0 0.0
    %4402 = vmatpush2.msra.mxu0 0.0
    %4403 = vmatprep.subr.mxu0 0.0
    %4404 = vmatpush2.msra.mxu0 0.0
    %4405 = vmatprep.subr.mxu0 0.0
    %4406 = vmatpush2.msra.mxu0 0.0
    %4407 = vmatprep.subr.mxu0 0.0
    %4408 = vmatpush2.msra.mxu0 0.0
    %4409 = vmatprep.subr.mxu0 0.0
    %4410 = vmatpush2.msra.mxu0 0.0
    %4411 = vmatprep.subr.mxu0 0.0
    %4412 = vmatpush2.msra.mxu0 0.0
    %4413 = vmatprep.subr.mxu0 0.0
    %4414 = vmatpush2.msra.mxu0 0.0
    %4415 = vmatprep.subr.mxu0 0.0
    %4416 = vmatpush2.msra.mxu0 0.0
    %4417 = vmatprep.mubr.f32.mxu0 0.0
    %4418 = vmatmul.mubr.f32.gmra.mxu0 %v4348
    %v4419 = vpop.f32.mrf.mxu0
    %v4420 = vadd.f32 0.0, %v4419
    %v4421 = vpop.f32.mrf.mxu0
    %4422 = vmatprep.mubr.f32.mxu0 0.0
    %4423 = vmatmul.mubr.f32.gmra.mxu0 %v4351
    %v4424 = vpop.f32.mrf.mxu0
    %v4425 = vadd.f32 0.0, %v4424
    %v4426 = vpop.f32.mrf.mxu0
    %4427 = vdwg.mxu0
    %v4428 = vmul.f32 %v4257, %v4420
    %v4429 = vmul.f32 %v4258, %v4425
    %v4430 = vmul.f32 %v4257, %v4257
    %v4431 = vmul.f32 %v4258, %v4258
    %v4432 = vmul.f32 %v4430, %v4337
    %v4433 = vmul.f32 %v4431, %v4342
    %v4434 = vadd.f32 %v4428, %v4432
    %v4435 = vadd.f32 %v4429, %v4433
    %s4436 = scalar_lea.vmem %s18, 2
    %v4437 = vld [vmem:[%s4436] sm:$0x1]
    %v4439 = vlaneseq
    %v4440 = vshrl.u32 %v4439, 7
    %v4441 = vsub.s32 0, %v4440
    %v4442 = vrot.slane %v4437, %v4441
    %v4444 = vadd.f32 %v4434, %v4442
    %v4445 = vadd.f32 %v4435, %v4442
    %s4446 = scalar_lea.vmem %s19, 64
    %v4447 = vld [vmem:[%s4446] sm:$0xff]
    %v4448 = vld [vmem:[%s4446 + $0x8] sm:$0xff]
    %v4449 = vld [vmem:[%s4446 + $0x10] sm:$0xff]
    %v4450 = vld [vmem:[%s4446 + $0x18] sm:$0xff]
    %s4451 = scalar_lea.vmem %s20, 2
    %v4452 = vld [vmem:[%s4451] sm:$0x1]
    %v4454 = vlaneseq
    %v4455 = vshrl.u32 %v4454, 7
    %v4456 = vsub.s32 0, %v4455
    %v4457 = vrot.slane %v4452, %v4456
    %v4460 = vsel %vm198, %v4444, 0
    %v4463 = vsel %vm198, %v4445, 0
    %4465 = vmatprep.subr.mxu0 0.0
    %4466 = vmatpush1.msra.mxu0 0.0
    %4467 = vmatprep.subr.mxu0 0.0
    %4468 = vmatpush1.msra.mxu0 0.0
    %4469 = vmatprep.subr.mxu0 0.0
    %4470 = vmatpush1.msra.mxu0 0.0
    %4471 = vmatprep.subr.mxu0 0.0
    %4472 = vmatpush1.msra.mxu0 0.0
    %4473 = vmatprep.subr.mxu0 0.0
    %4474 = vmatpush1.msra.mxu0 0.0
    %4475 = vmatprep.subr.mxu0 0.0
    %4476 = vmatpush1.msra.mxu0 0.0
    %4477 = vmatprep.subr.mxu0 0.0
    %4478 = vmatpush1.msra.mxu0 0.0
    %4479 = vmatprep.subr.mxu0 0.0
    %4480 = vmatpush1.msra.mxu0 0.0
    %4481 = vmatprep.subr.mxu0 0.0
    %4482 = vmatpush1.msra.mxu0 0.0
    %4483 = vmatprep.subr.mxu0 0.0
    %4484 = vmatpush1.msra.mxu0 0.0
    %4485 = vmatprep.subr.mxu0 0.0
    %4486 = vmatpush1.msra.mxu0 0.0
    %4487 = vmatprep.subr.mxu0 0.0
    %4488 = vmatpush1.msra.mxu0 0.0
    %4489 = vmatprep.subr.mxu0 0.0
    %4490 = vmatpush1.msra.mxu0 %v4450
    %4491 = vmatprep.subr.mxu0 0.0
    %4492 = vmatpush1.msra.mxu0 %v4449
    %4493 = vmatprep.subr.mxu0 0.0
    %4494 = vmatpush1.msra.mxu0 %v4448
    %4495 = vmatprep.subr.mxu0 0.0
    %4496 = vmatpush1.msra.mxu0 %v4447
    %4497 = vmatprep.subr.mxu0 0.0
    %4498 = vmatpush2.msra.mxu0 0.0
    %4499 = vmatprep.subr.mxu0 0.0
    %4500 = vmatpush2.msra.mxu0 0.0
    %4501 = vmatprep.subr.mxu0 0.0
    %4502 = vmatpush2.msra.mxu0 0.0
    %4503 = vmatprep.subr.mxu0 0.0
    %4504 = vmatpush2.msra.mxu0 0.0
    %4505 = vmatprep.subr.mxu0 0.0
    %4506 = vmatpush2.msra.mxu0 0.0
    %4507 = vmatprep.subr.mxu0 0.0
    %4508 = vmatpush2.msra.mxu0 0.0
    %4509 = vmatprep.subr.mxu0 0.0
    %4510 = vmatpush2.msra.mxu0 0.0
    %4511 = vmatprep.subr.mxu0 0.0
    %4512 = vmatpush2.msra.mxu0 0.0
    %4513 = vmatprep.subr.mxu0 0.0
    %4514 = vmatpush2.msra.mxu0 0.0
    %4515 = vmatprep.subr.mxu0 0.0
    %4516 = vmatpush2.msra.mxu0 0.0
    %4517 = vmatprep.subr.mxu0 0.0
    %4518 = vmatpush2.msra.mxu0 0.0
    %4519 = vmatprep.subr.mxu0 0.0
    %4520 = vmatpush2.msra.mxu0 0.0
    %4521 = vmatprep.subr.mxu0 0.0
    %4522 = vmatpush2.msra.mxu0 0.0
    %4523 = vmatprep.subr.mxu0 0.0
    %4524 = vmatpush2.msra.mxu0 0.0
    %4525 = vmatprep.subr.mxu0 0.0
    %4526 = vmatpush2.msra.mxu0 0.0
    %4527 = vmatprep.subr.mxu0 0.0
    %4528 = vmatpush2.msra.mxu0 0.0
    %4529 = vmatprep.mubr.f32.mxu0 0.0
    %4530 = vmatmul.mubr.f32.gmra.mxu0 %v4460
    %v4531 = vpop.f32.mrf.mxu0
    %v4532 = vadd.f32 %v4457, %v4531
    %v4533 = vpop.f32.mrf.mxu0
    %4534 = vmatprep.mubr.f32.mxu0 0.0
    %4535 = vmatmul.mubr.f32.gmra.mxu0 %v4463
    %v4536 = vpop.f32.mrf.mxu0
    %v4537 = vadd.f32 %v4457, %v4536
    %v4538 = vpop.f32.mrf.mxu0
    %4539 = vdwg.mxu0
    %v4540 = vmax.f32 %v4532, 0.0
    %v4541 = vmax.f32 %v4537, 0.0
    %s4542 = scalar_lea.vmem %s21, 2
    %v4543 = vld [vmem:[%s4542] sm:$0x1]
    %v4545 = vlaneseq
    %v4546 = vshrl.u32 %v4545, 7
    %v4547 = vsub.s32 0, %v4546
    %v4548 = vrot.slane %v4543, %v4547
    %v4550 = vmul.f32 %v4540, %v4548
    %v4551 = vmul.f32 %v4541, %v4548
    %s4552 = scalar_lea.vmem %s22, 2
    %v4553 = vld [vmem:[%s4552] sm:$0x1]
    %v4555 = vlaneseq
    %v4556 = vshrl.u32 %v4555, 7
    %v4557 = vsub.s32 0, %v4556
    %v4558 = vrot.slane %v4553, %v4557
    %v4560 = vadd.f32 %v4550, %v4558
    %v4561 = vadd.f32 %v4551, %v4558
    %4562 = vmatprep.subr.mxu0 0.0
    %4563 = vmatpush1.msra.mxu0 0.0
    %4564 = vmatprep.subr.mxu0 0.0
    %4565 = vmatpush1.msra.mxu0 0.0
    %4566 = vmatprep.subr.mxu0 0.0
    %4567 = vmatpush1.msra.mxu0 0.0
    %4568 = vmatprep.subr.mxu0 0.0
    %4569 = vmatpush1.msra.mxu0 0.0
    %4570 = vmatprep.subr.mxu0 0.0
    %4571 = vmatpush1.msra.mxu0 0.0
    %4572 = vmatprep.subr.mxu0 0.0
    %4573 = vmatpush1.msra.mxu0 0.0
    %4574 = vmatprep.subr.mxu0 0.0
    %4575 = vmatpush1.msra.mxu0 0.0
    %4576 = vmatprep.subr.mxu0 0.0
    %4577 = vmatpush1.msra.mxu0 0.0
    %4578 = vmatprep.subr.mxu0 0.0
    %4579 = vmatpush1.msra.mxu0 0.0
    %4580 = vmatprep.subr.mxu0 0.0
    %4581 = vmatpush1.msra.mxu0 0.0
    %4582 = vmatprep.subr.mxu0 0.0
    %4583 = vmatpush1.msra.mxu0 0.0
    %4584 = vmatprep.subr.mxu0 0.0
    %4585 = vmatpush1.msra.mxu0 0.0
    %4586 = vmatprep.subr.mxu0 0.0
    %4587 = vmatpush1.msra.mxu0 0.0
    %4588 = vmatprep.subr.mxu0 0.0
    %4589 = vmatpush1.msra.mxu0 0.0
    %4590 = vmatprep.subr.mxu0 0.0
    %4591 = vmatpush1.msra.mxu0 %v4561
    %4592 = vmatprep.subr.mxu0 0.0
    %4593 = vmatpush1.msra.mxu0 %v4560
    %4594 = vmatprep.subr.mxu0 0.0
    %4595 = vmatpush2.msra.mxu0 0.0
    %4596 = vmatprep.subr.mxu0 0.0
    %4597 = vmatpush2.msra.mxu0 0.0
    %4598 = vmatprep.subr.mxu0 0.0
    %4599 = vmatpush2.msra.mxu0 0.0
    %4600 = vmatprep.subr.mxu0 0.0
    %4601 = vmatpush2.msra.mxu0 0.0
    %4602 = vmatprep.subr.mxu0 0.0
    %4603 = vmatpush2.msra.mxu0 0.0
    %4604 = vmatprep.subr.mxu0 0.0
    %4605 = vmatpush2.msra.mxu0 0.0
    %4606 = vmatprep.subr.mxu0 0.0
    %4607 = vmatpush2.msra.mxu0 0.0
    %4608 = vmatprep.subr.mxu0 0.0
    %4609 = vmatpush2.msra.mxu0 0.0
    %4610 = vmatprep.subr.mxu0 0.0
    %4611 = vmatpush2.msra.mxu0 0.0
    %4612 = vmatprep.subr.mxu0 0.0
    %4613 = vmatpush2.msra.mxu0 0.0
    %4614 = vmatprep.subr.mxu0 0.0
    %4615 = vmatpush2.msra.mxu0 0.0
    %4616 = vmatprep.subr.mxu0 0.0
    %4617 = vmatpush2.msra.mxu0 0.0
    %4618 = vmatprep.subr.mxu0 0.0
    %4619 = vmatpush2.msra.mxu0 0.0
    %4620 = vmatprep.subr.mxu0 0.0
    %4621 = vmatpush2.msra.mxu0 0.0
    %4622 = vmatprep.subr.mxu0 0.0
    %4623 = vmatpush2.msra.mxu0 0.0
    %4624 = vmatprep.subr.mxu0 0.0
    %4625 = vmatpush2.msra.mxu0 0.0
    %4626 = vmatprep.mubr.f32.mxu0 0.0
    %4627 = vmatmul.mubr.f32.gmra.mxu0 %v4348
    %v4628 = vpop.f32.mrf.mxu0
    %v4629 = vadd.f32 0.0, %v4628
    %v4630 = vpop.f32.mrf.mxu0
    %4631 = vmatprep.mubr.f32.mxu0 0.0
    %4632 = vmatmul.mubr.f32.gmra.mxu0 %v4351
    %v4633 = vpop.f32.mrf.mxu0
    %v4634 = vadd.f32 0.0, %v4633
    %v4635 = vpop.f32.mrf.mxu0
    %4636 = vdwg.mxu0
    %s4637 = scalar_lea.vmem %s23, 2
    %v4638 = vld [vmem:[%s4637] sm:$0x1]
    %v4640 = vlaneseq
    %v4641 = vshrl.u32 %v4640, 7
    %v4642 = vsub.s32 0, %v4641
    %v4643 = vrot.slane %v4638, %v4642
    %v4645 = vmul.f32 %v4629, %v4643
    %v4646 = vmul.f32 %v4634, %v4643
    %s4647 = scalar_lea.vmem %s24, 2
    %v4648 = vld [vmem:[%s4647] sm:$0x1]
    %v4650 = vlaneseq
    %v4651 = vshrl.u32 %v4650, 7
    %v4652 = vsub.s32 0, %v4651
    %v4653 = vrot.slane %v4648, %v4652
    %v4655 = vmul.f32 %v4560, %v4653
    %v4656 = vmul.f32 %v4561, %v4653
    %v4657 = vadd.f32 %v4645, %v4655
    %v4658 = vadd.f32 %v4646, %v4656
    %v4659 = vsel %vm198, %v4657, 0.0
    %4660 = vadd.xlane.f32.xlu0 %v4659
    %v4661 = vpop.xlane.xlu0 %4660
    %v4662 = vsel %vm198, %v4658, 0.0
    %4663 = vadd.xlane.f32.xlu0 %v4662
    %v4664 = vpop.xlane.xlu0 %4663
    %s4665 = sld [smem:[#allocation3 + $0x2]]
    %v4666 = vstv %s4665
    %v4667 = vadd.f32 %v4661, %v4666
    %v4668 = vadd.f32 %v4664, %v4666
    %v4670 = vsel %vm198, %v4661, 0
    %v4673 = vsel %vm198, %v4664, 0
    %4675 = vmatprep.subr.mxu0 0.0
    %4676 = vmatpush1.xpose.msra.mxu0 0.0
    %4677 = vmatprep.subr.mxu0 0.0
    %4678 = vmatpush1.xpose.msra.mxu0 0.0
    %4679 = vmatprep.subr.mxu0 0.0
    %4680 = vmatpush1.xpose.msra.mxu0 0.0
    %4681 = vmatprep.subr.mxu0 0.0
    %4682 = vmatpush1.xpose.msra.mxu0 0.0
    %4683 = vmatprep.subr.mxu0 0.0
    %4684 = vmatpush1.xpose.msra.mxu0 0.0
    %4685 = vmatprep.subr.mxu0 0.0
    %4686 = vmatpush1.xpose.msra.mxu0 0.0
    %4687 = vmatprep.subr.mxu0 0.0
    %4688 = vmatpush1.xpose.msra.mxu0 0.0
    %4689 = vmatprep.subr.mxu0 0.0
    %4690 = vmatpush1.xpose.msra.mxu0 0.0
    %4691 = vmatprep.subr.mxu0 0.0
    %4692 = vmatpush1.xpose.msra.mxu0 0.0
    %4693 = vmatprep.subr.mxu0 0.0
    %4694 = vmatpush1.xpose.msra.mxu0 0.0
    %4695 = vmatprep.subr.mxu0 0.0
    %4696 = vmatpush1.xpose.msra.mxu0 0.0
    %4697 = vmatprep.subr.mxu0 0.0
    %4698 = vmatpush1.xpose.msra.mxu0 0.0
    %4699 = vmatprep.subr.mxu0 0.0
    %4700 = vmatpush1.xpose.msra.mxu0 0.0
    %4701 = vmatprep.subr.mxu0 0.0
    %4702 = vmatpush1.xpose.msra.mxu0 0.0
    %4703 = vmatprep.subr.mxu0 0.0
    %4704 = vmatpush1.xpose.msra.mxu0 %v4673
    %4705 = vmatprep.subr.mxu0 0.0
    %4706 = vmatpush1.xpose.msra.mxu0 %v4670
    %4707 = vmatprep.subr.mxu0 0.0
    %4708 = vmatpush2.xpose.msra.mxu0 0.0
    %4709 = vmatprep.subr.mxu0 0.0
    %4710 = vmatpush2.xpose.msra.mxu0 0.0
    %4711 = vmatprep.subr.mxu0 0.0
    %4712 = vmatpush2.xpose.msra.mxu0 0.0
    %4713 = vmatprep.subr.mxu0 0.0
    %4714 = vmatpush2.xpose.msra.mxu0 0.0
    %4715 = vmatprep.subr.mxu0 0.0
    %4716 = vmatpush2.xpose.msra.mxu0 0.0
    %4717 = vmatprep.subr.mxu0 0.0
    %4718 = vmatpush2.xpose.msra.mxu0 0.0
    %4719 = vmatprep.subr.mxu0 0.0
    %4720 = vmatpush2.xpose.msra.mxu0 0.0
    %4721 = vmatprep.subr.mxu0 0.0
    %4722 = vmatpush2.xpose.msra.mxu0 0.0
    %4723 = vmatprep.subr.mxu0 0.0
    %4724 = vmatpush2.xpose.msra.mxu0 0.0
    %4725 = vmatprep.subr.mxu0 0.0
    %4726 = vmatpush2.xpose.msra.mxu0 0.0
    %4727 = vmatprep.subr.mxu0 0.0
    %4728 = vmatpush2.xpose.msra.mxu0 0.0
    %4729 = vmatprep.subr.mxu0 0.0
    %4730 = vmatpush2.xpose.msra.mxu0 0.0
    %4731 = vmatprep.subr.mxu0 0.0
    %4732 = vmatpush2.xpose.msra.mxu0 0.0
    %4733 = vmatprep.subr.mxu0 0.0
    %4734 = vmatpush2.xpose.msra.mxu0 0.0
    %4735 = vmatprep.subr.mxu0 0.0
    %4736 = vmatpush2.xpose.msra.mxu0 0.0
    %4737 = vmatprep.subr.mxu0 0.0
    %4738 = vmatpush2.xpose.msra.mxu0 0.0
    %4739 = vmatprep.mubr.f32.mxu0 0.0
    %4740 = vmatmul.mubr.f32.gmra.mxu0 %v200
    %v4741 = vpop.f32.mrf.mxu0
    %v4742 = vadd.f32 0.0, %v4741
    %v4743 = vpop.f32.mrf.mxu0
    %4744 = vdwg.mxu0
    %v4745 = vmul.f32 %v4742, 0.03125
    %v4746 = vlaneseq
    %v4747 = vshrl.u32 %v4746, 7
    %v4748 = vsub.s32 0, %v4747
    %v4749 = vrot.slane %v4745, %v4748
    %vm4750 = vcmp.gt.f32.partialorder %v4749, %v4661
    %vm4751 = vcmp.gt.f32.partialorder %v4749, %v4664
    %vm4752 = vcmp.eq.f32.partialorder %v4749, %v4661
    %vm4753 = vcmp.eq.f32.partialorder %v4749, %v4664
    %vm4754 = vmand %vm4752, %vm1744
    %vm4755 = vmand %vm4753, %vm1745
    %vm4756 = vmor %vm4750, %vm4754
    %vm4757 = vmor %vm4751, %vm4755
    %vm4758 = vmand %vm1734, %vm4756
    %vm4759 = vmand %vm1735, %vm4757
    %v4760 = vsel %vm4758, %v4246, 0.0
    %v4761 = vsel %vm4759, %v4246, 0.0
    %v4762 = vsel %vm392, %v4760, 0.0
    %4763 = vadd.xlane.f32.xlu0 %v4762
    %v4764 = vpop.xlane.xlu0 %4763
    %v4765 = vsel %vm392, %v4761, 0.0
    %4766 = vadd.xlane.f32.xlu0 %v4765
    %v4767 = vpop.xlane.xlu0 %4766
    %vm4768 = vcmp.lt.f32.partialorder %v4764, 2.0
    %vm4769 = vcmp.lt.f32.partialorder %v4767, 2.0
    %v4770 = vsel %vm4768, 1.0, 0.0
    %v4771 = vsel %vm4769, 1.0, 0.0
    %v4772 = vmul.f32 %v3267, %v4770
    %v4773 = vmul.f32 %v3268, %v4771
    %v4774 = vtanh.pop %v4667
    %v4775 = vtanh.pop %v4668
    %v4776 = vmul.f32 %v4560, %v4774
    %v4777 = vmul.f32 %v4561, %v4775
    %v4778 = vmul.f32 %v4776, %v4772
    %v4779 = vmul.f32 %v4777, %v4773
    %v4781 = vsel %vm198, %v4772, 0
    %v4784 = vsel %vm198, %v4773, 0
    %4786 = vmatprep.subr.mxu0 0.0
    %4787 = vmatpush1.xpose.msra.mxu0 0.0
    %4788 = vmatprep.subr.mxu0 0.0
    %4789 = vmatpush1.xpose.msra.mxu0 0.0
    %4790 = vmatprep.subr.mxu0 0.0
    %4791 = vmatpush1.xpose.msra.mxu0 0.0
    %4792 = vmatprep.subr.mxu0 0.0
    %4793 = vmatpush1.xpose.msra.mxu0 0.0
    %4794 = vmatprep.subr.mxu0 0.0
    %4795 = vmatpush1.xpose.msra.mxu0 0.0
    %4796 = vmatprep.subr.mxu0 0.0
    %4797 = vmatpush1.xpose.msra.mxu0 0.0
    %4798 = vmatprep.subr.mxu0 0.0
    %4799 = vmatpush1.xpose.msra.mxu0 0.0
    %4800 = vmatprep.subr.mxu0 0.0
    %4801 = vmatpush1.xpose.msra.mxu0 0.0
    %4802 = vmatprep.subr.mxu0 0.0
    %4803 = vmatpush1.xpose.msra.mxu0 0.0
    %4804 = vmatprep.subr.mxu0 0.0
    %4805 = vmatpush1.xpose.msra.mxu0 0.0
    %4806 = vmatprep.subr.mxu0 0.0
    %4807 = vmatpush1.xpose.msra.mxu0 0.0
    %4808 = vmatprep.subr.mxu0 0.0
    %4809 = vmatpush1.xpose.msra.mxu0 0.0
    %4810 = vmatprep.subr.mxu0 0.0
    %4811 = vmatpush1.xpose.msra.mxu0 0.0
    %4812 = vmatprep.subr.mxu0 0.0
    %4813 = vmatpush1.xpose.msra.mxu0 0.0
    %4814 = vmatprep.subr.mxu0 0.0
    %4815 = vmatpush1.xpose.msra.mxu0 %v4784
    %4816 = vmatprep.subr.mxu0 0.0
    %4817 = vmatpush1.xpose.msra.mxu0 %v4781
    %4818 = vmatprep.subr.mxu0 0.0
    %4819 = vmatpush2.xpose.msra.mxu0 0.0
    %4820 = vmatprep.subr.mxu0 0.0
    %4821 = vmatpush2.xpose.msra.mxu0 0.0
    %4822 = vmatprep.subr.mxu0 0.0
    %4823 = vmatpush2.xpose.msra.mxu0 0.0
    %4824 = vmatprep.subr.mxu0 0.0
    %4825 = vmatpush2.xpose.msra.mxu0 0.0
    %4826 = vmatprep.subr.mxu0 0.0
    %4827 = vmatpush2.xpose.msra.mxu0 0.0
    %4828 = vmatprep.subr.mxu0 0.0
    %4829 = vmatpush2.xpose.msra.mxu0 0.0
    %4830 = vmatprep.subr.mxu0 0.0
    %4831 = vmatpush2.xpose.msra.mxu0 0.0
    %4832 = vmatprep.subr.mxu0 0.0
    %4833 = vmatpush2.xpose.msra.mxu0 0.0
    %4834 = vmatprep.subr.mxu0 0.0
    %4835 = vmatpush2.xpose.msra.mxu0 0.0
    %4836 = vmatprep.subr.mxu0 0.0
    %4837 = vmatpush2.xpose.msra.mxu0 0.0
    %4838 = vmatprep.subr.mxu0 0.0
    %4839 = vmatpush2.xpose.msra.mxu0 0.0
    %4840 = vmatprep.subr.mxu0 0.0
    %4841 = vmatpush2.xpose.msra.mxu0 0.0
    %4842 = vmatprep.subr.mxu0 0.0
    %4843 = vmatpush2.xpose.msra.mxu0 0.0
    %4844 = vmatprep.subr.mxu0 0.0
    %4845 = vmatpush2.xpose.msra.mxu0 0.0
    %4846 = vmatprep.subr.mxu0 0.0
    %4847 = vmatpush2.xpose.msra.mxu0 0.0
    %4848 = vmatprep.subr.mxu0 0.0
    %4849 = vmatpush2.xpose.msra.mxu0 0.0
    %4850 = vmatprep.mubr.f32.mxu0 0.0
    %4851 = vmatmul.mubr.f32.gmra.mxu0 %v200
    %v4852 = vpop.f32.mrf.mxu0
    %v4853 = vadd.f32 0.0, %v4852
    %v4854 = vpop.f32.mrf.mxu0
    %4855 = vdwg.mxu0
    %vm4856 = vcmp.gt.f32.partialorder %v4853, 16.0
    %v4857 = vsel %vm4856, 1.0, 0.0
    %v4858 = vmul.f32 %v190, %v4772
    %v4859 = vmul.f32 %v191, %v4773
    %v4860 = vlaneseq
    %v4861 = vshrl.u32 %v4860, 7
    %v4862 = vsub.s32 0, %v4861
    %v4863 = vrot.slane %v4857, %v4862
    %v4864 = vmul.f32 %v4858, %v4863
    %v4865 = vmul.f32 %v4859, %v4863
    %v4866 = vsel %vm392, %v4864, 0.0
    %4867 = vadd.xlane.f32.xlu0 %v4866
    %v4868 = vpop.xlane.xlu0 %4867
    %v4869 = vsel %vm392, %v4865, 0.0
    %4870 = vadd.xlane.f32.xlu0 %v4869
    %v4871 = vpop.xlane.xlu0 %4870
    %v4872 = vadd.f32 %v4868, 1.0
    %v4873 = vadd.f32 %v4871, 1.0
    %v4874 = vrsqrt.pop %v4872
    %v4875 = vrsqrt.pop %v4873
    %s4876 = scalar_lea.vmem %s17, 96
    %v4877 = vld [vmem:[%s4876] sm:$0xff]
    %v4878 = vld [vmem:[%s4876 + $0x8] sm:$0xff]
    %v4879 = vld [vmem:[%s4876 + $0x10] sm:$0xff]
    %v4880 = vld [vmem:[%s4876 + $0x18] sm:$0xff]
    %v4882 = vsel %vm198, %v4778, 0
    %v4885 = vsel %vm198, %v4779, 0
    %4887 = vmatprep.subr.mxu0 0.0
    %4888 = vmatpush1.msra.mxu0 0.0
    %4889 = vmatprep.subr.mxu0 0.0
    %4890 = vmatpush1.msra.mxu0 0.0
    %4891 = vmatprep.subr.mxu0 0.0
    %4892 = vmatpush1.msra.mxu0 0.0
    %4893 = vmatprep.subr.mxu0 0.0
    %4894 = vmatpush1.msra.mxu0 0.0
    %4895 = vmatprep.subr.mxu0 0.0
    %4896 = vmatpush1.msra.mxu0 0.0
    %4897 = vmatprep.subr.mxu0 0.0
    %4898 = vmatpush1.msra.mxu0 0.0
    %4899 = vmatprep.subr.mxu0 0.0
    %4900 = vmatpush1.msra.mxu0 0.0
    %4901 = vmatprep.subr.mxu0 0.0
    %4902 = vmatpush1.msra.mxu0 0.0
    %4903 = vmatprep.subr.mxu0 0.0
    %4904 = vmatpush1.msra.mxu0 0.0
    %4905 = vmatprep.subr.mxu0 0.0
    %4906 = vmatpush1.msra.mxu0 0.0
    %4907 = vmatprep.subr.mxu0 0.0
    %4908 = vmatpush1.msra.mxu0 0.0
    %4909 = vmatprep.subr.mxu0 0.0
    %4910 = vmatpush1.msra.mxu0 0.0
    %4911 = vmatprep.subr.mxu0 0.0
    %4912 = vmatpush1.msra.mxu0 %v4880
    %4913 = vmatprep.subr.mxu0 0.0
    %4914 = vmatpush1.msra.mxu0 %v4879
    %4915 = vmatprep.subr.mxu0 0.0
    %4916 = vmatpush1.msra.mxu0 %v4878
    %4917 = vmatprep.subr.mxu0 0.0
    %4918 = vmatpush1.msra.mxu0 %v4877
    %4919 = vmatprep.subr.mxu0 0.0
    %4920 = vmatpush2.msra.mxu0 0.0
    %4921 = vmatprep.subr.mxu0 0.0
    %4922 = vmatpush2.msra.mxu0 0.0
    %4923 = vmatprep.subr.mxu0 0.0
    %4924 = vmatpush2.msra.mxu0 0.0
    %4925 = vmatprep.subr.mxu0 0.0
    %4926 = vmatpush2.msra.mxu0 0.0
    %4927 = vmatprep.subr.mxu0 0.0
    %4928 = vmatpush2.msra.mxu0 0.0
    %4929 = vmatprep.subr.mxu0 0.0
    %4930 = vmatpush2.msra.mxu0 0.0
    %4931 = vmatprep.subr.mxu0 0.0
    %4932 = vmatpush2.msra.mxu0 0.0
    %4933 = vmatprep.subr.mxu0 0.0
    %4934 = vmatpush2.msra.mxu0 0.0
    %4935 = vmatprep.subr.mxu0 0.0
    %4936 = vmatpush2.msra.mxu0 0.0
    %4937 = vmatprep.subr.mxu0 0.0
    %4938 = vmatpush2.msra.mxu0 0.0
    %4939 = vmatprep.subr.mxu0 0.0
    %4940 = vmatpush2.msra.mxu0 0.0
    %4941 = vmatprep.subr.mxu0 0.0
    %4942 = vmatpush2.msra.mxu0 0.0
    %4943 = vmatprep.subr.mxu0 0.0
    %4944 = vmatpush2.msra.mxu0 0.0
    %4945 = vmatprep.subr.mxu0 0.0
    %4946 = vmatpush2.msra.mxu0 0.0
    %4947 = vmatprep.subr.mxu0 0.0
    %4948 = vmatpush2.msra.mxu0 0.0
    %4949 = vmatprep.subr.mxu0 0.0
    %4950 = vmatpush2.msra.mxu0 0.0
    %4951 = vmatprep.mubr.f32.mxu0 0.0
    %4952 = vmatmul.mubr.f32.gmra.mxu0 %v4882
    %v4953 = vpop.f32.mrf.mxu0
    %v4954 = vadd.f32 0.0, %v4953
    %v4955 = vpop.f32.mrf.mxu0
    %4956 = vmatprep.mubr.f32.mxu0 0.0
    %4957 = vmatmul.mubr.f32.gmra.mxu0 %v4885
    %v4958 = vpop.f32.mrf.mxu0
    %v4959 = vadd.f32 0.0, %v4958
    %v4960 = vpop.f32.mrf.mxu0
    %4961 = vdwg.mxu0
    %v4962 = vmul.f32 %v4874, %v4954
    %v4963 = vmul.f32 %v4875, %v4959
    %v4965 = vsel %vm392, %v4864, 0
    %v4968 = vsel %vm392, %v4865, 0
    %4970 = vmatprep.subr.mxu0 0.0
    %4971 = vmatpush1.msra.mxu0 0.0
    %4972 = vmatprep.subr.mxu0 0.0
    %4973 = vmatpush1.msra.mxu0 0.0
    %4974 = vmatprep.subr.mxu0 0.0
    %4975 = vmatpush1.msra.mxu0 0.0
    %4976 = vmatprep.subr.mxu0 0.0
    %4977 = vmatpush1.msra.mxu0 0.0
    %4978 = vmatprep.subr.mxu0 0.0
    %4979 = vmatpush1.msra.mxu0 0.0
    %4980 = vmatprep.subr.mxu0 0.0
    %4981 = vmatpush1.msra.mxu0 0.0
    %4982 = vmatprep.subr.mxu0 0.0
    %4983 = vmatpush1.msra.mxu0 0.0
    %4984 = vmatprep.subr.mxu0 0.0
    %4985 = vmatpush1.msra.mxu0 0.0
    %4986 = vmatprep.subr.mxu0 0.0
    %4987 = vmatpush1.msra.mxu0 0.0
    %4988 = vmatprep.subr.mxu0 0.0
    %4989 = vmatpush1.msra.mxu0 0.0
    %4990 = vmatprep.subr.mxu0 0.0
    %4991 = vmatpush1.msra.mxu0 0.0
    %4992 = vmatprep.subr.mxu0 0.0
    %4993 = vmatpush1.msra.mxu0 0.0
    %4994 = vmatprep.subr.mxu0 0.0
    %4995 = vmatpush1.msra.mxu0 0.0
    %4996 = vmatprep.subr.mxu0 0.0
    %4997 = vmatpush1.msra.mxu0 0.0
    %4998 = vmatprep.subr.mxu0 0.0
    %4999 = vmatpush1.msra.mxu0 %v4963
    %5000 = vmatprep.subr.mxu0 0.0
    %5001 = vmatpush1.msra.mxu0 %v4962
    %5002 = vmatprep.subr.mxu0 0.0
    %5003 = vmatpush2.msra.mxu0 0.0
    %5004 = vmatprep.subr.mxu0 0.0
    %5005 = vmatpush2.msra.mxu0 0.0
    %5006 = vmatprep.subr.mxu0 0.0
    %5007 = vmatpush2.msra.mxu0 0.0
    %5008 = vmatprep.subr.mxu0 0.0
    %5009 = vmatpush2.msra.mxu0 0.0
    %5010 = vmatprep.subr.mxu0 0.0
    %5011 = vmatpush2.msra.mxu0 0.0
    %5012 = vmatprep.subr.mxu0 0.0
    %5013 = vmatpush2.msra.mxu0 0.0
    %5014 = vmatprep.subr.mxu0 0.0
    %5015 = vmatpush2.msra.mxu0 0.0
    %5016 = vmatprep.subr.mxu0 0.0
    %5017 = vmatpush2.msra.mxu0 0.0
    %5018 = vmatprep.subr.mxu0 0.0
    %5019 = vmatpush2.msra.mxu0 0.0
    %5020 = vmatprep.subr.mxu0 0.0
    %5021 = vmatpush2.msra.mxu0 0.0
    %5022 = vmatprep.subr.mxu0 0.0
    %5023 = vmatpush2.msra.mxu0 0.0
    %5024 = vmatprep.subr.mxu0 0.0
    %5025 = vmatpush2.msra.mxu0 0.0
    %5026 = vmatprep.subr.mxu0 0.0
    %5027 = vmatpush2.msra.mxu0 0.0
    %5028 = vmatprep.subr.mxu0 0.0
    %5029 = vmatpush2.msra.mxu0 0.0
    %5030 = vmatprep.subr.mxu0 0.0
    %5031 = vmatpush2.msra.mxu0 0.0
    %5032 = vmatprep.subr.mxu0 0.0
    %5033 = vmatpush2.msra.mxu0 0.0
    %5034 = vmatprep.mubr.f32.mxu0 0.0
    %5035 = vmatmul.mubr.f32.gmra.mxu0 %v4965
    %v5036 = vpop.f32.mrf.mxu0
    %v5037 = vadd.f32 0.0, %v5036
    %v5038 = vpop.f32.mrf.mxu0
    %5039 = vmatprep.mubr.f32.mxu0 0.0
    %5040 = vmatmul.mubr.f32.gmra.mxu0 %v4968
    %v5041 = vpop.f32.mrf.mxu0
    %v5042 = vadd.f32 0.0, %v5041
    %v5043 = vpop.f32.mrf.mxu0
    %5044 = vdwg.mxu0
    %v5045 = vmul.f32 %v4874, %v5037
    %v5046 = vmul.f32 %v4875, %v5042
    %v5047 = vmul.f32 %v4874, %v4874
    %v5048 = vmul.f32 %v4875, %v4875
    %v5049 = vmul.f32 %v5047, %v4954
    %v5050 = vmul.f32 %v5048, %v4959
    %v5051 = vadd.f32 %v5045, %v5049
    %v5052 = vadd.f32 %v5046, %v5050
    %s5053 = scalar_lea.vmem %s18, 3
    %v5054 = vld [vmem:[%s5053] sm:$0x1]
    %v5056 = vlaneseq
    %v5057 = vshrl.u32 %v5056, 7
    %v5058 = vsub.s32 0, %v5057
    %v5059 = vrot.slane %v5054, %v5058
    %v5061 = vadd.f32 %v5051, %v5059
    %v5062 = vadd.f32 %v5052, %v5059
    %s5063 = scalar_lea.vmem %s19, 96
    %v5064 = vld [vmem:[%s5063] sm:$0xff]
    %v5065 = vld [vmem:[%s5063 + $0x8] sm:$0xff]
    %v5066 = vld [vmem:[%s5063 + $0x10] sm:$0xff]
    %v5067 = vld [vmem:[%s5063 + $0x18] sm:$0xff]
    %s5068 = scalar_lea.vmem %s20, 3
    %v5069 = vld [vmem:[%s5068] sm:$0x1]
    %v5071 = vlaneseq
    %v5072 = vshrl.u32 %v5071, 7
    %v5073 = vsub.s32 0, %v5072
    %v5074 = vrot.slane %v5069, %v5073
    %v5077 = vsel %vm198, %v5061, 0
    %v5080 = vsel %vm198, %v5062, 0
    %5082 = vmatprep.subr.mxu0 0.0
    %5083 = vmatpush1.msra.mxu0 0.0
    %5084 = vmatprep.subr.mxu0 0.0
    %5085 = vmatpush1.msra.mxu0 0.0
    %5086 = vmatprep.subr.mxu0 0.0
    %5087 = vmatpush1.msra.mxu0 0.0
    %5088 = vmatprep.subr.mxu0 0.0
    %5089 = vmatpush1.msra.mxu0 0.0
    %5090 = vmatprep.subr.mxu0 0.0
    %5091 = vmatpush1.msra.mxu0 0.0
    %5092 = vmatprep.subr.mxu0 0.0
    %5093 = vmatpush1.msra.mxu0 0.0
    %5094 = vmatprep.subr.mxu0 0.0
    %5095 = vmatpush1.msra.mxu0 0.0
    %5096 = vmatprep.subr.mxu0 0.0
    %5097 = vmatpush1.msra.mxu0 0.0
    %5098 = vmatprep.subr.mxu0 0.0
    %5099 = vmatpush1.msra.mxu0 0.0
    %5100 = vmatprep.subr.mxu0 0.0
    %5101 = vmatpush1.msra.mxu0 0.0
    %5102 = vmatprep.subr.mxu0 0.0
    %5103 = vmatpush1.msra.mxu0 0.0
    %5104 = vmatprep.subr.mxu0 0.0
    %5105 = vmatpush1.msra.mxu0 0.0
    %5106 = vmatprep.subr.mxu0 0.0
    %5107 = vmatpush1.msra.mxu0 %v5067
    %5108 = vmatprep.subr.mxu0 0.0
    %5109 = vmatpush1.msra.mxu0 %v5066
    %5110 = vmatprep.subr.mxu0 0.0
    %5111 = vmatpush1.msra.mxu0 %v5065
    %5112 = vmatprep.subr.mxu0 0.0
    %5113 = vmatpush1.msra.mxu0 %v5064
    %5114 = vmatprep.subr.mxu0 0.0
    %5115 = vmatpush2.msra.mxu0 0.0
    %5116 = vmatprep.subr.mxu0 0.0
    %5117 = vmatpush2.msra.mxu0 0.0
    %5118 = vmatprep.subr.mxu0 0.0
    %5119 = vmatpush2.msra.mxu0 0.0
    %5120 = vmatprep.subr.mxu0 0.0
    %5121 = vmatpush2.msra.mxu0 0.0
    %5122 = vmatprep.subr.mxu0 0.0
    %5123 = vmatpush2.msra.mxu0 0.0
    %5124 = vmatprep.subr.mxu0 0.0
    %5125 = vmatpush2.msra.mxu0 0.0
    %5126 = vmatprep.subr.mxu0 0.0
    %5127 = vmatpush2.msra.mxu0 0.0
    %5128 = vmatprep.subr.mxu0 0.0
    %5129 = vmatpush2.msra.mxu0 0.0
    %5130 = vmatprep.subr.mxu0 0.0
    %5131 = vmatpush2.msra.mxu0 0.0
    %5132 = vmatprep.subr.mxu0 0.0
    %5133 = vmatpush2.msra.mxu0 0.0
    %5134 = vmatprep.subr.mxu0 0.0
    %5135 = vmatpush2.msra.mxu0 0.0
    %5136 = vmatprep.subr.mxu0 0.0
    %5137 = vmatpush2.msra.mxu0 0.0
    %5138 = vmatprep.subr.mxu0 0.0
    %5139 = vmatpush2.msra.mxu0 0.0
    %5140 = vmatprep.subr.mxu0 0.0
    %5141 = vmatpush2.msra.mxu0 0.0
    %5142 = vmatprep.subr.mxu0 0.0
    %5143 = vmatpush2.msra.mxu0 0.0
    %5144 = vmatprep.subr.mxu0 0.0
    %5145 = vmatpush2.msra.mxu0 0.0
    %5146 = vmatprep.mubr.f32.mxu0 0.0
    %5147 = vmatmul.mubr.f32.gmra.mxu0 %v5077
    %v5148 = vpop.f32.mrf.mxu0
    %v5149 = vadd.f32 %v5074, %v5148
    %v5150 = vpop.f32.mrf.mxu0
    %5151 = vmatprep.mubr.f32.mxu0 0.0
    %5152 = vmatmul.mubr.f32.gmra.mxu0 %v5080
    %v5153 = vpop.f32.mrf.mxu0
    %v5154 = vadd.f32 %v5074, %v5153
    %v5155 = vpop.f32.mrf.mxu0
    %5156 = vdwg.mxu0
    %v5157 = vmax.f32 %v5149, 0.0
    %v5158 = vmax.f32 %v5154, 0.0
    %s5159 = scalar_lea.vmem %s21, 3
    %v5160 = vld [vmem:[%s5159] sm:$0x1]
    %v5162 = vlaneseq
    %v5163 = vshrl.u32 %v5162, 7
    %v5164 = vsub.s32 0, %v5163
    %v5165 = vrot.slane %v5160, %v5164
    %v5167 = vmul.f32 %v5157, %v5165
    %v5168 = vmul.f32 %v5158, %v5165
    %s5169 = scalar_lea.vmem %s22, 3
    %v5170 = vld [vmem:[%s5169] sm:$0x1]
    %v5172 = vlaneseq
    %v5173 = vshrl.u32 %v5172, 7
    %v5174 = vsub.s32 0, %v5173
    %v5175 = vrot.slane %v5170, %v5174
    %v5177 = vadd.f32 %v5167, %v5175
    %v5178 = vadd.f32 %v5168, %v5175
    %5179 = vmatprep.subr.mxu0 0.0
    %5180 = vmatpush1.msra.mxu0 0.0
    %5181 = vmatprep.subr.mxu0 0.0
    %5182 = vmatpush1.msra.mxu0 0.0
    %5183 = vmatprep.subr.mxu0 0.0
    %5184 = vmatpush1.msra.mxu0 0.0
    %5185 = vmatprep.subr.mxu0 0.0
    %5186 = vmatpush1.msra.mxu0 0.0
    %5187 = vmatprep.subr.mxu0 0.0
    %5188 = vmatpush1.msra.mxu0 0.0
    %5189 = vmatprep.subr.mxu0 0.0
    %5190 = vmatpush1.msra.mxu0 0.0
    %5191 = vmatprep.subr.mxu0 0.0
    %5192 = vmatpush1.msra.mxu0 0.0
    %5193 = vmatprep.subr.mxu0 0.0
    %5194 = vmatpush1.msra.mxu0 0.0
    %5195 = vmatprep.subr.mxu0 0.0
    %5196 = vmatpush1.msra.mxu0 0.0
    %5197 = vmatprep.subr.mxu0 0.0
    %5198 = vmatpush1.msra.mxu0 0.0
    %5199 = vmatprep.subr.mxu0 0.0
    %5200 = vmatpush1.msra.mxu0 0.0
    %5201 = vmatprep.subr.mxu0 0.0
    %5202 = vmatpush1.msra.mxu0 0.0
    %5203 = vmatprep.subr.mxu0 0.0
    %5204 = vmatpush1.msra.mxu0 0.0
    %5205 = vmatprep.subr.mxu0 0.0
    %5206 = vmatpush1.msra.mxu0 0.0
    %5207 = vmatprep.subr.mxu0 0.0
    %5208 = vmatpush1.msra.mxu0 %v5178
    %5209 = vmatprep.subr.mxu0 0.0
    %5210 = vmatpush1.msra.mxu0 %v5177
    %5211 = vmatprep.subr.mxu0 0.0
    %5212 = vmatpush2.msra.mxu0 0.0
    %5213 = vmatprep.subr.mxu0 0.0
    %5214 = vmatpush2.msra.mxu0 0.0
    %5215 = vmatprep.subr.mxu0 0.0
    %5216 = vmatpush2.msra.mxu0 0.0
    %5217 = vmatprep.subr.mxu0 0.0
    %5218 = vmatpush2.msra.mxu0 0.0
    %5219 = vmatprep.subr.mxu0 0.0
    %5220 = vmatpush2.msra.mxu0 0.0
    %5221 = vmatprep.subr.mxu0 0.0
    %5222 = vmatpush2.msra.mxu0 0.0
    %5223 = vmatprep.subr.mxu0 0.0
    %5224 = vmatpush2.msra.mxu0 0.0
    %5225 = vmatprep.subr.mxu0 0.0
    %5226 = vmatpush2.msra.mxu0 0.0
    %5227 = vmatprep.subr.mxu0 0.0
    %5228 = vmatpush2.msra.mxu0 0.0
    %5229 = vmatprep.subr.mxu0 0.0
    %5230 = vmatpush2.msra.mxu0 0.0
    %5231 = vmatprep.subr.mxu0 0.0
    %5232 = vmatpush2.msra.mxu0 0.0
    %5233 = vmatprep.subr.mxu0 0.0
    %5234 = vmatpush2.msra.mxu0 0.0
    %5235 = vmatprep.subr.mxu0 0.0
    %5236 = vmatpush2.msra.mxu0 0.0
    %5237 = vmatprep.subr.mxu0 0.0
    %5238 = vmatpush2.msra.mxu0 0.0
    %5239 = vmatprep.subr.mxu0 0.0
    %5240 = vmatpush2.msra.mxu0 0.0
    %5241 = vmatprep.subr.mxu0 0.0
    %5242 = vmatpush2.msra.mxu0 0.0
    %5243 = vmatprep.mubr.f32.mxu0 0.0
    %5244 = vmatmul.mubr.f32.gmra.mxu0 %v4965
    %v5245 = vpop.f32.mrf.mxu0
    %v5246 = vadd.f32 0.0, %v5245
    %v5247 = vpop.f32.mrf.mxu0
    %5248 = vmatprep.mubr.f32.mxu0 0.0
    %5249 = vmatmul.mubr.f32.gmra.mxu0 %v4968
    %v5250 = vpop.f32.mrf.mxu0
    %v5251 = vadd.f32 0.0, %v5250
    %v5252 = vpop.f32.mrf.mxu0
    %5253 = vdwg.mxu0
    %s5254 = scalar_lea.vmem %s23, 3
    %v5255 = vld [vmem:[%s5254] sm:$0x1]
    %v5257 = vlaneseq
    %v5258 = vshrl.u32 %v5257, 7
    %v5259 = vsub.s32 0, %v5258
    %v5260 = vrot.slane %v5255, %v5259
    %v5262 = vmul.f32 %v5246, %v5260
    %v5263 = vmul.f32 %v5251, %v5260
    %s5264 = scalar_lea.vmem %s24, 3
    %v5265 = vld [vmem:[%s5264] sm:$0x1]
    %v5267 = vlaneseq
    %v5268 = vshrl.u32 %v5267, 7
    %v5269 = vsub.s32 0, %v5268
    %v5270 = vrot.slane %v5265, %v5269
    %v5272 = vmul.f32 %v5177, %v5270
    %v5273 = vmul.f32 %v5178, %v5270
    %v5274 = vadd.f32 %v5262, %v5272
    %v5275 = vadd.f32 %v5263, %v5273
    %v5276 = vsel %vm198, %v5274, 0.0
    %5277 = vadd.xlane.f32.xlu0 %v5276
    %v5278 = vpop.xlane.xlu0 %5277
    %v5279 = vsel %vm198, %v5275, 0.0
    %5280 = vadd.xlane.f32.xlu0 %v5279
    %v5281 = vpop.xlane.xlu0 %5280
    %s5282 = sld [smem:[#allocation3 + $0x3]]
    %v5283 = vstv %s5282
    %v5284 = vadd.f32 %v5278, %v5283
    %v5285 = vadd.f32 %v5281, %v5283
    %v5287 = vsel %vm198, %v5278, 0
    %v5290 = vsel %vm198, %v5281, 0
    %5292 = vmatprep.subr.mxu0 0.0
    %5293 = vmatpush1.xpose.msra.mxu0 0.0
    %5294 = vmatprep.subr.mxu0 0.0
    %5295 = vmatpush1.xpose.msra.mxu0 0.0
    %5296 = vmatprep.subr.mxu0 0.0
    %5297 = vmatpush1.xpose.msra.mxu0 0.0
    %5298 = vmatprep.subr.mxu0 0.0
    %5299 = vmatpush1.xpose.msra.mxu0 0.0
    %5300 = vmatprep.subr.mxu0 0.0
    %5301 = vmatpush1.xpose.msra.mxu0 0.0
    %5302 = vmatprep.subr.mxu0 0.0
    %5303 = vmatpush1.xpose.msra.mxu0 0.0
    %5304 = vmatprep.subr.mxu0 0.0
    %5305 = vmatpush1.xpose.msra.mxu0 0.0
    %5306 = vmatprep.subr.mxu0 0.0
    %5307 = vmatpush1.xpose.msra.mxu0 0.0
    %5308 = vmatprep.subr.mxu0 0.0
    %5309 = vmatpush1.xpose.msra.mxu0 0.0
    %5310 = vmatprep.subr.mxu0 0.0
    %5311 = vmatpush1.xpose.msra.mxu0 0.0
    %5312 = vmatprep.subr.mxu0 0.0
    %5313 = vmatpush1.xpose.msra.mxu0 0.0
    %5314 = vmatprep.subr.mxu0 0.0
    %5315 = vmatpush1.xpose.msra.mxu0 0.0
    %5316 = vmatprep.subr.mxu0 0.0
    %5317 = vmatpush1.xpose.msra.mxu0 0.0
    %5318 = vmatprep.subr.mxu0 0.0
    %5319 = vmatpush1.xpose.msra.mxu0 0.0
    %5320 = vmatprep.subr.mxu0 0.0
    %5321 = vmatpush1.xpose.msra.mxu0 %v5290
    %5322 = vmatprep.subr.mxu0 0.0
    %5323 = vmatpush1.xpose.msra.mxu0 %v5287
    %5324 = vmatprep.subr.mxu0 0.0
    %5325 = vmatpush2.xpose.msra.mxu0 0.0
    %5326 = vmatprep.subr.mxu0 0.0
    %5327 = vmatpush2.xpose.msra.mxu0 0.0
    %5328 = vmatprep.subr.mxu0 0.0
    %5329 = vmatpush2.xpose.msra.mxu0 0.0
    %5330 = vmatprep.subr.mxu0 0.0
    %5331 = vmatpush2.xpose.msra.mxu0 0.0
    %5332 = vmatprep.subr.mxu0 0.0
    %5333 = vmatpush2.xpose.msra.mxu0 0.0
    %5334 = vmatprep.subr.mxu0 0.0
    %5335 = vmatpush2.xpose.msra.mxu0 0.0
    %5336 = vmatprep.subr.mxu0 0.0
    %5337 = vmatpush2.xpose.msra.mxu0 0.0
    %5338 = vmatprep.subr.mxu0 0.0
    %5339 = vmatpush2.xpose.msra.mxu0 0.0
    %5340 = vmatprep.subr.mxu0 0.0
    %5341 = vmatpush2.xpose.msra.mxu0 0.0
    %5342 = vmatprep.subr.mxu0 0.0
    %5343 = vmatpush2.xpose.msra.mxu0 0.0
    %5344 = vmatprep.subr.mxu0 0.0
    %5345 = vmatpush2.xpose.msra.mxu0 0.0
    %5346 = vmatprep.subr.mxu0 0.0
    %5347 = vmatpush2.xpose.msra.mxu0 0.0
    %5348 = vmatprep.subr.mxu0 0.0
    %5349 = vmatpush2.xpose.msra.mxu0 0.0
    %5350 = vmatprep.subr.mxu0 0.0
    %5351 = vmatpush2.xpose.msra.mxu0 0.0
    %5352 = vmatprep.subr.mxu0 0.0
    %5353 = vmatpush2.xpose.msra.mxu0 0.0
    %5354 = vmatprep.subr.mxu0 0.0
    %5355 = vmatpush2.xpose.msra.mxu0 0.0
    %5356 = vmatprep.mubr.f32.mxu0 0.0
    %5357 = vmatmul.mubr.f32.gmra.mxu0 %v200
    %v5358 = vpop.f32.mrf.mxu0
    %v5359 = vadd.f32 0.0, %v5358
    %v5360 = vpop.f32.mrf.mxu0
    %5361 = vdwg.mxu0
    %v5362 = vmul.f32 %v5359, 0.03125
    %v5363 = vlaneseq
    %v5364 = vshrl.u32 %v5363, 7
    %v5365 = vsub.s32 0, %v5364
    %v5366 = vrot.slane %v5362, %v5365
    %vm5367 = vcmp.gt.f32.partialorder %v5366, %v5278
    %vm5368 = vcmp.gt.f32.partialorder %v5366, %v5281
    %vm5369 = vcmp.eq.f32.partialorder %v5366, %v5278
    %vm5370 = vcmp.eq.f32.partialorder %v5366, %v5281
    %vm5371 = vmand %vm5369, %vm1744
    %vm5372 = vmand %vm5370, %vm1745
    %vm5373 = vmor %vm5367, %vm5371
    %vm5374 = vmor %vm5368, %vm5372
    %vm5375 = vmand %vm1734, %vm5373
    %vm5376 = vmand %vm1735, %vm5374
    %v5377 = vsel %vm5375, %v4863, 0.0
    %v5378 = vsel %vm5376, %v4863, 0.0
    %v5379 = vsel %vm392, %v5377, 0.0
    %5380 = vadd.xlane.f32.xlu0 %v5379
    %v5381 = vpop.xlane.xlu0 %5380
    %v5382 = vsel %vm392, %v5378, 0.0
    %5383 = vadd.xlane.f32.xlu0 %v5382
    %v5384 = vpop.xlane.xlu0 %5383
    %vm5385 = vcmp.lt.f32.partialorder %v5381, 1.0
    %vm5386 = vcmp.lt.f32.partialorder %v5384, 1.0
    %v5387 = vsel %vm5385, 1.0, 0.0
    %v5388 = vsel %vm5386, 1.0, 0.0
    %v5389 = vmul.f32 %v4772, %v5387
    %v5390 = vmul.f32 %v4773, %v5388
    %v5391 = vtanh.pop %v5284
    %v5392 = vtanh.pop %v5285
    %v5393 = vmul.f32 %v5177, %v5391
    %v5394 = vmul.f32 %v5178, %v5392
    %v5395 = vmul.f32 %v5393, %v5389
    %v5396 = vmul.f32 %v5394, %v5390
    %v5397 = vsel %vm392, 1.0, 0
    %5399 = vmatprep.subr.mxu0 0.0
    %5400 = vmatpush1.msra.mxu0 0.0
    %5401 = vmatprep.subr.mxu0 0.0
    %5402 = vmatpush1.msra.mxu0 0.0
    %5403 = vmatprep.subr.mxu0 0.0
    %5404 = vmatpush1.msra.mxu0 0.0
    %5405 = vmatprep.subr.mxu0 0.0
    %5406 = vmatpush1.msra.mxu0 0.0
    %5407 = vmatprep.subr.mxu0 0.0
    %5408 = vmatpush1.msra.mxu0 0.0
    %5409 = vmatprep.subr.mxu0 0.0
    %5410 = vmatpush1.msra.mxu0 0.0
    %5411 = vmatprep.subr.mxu0 0.0
    %5412 = vmatpush1.msra.mxu0 0.0
    %5413 = vmatprep.subr.mxu0 0.0
    %5414 = vmatpush1.msra.mxu0 0.0
    %5415 = vmatprep.subr.mxu0 0.0
    %5416 = vmatpush1.msra.mxu0 0.0
    %5417 = vmatprep.subr.mxu0 0.0
    %5418 = vmatpush1.msra.mxu0 0.0
    %5419 = vmatprep.subr.mxu0 0.0
    %5420 = vmatpush1.msra.mxu0 0.0
    %5421 = vmatprep.subr.mxu0 0.0
    %5422 = vmatpush1.msra.mxu0 0.0
    %5423 = vmatprep.subr.mxu0 0.0
    %5424 = vmatpush1.msra.mxu0 0.0
    %5425 = vmatprep.subr.mxu0 0.0
    %5426 = vmatpush1.msra.mxu0 0.0
    %5427 = vmatprep.subr.mxu0 0.0
    %5428 = vmatpush1.msra.mxu0 %v5396
    %5429 = vmatprep.subr.mxu0 0.0
    %5430 = vmatpush1.msra.mxu0 %v5395
    %5431 = vmatprep.subr.mxu0 0.0
    %5432 = vmatpush2.msra.mxu0 0.0
    %5433 = vmatprep.subr.mxu0 0.0
    %5434 = vmatpush2.msra.mxu0 0.0
    %5435 = vmatprep.subr.mxu0 0.0
    %5436 = vmatpush2.msra.mxu0 0.0
    %5437 = vmatprep.subr.mxu0 0.0
    %5438 = vmatpush2.msra.mxu0 0.0
    %5439 = vmatprep.subr.mxu0 0.0
    %5440 = vmatpush2.msra.mxu0 0.0
    %5441 = vmatprep.subr.mxu0 0.0
    %5442 = vmatpush2.msra.mxu0 0.0
    %5443 = vmatprep.subr.mxu0 0.0
    %5444 = vmatpush2.msra.mxu0 0.0
    %5445 = vmatprep.subr.mxu0 0.0
    %5446 = vmatpush2.msra.mxu0 0.0
    %5447 = vmatprep.subr.mxu0 0.0
    %5448 = vmatpush2.msra.mxu0 0.0
    %5449 = vmatprep.subr.mxu0 0.0
    %5450 = vmatpush2.msra.mxu0 0.0
    %5451 = vmatprep.subr.mxu0 0.0
    %5452 = vmatpush2.msra.mxu0 0.0
    %5453 = vmatprep.subr.mxu0 0.0
    %5454 = vmatpush2.msra.mxu0 0.0
    %5455 = vmatprep.subr.mxu0 0.0
    %5456 = vmatpush2.msra.mxu0 0.0
    %5457 = vmatprep.subr.mxu0 0.0
    %5458 = vmatpush2.msra.mxu0 0.0
    %5459 = vmatprep.subr.mxu0 0.0
    %5460 = vmatpush2.msra.mxu0 0.0
    %5461 = vmatprep.subr.mxu0 0.0
    %5462 = vmatpush2.msra.mxu0 0.0
    %5463 = vmatprep.mubr.f32.mxu0 0.0
    %5464 = vmatmul.mubr.f32.gmra.mxu0 %v5397
    %v5465 = vpop.f32.mrf.mxu0
    %v5466 = vadd.f32 0.0, %v5465
    %v5467 = vpop.f32.mrf.mxu0
    %5468 = vdwg.mxu0
    %vm5469 = vcmask 253952
    %5470 = vst.msk [vmem:[#allocation6] sm:$0x1] %vm5469, %v5466
    // Predicated region
    $region110: #{trans_gcn_forward.1} parent=1 // pred_check
      _
    $region111: #{trans_gcn_forward.1} parent=1 // pred_check_branch
      %5472 = sbr.rel (0) target = $region113
    $region112: #{trans_gcn_forward.1} parent=1 // pred_region
      %s5474 = ssub.s32 16, 16
      %5475 = vsyncadd [#allocation4], %s5474
      %s5477 = sshll.u32 [#allocation6], 4
      %s5478 = int_to_ptr.vmem [resolvable:$true] %s5477
      %5480 = dma.vmem_to_hbm [thread:$0]  %s5478, 16, %s26, [#allocation4]
    $region113: #{trans_gcn_forward.1} parent=1 // pred_fallthru
      _
    // Predicated region
    $region114: #{trans_gcn_forward.1} parent=1 // pred_check
      _
    $region115: #{trans_gcn_forward.1} parent=1 // pred_check_branch
      %5482 = sbr.rel (0) target = $region117
    $region116: #{trans_gcn_forward.1} parent=1 // pred_region
      %5483 = dma.done [#allocation4], 16
    $region117: #{trans_gcn_forward.1} parent=1 // pred_fallthru
      _
    %5484 = vsyncpa [#allocation4], 1
    %5485 = vsyncpa [#allocation5], 1

</llo_original>
